<compile_context>
chip_gen: v7x
topology: tpu7x:2x2x1
jax: 0.10.0
libtpu: 0.0.40
codegen_flags: <defaults>
</compile_context>

<pallas_src>
import jax
import jax.numpy as jnp
from jax import lax
from jax.experimental import pallas as pl
from jax.experimental.pallas import tpu as pltpu

XYDIM = 6
C_IN = 31 + XYDIM          # 37
C_MID = 64                 # num_filter; also the lane-padded input channel count
C_OUT = 31


# ----------------------------------------------------------------------------
# In-kernel 3x3 "same" convolution.
#   src_ref : (H+2, Wp, C_MID) f32 VMEM scratch; activation at [1:H+1, 1:W+1],
#             row 0, row H+1, col 0 and col W+1 are zero.
#   w_ref   : (3, 3*C_MID, Cout) bf16, tap-stacked:
#             w_ref[dy, dx*C_MID + c, o] == torch_weight[o, c, dy, dx]
#   b_ref   : (1, Cout) f32
# returns (H*W, Cout) f32 (conv + bias, no activation).
# ----------------------------------------------------------------------------
def _conv3x3(src_ref, w_ref, b_ref, H, W):
    cin = src_ref.shape[-1]
    cout = w_ref.shape[-1]
    # dx-shifted copies stacked on the channel (lane) axis -> big-K contraction.
    xcat = jnp.concatenate(
        [src_ref[:, dx:dx + W, :] for dx in range(3)], axis=-1)  # (H+2, W, 3*cin)
    xcat = xcat.astype(jnp.bfloat16)
    acc = jnp.zeros((H * W, cout), jnp.float32)
    for dy in range(3):
        # dy slice is on the (free) major axis; W % 8 == 0 keeps the reshape
        # layout-compatible.
        patch = xcat[dy:dy + H, :, :].reshape(H * W, 3 * cin)
        acc = acc + jnp.dot(patch, w_ref[dy],
                            preferred_element_type=jnp.float32)
    return acc + b_ref[...]


def _zero_border(buf, H, W):
    """Zero only the 1-pixel border actually read by the convs."""
    Wp = buf.shape[1]
    c = buf.shape[2]
    z_row = jnp.zeros((1, Wp, c), buf.dtype)
    z_col = jnp.zeros((H + 2, 1, c), buf.dtype)
    buf[0:1, :, :] = z_row
    buf[H + 1:H + 2, :, :] = z_row
    buf[:, 0:1, :] = z_col
    buf[:, W + 1:W + 2, :] = z_col


def _resblock_kernel(x_ref,
                     w1, b1, w2, b2, w3, b3, w4, b4, w5, b5,
                     o_ref,
                     pad_a, pad_b):
    H, W = o_ref.shape[1], o_ref.shape[2]

    # Interiors are fully overwritten every step, so only the zero border is
    # (re)written.  Done every step -> correct even if grid steps land on
    # different TensorCores (separate scratch per core).
    _zero_border(pad_a, H, W)
    _zero_border(pad_b, H, W)

    x = x_ref[0]                                          # (H, W, 64) f32
    pad_a[1:H + 1, 1:W + 1, :] = x

    y = jnp.maximum(_conv3x3(pad_a, w1, b1, H, W), 0.0)
    pad_b[1:H + 1, 1:W + 1, :] = y.reshape(H, W, C_MID)

    y = jnp.maximum(_conv3x3(pad_b, w2, b2, H, W), 0.0)
    pad_a[1:H + 1, 1:W + 1, :] = y.reshape(H, W, C_MID)

    y = jnp.maximum(_conv3x3(pad_a, w3, b3, H, W), 0.0)
    pad_b[1:H + 1, 1:W + 1, :] = y.reshape(H, W, C_MID)

    y = jnp.maximum(_conv3x3(pad_b, w4, b4, H, W), 0.0)
    pad_a[1:H + 1, 1:W + 1, :] = y.reshape(H, W, C_MID)

    y5 = _conv3x3(pad_a, w5, b5, H, W)                    # (H*W, 31) f32, no relu
    o_ref[0] = x[:, :, 0:C_OUT] + y5.reshape(H, W, C_OUT)


# ----------------------------------------------------------------------------
# Parameter setup (plain JAX glue)
# ----------------------------------------------------------------------------
def _spectral_normalize(w):
    """Divide conv weight (Cout, Cin, kh, kw) by its largest singular value
    (power iteration), mimicking torch.nn.utils.spectral_norm at convergence."""
    m = w.reshape(w.shape[0], -1)
    v = jnp.ones((m.shape[1],), w.dtype) / jnp.sqrt(float(m.shape[1]))
    for _ in range(30):
        u = m @ v
        u = u / (jnp.linalg.norm(u) + 1e-12)
        v = m.T @ u
        v = v / (jnp.linalg.norm(v) + 1e-12)
    sigma = u @ (m @ v)
    return w / sigma


def make_params(key):
    shapes = [
        (C_MID, C_IN, 3, 3),
        (C_MID, C_MID, 3, 3),
        (C_MID, C_MID, 3, 3),
        (C_MID, C_MID, 3, 3),
        (C_OUT, C_MID, 3, 3),
    ]
    params = []
    for s in shapes:
        key, kw, kb = jax.random.split(key, 3)
        w = jax.random.normal(kw, s, jnp.float32) * 0.1
        w = _spectral_normalize(w)
        b = jax.random.normal(kb, (s[0],), jnp.float32) * 0.1
        params.append((w, b))
    return params


def _to_kernel_weight(w, cin_pad):
    """torch (Cout, Cin, 3, 3) -> tap-stacked (3, 3*cin_pad, Cout) bf16."""
    cout, cin = w.shape[0], w.shape[1]
    wt = jnp.transpose(w, (2, 3, 1, 0))                   # (ky, kx, Cin, Cout)
    wt = jnp.pad(wt, ((0, 0), (0, 0), (0, cin_pad - cin), (0, 0)))
    return wt.reshape(3, 3 * cin_pad, cout).astype(jnp.bfloat16)


# ----------------------------------------------------------------------------
# Wrapper: NCHW in, NCHW out
# ----------------------------------------------------------------------------
@jax.jit
def resblock_pallas(x_nchw, params):
    B, C, H, W = x_nchw.shape
    assert C == C_IN
    Wp = ((W + 2 + 7) // 8) * 8                           # 8-aligned scratch width

    # NCHW -> NHWC; zero-pad channels to 64 so every conv sees the same
    # lane layout (extra channels hit zero weight rows -> no effect).
    x_nhwc = jnp.transpose(x_nchw, (0, 2, 3, 1))
    x_cpad = jnp.pad(x_nhwc, ((0, 0), (0, 0), (0, 0), (0, C_MID - C_IN)))

    kernel_args = [x_cpad]
    in_specs = [pl.BlockSpec((1, H, W, C_MID), lambda b: (b, 0, 0, 0))]
    for (w, bias) in params:
        wk = _to_kernel_weight(w, C_MID)
        bk = bias.reshape(1, -1).astype(jnp.float32)
        kernel_args += [wk, bk]
        in_specs += [pl.BlockSpec(wk.shape, lambda b: (0, 0, 0)),
                     pl.BlockSpec(bk.shape, lambda b: (0, 0))]

    out_nhwc = pl.pallas_call(
        _resblock_kernel,
        out_shape=jax.ShapeDtypeStruct((B, H, W, C_OUT), jnp.float32),
        grid_spec=pltpu.PrefetchScalarGridSpec(
            num_scalar_prefetch=0,
            grid=(B,),
            in_specs=in_specs,
            out_specs=pl.BlockSpec((1, H, W, C_OUT), lambda b: (b, 0, 0, 0)),
            scratch_shapes=[
                pltpu.VMEM((H + 2, Wp, C_MID), jnp.float32),
                pltpu.VMEM((H + 2, Wp, C_MID), jnp.float32),
            ],
        ),
        compiler_params=pltpu.CompilerParams(
            dimension_semantics=("parallel",),
            vmem_limit_bytes=64 * 1024 * 1024,
        ),
    )(*kernel_args)

    return jnp.transpose(out_nhwc, (0, 3, 1, 2))          # NCHW


# ----------------------------------------------------------------------------
# References for correctness checks
# ----------------------------------------------------------------------------
def _conv_ref(x_nhwc, w_hwio, precision=None, preferred=None):
    return lax.conv_general_dilated(
        x_nhwc, w_hwio, window_strides=(1, 1), padding="SAME",
        dimension_numbers=("NHWC", "HWIO", "NHWC"),
        precision=precision, preferred_element_type=preferred)


def resblock_ref_f32(x_nchw, params):
    """Exact f32 reference (HIGHEST precision)."""
    x = jnp.transpose(x_nchw, (0, 2, 3, 1))
    y = x
    for i, (w, b) in enumerate(params):
        w_hwio = jnp.transpose(w, (2, 3, 1, 0))
        y = _conv_ref(y, w_hwio, precision=lax.Precision.HIGHEST) + b
        if i < 4:
            y = jax.nn.relu(y)
    out = x[..., :C_OUT] + y
    return jnp.transpose(out, (0, 3, 1, 2))


def resblock_ref_bf16(x_nchw, params):
    """Reference matching the kernel numerics: bf16 operands, f32 accumulation."""
    x = jnp.transpose(x_nchw, (0, 2, 3, 1))
    y = x.astype(jnp.bfloat16)
    for i, (w, b) in enumerate(params):
        w_hwio = jnp.transpose(w, (2, 3, 1, 0)).astype(jnp.bfloat16)
        y = _conv_ref(y, w_hwio, preferred=jnp.float32) + b
        if i < 4:
            y = jax.nn.relu(y).astype(jnp.bfloat16)
    out = x[..., :C_OUT] + y
    return jnp.transpose(out, (0, 3, 1, 2))


if __name__ == "__main__":
    key = jax.random.PRNGKey(0)
    key, kx = jax.random.split(key)

    B, H, W = 2, 16, 16
    x = jax.random.normal(kx, (B, C_IN, H, W), jnp.float32)   # NCHW like PyTorch
    params = make_params(key)

    out = jax.block_until_ready(resblock_pallas(x, params))
    assert out.shape == (B, C_OUT, H, W), out.shape

    ref_bf16 = jax.block_until_ready(resblock_ref_bf16(x, params))
    ref_f32 = jax.block_until_ready(resblock_ref_f32(x, params))

    err_matched = float(jnp.max(jnp.abs(out - ref_bf16)))
    err_f32 = float(jnp.max(jnp.abs(out - ref_f32)))
    # Kernel numerics are bf16-in / f32-accumulate (per perf review), so the
    # tight check is vs. the matched reference; the f32 check is a loose
    # semantic sanity bound.
    assert err_matched < 5e-2, err_matched
    assert err_f32 < 2.5e-1, err_f32

    print("KERNEL_OK")
</pallas_src>

<mosaic_0001>
module attributes {stable_mosaic.version = 11 : i64} {
  func.func @_resblock_kernel(%arg0: i32, %arg1: memref<1x16x16x64xf32, #tpu.memory_space<vmem>>, %arg2: memref<3x192x64xbf16, #tpu.memory_space<vmem>>, %arg3: memref<1x64xf32, #tpu.memory_space<vmem>>, %arg4: memref<3x192x64xbf16, #tpu.memory_space<vmem>>, %arg5: memref<1x64xf32, #tpu.memory_space<vmem>>, %arg6: memref<3x192x64xbf16, #tpu.memory_space<vmem>>, %arg7: memref<1x64xf32, #tpu.memory_space<vmem>>, %arg8: memref<3x192x64xbf16, #tpu.memory_space<vmem>>, %arg9: memref<1x64xf32, #tpu.memory_space<vmem>>, %arg10: memref<3x192x31xbf16, #tpu.memory_space<vmem>>, %arg11: memref<1x31xf32, #tpu.memory_space<vmem>>, %arg12: memref<1x16x16x31xf32, #tpu.memory_space<vmem>>, %arg13: memref<18x24x64xf32, #tpu.memory_space<vmem>>, %arg14: memref<18x24x64xf32, #tpu.memory_space<vmem>>) attributes {dimension_semantics = [#tpu.dimension_semantics<parallel>], iteration_bounds = array<i64: 2>, scalar_prefetch = 0 : i64, scratch_operands = 2 : i64, tpu.core_type = #tpu.core_type<tc>, window_params = [{transform_indices = @transform_0, window_bounds = array<i64: 1, 16, 16, 64>}, {pipeline_mode = #tpu.pipeline_mode<synchronous>, transform_indices = @transform_1, window_bounds = array<i64: 3, 192, 64>}, {pipeline_mode = #tpu.pipeline_mode<synchronous>, transform_indices = @transform_2, window_bounds = array<i64: 1, 64>}, {pipeline_mode = #tpu.pipeline_mode<synchronous>, transform_indices = @transform_3, window_bounds = array<i64: 3, 192, 64>}, {pipeline_mode = #tpu.pipeline_mode<synchronous>, transform_indices = @transform_4, window_bounds = array<i64: 1, 64>}, {pipeline_mode = #tpu.pipeline_mode<synchronous>, transform_indices = @transform_5, window_bounds = array<i64: 3, 192, 64>}, {pipeline_mode = #tpu.pipeline_mode<synchronous>, transform_indices = @transform_6, window_bounds = array<i64: 1, 64>}, {pipeline_mode = #tpu.pipeline_mode<synchronous>, transform_indices = @transform_7, window_bounds = array<i64: 3, 192, 64>}, {pipeline_mode = #tpu.pipeline_mode<synchronous>, transform_indices = @transform_8, window_bounds = array<i64: 1, 64>}, {pipeline_mode = #tpu.pipeline_mode<synchronous>, transform_indices = @transform_9, window_bounds = array<i64: 3, 192, 31>}, {pipeline_mode = #tpu.pipeline_mode<synchronous>, transform_indices = @transform_10, window_bounds = array<i64: 1, 31>}, {transform_indices = @transform_11, window_bounds = array<i64: 1, 16, 16, 31>}]} {
    %cst = arith.constant 0.000000e+00 : f32
    %0 = vector.broadcast %cst : f32 to vector<1x24x64xf32>
    %cst_0 = arith.constant 0.000000e+00 : f32
    %1 = vector.broadcast %cst_0 : f32 to vector<18x1x64xf32>
    %c0 = arith.constant 0 : index
    %c0_1 = arith.constant 0 : index
    %c0_2 = arith.constant 0 : index
    %2 = vector.load %arg13[%c0, %c0_1, %c0_2] : memref<18x24x64xf32, #tpu.memory_space<vmem>>, vector<1x24x64xf32>
    tpu.vector_store %arg13[%c0, %c0_1, %c0_2], %0 {strides = array<i32>} : memref<18x24x64xf32, #tpu.memory_space<vmem>>, vector<1x24x64xf32>,
    %c17 = arith.constant 17 : index
    %c0_3 = arith.constant 0 : index
    %c0_4 = arith.constant 0 : index
    %3 = vector.load %arg13[%c17, %c0_3, %c0_4] : memref<18x24x64xf32, #tpu.memory_space<vmem>>, vector<1x24x64xf32>
    tpu.vector_store %arg13[%c17, %c0_3, %c0_4], %0 {strides = array<i32>} : memref<18x24x64xf32, #tpu.memory_space<vmem>>, vector<1x24x64xf32>,
    %c0_5 = arith.constant 0 : index
    %c0_6 = arith.constant 0 : index
    %c0_7 = arith.constant 0 : index
    %4 = vector.load %arg13[%c0_5, %c0_6, %c0_7] : memref<18x24x64xf32, #tpu.memory_space<vmem>>, vector<18x1x64xf32>
    tpu.vector_store %arg13[%c0_5, %c0_6, %c0_7], %1 {strides = array<i32>} : memref<18x24x64xf32, #tpu.memory_space<vmem>>, vector<18x1x64xf32>,
    %c0_8 = arith.constant 0 : index
    %c17_9 = arith.constant 17 : index
    %c0_10 = arith.constant 0 : index
    %5 = vector.load %arg13[%c0_8, %c17_9, %c0_10] : memref<18x24x64xf32, #tpu.memory_space<vmem>>, vector<18x1x64xf32>
    tpu.vector_store %arg13[%c0_8, %c17_9, %c0_10], %1 {strides = array<i32>} : memref<18x24x64xf32, #tpu.memory_space<vmem>>, vector<18x1x64xf32>,
    %cst_11 = arith.constant 0.000000e+00 : f32
    %6 = vector.broadcast %cst_11 : f32 to vector<1x24x64xf32>
    %cst_12 = arith.constant 0.000000e+00 : f32
    %7 = vector.broadcast %cst_12 : f32 to vector<18x1x64xf32>
    %c0_13 = arith.constant 0 : index
    %c0_14 = arith.constant 0 : index
    %c0_15 = arith.constant 0 : index
    %8 = vector.load %arg14[%c0_13, %c0_14, %c0_15] : memref<18x24x64xf32, #tpu.memory_space<vmem>>, vector<1x24x64xf32>
    tpu.vector_store %arg14[%c0_13, %c0_14, %c0_15], %6 {strides = array<i32>} : memref<18x24x64xf32, #tpu.memory_space<vmem>>, vector<1x24x64xf32>,
    %c17_16 = arith.constant 17 : index
    %c0_17 = arith.constant 0 : index
    %c0_18 = arith.constant 0 : index
    %9 = vector.load %arg14[%c17_16, %c0_17, %c0_18] : memref<18x24x64xf32, #tpu.memory_space<vmem>>, vector<1x24x64xf32>
    tpu.vector_store %arg14[%c17_16, %c0_17, %c0_18], %6 {strides = array<i32>} : memref<18x24x64xf32, #tpu.memory_space<vmem>>, vector<1x24x64xf32>,
    %c0_19 = arith.constant 0 : index
    %c0_20 = arith.constant 0 : index
    %c0_21 = arith.constant 0 : index
    %10 = vector.load %arg14[%c0_19, %c0_20, %c0_21] : memref<18x24x64xf32, #tpu.memory_space<vmem>>, vector<18x1x64xf32>
    tpu.vector_store %arg14[%c0_19, %c0_20, %c0_21], %7 {strides = array<i32>} : memref<18x24x64xf32, #tpu.memory_space<vmem>>, vector<18x1x64xf32>,
    %c0_22 = arith.constant 0 : index
    %c17_23 = arith.constant 17 : index
    %c0_24 = arith.constant 0 : index
    %11 = vector.load %arg14[%c0_22, %c17_23, %c0_24] : memref<18x24x64xf32, #tpu.memory_space<vmem>>, vector<18x1x64xf32>
    tpu.vector_store %arg14[%c0_22, %c17_23, %c0_24], %7 {strides = array<i32>} : memref<18x24x64xf32, #tpu.memory_space<vmem>>, vector<18x1x64xf32>,
    %c0_25 = arith.constant 0 : index
    %c0_26 = arith.constant 0 : index
    %c0_27 = arith.constant 0 : index
    %c0_28 = arith.constant 0 : index
    %12 = vector.load %arg1[%c0_25, %c0_26, %c0_27, %c0_28] : memref<1x16x16x64xf32, #tpu.memory_space<vmem>>, vector<1x16x16x64xf32>
    %13 = vector.shape_cast %12 : vector<1x16x16x64xf32> to vector<16x16x64xf32>
    %c1 = arith.constant 1 : index
    %c1_29 = arith.constant 1 : index
    %c0_30 = arith.constant 0 : index
    %14 = vector.load %arg13[%c1, %c1_29, %c0_30] : memref<18x24x64xf32, #tpu.memory_space<vmem>>, vector<16x16x64xf32>
    tpu.vector_store %arg13[%c1, %c1_29, %c0_30], %13 {strides = array<i32>} : memref<18x24x64xf32, #tpu.memory_space<vmem>>, vector<16x16x64xf32>,
    %c0_31 = arith.constant 0 : index
    %c0_32 = arith.constant 0 : index
    %c0_33 = arith.constant 0 : index
    %15 = vector.load %arg13[%c0_31, %c0_32, %c0_33] : memref<18x24x64xf32, #tpu.memory_space<vmem>>, vector<18x16x64xf32>
    %c0_34 = arith.constant 0 : index
    %c1_35 = arith.constant 1 : index
    %c0_36 = arith.constant 0 : index
    %16 = vector.load %arg13[%c0_34, %c1_35, %c0_36] : memref<18x24x64xf32, #tpu.memory_space<vmem>>, vector<18x16x64xf32>
    %c0_37 = arith.constant 0 : index
    %c2 = arith.constant 2 : index
    %c0_38 = arith.constant 0 : index
    %17 = vector.load %arg13[%c0_37, %c2, %c0_38] : memref<18x24x64xf32, #tpu.memory_space<vmem>>, vector<18x16x64xf32>
    %18 = tpu.concatenate %15, %16, %17 in 2 : vector<18x16x64xf32>, vector<18x16x64xf32>, vector<18x16x64xf32> -> vector<18x16x192xf32>
    %19 = arith.truncf %18 : vector<18x16x192xf32> to vector<18x16x192xbf16>
    %cst_39 = arith.constant 0.000000e+00 : f32
    %20 = vector.broadcast %cst_39 : f32 to vector<256x64xf32>
    %21 = vector.extract_strided_slice %19 {offsets = [0, 0, 0], sizes = [16, 16, 192], strides = [1, 1, 1]} : vector<18x16x192xbf16> to vector<16x16x192xbf16>
    %22 = vector.shape_cast %21 : vector<16x16x192xbf16> to vector<256x192xbf16>
    %c0_40 = arith.constant 0 : index
    %c0_41 = arith.constant 0 : index
    %c0_42 = arith.constant 0 : index
    %23 = vector.load %arg2[%c0_40, %c0_41, %c0_42] : memref<3x192x64xbf16, #tpu.memory_space<vmem>>, vector<1x192x64xbf16>
    %24 = vector.shape_cast %23 : vector<1x192x64xbf16> to vector<192x64xbf16>
    %cst_43 = arith.constant dense<0.000000e+00> : vector<256x64xf32>
    %25 = tpu.matmul %22, %24, %cst_43 {dimension_numbers = #tpu.dot_dimension_numbers<[1], [0], [0], [1], [0, 0, 1, 1], [], []>} : vector<256x192xbf16>, vector<192x64xbf16>, vector<256x64xf32> -> vector<256x64xf32>
    %26 = arith.addf %20, %25 : vector<256x64xf32>
    %27 = vector.extract_strided_slice %19 {offsets = [1, 0, 0], sizes = [16, 16, 192], strides = [1, 1, 1]} : vector<18x16x192xbf16> to vector<16x16x192xbf16>
    %28 = vector.shape_cast %27 : vector<16x16x192xbf16> to vector<256x192xbf16>
    %c1_44 = arith.constant 1 : index
    %c0_45 = arith.constant 0 : index
    %c0_46 = arith.constant 0 : index
    %29 = vector.load %arg2[%c1_44, %c0_45, %c0_46] : memref<3x192x64xbf16, #tpu.memory_space<vmem>>, vector<1x192x64xbf16>
    %30 = vector.shape_cast %29 : vector<1x192x64xbf16> to vector<192x64xbf16>
    %cst_47 = arith.constant dense<0.000000e+00> : vector<256x64xf32>
    %31 = tpu.matmul %28, %30, %cst_47 {dimension_numbers = #tpu.dot_dimension_numbers<[1], [0], [0], [1], [0, 0, 1, 1], [], []>} : vector<256x192xbf16>, vector<192x64xbf16>, vector<256x64xf32> -> vector<256x64xf32>
    %32 = arith.addf %26, %31 : vector<256x64xf32>
    %33 = vector.extract_strided_slice %19 {offsets = [2, 0, 0], sizes = [16, 16, 192], strides = [1, 1, 1]} : vector<18x16x192xbf16> to vector<16x16x192xbf16>
    %34 = vector.shape_cast %33 : vector<16x16x192xbf16> to vector<256x192xbf16>
    %c2_48 = arith.constant 2 : index
    %c0_49 = arith.constant 0 : index
    %c0_50 = arith.constant 0 : index
    %35 = vector.load %arg2[%c2_48, %c0_49, %c0_50] : memref<3x192x64xbf16, #tpu.memory_space<vmem>>, vector<1x192x64xbf16>
    %36 = vector.shape_cast %35 : vector<1x192x64xbf16> to vector<192x64xbf16>
    %cst_51 = arith.constant dense<0.000000e+00> : vector<256x64xf32>
    %37 = tpu.matmul %34, %36, %cst_51 {dimension_numbers = #tpu.dot_dimension_numbers<[1], [0], [0], [1], [0, 0, 1, 1], [], []>} : vector<256x192xbf16>, vector<192x64xbf16>, vector<256x64xf32> -> vector<256x64xf32>
    %38 = arith.addf %32, %37 : vector<256x64xf32>
    %c0_52 = arith.constant 0 : index
    %c0_53 = arith.constant 0 : index
    %39 = vector.load %arg3[%c0_52, %c0_53] : memref<1x64xf32, #tpu.memory_space<vmem>>, vector<1x64xf32>
    %40 = vector.broadcast %39 : vector<1x64xf32> to vector<256x64xf32>
    %41 = arith.addf %38, %40 : vector<256x64xf32>
    %cst_54 = arith.constant 0.000000e+00 : f32
    %42 = vector.broadcast %cst_54 : f32 to vector<256x64xf32>
    %43 = arith.maximumf %41, %42 : vector<256x64xf32>
    %44 = vector.shape_cast %43 : vector<256x64xf32> to vector<16x16x64xf32>
    %c1_55 = arith.constant 1 : index
    %c1_56 = arith.constant 1 : index
    %c0_57 = arith.constant 0 : index
    %45 = vector.load %arg14[%c1_55, %c1_56, %c0_57] : memref<18x24x64xf32, #tpu.memory_space<vmem>>, vector<16x16x64xf32>
    tpu.vector_store %arg14[%c1_55, %c1_56, %c0_57], %44 {strides = array<i32>} : memref<18x24x64xf32, #tpu.memory_space<vmem>>, vector<16x16x64xf32>,
    %c0_58 = arith.constant 0 : index
    %c0_59 = arith.constant 0 : index
    %c0_60 = arith.constant 0 : index
    %46 = vector.load %arg14[%c0_58, %c0_59, %c0_60] : memref<18x24x64xf32, #tpu.memory_space<vmem>>, vector<18x16x64xf32>
    %c0_61 = arith.constant 0 : index
    %c1_62 = arith.constant 1 : index
    %c0_63 = arith.constant 0 : index
    %47 = vector.load %arg14[%c0_61, %c1_62, %c0_63] : memref<18x24x64xf32, #tpu.memory_space<vmem>>, vector<18x16x64xf32>
    %c0_64 = arith.constant 0 : index
    %c2_65 = arith.constant 2 : index
    %c0_66 = arith.constant 0 : index
    %48 = vector.load %arg14[%c0_64, %c2_65, %c0_66] : memref<18x24x64xf32, #tpu.memory_space<vmem>>, vector<18x16x64xf32>
    %49 = tpu.concatenate %46, %47, %48 in 2 : vector<18x16x64xf32>, vector<18x16x64xf32>, vector<18x16x64xf32> -> vector<18x16x192xf32>
    %50 = arith.truncf %49 : vector<18x16x192xf32> to vector<18x16x192xbf16>
    %cst_67 = arith.constant 0.000000e+00 : f32
    %51 = vector.broadcast %cst_67 : f32 to vector<256x64xf32>
    %52 = vector.extract_strided_slice %50 {offsets = [0, 0, 0], sizes = [16, 16, 192], strides = [1, 1, 1]} : vector<18x16x192xbf16> to vector<16x16x192xbf16>
    %53 = vector.shape_cast %52 : vector<16x16x192xbf16> to vector<256x192xbf16>
    %c0_68 = arith.constant 0 : index
    %c0_69 = arith.constant 0 : index
    %c0_70 = arith.constant 0 : index
    %54 = vector.load %arg4[%c0_68, %c0_69, %c0_70] : memref<3x192x64xbf16, #tpu.memory_space<vmem>>, vector<1x192x64xbf16>
    %55 = vector.shape_cast %54 : vector<1x192x64xbf16> to vector<192x64xbf16>
    %cst_71 = arith.constant dense<0.000000e+00> : vector<256x64xf32>
    %56 = tpu.matmul %53, %55, %cst_71 {dimension_numbers = #tpu.dot_dimension_numbers<[1], [0], [0], [1], [0, 0, 1, 1], [], []>} : vector<256x192xbf16>, vector<192x64xbf16>, vector<256x64xf32> -> vector<256x64xf32>
    %57 = arith.addf %51, %56 : vector<256x64xf32>
    %58 = vector.extract_strided_slice %50 {offsets = [1, 0, 0], sizes = [16, 16, 192], strides = [1, 1, 1]} : vector<18x16x192xbf16> to vector<16x16x192xbf16>
    %59 = vector.shape_cast %58 : vector<16x16x192xbf16> to vector<256x192xbf16>
    %c1_72 = arith.constant 1 : index
    %c0_73 = arith.constant 0 : index
    %c0_74 = arith.constant 0 : index
    %60 = vector.load %arg4[%c1_72, %c0_73, %c0_74] : memref<3x192x64xbf16, #tpu.memory_space<vmem>>, vector<1x192x64xbf16>
    %61 = vector.shape_cast %60 : vector<1x192x64xbf16> to vector<192x64xbf16>
    %cst_75 = arith.constant dense<0.000000e+00> : vector<256x64xf32>
    %62 = tpu.matmul %59, %61, %cst_75 {dimension_numbers = #tpu.dot_dimension_numbers<[1], [0], [0], [1], [0, 0, 1, 1], [], []>} : vector<256x192xbf16>, vector<192x64xbf16>, vector<256x64xf32> -> vector<256x64xf32>
    %63 = arith.addf %57, %62 : vector<256x64xf32>
    %64 = vector.extract_strided_slice %50 {offsets = [2, 0, 0], sizes = [16, 16, 192], strides = [1, 1, 1]} : vector<18x16x192xbf16> to vector<16x16x192xbf16>
    %65 = vector.shape_cast %64 : vector<16x16x192xbf16> to vector<256x192xbf16>
    %c2_76 = arith.constant 2 : index
    %c0_77 = arith.constant 0 : index
    %c0_78 = arith.constant 0 : index
    %66 = vector.load %arg4[%c2_76, %c0_77, %c0_78] : memref<3x192x64xbf16, #tpu.memory_space<vmem>>, vector<1x192x64xbf16>
    %67 = vector.shape_cast %66 : vector<1x192x64xbf16> to vector<192x64xbf16>
    %cst_79 = arith.constant dense<0.000000e+00> : vector<256x64xf32>
    %68 = tpu.matmul %65, %67, %cst_79 {dimension_numbers = #tpu.dot_dimension_numbers<[1], [0], [0], [1], [0, 0, 1, 1], [], []>} : vector<256x192xbf16>, vector<192x64xbf16>, vector<256x64xf32> -> vector<256x64xf32>
    %69 = arith.addf %63, %68 : vector<256x64xf32>
    %c0_80 = arith.constant 0 : index
    %c0_81 = arith.constant 0 : index
    %70 = vector.load %arg5[%c0_80, %c0_81] : memref<1x64xf32, #tpu.memory_space<vmem>>, vector<1x64xf32>
    %71 = vector.broadcast %70 : vector<1x64xf32> to vector<256x64xf32>
    %72 = arith.addf %69, %71 : vector<256x64xf32>
    %cst_82 = arith.constant 0.000000e+00 : f32
    %73 = vector.broadcast %cst_82 : f32 to vector<256x64xf32>
    %74 = arith.maximumf %72, %73 : vector<256x64xf32>
    %75 = vector.shape_cast %74 : vector<256x64xf32> to vector<16x16x64xf32>
    %c1_83 = arith.constant 1 : index
    %c1_84 = arith.constant 1 : index
    %c0_85 = arith.constant 0 : index
    %76 = vector.load %arg13[%c1_83, %c1_84, %c0_85] : memref<18x24x64xf32, #tpu.memory_space<vmem>>, vector<16x16x64xf32>
    tpu.vector_store %arg13[%c1_83, %c1_84, %c0_85], %75 {strides = array<i32>} : memref<18x24x64xf32, #tpu.memory_space<vmem>>, vector<16x16x64xf32>,
    %c0_86 = arith.constant 0 : index
    %c0_87 = arith.constant 0 : index
    %c0_88 = arith.constant 0 : index
    %77 = vector.load %arg13[%c0_86, %c0_87, %c0_88] : memref<18x24x64xf32, #tpu.memory_space<vmem>>, vector<18x16x64xf32>
    %c0_89 = arith.constant 0 : index
    %c1_90 = arith.constant 1 : index
    %c0_91 = arith.constant 0 : index
    %78 = vector.load %arg13[%c0_89, %c1_90, %c0_91] : memref<18x24x64xf32, #tpu.memory_space<vmem>>, vector<18x16x64xf32>
    %c0_92 = arith.constant 0 : index
    %c2_93 = arith.constant 2 : index
    %c0_94 = arith.constant 0 : index
    %79 = vector.load %arg13[%c0_92, %c2_93, %c0_94] : memref<18x24x64xf32, #tpu.memory_space<vmem>>, vector<18x16x64xf32>
    %80 = tpu.concatenate %77, %78, %79 in 2 : vector<18x16x64xf32>, vector<18x16x64xf32>, vector<18x16x64xf32> -> vector<18x16x192xf32>
    %81 = arith.truncf %80 : vector<18x16x192xf32> to vector<18x16x192xbf16>
    %cst_95 = arith.constant 0.000000e+00 : f32
    %82 = vector.broadcast %cst_95 : f32 to vector<256x64xf32>
    %83 = vector.extract_strided_slice %81 {offsets = [0, 0, 0], sizes = [16, 16, 192], strides = [1, 1, 1]} : vector<18x16x192xbf16> to vector<16x16x192xbf16>
    %84 = vector.shape_cast %83 : vector<16x16x192xbf16> to vector<256x192xbf16>
    %c0_96 = arith.constant 0 : index
    %c0_97 = arith.constant 0 : index
    %c0_98 = arith.constant 0 : index
    %85 = vector.load %arg6[%c0_96, %c0_97, %c0_98] : memref<3x192x64xbf16, #tpu.memory_space<vmem>>, vector<1x192x64xbf16>
    %86 = vector.shape_cast %85 : vector<1x192x64xbf16> to vector<192x64xbf16>
    %cst_99 = arith.constant dense<0.000000e+00> : vector<256x64xf32>
    %87 = tpu.matmul %84, %86, %cst_99 {dimension_numbers = #tpu.dot_dimension_numbers<[1], [0], [0], [1], [0, 0, 1, 1], [], []>} : vector<256x192xbf16>, vector<192x64xbf16>, vector<256x64xf32> -> vector<256x64xf32>
    %88 = arith.addf %82, %87 : vector<256x64xf32>
    %89 = vector.extract_strided_slice %81 {offsets = [1, 0, 0], sizes = [16, 16, 192], strides = [1, 1, 1]} : vector<18x16x192xbf16> to vector<16x16x192xbf16>
    %90 = vector.shape_cast %89 : vector<16x16x192xbf16> to vector<256x192xbf16>
    %c1_100 = arith.constant 1 : index
    %c0_101 = arith.constant 0 : index
    %c0_102 = arith.constant 0 : index
    %91 = vector.load %arg6[%c1_100, %c0_101, %c0_102] : memref<3x192x64xbf16, #tpu.memory_space<vmem>>, vector<1x192x64xbf16>
    %92 = vector.shape_cast %91 : vector<1x192x64xbf16> to vector<192x64xbf16>
    %cst_103 = arith.constant dense<0.000000e+00> : vector<256x64xf32>
    %93 = tpu.matmul %90, %92, %cst_103 {dimension_numbers = #tpu.dot_dimension_numbers<[1], [0], [0], [1], [0, 0, 1, 1], [], []>} : vector<256x192xbf16>, vector<192x64xbf16>, vector<256x64xf32> -> vector<256x64xf32>
    %94 = arith.addf %88, %93 : vector<256x64xf32>
    %95 = vector.extract_strided_slice %81 {offsets = [2, 0, 0], sizes = [16, 16, 192], strides = [1, 1, 1]} : vector<18x16x192xbf16> to vector<16x16x192xbf16>
    %96 = vector.shape_cast %95 : vector<16x16x192xbf16> to vector<256x192xbf16>
    %c2_104 = arith.constant 2 : index
    %c0_105 = arith.constant 0 : index
    %c0_106 = arith.constant 0 : index
    %97 = vector.load %arg6[%c2_104, %c0_105, %c0_106] : memref<3x192x64xbf16, #tpu.memory_space<vmem>>, vector<1x192x64xbf16>
    %98 = vector.shape_cast %97 : vector<1x192x64xbf16> to vector<192x64xbf16>
    %cst_107 = arith.constant dense<0.000000e+00> : vector<256x64xf32>
    %99 = tpu.matmul %96, %98, %cst_107 {dimension_numbers = #tpu.dot_dimension_numbers<[1], [0], [0], [1], [0, 0, 1, 1], [], []>} : vector<256x192xbf16>, vector<192x64xbf16>, vector<256x64xf32> -> vector<256x64xf32>
    %100 = arith.addf %94, %99 : vector<256x64xf32>
    %c0_108 = arith.constant 0 : index
    %c0_109 = arith.constant 0 : index
    %101 = vector.load %arg7[%c0_108, %c0_109] : memref<1x64xf32, #tpu.memory_space<vmem>>, vector<1x64xf32>
    %102 = vector.broadcast %101 : vector<1x64xf32> to vector<256x64xf32>
    %103 = arith.addf %100, %102 : vector<256x64xf32>
    %cst_110 = arith.constant 0.000000e+00 : f32
    %104 = vector.broadcast %cst_110 : f32 to vector<256x64xf32>
    %105 = arith.maximumf %103, %104 : vector<256x64xf32>
    %106 = vector.shape_cast %105 : vector<256x64xf32> to vector<16x16x64xf32>
    %c1_111 = arith.constant 1 : index
    %c1_112 = arith.constant 1 : index
    %c0_113 = arith.constant 0 : index
    %107 = vector.load %arg14[%c1_111, %c1_112, %c0_113] : memref<18x24x64xf32, #tpu.memory_space<vmem>>, vector<16x16x64xf32>
    tpu.vector_store %arg14[%c1_111, %c1_112, %c0_113], %106 {strides = array<i32>} : memref<18x24x64xf32, #tpu.memory_space<vmem>>, vector<16x16x64xf32>,
    %c0_114 = arith.constant 0 : index
    %c0_115 = arith.constant 0 : index
    %c0_116 = arith.constant 0 : index
    %108 = vector.load %arg14[%c0_114, %c0_115, %c0_116] : memref<18x24x64xf32, #tpu.memory_space<vmem>>, vector<18x16x64xf32>
    %c0_117 = arith.constant 0 : index
    %c1_118 = arith.constant 1 : index
    %c0_119 = arith.constant 0 : index
    %109 = vector.load %arg14[%c0_117, %c1_118, %c0_119] : memref<18x24x64xf32, #tpu.memory_space<vmem>>, vector<18x16x64xf32>
    %c0_120 = arith.constant 0 : index
    %c2_121 = arith.constant 2 : index
    %c0_122 = arith.constant 0 : index
    %110 = vector.load %arg14[%c0_120, %c2_121, %c0_122] : memref<18x24x64xf32, #tpu.memory_space<vmem>>, vector<18x16x64xf32>
    %111 = tpu.concatenate %108, %109, %110 in 2 : vector<18x16x64xf32>, vector<18x16x64xf32>, vector<18x16x64xf32> -> vector<18x16x192xf32>
    %112 = arith.truncf %111 : vector<18x16x192xf32> to vector<18x16x192xbf16>
    %cst_123 = arith.constant 0.000000e+00 : f32
    %113 = vector.broadcast %cst_123 : f32 to vector<256x64xf32>
    %114 = vector.extract_strided_slice %112 {offsets = [0, 0, 0], sizes = [16, 16, 192], strides = [1, 1, 1]} : vector<18x16x192xbf16> to vector<16x16x192xbf16>
    %115 = vector.shape_cast %114 : vector<16x16x192xbf16> to vector<256x192xbf16>
    %c0_124 = arith.constant 0 : index
    %c0_125 = arith.constant 0 : index
    %c0_126 = arith.constant 0 : index
    %116 = vector.load %arg8[%c0_124, %c0_125, %c0_126] : memref<3x192x64xbf16, #tpu.memory_space<vmem>>, vector<1x192x64xbf16>
    %117 = vector.shape_cast %116 : vector<1x192x64xbf16> to vector<192x64xbf16>
    %cst_127 = arith.constant dense<0.000000e+00> : vector<256x64xf32>
    %118 = tpu.matmul %115, %117, %cst_127 {dimension_numbers = #tpu.dot_dimension_numbers<[1], [0], [0], [1], [0, 0, 1, 1], [], []>} : vector<256x192xbf16>, vector<192x64xbf16>, vector<256x64xf32> -> vector<256x64xf32>
    %119 = arith.addf %113, %118 : vector<256x64xf32>
    %120 = vector.extract_strided_slice %112 {offsets = [1, 0, 0], sizes = [16, 16, 192], strides = [1, 1, 1]} : vector<18x16x192xbf16> to vector<16x16x192xbf16>
    %121 = vector.shape_cast %120 : vector<16x16x192xbf16> to vector<256x192xbf16>
    %c1_128 = arith.constant 1 : index
    %c0_129 = arith.constant 0 : index
    %c0_130 = arith.constant 0 : index
    %122 = vector.load %arg8[%c1_128, %c0_129, %c0_130] : memref<3x192x64xbf16, #tpu.memory_space<vmem>>, vector<1x192x64xbf16>
    %123 = vector.shape_cast %122 : vector<1x192x64xbf16> to vector<192x64xbf16>
    %cst_131 = arith.constant dense<0.000000e+00> : vector<256x64xf32>
    %124 = tpu.matmul %121, %123, %cst_131 {dimension_numbers = #tpu.dot_dimension_numbers<[1], [0], [0], [1], [0, 0, 1, 1], [], []>} : vector<256x192xbf16>, vector<192x64xbf16>, vector<256x64xf32> -> vector<256x64xf32>
    %125 = arith.addf %119, %124 : vector<256x64xf32>
    %126 = vector.extract_strided_slice %112 {offsets = [2, 0, 0], sizes = [16, 16, 192], strides = [1, 1, 1]} : vector<18x16x192xbf16> to vector<16x16x192xbf16>
    %127 = vector.shape_cast %126 : vector<16x16x192xbf16> to vector<256x192xbf16>
    %c2_132 = arith.constant 2 : index
    %c0_133 = arith.constant 0 : index
    %c0_134 = arith.constant 0 : index
    %128 = vector.load %arg8[%c2_132, %c0_133, %c0_134] : memref<3x192x64xbf16, #tpu.memory_space<vmem>>, vector<1x192x64xbf16>
    %129 = vector.shape_cast %128 : vector<1x192x64xbf16> to vector<192x64xbf16>
    %cst_135 = arith.constant dense<0.000000e+00> : vector<256x64xf32>
    %130 = tpu.matmul %127, %129, %cst_135 {dimension_numbers = #tpu.dot_dimension_numbers<[1], [0], [0], [1], [0, 0, 1, 1], [], []>} : vector<256x192xbf16>, vector<192x64xbf16>, vector<256x64xf32> -> vector<256x64xf32>
    %131 = arith.addf %125, %130 : vector<256x64xf32>
    %c0_136 = arith.constant 0 : index
    %c0_137 = arith.constant 0 : index
    %132 = vector.load %arg9[%c0_136, %c0_137] : memref<1x64xf32, #tpu.memory_space<vmem>>, vector<1x64xf32>
    %133 = vector.broadcast %132 : vector<1x64xf32> to vector<256x64xf32>
    %134 = arith.addf %131, %133 : vector<256x64xf32>
    %cst_138 = arith.constant 0.000000e+00 : f32
    %135 = vector.broadcast %cst_138 : f32 to vector<256x64xf32>
    %136 = arith.maximumf %134, %135 : vector<256x64xf32>
    %137 = vector.shape_cast %136 : vector<256x64xf32> to vector<16x16x64xf32>
    %c1_139 = arith.constant 1 : index
    %c1_140 = arith.constant 1 : index
    %c0_141 = arith.constant 0 : index
    %138 = vector.load %arg13[%c1_139, %c1_140, %c0_141] : memref<18x24x64xf32, #tpu.memory_space<vmem>>, vector<16x16x64xf32>
    tpu.vector_store %arg13[%c1_139, %c1_140, %c0_141], %137 {strides = array<i32>} : memref<18x24x64xf32, #tpu.memory_space<vmem>>, vector<16x16x64xf32>,
    %c0_142 = arith.constant 0 : index
    %c0_143 = arith.constant 0 : index
    %c0_144 = arith.constant 0 : index
    %139 = vector.load %arg13[%c0_142, %c0_143, %c0_144] : memref<18x24x64xf32, #tpu.memory_space<vmem>>, vector<18x16x64xf32>
    %c0_145 = arith.constant 0 : index
    %c1_146 = arith.constant 1 : index
    %c0_147 = arith.constant 0 : index
    %140 = vector.load %arg13[%c0_145, %c1_146, %c0_147] : memref<18x24x64xf32, #tpu.memory_space<vmem>>, vector<18x16x64xf32>
    %c0_148 = arith.constant 0 : index
    %c2_149 = arith.constant 2 : index
    %c0_150 = arith.constant 0 : index
    %141 = vector.load %arg13[%c0_148, %c2_149, %c0_150] : memref<18x24x64xf32, #tpu.memory_space<vmem>>, vector<18x16x64xf32>
    %142 = tpu.concatenate %139, %140, %141 in 2 : vector<18x16x64xf32>, vector<18x16x64xf32>, vector<18x16x64xf32> -> vector<18x16x192xf32>
    %143 = arith.truncf %142 : vector<18x16x192xf32> to vector<18x16x192xbf16>
    %cst_151 = arith.constant 0.000000e+00 : f32
    %144 = vector.broadcast %cst_151 : f32 to vector<256x31xf32>
    %145 = vector.extract_strided_slice %143 {offsets = [0, 0, 0], sizes = [16, 16, 192], strides = [1, 1, 1]} : vector<18x16x192xbf16> to vector<16x16x192xbf16>
    %146 = vector.shape_cast %145 : vector<16x16x192xbf16> to vector<256x192xbf16>
    %c0_152 = arith.constant 0 : index
    %c0_153 = arith.constant 0 : index
    %c0_154 = arith.constant 0 : index
    %147 = vector.load %arg10[%c0_152, %c0_153, %c0_154] : memref<3x192x31xbf16, #tpu.memory_space<vmem>>, vector<1x192x31xbf16>
    %148 = vector.shape_cast %147 : vector<1x192x31xbf16> to vector<192x31xbf16>
    %cst_155 = arith.constant dense<0.000000e+00> : vector<256x31xf32>
    %149 = tpu.matmul %146, %148, %cst_155 {dimension_numbers = #tpu.dot_dimension_numbers<[1], [0], [0], [1], [0, 0, 1, 1], [], []>} : vector<256x192xbf16>, vector<192x31xbf16>, vector<256x31xf32> -> vector<256x31xf32>
    %150 = arith.addf %144, %149 : vector<256x31xf32>
    %151 = vector.extract_strided_slice %143 {offsets = [1, 0, 0], sizes = [16, 16, 192], strides = [1, 1, 1]} : vector<18x16x192xbf16> to vector<16x16x192xbf16>
    %152 = vector.shape_cast %151 : vector<16x16x192xbf16> to vector<256x192xbf16>
    %c1_156 = arith.constant 1 : index
    %c0_157 = arith.constant 0 : index
    %c0_158 = arith.constant 0 : index
    %153 = vector.load %arg10[%c1_156, %c0_157, %c0_158] : memref<3x192x31xbf16, #tpu.memory_space<vmem>>, vector<1x192x31xbf16>
    %154 = vector.shape_cast %153 : vector<1x192x31xbf16> to vector<192x31xbf16>
    %cst_159 = arith.constant dense<0.000000e+00> : vector<256x31xf32>
    %155 = tpu.matmul %152, %154, %cst_159 {dimension_numbers = #tpu.dot_dimension_numbers<[1], [0], [0], [1], [0, 0, 1, 1], [], []>} : vector<256x192xbf16>, vector<192x31xbf16>, vector<256x31xf32> -> vector<256x31xf32>
    %156 = arith.addf %150, %155 : vector<256x31xf32>
    %157 = vector.extract_strided_slice %143 {offsets = [2, 0, 0], sizes = [16, 16, 192], strides = [1, 1, 1]} : vector<18x16x192xbf16> to vector<16x16x192xbf16>
    %158 = vector.shape_cast %157 : vector<16x16x192xbf16> to vector<256x192xbf16>
    %c2_160 = arith.constant 2 : index
    %c0_161 = arith.constant 0 : index
    %c0_162 = arith.constant 0 : index
    %159 = vector.load %arg10[%c2_160, %c0_161, %c0_162] : memref<3x192x31xbf16, #tpu.memory_space<vmem>>, vector<1x192x31xbf16>
    %160 = vector.shape_cast %159 : vector<1x192x31xbf16> to vector<192x31xbf16>
    %cst_163 = arith.constant dense<0.000000e+00> : vector<256x31xf32>
    %161 = tpu.matmul %158, %160, %cst_163 {dimension_numbers = #tpu.dot_dimension_numbers<[1], [0], [0], [1], [0, 0, 1, 1], [], []>} : vector<256x192xbf16>, vector<192x31xbf16>, vector<256x31xf32> -> vector<256x31xf32>
    %162 = arith.addf %156, %161 : vector<256x31xf32>
    %c0_164 = arith.constant 0 : index
    %c0_165 = arith.constant 0 : index
    %163 = vector.load %arg11[%c0_164, %c0_165] : memref<1x31xf32, #tpu.memory_space<vmem>>, vector<1x31xf32>
    %164 = vector.broadcast %163 : vector<1x31xf32> to vector<256x31xf32>
    %165 = arith.addf %162, %164 : vector<256x31xf32>
    %166 = vector.extract_strided_slice %13 {offsets = [0, 0, 0], sizes = [16, 16, 31], strides = [1, 1, 1]} : vector<16x16x64xf32> to vector<16x16x31xf32>
    %167 = vector.shape_cast %165 : vector<256x31xf32> to vector<16x16x31xf32>
    %168 = arith.addf %166, %167 : vector<16x16x31xf32>
    %c0_166 = arith.constant 0 : index
    %c0_167 = arith.constant 0 : index
    %c0_168 = arith.constant 0 : index
    %c0_169 = arith.constant 0 : index
    %169 = vector.load %arg12[%c0_166, %c0_167, %c0_168, %c0_169] : memref<1x16x16x31xf32, #tpu.memory_space<vmem>>, vector<1x16x16x31xf32>
    %170 = vector.shape_cast %169 : vector<1x16x16x31xf32> to vector<16x16x31xf32>
    %171 = vector.shape_cast %168 : vector<16x16x31xf32> to vector<1x16x16x31xf32>
    tpu.vector_store %arg12[%c0_166, %c0_167, %c0_168, %c0_169], %171 {strides = array<i32>} : memref<1x16x16x31xf32, #tpu.memory_space<vmem>>, vector<1x16x16x31xf32>,
    return
  }
  func.func @transform_0(%arg0: i32) -> (i32, i32, i32, i32) {
    %c0_i32 = arith.constant 0 : i32
    %c0_i32_0 = arith.constant 0 : i32
    %c0_i32_1 = arith.constant 0 : i32
    %c0_i32_2 = arith.constant 0 : i32
    return %arg0, %c0_i32, %c0_i32_0, %c0_i32_1 : i32, i32, i32, i32
  }
  func.func @transform_1(%arg0: i32) -> (i32, i32, i32) {
    %c0_i32 = arith.constant 0 : i32
    %c0_i32_0 = arith.constant 0 : i32
    %c0_i32_1 = arith.constant 0 : i32
    %c0_i32_2 = arith.constant 0 : i32
    return %c0_i32, %c0_i32_0, %c0_i32_1 : i32, i32, i32
  }
  func.func @transform_2(%arg0: i32) -> (i32, i32) {
    %c0_i32 = arith.constant 0 : i32
    %c0_i32_0 = arith.constant 0 : i32
    %c0_i32_1 = arith.constant 0 : i32
    return %c0_i32, %c0_i32_0 : i32, i32
  }
  func.func @transform_3(%arg0: i32) -> (i32, i32, i32) {
    %c0_i32 = arith.constant 0 : i32
    %c0_i32_0 = arith.constant 0 : i32
    %c0_i32_1 = arith.constant 0 : i32
    %c0_i32_2 = arith.constant 0 : i32
    return %c0_i32, %c0_i32_0, %c0_i32_1 : i32, i32, i32
  }
  func.func @transform_4(%arg0: i32) -> (i32, i32) {
    %c0_i32 = arith.constant 0 : i32
    %c0_i32_0 = arith.constant 0 : i32
    %c0_i32_1 = arith.constant 0 : i32
    return %c0_i32, %c0_i32_0 : i32, i32
  }
  func.func @transform_5(%arg0: i32) -> (i32, i32, i32) {
    %c0_i32 = arith.constant 0 : i32
    %c0_i32_0 = arith.constant 0 : i32
    %c0_i32_1 = arith.constant 0 : i32
    %c0_i32_2 = arith.constant 0 : i32
    return %c0_i32, %c0_i32_0, %c0_i32_1 : i32, i32, i32
  }
  func.func @transform_6(%arg0: i32) -> (i32, i32) {
    %c0_i32 = arith.constant 0 : i32
    %c0_i32_0 = arith.constant 0 : i32
    %c0_i32_1 = arith.constant 0 : i32
    return %c0_i32, %c0_i32_0 : i32, i32
  }
  func.func @transform_7(%arg0: i32) -> (i32, i32, i32) {
    %c0_i32 = arith.constant 0 : i32
    %c0_i32_0 = arith.constant 0 : i32
    %c0_i32_1 = arith.constant 0 : i32
    %c0_i32_2 = arith.constant 0 : i32
    return %c0_i32, %c0_i32_0, %c0_i32_1 : i32, i32, i32
  }
  func.func @transform_8(%arg0: i32) -> (i32, i32) {
    %c0_i32 = arith.constant 0 : i32
    %c0_i32_0 = arith.constant 0 : i32
    %c0_i32_1 = arith.constant 0 : i32
    return %c0_i32, %c0_i32_0 : i32, i32
  }
  func.func @transform_9(%arg0: i32) -> (i32, i32, i32) {
    %c0_i32 = arith.constant 0 : i32
    %c0_i32_0 = arith.constant 0 : i32
    %c0_i32_1 = arith.constant 0 : i32
    %c0_i32_2 = arith.constant 0 : i32
    return %c0_i32, %c0_i32_0, %c0_i32_1 : i32, i32, i32
  }
  func.func @transform_10(%arg0: i32) -> (i32, i32) {
    %c0_i32 = arith.constant 0 : i32
    %c0_i32_0 = arith.constant 0 : i32
    %c0_i32_1 = arith.constant 0 : i32
    return %c0_i32, %c0_i32_0 : i32, i32
  }
  func.func @transform_11(%arg0: i32) -> (i32, i32, i32, i32) {
    %c0_i32 = arith.constant 0 : i32
    %c0_i32_0 = arith.constant 0 : i32
    %c0_i32_1 = arith.constant 0 : i32
    %c0_i32_2 = arith.constant 0 : i32
    return %arg0, %c0_i32, %c0_i32_0, %c0_i32_1 : i32, i32, i32, i32
  }
}

</mosaic_0001>

<llo_original>
// kernel: resblock_pallas.1
$region0: #{resblock_pallas.1}
  #allocation0 [shape = 'u32[]', space=smem, size = 0x4, offset = 0x4, fixed_abs, tag = 'smem constant byte address 0x4 - core index']
  #allocation1 [shape = 'u32[144,128]{1,0:T(1,128)}', space=vmem, size = 0x12000, scoped, tag = 'internal scratch']
  #allocation2 [shape = 'f32[18,24,64]{2,1,0:T(8,128)}', space=vmem, size = 0x36000, scoped, tag = 'scratch operand']
  #allocation3 [shape = 'f32[18,24,64]{2,1,0:T(8,128)}', space=vmem, size = 0x36000, scoped, tag = 'scratch operand']
  %s0 = inlined_call_operand.hbm [shape: f32[2,16,16,64], index: 0, kind: input, shape index: {}]
  %s1 = inlined_call_operand.hbm [shape: bf16[3,192,64], index: 1, kind: input, shape index: {}]
  %s2 = inlined_call_operand.hbm [shape: f32[1,64], index: 2, kind: input, shape index: {}]
  %s3 = inlined_call_operand.hbm [shape: bf16[3,192,64], index: 3, kind: input, shape index: {}]
  %s4 = inlined_call_operand.hbm [shape: f32[1,64], index: 4, kind: input, shape index: {}]
  %s5 = inlined_call_operand.hbm [shape: bf16[3,192,64], index: 5, kind: input, shape index: {}]
  %s6 = inlined_call_operand.hbm [shape: f32[1,64], index: 6, kind: input, shape index: {}]
  %s7 = inlined_call_operand.hbm [shape: bf16[3,192,64], index: 7, kind: input, shape index: {}]
  %s8 = inlined_call_operand.hbm [shape: f32[1,64], index: 8, kind: input, shape index: {}]
  %s9 = inlined_call_operand.hbm [shape: bf16[3,192,31], index: 9, kind: input, shape index: {}]
  %s10 = inlined_call_operand.hbm [shape: f32[1,31], index: 10, kind: input, shape index: {}]
  %s11 = inlined_call_operand.hbm [shape: f32[2,16,16,31], index: 11, kind: output, shape index: {}]
  %s12 = sld [smem:[#allocation0]]
  $region121: #{resblock_pallas.1} parent=0
    _
  %s14 = ssub.s32 1, %s12
  %s15 = scalar_select 0, %s14, %s12
  $region1: #{resblock_pallas.1} parent=0
    #allocation4 [shape = 'u8[262144]{0}', space=vmem, size = 0x40000, scoped, tag = 'input window, operand 0']
    #allocation5 [shape = 's32[2]{0}', space=sflag, size = 0x8, scoped, tag = 'scoped memory for resblock_pallas.1']
    #allocation6 [shape = 's32[2]{0}', space=sflag, size = 0x8, scoped, tag = 'scoped memory for resblock_pallas.1']
    #allocation7 [shape = 'u8[147456]{0}', space=vmem, size = 0x24000, scoped, tag = 'input window, operand 1, single buffered']
    #allocation8 [shape = 's32[1]{0}', space=sflag, size = 0x4, scoped, tag = 'scoped memory for resblock_pallas.1']
    #allocation9 [shape = 'u8[512]{0}', space=vmem, size = 0x400, scoped, tag = 'input window, operand 2, single buffered']
    #allocation10 [shape = 'u8[147456]{0}', space=vmem, size = 0x24000, scoped, tag = 'input window, operand 3, single buffered']
    #allocation11 [shape = 's32[1]{0}', space=sflag, size = 0x4, scoped, tag = 'scoped memory for resblock_pallas.1']
    #allocation12 [shape = 'u8[512]{0}', space=vmem, size = 0x400, scoped, tag = 'input window, operand 4, single buffered']
    #allocation13 [shape = 'u8[147456]{0}', space=vmem, size = 0x24000, scoped, tag = 'input window, operand 5, single buffered']
    #allocation14 [shape = 's32[1]{0}', space=sflag, size = 0x4, scoped, tag = 'scoped memory for resblock_pallas.1']
    #allocation15 [shape = 'u8[512]{0}', space=vmem, size = 0x400, scoped, tag = 'input window, operand 6, single buffered']
    #allocation16 [shape = 'u8[147456]{0}', space=vmem, size = 0x24000, scoped, tag = 'input window, operand 7, single buffered']
    #allocation17 [shape = 's32[1]{0}', space=sflag, size = 0x4, scoped, tag = 'scoped memory for resblock_pallas.1']
    #allocation18 [shape = 'u8[512]{0}', space=vmem, size = 0x400, scoped, tag = 'input window, operand 8, single buffered']
    #allocation19 [shape = 'u8[147456]{0}', space=vmem, size = 0x24000, scoped, tag = 'input window, operand 9, single buffered']
    #allocation20 [shape = 's32[1]{0}', space=sflag, size = 0x4, scoped, tag = 'scoped memory for resblock_pallas.1']
    #allocation21 [shape = 'u8[512]{0}', space=vmem, size = 0x400, scoped, tag = 'input window, operand 10, single buffered']
    #allocation22 [shape = 'u8[262144]{0}', space=vmem, size = 0x40000, scoped, tag = 'output window, operand 0']
    %16 = vsyncpa [#allocation5], 0
    %s17 = scalar_lea.sflag [#allocation5], 1
    %18 = vsyncpa %s17, 0
    %19 = vsyncpa [#allocation8], 0
    %20 = vsyncpa [#allocation11], 0
    %21 = vsyncpa [#allocation14], 0
    %22 = vsyncpa [#allocation17], 0
    %23 = vsyncpa [#allocation20], 0
    %24 = vsyncpa [#allocation6], 0
    %s25 = scalar_lea.sflag [#allocation6], 1
    %26 = vsyncpa %s25, 0
    loop: start=0, step=1, limit=4
    $region2: #{resblock_pallas.1} parent=1 // loop_pre_header
      _
    $region3: #{resblock_pallas.1} parent=1 // loop_header
      %s28 = sphi 0, %s32
      %p29 = scmp.ge.s32.totalorder %s28, 4
      %s38 = sphi 0, %s40
      %s41 = sphi 0, %s38
      %s42 = sphi 0, %s41
      %s58 = sphi 0, %s42
      %s62 = sphi 0, %s62
      %s64 = sphi 0, %s62
      %s65 = sphi 0, %s64
      %s79 = sphi 0, %s65
      %s83 = sphi 0, %s83
      %s85 = sphi 0, %s83
      %s86 = sphi 0, %s85
      %s100 = sphi 0, %s86
      %s104 = sphi 0, %s104
      %s106 = sphi 0, %s104
      %s107 = sphi 0, %s106
      %s121 = sphi 0, %s107
      %s125 = sphi 0, %s125
      %s127 = sphi 0, %s125
      %s128 = sphi 0, %s127
      %s142 = sphi 0, %s128
      %s146 = sphi 0, %s146
      %s148 = sphi 0, %s146
      %s149 = sphi 0, %s148
      %s163 = sphi 0, %s149
      %s167 = sphi 0, %s167
      %s169 = sphi 0, %s167
      %s170 = sphi 0, %s169
      %s184 = sphi 0, %s170
      %s188 = sphi 0, %s188
      %s190 = sphi 0, %s188
      %s191 = sphi 0, %s190
      %s205 = sphi 0, %s191
      %s209 = sphi 0, %s209
      %s211 = sphi 0, %s209
      %s212 = sphi 0, %s211
      %s226 = sphi 0, %s212
      %s230 = sphi 0, %s230
      %s232 = sphi 0, %s230
      %s233 = sphi 0, %s232
      %s247 = sphi 0, %s233
      %s251 = sphi 0, %s251
      %s253 = sphi 0, %s251
      %s254 = sphi 0, %s253
      %s268 = sphi 0, %s254
      %s274 = sphi 0, %s276
      %s277 = sphi 0, %s274
      %s278 = sphi 0, %s277
      %s294 = sphi 0, %s278
    $region4: #{resblock_pallas.1} parent=1 // loop_header_branch
      %31 = sbr.rel (%p29) target = $region8
    $region5: #{resblock_pallas.1} parent=1 // loop_body
      %s33 = ssub.s32 %s28, 1
      %s34 = ssub.s32 %s28, 2
      %s35 = sadd.s32 %s28, 1
      %s36 = ssub.s32 %s28, %s35
      %p37 = scmp.eq.s32.totalorder %s36, 0
      %s39 = sadd.s32 %s38, 1
      %s40 = scalar_select %p37, %s38, %s39
      %p43 = pneg %p37
      %p44 = scmp.eq.s32.totalorder %s28, 1
      %p45 = por %p43, %p44
      %p46 = scmp.ne.s32.totalorder %s38, %s41
      %p47 = scmp.eq.s32.totalorder %s28, 0
      %p48 = por %p46, %p47
      %p49 = scmp.ne.s32.totalorder %s38, %s41
      %p50 = scmp.eq.s32.totalorder %s33, 1
      %p51 = por %p49, %p50
      %p52 = scmp.ne.s32.totalorder %s41, %s42
      %p53 = scmp.eq.s32.totalorder %s33, 0
      %p54 = por %p52, %p53
      %p55 = scmp.ne.s32.totalorder %s41, %s42
      %p56 = scmp.eq.s32.totalorder %s34, 1
      %p57 = por %p55, %p56
      %p59 = scmp.ne.s32.totalorder %s42, %s58
      %p60 = scmp.eq.s32.totalorder %s34, 0
      %p61 = por %p59, %p60
      %s63 = sadd.s32 %s62, 1
      %p66 = scmp.eq.s32.totalorder %s28, 1
      %p67 = scmp.ne.s32.totalorder %s62, %s64
      %p68 = scmp.eq.s32.totalorder %s28, 0
      %p69 = por %p67, %p68
      %p70 = scmp.ne.s32.totalorder %s62, %s64
      %p71 = scmp.eq.s32.totalorder %s33, 1
      %p72 = por %p70, %p71
      %p73 = scmp.ne.s32.totalorder %s64, %s65
      %p74 = scmp.eq.s32.totalorder %s33, 0
      %p75 = por %p73, %p74
      %p76 = scmp.ne.s32.totalorder %s64, %s65
      %p77 = scmp.eq.s32.totalorder %s34, 1
      %p78 = por %p76, %p77
      %p80 = scmp.ne.s32.totalorder %s65, %s79
      %p81 = scmp.eq.s32.totalorder %s34, 0
      %p82 = por %p80, %p81
      %s84 = sadd.s32 %s83, 1
      %p87 = scmp.eq.s32.totalorder %s28, 1
      %p88 = scmp.ne.s32.totalorder %s83, %s85
      %p89 = scmp.eq.s32.totalorder %s28, 0
      %p90 = por %p88, %p89
      %p91 = scmp.ne.s32.totalorder %s83, %s85
      %p92 = scmp.eq.s32.totalorder %s33, 1
      %p93 = por %p91, %p92
      %p94 = scmp.ne.s32.totalorder %s85, %s86
      %p95 = scmp.eq.s32.totalorder %s33, 0
      %p96 = por %p94, %p95
      %p97 = scmp.ne.s32.totalorder %s85, %s86
      %p98 = scmp.eq.s32.totalorder %s34, 1
      %p99 = por %p97, %p98
      %p101 = scmp.ne.s32.totalorder %s86, %s100
      %p102 = scmp.eq.s32.totalorder %s34, 0
      %p103 = por %p101, %p102
      %s105 = sadd.s32 %s104, 1
      %p108 = scmp.eq.s32.totalorder %s28, 1
      %p109 = scmp.ne.s32.totalorder %s104, %s106
      %p110 = scmp.eq.s32.totalorder %s28, 0
      %p111 = por %p109, %p110
      %p112 = scmp.ne.s32.totalorder %s104, %s106
      %p113 = scmp.eq.s32.totalorder %s33, 1
      %p114 = por %p112, %p113
      %p115 = scmp.ne.s32.totalorder %s106, %s107
      %p116 = scmp.eq.s32.totalorder %s33, 0
      %p117 = por %p115, %p116
      %p118 = scmp.ne.s32.totalorder %s106, %s107
      %p119 = scmp.eq.s32.totalorder %s34, 1
      %p120 = por %p118, %p119
      %p122 = scmp.ne.s32.totalorder %s107, %s121
      %p123 = scmp.eq.s32.totalorder %s34, 0
      %p124 = por %p122, %p123
      %s126 = sadd.s32 %s125, 1
      %p129 = scmp.eq.s32.totalorder %s28, 1
      %p130 = scmp.ne.s32.totalorder %s125, %s127
      %p131 = scmp.eq.s32.totalorder %s28, 0
      %p132 = por %p130, %p131
      %p133 = scmp.ne.s32.totalorder %s125, %s127
      %p134 = scmp.eq.s32.totalorder %s33, 1
      %p135 = por %p133, %p134
      %p136 = scmp.ne.s32.totalorder %s127, %s128
      %p137 = scmp.eq.s32.totalorder %s33, 0
      %p138 = por %p136, %p137
      %p139 = scmp.ne.s32.totalorder %s127, %s128
      %p140 = scmp.eq.s32.totalorder %s34, 1
      %p141 = por %p139, %p140
      %p143 = scmp.ne.s32.totalorder %s128, %s142
      %p144 = scmp.eq.s32.totalorder %s34, 0
      %p145 = por %p143, %p144
      %s147 = sadd.s32 %s146, 1
      %p150 = scmp.eq.s32.totalorder %s28, 1
      %p151 = scmp.ne.s32.totalorder %s146, %s148
      %p152 = scmp.eq.s32.totalorder %s28, 0
      %p153 = por %p151, %p152
      %p154 = scmp.ne.s32.totalorder %s146, %s148
      %p155 = scmp.eq.s32.totalorder %s33, 1
      %p156 = por %p154, %p155
      %p157 = scmp.ne.s32.totalorder %s148, %s149
      %p158 = scmp.eq.s32.totalorder %s33, 0
      %p159 = por %p157, %p158
      %p160 = scmp.ne.s32.totalorder %s148, %s149
      %p161 = scmp.eq.s32.totalorder %s34, 1
      %p162 = por %p160, %p161
      %p164 = scmp.ne.s32.totalorder %s149, %s163
      %p165 = scmp.eq.s32.totalorder %s34, 0
      %p166 = por %p164, %p165
      %s168 = sadd.s32 %s167, 1
      %p171 = scmp.eq.s32.totalorder %s28, 1
      %p172 = scmp.ne.s32.totalorder %s167, %s169
      %p173 = scmp.eq.s32.totalorder %s28, 0
      %p174 = por %p172, %p173
      %p175 = scmp.ne.s32.totalorder %s167, %s169
      %p176 = scmp.eq.s32.totalorder %s33, 1
      %p177 = por %p175, %p176
      %p178 = scmp.ne.s32.totalorder %s169, %s170
      %p179 = scmp.eq.s32.totalorder %s33, 0
      %p180 = por %p178, %p179
      %p181 = scmp.ne.s32.totalorder %s169, %s170
      %p182 = scmp.eq.s32.totalorder %s34, 1
      %p183 = por %p181, %p182
      %p185 = scmp.ne.s32.totalorder %s170, %s184
      %p186 = scmp.eq.s32.totalorder %s34, 0
      %p187 = por %p185, %p186
      %s189 = sadd.s32 %s188, 1
      %p192 = scmp.eq.s32.totalorder %s28, 1
      %p193 = scmp.ne.s32.totalorder %s188, %s190
      %p194 = scmp.eq.s32.totalorder %s28, 0
      %p195 = por %p193, %p194
      %p196 = scmp.ne.s32.totalorder %s188, %s190
      %p197 = scmp.eq.s32.totalorder %s33, 1
      %p198 = por %p196, %p197
      %p199 = scmp.ne.s32.totalorder %s190, %s191
      %p200 = scmp.eq.s32.totalorder %s33, 0
      %p201 = por %p199, %p200
      %p202 = scmp.ne.s32.totalorder %s190, %s191
      %p203 = scmp.eq.s32.totalorder %s34, 1
      %p204 = por %p202, %p203
      %p206 = scmp.ne.s32.totalorder %s191, %s205
      %p207 = scmp.eq.s32.totalorder %s34, 0
      %p208 = por %p206, %p207
      %s210 = sadd.s32 %s209, 1
      %p213 = scmp.eq.s32.totalorder %s28, 1
      %p214 = scmp.ne.s32.totalorder %s209, %s211
      %p215 = scmp.eq.s32.totalorder %s28, 0
      %p216 = por %p214, %p215
      %p217 = scmp.ne.s32.totalorder %s209, %s211
      %p218 = scmp.eq.s32.totalorder %s33, 1
      %p219 = por %p217, %p218
      %p220 = scmp.ne.s32.totalorder %s211, %s212
      %p221 = scmp.eq.s32.totalorder %s33, 0
      %p222 = por %p220, %p221
      %p223 = scmp.ne.s32.totalorder %s211, %s212
      %p224 = scmp.eq.s32.totalorder %s34, 1
      %p225 = por %p223, %p224
      %p227 = scmp.ne.s32.totalorder %s212, %s226
      %p228 = scmp.eq.s32.totalorder %s34, 0
      %p229 = por %p227, %p228
      %s231 = sadd.s32 %s230, 1
      %p234 = scmp.eq.s32.totalorder %s28, 1
      %p235 = scmp.ne.s32.totalorder %s230, %s232
      %p236 = scmp.eq.s32.totalorder %s28, 0
      %p237 = por %p235, %p236
      %p238 = scmp.ne.s32.totalorder %s230, %s232
      %p239 = scmp.eq.s32.totalorder %s33, 1
      %p240 = por %p238, %p239
      %p241 = scmp.ne.s32.totalorder %s232, %s233
      %p242 = scmp.eq.s32.totalorder %s33, 0
      %p243 = por %p241, %p242
      %p244 = scmp.ne.s32.totalorder %s232, %s233
      %p245 = scmp.eq.s32.totalorder %s34, 1
      %p246 = por %p244, %p245
      %p248 = scmp.ne.s32.totalorder %s233, %s247
      %p249 = scmp.eq.s32.totalorder %s34, 0
      %p250 = por %p248, %p249
      %s252 = sadd.s32 %s251, 1
      %p255 = scmp.eq.s32.totalorder %s28, 1
      %p256 = scmp.ne.s32.totalorder %s251, %s253
      %p257 = scmp.eq.s32.totalorder %s28, 0
      %p258 = por %p256, %p257
      %p259 = scmp.ne.s32.totalorder %s251, %s253
      %p260 = scmp.eq.s32.totalorder %s33, 1
      %p261 = por %p259, %p260
      %p262 = scmp.ne.s32.totalorder %s253, %s254
      %p263 = scmp.eq.s32.totalorder %s33, 0
      %p264 = por %p262, %p263
      %p265 = scmp.ne.s32.totalorder %s253, %s254
      %p266 = scmp.eq.s32.totalorder %s34, 1
      %p267 = por %p265, %p266
      %p269 = scmp.ne.s32.totalorder %s254, %s268
      %p270 = scmp.eq.s32.totalorder %s34, 0
      %p271 = por %p269, %p270
      %s272 = ssub.s32 %s28, %s35
      %p273 = scmp.eq.s32.totalorder %s272, 0
      %s275 = sadd.s32 %s274, 1
      %s276 = scalar_select %p273, %s274, %s275
      %p279 = pneg %p273
      %p280 = scmp.eq.s32.totalorder %s28, 1
      %p281 = por %p279, %p280
      %p282 = scmp.ne.s32.totalorder %s274, %s277
      %p283 = scmp.eq.s32.totalorder %s28, 0
      %p284 = por %p282, %p283
      %p285 = scmp.ne.s32.totalorder %s274, %s277
      %p286 = scmp.eq.s32.totalorder %s33, 1
      %p287 = por %p285, %p286
      %p288 = scmp.ne.s32.totalorder %s277, %s278
      %p289 = scmp.eq.s32.totalorder %s33, 0
      %p290 = por %p288, %p289
      %p291 = scmp.ne.s32.totalorder %s277, %s278
      %p292 = scmp.eq.s32.totalorder %s34, 1
      %p293 = por %p291, %p292
      %p295 = scmp.ne.s32.totalorder %s278, %s294
      %p296 = scmp.eq.s32.totalorder %s34, 0
      %p297 = por %p295, %p296
      %p298 = scmp.le.s32.totalorder 1, %s28
      %p299 = scmp.lt.s32.totalorder %s28, 3
      %p300 = pnand %p298, %p299
      %p301 = pneg %p300
      // Predicated region
      $region9: #{resblock_pallas.1} parent=5 // pred_check
        _
      $region10: #{resblock_pallas.1} parent=5 // pred_check_branch
        %303 = sbr.rel (%p300) target = $region12
      $region11: #{resblock_pallas.1} parent=5 // pred_region
        %s304 = ssub.s32 %s28, 1
        // Predicated region
        $region13: #{resblock_pallas.1} parent=11 // pred_check
          %p305 = pneg %p75
        $region14: #{resblock_pallas.1} parent=11 // pred_check_branch
          %307 = sbr.rel (%p305) target = $region16
        $region15: #{resblock_pallas.1} parent=11 // pred_region
          %s309 = ssub.s32 4608, 4608
          %310 = vsyncadd [#allocation8], %s309
          %s311 = sshll.u32 [#allocation7], 4
          %s312 = int_to_ptr.vmem [resolvable:$true] %s311
          %317 = dma.hbm_to_vmem [thread:$0]  %s1, 4608, %s312, [#allocation8], 64, 64, 4
        $region16: #{resblock_pallas.1} parent=11 // pred_fallthru
          _
        // Predicated region
        $region17: #{resblock_pallas.1} parent=11 // pred_check
          %p318 = pneg %p96
        $region18: #{resblock_pallas.1} parent=11 // pred_check_branch
          %320 = sbr.rel (%p318) target = $region20
        $region19: #{resblock_pallas.1} parent=11 // pred_region
          %s322 = ssub.s32 16, 16
          %323 = vsyncadd [#allocation8], %s322
          %s325 = sshll.u32 [#allocation9], 4
          %s326 = int_to_ptr.vmem [resolvable:$true] %s325
          %328 = dma.hbm_to_vmem [thread:$0]  %s2, 16, %s326, [#allocation8]
        $region20: #{resblock_pallas.1} parent=11 // pred_fallthru
          _
        // Predicated region
        $region21: #{resblock_pallas.1} parent=11 // pred_check
          %p329 = pneg %p117
        $region22: #{resblock_pallas.1} parent=11 // pred_check_branch
          %331 = sbr.rel (%p329) target = $region24
        $region23: #{resblock_pallas.1} parent=11 // pred_region
          %s333 = ssub.s32 4608, 4608
          %334 = vsyncadd [#allocation11], %s333
          %s335 = sshll.u32 [#allocation10], 4
          %s336 = int_to_ptr.vmem [resolvable:$true] %s335
          %341 = dma.hbm_to_vmem [thread:$0]  %s3, 4608, %s336, [#allocation11], 64, 64, 4
        $region24: #{resblock_pallas.1} parent=11 // pred_fallthru
          _
        // Predicated region
        $region25: #{resblock_pallas.1} parent=11 // pred_check
          %p342 = pneg %p138
        $region26: #{resblock_pallas.1} parent=11 // pred_check_branch
          %344 = sbr.rel (%p342) target = $region28
        $region27: #{resblock_pallas.1} parent=11 // pred_region
          %s346 = ssub.s32 16, 16
          %347 = vsyncadd [#allocation11], %s346
          %s349 = sshll.u32 [#allocation12], 4
          %s350 = int_to_ptr.vmem [resolvable:$true] %s349
          %352 = dma.hbm_to_vmem [thread:$0]  %s4, 16, %s350, [#allocation11]
        $region28: #{resblock_pallas.1} parent=11 // pred_fallthru
          _
        // Predicated region
        $region29: #{resblock_pallas.1} parent=11 // pred_check
          %p353 = pneg %p159
        $region30: #{resblock_pallas.1} parent=11 // pred_check_branch
          %355 = sbr.rel (%p353) target = $region32
        $region31: #{resblock_pallas.1} parent=11 // pred_region
          %s357 = ssub.s32 4608, 4608
          %358 = vsyncadd [#allocation14], %s357
          %s359 = sshll.u32 [#allocation13], 4
          %s360 = int_to_ptr.vmem [resolvable:$true] %s359
          %365 = dma.hbm_to_vmem [thread:$0]  %s5, 4608, %s360, [#allocation14], 64, 64, 4
        $region32: #{resblock_pallas.1} parent=11 // pred_fallthru
          _
        // Predicated region
        $region33: #{resblock_pallas.1} parent=11 // pred_check
          %p366 = pneg %p180
        $region34: #{resblock_pallas.1} parent=11 // pred_check_branch
          %368 = sbr.rel (%p366) target = $region36
        $region35: #{resblock_pallas.1} parent=11 // pred_region
          %s370 = ssub.s32 16, 16
          %371 = vsyncadd [#allocation14], %s370
          %s373 = sshll.u32 [#allocation15], 4
          %s374 = int_to_ptr.vmem [resolvable:$true] %s373
          %376 = dma.hbm_to_vmem [thread:$0]  %s6, 16, %s374, [#allocation14]
        $region36: #{resblock_pallas.1} parent=11 // pred_fallthru
          _
        // Predicated region
        $region37: #{resblock_pallas.1} parent=11 // pred_check
          %p377 = pneg %p201
        $region38: #{resblock_pallas.1} parent=11 // pred_check_branch
          %379 = sbr.rel (%p377) target = $region40
        $region39: #{resblock_pallas.1} parent=11 // pred_region
          %s381 = ssub.s32 4608, 4608
          %382 = vsyncadd [#allocation17], %s381
          %s383 = sshll.u32 [#allocation16], 4
          %s384 = int_to_ptr.vmem [resolvable:$true] %s383
          %389 = dma.hbm_to_vmem [thread:$0]  %s7, 4608, %s384, [#allocation17], 64, 64, 4
        $region40: #{resblock_pallas.1} parent=11 // pred_fallthru
          _
        // Predicated region
        $region41: #{resblock_pallas.1} parent=11 // pred_check
          %p390 = pneg %p222
        $region42: #{resblock_pallas.1} parent=11 // pred_check_branch
          %392 = sbr.rel (%p390) target = $region44
        $region43: #{resblock_pallas.1} parent=11 // pred_region
          %s394 = ssub.s32 16, 16
          %395 = vsyncadd [#allocation17], %s394
          %s397 = sshll.u32 [#allocation18], 4
          %s398 = int_to_ptr.vmem [resolvable:$true] %s397
          %400 = dma.hbm_to_vmem [thread:$0]  %s8, 16, %s398, [#allocation17]
        $region44: #{resblock_pallas.1} parent=11 // pred_fallthru
          _
        // Predicated region
        $region45: #{resblock_pallas.1} parent=11 // pred_check
          %p401 = pneg %p243
        $region46: #{resblock_pallas.1} parent=11 // pred_check_branch
          %403 = sbr.rel (%p401) target = $region48
        $region47: #{resblock_pallas.1} parent=11 // pred_region
          %s405 = ssub.s32 4608, 4608
          %406 = vsyncadd [#allocation20], %s405
          %s407 = sshll.u32 [#allocation19], 4
          %s408 = int_to_ptr.vmem [resolvable:$true] %s407
          %413 = dma.hbm_to_vmem [thread:$0]  %s9, 4608, %s408, [#allocation20], 64, 64, 4
        $region48: #{resblock_pallas.1} parent=11 // pred_fallthru
          _
        // Predicated region
        $region49: #{resblock_pallas.1} parent=11 // pred_check
          %p414 = pneg %p264
        $region50: #{resblock_pallas.1} parent=11 // pred_check_branch
          %416 = sbr.rel (%p414) target = $region52
        $region51: #{resblock_pallas.1} parent=11 // pred_region
          %s418 = ssub.s32 16, 16
          %419 = vsyncadd [#allocation20], %s418
          %s421 = sshll.u32 [#allocation21], 4
          %s422 = int_to_ptr.vmem [resolvable:$true] %s421
          %424 = dma.hbm_to_vmem [thread:$0]  %s10, 16, %s422, [#allocation20]
        $region52: #{resblock_pallas.1} parent=11 // pred_fallthru
          _
      $region12: #{resblock_pallas.1} parent=5 // pred_fallthru
        _
      %p425 = scmp.lt.s32.totalorder %s28, 2
      // Predicated region
      $region53: #{resblock_pallas.1} parent=5 // pred_check
        %p426 = pneg %p425
      $region54: #{resblock_pallas.1} parent=5 // pred_check_branch
        %428 = sbr.rel (%p426) target = $region56
      $region55: #{resblock_pallas.1} parent=5 // pred_region
        // Predicated region
        $region57: #{resblock_pallas.1} parent=55 // pred_check
          %p429 = pneg %p48
        $region58: #{resblock_pallas.1} parent=55 // pred_check_branch
          %431 = sbr.rel (%p429) target = $region60
        $region59: #{resblock_pallas.1} parent=55 // pred_region
          %s432 = sand.u32 %s38, 1
          %s433 = scalar_lea.sflag [#allocation5], %s432
          %s434 = sand.u32 %s38, 1
          %s435 = smul.addr %s434, 256
          %s436 = scalar_lea.vmem [#allocation4], %s435
          %s438 = ssub.s32 4096, 4096
          %439 = vsyncadd %s433, %s438
          %s440 = smul.addr %s28, 32
          %s441 = smul.addr %s440, 128
          %s442 = scalar_lea.hbm %s0, %s441
          %s443 = sshll.u32 %s436, 4
          %s444 = int_to_ptr.vmem [resolvable:$true] %s443
          %449 = dma.hbm_to_vmem [thread:$0]  %s442, 4096, %s444, %s433, 128, 128, 8
        $region60: #{resblock_pallas.1} parent=55 // pred_fallthru
          _
      $region56: #{resblock_pallas.1} parent=5 // pred_fallthru
        _
      %p450 = scmp.le.s32.totalorder 1, %s28
      %p451 = scmp.lt.s32.totalorder %s28, 3
      %p452 = pnand %p450, %p451
      %p453 = pneg %p452
      // Predicated region
      $region61: #{resblock_pallas.1} parent=5 // pred_check
        _
      $region62: #{resblock_pallas.1} parent=5 // pred_check_branch
        %455 = sbr.rel (%p452) target = $region64
      $region63: #{resblock_pallas.1} parent=5 // pred_region
        %s456 = ssub.s32 %s28, 1
        %s457 = sand.u32 %s41, 1
        %s458 = scalar_lea.sflag [#allocation5], %s457
        %s459 = sand.u32 %s41, 1
        %s460 = smul.addr %s459, 256
        %s461 = scalar_lea.vmem [#allocation4], %s460
        // Predicated region
        $region65: #{resblock_pallas.1} parent=63 // pred_check
          %p462 = pneg %p54
        $region66: #{resblock_pallas.1} parent=63 // pred_check_branch
          %464 = sbr.rel (%p462) target = $region68
        $region67: #{resblock_pallas.1} parent=63 // pred_region
          %465 = dma.done %s458, 4096
        $region68: #{resblock_pallas.1} parent=63 // pred_fallthru
          _
        // Predicated region
        $region69: #{resblock_pallas.1} parent=63 // pred_check
          %p466 = pneg %p75
        $region70: #{resblock_pallas.1} parent=63 // pred_check_branch
          %468 = sbr.rel (%p466) target = $region72
        $region71: #{resblock_pallas.1} parent=63 // pred_region
          %469 = dma.done [#allocation8], 4608
        $region72: #{resblock_pallas.1} parent=63 // pred_fallthru
          _
        // Predicated region
        $region73: #{resblock_pallas.1} parent=63 // pred_check
          %p470 = pneg %p96
        $region74: #{resblock_pallas.1} parent=63 // pred_check_branch
          %472 = sbr.rel (%p470) target = $region76
        $region75: #{resblock_pallas.1} parent=63 // pred_region
          %473 = dma.done [#allocation8], 16
        $region76: #{resblock_pallas.1} parent=63 // pred_fallthru
          _
        // Predicated region
        $region77: #{resblock_pallas.1} parent=63 // pred_check
          %p474 = pneg %p117
        $region78: #{resblock_pallas.1} parent=63 // pred_check_branch
          %476 = sbr.rel (%p474) target = $region80
        $region79: #{resblock_pallas.1} parent=63 // pred_region
          %477 = dma.done [#allocation11], 4608
        $region80: #{resblock_pallas.1} parent=63 // pred_fallthru
          _
        // Predicated region
        $region81: #{resblock_pallas.1} parent=63 // pred_check
          %p478 = pneg %p138
        $region82: #{resblock_pallas.1} parent=63 // pred_check_branch
          %480 = sbr.rel (%p478) target = $region84
        $region83: #{resblock_pallas.1} parent=63 // pred_region
          %481 = dma.done [#allocation11], 16
        $region84: #{resblock_pallas.1} parent=63 // pred_fallthru
          _
        // Predicated region
        $region85: #{resblock_pallas.1} parent=63 // pred_check
          %p482 = pneg %p159
        $region86: #{resblock_pallas.1} parent=63 // pred_check_branch
          %484 = sbr.rel (%p482) target = $region88
        $region87: #{resblock_pallas.1} parent=63 // pred_region
          %485 = dma.done [#allocation14], 4608
        $region88: #{resblock_pallas.1} parent=63 // pred_fallthru
          _
        // Predicated region
        $region89: #{resblock_pallas.1} parent=63 // pred_check
          %p486 = pneg %p180
        $region90: #{resblock_pallas.1} parent=63 // pred_check_branch
          %488 = sbr.rel (%p486) target = $region92
        $region91: #{resblock_pallas.1} parent=63 // pred_region
          %489 = dma.done [#allocation14], 16
        $region92: #{resblock_pallas.1} parent=63 // pred_fallthru
          _
        // Predicated region
        $region93: #{resblock_pallas.1} parent=63 // pred_check
          %p490 = pneg %p201
        $region94: #{resblock_pallas.1} parent=63 // pred_check_branch
          %492 = sbr.rel (%p490) target = $region96
        $region95: #{resblock_pallas.1} parent=63 // pred_region
          %493 = dma.done [#allocation17], 4608
        $region96: #{resblock_pallas.1} parent=63 // pred_fallthru
          _
        // Predicated region
        $region97: #{resblock_pallas.1} parent=63 // pred_check
          %p494 = pneg %p222
        $region98: #{resblock_pallas.1} parent=63 // pred_check_branch
          %496 = sbr.rel (%p494) target = $region100
        $region99: #{resblock_pallas.1} parent=63 // pred_region
          %497 = dma.done [#allocation17], 16
        $region100: #{resblock_pallas.1} parent=63 // pred_fallthru
          _
        // Predicated region
        $region101: #{resblock_pallas.1} parent=63 // pred_check
          %p498 = pneg %p243
        $region102: #{resblock_pallas.1} parent=63 // pred_check_branch
          %500 = sbr.rel (%p498) target = $region104
        $region103: #{resblock_pallas.1} parent=63 // pred_region
          %501 = dma.done [#allocation20], 4608
        $region104: #{resblock_pallas.1} parent=63 // pred_fallthru
          _
        // Predicated region
        $region105: #{resblock_pallas.1} parent=63 // pred_check
          %p502 = pneg %p264
        $region106: #{resblock_pallas.1} parent=63 // pred_check_branch
          %504 = sbr.rel (%p502) target = $region108
        $region107: #{resblock_pallas.1} parent=63 // pred_region
          %505 = dma.done [#allocation20], 16
        $region108: #{resblock_pallas.1} parent=63 // pred_fallthru
          _
        %s506 = sand.u32 %s41, 1
        %s507 = scalar_lea.sflag [#allocation5], %s506
        %s508 = sand.u32 %s41, 1
        %s509 = smul.addr %s508, 256
        %s510 = scalar_lea.vmem [#allocation4], %s509
        %p511 = pneg %p54
        %p512 = pneg %p51
        %p513 = pneg %p75
        %p514 = pneg %p72
        %p515 = pneg %p96
        %p516 = pneg %p93
        %p517 = pneg %p117
        %p518 = pneg %p114
        %p519 = pneg %p138
        %p520 = pneg %p135
        %p521 = pneg %p159
        %p522 = pneg %p156
        %p523 = pneg %p180
        %p524 = pneg %p177
        %p525 = pneg %p201
        %p526 = pneg %p198
        %p527 = pneg %p222
        %p528 = pneg %p219
        %p529 = pneg %p243
        %p530 = pneg %p240
        %p531 = pneg %p264
        %p532 = pneg %p261
        %p533 = pneg %p290
        %p534 = pneg %p287
        %s535 = sand.u32 %s277, 1
        %s536 = scalar_lea.sflag [#allocation6], %s535
        %s537 = sand.u32 %s277, 1
        %s538 = smul.addr %s537, 256
        %s539 = scalar_lea.vmem [#allocation22], %s538
        %vm541 = vcmask 523264
        %542 = vst.msk [vmem:[#allocation2] sm:$0xff] %vm541, 0.0
        %543 = vst.msk [vmem:[#allocation2 + $0x8] sm:$0xff] %vm541, 0.0
        %544 = vst.msk [vmem:[#allocation2 + $0x10] sm:$0xff] %vm541, 0.0
        %s545 = scalar_lea.vmem [#allocation2], 408
        %546 = vst.msk [vmem:[%s545] sm:$0xff] %vm541, 0.0
        %547 = vst.msk [vmem:[%s545 + $0x8] sm:$0xff] %vm541, 0.0
        %548 = vst.msk [vmem:[%s545 + $0x10] sm:$0xff] %vm541, 0.0
        %vm549 = vcmask 516096
        %550 = vst.msk [vmem:[#allocation2] sm:$0x1] %vm549, 0.0
        %551 = vst.msk [vmem:[#allocation2 + $0x18] sm:$0x1] %vm549, 0.0
        %552 = vst.msk [vmem:[#allocation2 + $0x30] sm:$0x1] %vm549, 0.0
        %553 = vst.msk [vmem:[#allocation2 + $0x48] sm:$0x1] %vm549, 0.0
        %554 = vst.msk [vmem:[#allocation2 + $0x60] sm:$0x1] %vm549, 0.0
        %555 = vst.msk [vmem:[#allocation2 + $0x78] sm:$0x1] %vm549, 0.0
        %556 = vst.msk [vmem:[#allocation2 + $0x90] sm:$0x1] %vm549, 0.0
        %557 = vst.msk [vmem:[#allocation2 + $0xa8] sm:$0x1] %vm549, 0.0
        %558 = vst.msk [vmem:[#allocation2 + $0xc0] sm:$0x1] %vm549, 0.0
        %559 = vst.msk [vmem:[#allocation2 + $0xd8] sm:$0x1] %vm549, 0.0
        %560 = vst.msk [vmem:[#allocation2 + $0xf0] sm:$0x1] %vm549, 0.0
        %561 = vst.msk [vmem:[#allocation2 + $0x108] sm:$0x1] %vm549, 0.0
        %562 = vst.msk [vmem:[#allocation2 + $0x120] sm:$0x1] %vm549, 0.0
        %563 = vst.msk [vmem:[#allocation2 + $0x138] sm:$0x1] %vm549, 0.0
        %564 = vst.msk [vmem:[#allocation2 + $0x150] sm:$0x1] %vm549, 0.0
        %565 = vst.msk [vmem:[#allocation2 + $0x168] sm:$0x1] %vm549, 0.0
        %566 = vst.msk [vmem:[#allocation2 + $0x180] sm:$0x1] %vm549, 0.0
        %567 = vst.msk [vmem:[#allocation2 + $0x198] sm:$0x1] %vm549, 0.0
        %568 = vst.msk [vmem:[#allocation2 + $0x11] sm:$0x1] %vm549, 0.0
        %569 = vst.msk [vmem:[#allocation2 + $0x29] sm:$0x1] %vm549, 0.0
        %570 = vst.msk [vmem:[#allocation2 + $0x41] sm:$0x1] %vm549, 0.0
        %571 = vst.msk [vmem:[#allocation2 + $0x59] sm:$0x1] %vm549, 0.0
        %572 = vst.msk [vmem:[#allocation2 + $0x71] sm:$0x1] %vm549, 0.0
        %573 = vst.msk [vmem:[#allocation2 + $0x89] sm:$0x1] %vm549, 0.0
        %574 = vst.msk [vmem:[#allocation2 + $0xa1] sm:$0x1] %vm549, 0.0
        %575 = vst.msk [vmem:[#allocation2 + $0xb9] sm:$0x1] %vm549, 0.0
        %576 = vst.msk [vmem:[#allocation2 + $0xd1] sm:$0x1] %vm549, 0.0
        %577 = vst.msk [vmem:[#allocation2 + $0xe9] sm:$0x1] %vm549, 0.0
        %578 = vst.msk [vmem:[#allocation2 + $0x101] sm:$0x1] %vm549, 0.0
        %579 = vst.msk [vmem:[#allocation2 + $0x119] sm:$0x1] %vm549, 0.0
        %580 = vst.msk [vmem:[#allocation2 + $0x131] sm:$0x1] %vm549, 0.0
        %581 = vst.msk [vmem:[#allocation2 + $0x149] sm:$0x1] %vm549, 0.0
        %582 = vst.msk [vmem:[#allocation2 + $0x161] sm:$0x1] %vm549, 0.0
        %583 = vst.msk [vmem:[#allocation2 + $0x179] sm:$0x1] %vm549, 0.0
        %584 = vst.msk [vmem:[#allocation2 + $0x191] sm:$0x1] %vm549, 0.0
        %585 = vst.msk [vmem:[#allocation2 + $0x1a9] sm:$0x1] %vm549, 0.0
        %586 = vst.msk [vmem:[#allocation3] sm:$0xff] %vm541, 0.0
        %587 = vst.msk [vmem:[#allocation3 + $0x8] sm:$0xff] %vm541, 0.0
        %588 = vst.msk [vmem:[#allocation3 + $0x10] sm:$0xff] %vm541, 0.0
        %s589 = scalar_lea.vmem [#allocation3], 408
        %590 = vst.msk [vmem:[%s589] sm:$0xff] %vm541, 0.0
        %591 = vst.msk [vmem:[%s589 + $0x8] sm:$0xff] %vm541, 0.0
        %592 = vst.msk [vmem:[%s589 + $0x10] sm:$0xff] %vm541, 0.0
        %593 = vst.msk [vmem:[#allocation3] sm:$0x1] %vm549, 0.0
        %594 = vst.msk [vmem:[#allocation3 + $0x18] sm:$0x1] %vm549, 0.0
        %595 = vst.msk [vmem:[#allocation3 + $0x30] sm:$0x1] %vm549, 0.0
        %596 = vst.msk [vmem:[#allocation3 + $0x48] sm:$0x1] %vm549, 0.0
        %597 = vst.msk [vmem:[#allocation3 + $0x60] sm:$0x1] %vm549, 0.0
        %598 = vst.msk [vmem:[#allocation3 + $0x78] sm:$0x1] %vm549, 0.0
        %599 = vst.msk [vmem:[#allocation3 + $0x90] sm:$0x1] %vm549, 0.0
        %600 = vst.msk [vmem:[#allocation3 + $0xa8] sm:$0x1] %vm549, 0.0
        %601 = vst.msk [vmem:[#allocation3 + $0xc0] sm:$0x1] %vm549, 0.0
        %602 = vst.msk [vmem:[#allocation3 + $0xd8] sm:$0x1] %vm549, 0.0
        %603 = vst.msk [vmem:[#allocation3 + $0xf0] sm:$0x1] %vm549, 0.0
        %604 = vst.msk [vmem:[#allocation3 + $0x108] sm:$0x1] %vm549, 0.0
        %605 = vst.msk [vmem:[#allocation3 + $0x120] sm:$0x1] %vm549, 0.0
        %606 = vst.msk [vmem:[#allocation3 + $0x138] sm:$0x1] %vm549, 0.0
        %607 = vst.msk [vmem:[#allocation3 + $0x150] sm:$0x1] %vm549, 0.0
        %608 = vst.msk [vmem:[#allocation3 + $0x168] sm:$0x1] %vm549, 0.0
        %609 = vst.msk [vmem:[#allocation3 + $0x180] sm:$0x1] %vm549, 0.0
        %610 = vst.msk [vmem:[#allocation3 + $0x198] sm:$0x1] %vm549, 0.0
        %611 = vst.msk [vmem:[#allocation3 + $0x11] sm:$0x1] %vm549, 0.0
        %612 = vst.msk [vmem:[#allocation3 + $0x29] sm:$0x1] %vm549, 0.0
        %613 = vst.msk [vmem:[#allocation3 + $0x41] sm:$0x1] %vm549, 0.0
        %614 = vst.msk [vmem:[#allocation3 + $0x59] sm:$0x1] %vm549, 0.0
        %615 = vst.msk [vmem:[#allocation3 + $0x71] sm:$0x1] %vm549, 0.0
        %616 = vst.msk [vmem:[#allocation3 + $0x89] sm:$0x1] %vm549, 0.0
        %617 = vst.msk [vmem:[#allocation3 + $0xa1] sm:$0x1] %vm549, 0.0
        %618 = vst.msk [vmem:[#allocation3 + $0xb9] sm:$0x1] %vm549, 0.0
        %619 = vst.msk [vmem:[#allocation3 + $0xd1] sm:$0x1] %vm549, 0.0
        %620 = vst.msk [vmem:[#allocation3 + $0xe9] sm:$0x1] %vm549, 0.0
        %621 = vst.msk [vmem:[#allocation3 + $0x101] sm:$0x1] %vm549, 0.0
        %622 = vst.msk [vmem:[#allocation3 + $0x119] sm:$0x1] %vm549, 0.0
        %623 = vst.msk [vmem:[#allocation3 + $0x131] sm:$0x1] %vm549, 0.0
        %624 = vst.msk [vmem:[#allocation3 + $0x149] sm:$0x1] %vm549, 0.0
        %625 = vst.msk [vmem:[#allocation3 + $0x161] sm:$0x1] %vm549, 0.0
        %626 = vst.msk [vmem:[#allocation3 + $0x179] sm:$0x1] %vm549, 0.0
        %627 = vst.msk [vmem:[#allocation3 + $0x191] sm:$0x1] %vm549, 0.0
        %628 = vst.msk [vmem:[#allocation3 + $0x1a9] sm:$0x1] %vm549, 0.0
        %v629 = vld [vmem:[%s461] sm:$0xff]
        %v630 = vld [vmem:[%s461 + $0x8] sm:$0xff]
        %v631 = vld [vmem:[%s461 + $0x10] sm:$0xff]
        %v632 = vld [vmem:[%s461 + $0x18] sm:$0xff]
        %v633 = vld [vmem:[%s461 + $0x20] sm:$0xff]
        %v634 = vld [vmem:[%s461 + $0x28] sm:$0xff]
        %v635 = vld [vmem:[%s461 + $0x30] sm:$0xff]
        %v636 = vld [vmem:[%s461 + $0x38] sm:$0xff]
        %v637 = vld [vmem:[%s461 + $0x40] sm:$0xff]
        %v638 = vld [vmem:[%s461 + $0x48] sm:$0xff]
        %v639 = vld [vmem:[%s461 + $0x50] sm:$0xff]
        %v640 = vld [vmem:[%s461 + $0x58] sm:$0xff]
        %v641 = vld [vmem:[%s461 + $0x60] sm:$0xff]
        %v642 = vld [vmem:[%s461 + $0x68] sm:$0xff]
        %v643 = vld [vmem:[%s461 + $0x70] sm:$0xff]
        %v644 = vld [vmem:[%s461 + $0x78] sm:$0xff]
        %v645 = vld [vmem:[%s461 + $0x80] sm:$0xff]
        %v646 = vld [vmem:[%s461 + $0x88] sm:$0xff]
        %v647 = vld [vmem:[%s461 + $0x90] sm:$0xff]
        %v648 = vld [vmem:[%s461 + $0x98] sm:$0xff]
        %v649 = vld [vmem:[%s461 + $0xa0] sm:$0xff]
        %v650 = vld [vmem:[%s461 + $0xa8] sm:$0xff]
        %v651 = vld [vmem:[%s461 + $0xb0] sm:$0xff]
        %v652 = vld [vmem:[%s461 + $0xb8] sm:$0xff]
        %v653 = vld [vmem:[%s461 + $0xc0] sm:$0xff]
        %v654 = vld [vmem:[%s461 + $0xc8] sm:$0xff]
        %v655 = vld [vmem:[%s461 + $0xd0] sm:$0xff]
        %v656 = vld [vmem:[%s461 + $0xd8] sm:$0xff]
        %v657 = vld [vmem:[%s461 + $0xe0] sm:$0xff]
        %v658 = vld [vmem:[%s461 + $0xe8] sm:$0xff]
        %v659 = vld [vmem:[%s461 + $0xf0] sm:$0xff]
        %v660 = vld [vmem:[%s461 + $0xf8] sm:$0xff]
        %s661 = scalar_lea.vmem [#allocation2], 24
        %662 = vst.msk [vmem:[%s661 + $0x1] sm:$0xff] %vm541, %v629
        %663 = vst.msk [vmem:[%s661 + $0x9] sm:$0xff] %vm541, %v630
        %664 = vst.msk [vmem:[%s661 + $0x19] sm:$0xff] %vm541, %v631
        %665 = vst.msk [vmem:[%s661 + $0x21] sm:$0xff] %vm541, %v632
        %666 = vst.msk [vmem:[%s661 + $0x31] sm:$0xff] %vm541, %v633
        %667 = vst.msk [vmem:[%s661 + $0x39] sm:$0xff] %vm541, %v634
        %668 = vst.msk [vmem:[%s661 + $0x49] sm:$0xff] %vm541, %v635
        %669 = vst.msk [vmem:[%s661 + $0x51] sm:$0xff] %vm541, %v636
        %670 = vst.msk [vmem:[%s661 + $0x61] sm:$0xff] %vm541, %v637
        %671 = vst.msk [vmem:[%s661 + $0x69] sm:$0xff] %vm541, %v638
        %672 = vst.msk [vmem:[%s661 + $0x79] sm:$0xff] %vm541, %v639
        %673 = vst.msk [vmem:[%s661 + $0x81] sm:$0xff] %vm541, %v640
        %674 = vst.msk [vmem:[%s661 + $0x91] sm:$0xff] %vm541, %v641
        %675 = vst.msk [vmem:[%s661 + $0x99] sm:$0xff] %vm541, %v642
        %676 = vst.msk [vmem:[%s661 + $0xa9] sm:$0xff] %vm541, %v643
        %677 = vst.msk [vmem:[%s661 + $0xb1] sm:$0xff] %vm541, %v644
        %678 = vst.msk [vmem:[%s661 + $0xc1] sm:$0xff] %vm541, %v645
        %679 = vst.msk [vmem:[%s661 + $0xc9] sm:$0xff] %vm541, %v646
        %680 = vst.msk [vmem:[%s661 + $0xd9] sm:$0xff] %vm541, %v647
        %681 = vst.msk [vmem:[%s661 + $0xe1] sm:$0xff] %vm541, %v648
        %682 = vst.msk [vmem:[%s661 + $0xf1] sm:$0xff] %vm541, %v649
        %683 = vst.msk [vmem:[%s661 + $0xf9] sm:$0xff] %vm541, %v650
        %684 = vst.msk [vmem:[%s661 + $0x109] sm:$0xff] %vm541, %v651
        %685 = vst.msk [vmem:[%s661 + $0x111] sm:$0xff] %vm541, %v652
        %686 = vst.msk [vmem:[%s661 + $0x121] sm:$0xff] %vm541, %v653
        %687 = vst.msk [vmem:[%s661 + $0x129] sm:$0xff] %vm541, %v654
        %688 = vst.msk [vmem:[%s661 + $0x139] sm:$0xff] %vm541, %v655
        %689 = vst.msk [vmem:[%s661 + $0x141] sm:$0xff] %vm541, %v656
        %690 = vst.msk [vmem:[%s661 + $0x151] sm:$0xff] %vm541, %v657
        %691 = vst.msk [vmem:[%s661 + $0x159] sm:$0xff] %vm541, %v658
        %692 = vst.msk [vmem:[%s661 + $0x169] sm:$0xff] %vm541, %v659
        %693 = vst.msk [vmem:[%s661 + $0x171] sm:$0xff] %vm541, %v660
        %v694 = vld [vmem:[#allocation2] sm:$0xff]
        %v695 = vld [vmem:[#allocation2 + $0x8] sm:$0xff]
        %v696 = vld [vmem:[#allocation2 + $0x18] sm:$0xff]
        %v697 = vld [vmem:[#allocation2 + $0x20] sm:$0xff]
        %v698 = vld [vmem:[#allocation2 + $0x30] sm:$0xff]
        %v699 = vld [vmem:[#allocation2 + $0x38] sm:$0xff]
        %v700 = vld [vmem:[#allocation2 + $0x48] sm:$0xff]
        %v701 = vld [vmem:[#allocation2 + $0x50] sm:$0xff]
        %v702 = vld [vmem:[#allocation2 + $0x60] sm:$0xff]
        %v703 = vld [vmem:[#allocation2 + $0x68] sm:$0xff]
        %v704 = vld [vmem:[#allocation2 + $0x78] sm:$0xff]
        %v705 = vld [vmem:[#allocation2 + $0x80] sm:$0xff]
        %v706 = vld [vmem:[#allocation2 + $0x90] sm:$0xff]
        %v707 = vld [vmem:[#allocation2 + $0x98] sm:$0xff]
        %v708 = vld [vmem:[#allocation2 + $0xa8] sm:$0xff]
        %v709 = vld [vmem:[#allocation2 + $0xb0] sm:$0xff]
        %v710 = vld [vmem:[#allocation2 + $0xc0] sm:$0xff]
        %v711 = vld [vmem:[#allocation2 + $0xc8] sm:$0xff]
        %v712 = vld [vmem:[#allocation2 + $0xd8] sm:$0xff]
        %v713 = vld [vmem:[#allocation2 + $0xe0] sm:$0xff]
        %v714 = vld [vmem:[#allocation2 + $0xf0] sm:$0xff]
        %v715 = vld [vmem:[#allocation2 + $0xf8] sm:$0xff]
        %v716 = vld [vmem:[#allocation2 + $0x108] sm:$0xff]
        %v717 = vld [vmem:[#allocation2 + $0x110] sm:$0xff]
        %v718 = vld [vmem:[#allocation2 + $0x120] sm:$0xff]
        %v719 = vld [vmem:[#allocation2 + $0x128] sm:$0xff]
        %v720 = vld [vmem:[#allocation2 + $0x138] sm:$0xff]
        %v721 = vld [vmem:[#allocation2 + $0x140] sm:$0xff]
        %v722 = vld [vmem:[#allocation2 + $0x150] sm:$0xff]
        %v723 = vld [vmem:[#allocation2 + $0x158] sm:$0xff]
        %v724 = vld [vmem:[#allocation2 + $0x168] sm:$0xff]
        %v725 = vld [vmem:[#allocation2 + $0x170] sm:$0xff]
        %v726 = vld [vmem:[#allocation2 + $0x180] sm:$0xff]
        %v727 = vld [vmem:[#allocation2 + $0x188] sm:$0xff]
        %v728 = vld [vmem:[#allocation2 + $0x198] sm:$0xff]
        %v729 = vld [vmem:[#allocation2 + $0x1a0] sm:$0xff]
        %v730 = vld [vmem:[#allocation2 + $0x1] sm:$0xff]
        %v731 = vld [vmem:[#allocation2 + $0x9] sm:$0xff]
        %v732 = vld [vmem:[#allocation2 + $0x19] sm:$0xff]
        %v733 = vld [vmem:[#allocation2 + $0x21] sm:$0xff]
        %v734 = vld [vmem:[#allocation2 + $0x31] sm:$0xff]
        %v735 = vld [vmem:[#allocation2 + $0x39] sm:$0xff]
        %v736 = vld [vmem:[#allocation2 + $0x49] sm:$0xff]
        %v737 = vld [vmem:[#allocation2 + $0x51] sm:$0xff]
        %v738 = vld [vmem:[#allocation2 + $0x61] sm:$0xff]
        %v739 = vld [vmem:[#allocation2 + $0x69] sm:$0xff]
        %v740 = vld [vmem:[#allocation2 + $0x79] sm:$0xff]
        %v741 = vld [vmem:[#allocation2 + $0x81] sm:$0xff]
        %v742 = vld [vmem:[#allocation2 + $0x91] sm:$0xff]
        %v743 = vld [vmem:[#allocation2 + $0x99] sm:$0xff]
        %v744 = vld [vmem:[#allocation2 + $0xa9] sm:$0xff]
        %v745 = vld [vmem:[#allocation2 + $0xb1] sm:$0xff]
        %v746 = vld [vmem:[#allocation2 + $0xc1] sm:$0xff]
        %v747 = vld [vmem:[#allocation2 + $0xc9] sm:$0xff]
        %v748 = vld [vmem:[#allocation2 + $0xd9] sm:$0xff]
        %v749 = vld [vmem:[#allocation2 + $0xe1] sm:$0xff]
        %v750 = vld [vmem:[#allocation2 + $0xf1] sm:$0xff]
        %v751 = vld [vmem:[#allocation2 + $0xf9] sm:$0xff]
        %v752 = vld [vmem:[#allocation2 + $0x109] sm:$0xff]
        %v753 = vld [vmem:[#allocation2 + $0x111] sm:$0xff]
        %v754 = vld [vmem:[#allocation2 + $0x121] sm:$0xff]
        %v755 = vld [vmem:[#allocation2 + $0x129] sm:$0xff]
        %v756 = vld [vmem:[#allocation2 + $0x139] sm:$0xff]
        %v757 = vld [vmem:[#allocation2 + $0x141] sm:$0xff]
        %v758 = vld [vmem:[#allocation2 + $0x151] sm:$0xff]
        %v759 = vld [vmem:[#allocation2 + $0x159] sm:$0xff]
        %v760 = vld [vmem:[#allocation2 + $0x169] sm:$0xff]
        %v761 = vld [vmem:[#allocation2 + $0x171] sm:$0xff]
        %v762 = vld [vmem:[#allocation2 + $0x181] sm:$0xff]
        %v763 = vld [vmem:[#allocation2 + $0x189] sm:$0xff]
        %v764 = vld [vmem:[#allocation2 + $0x199] sm:$0xff]
        %v765 = vld [vmem:[#allocation2 + $0x1a1] sm:$0xff]
        %v766 = vld [vmem:[#allocation2 + $0x2] sm:$0xff]
        %v767 = vld [vmem:[#allocation2 + $0xa] sm:$0xff]
        %v768 = vld [vmem:[#allocation2 + $0x1a] sm:$0xff]
        %v769 = vld [vmem:[#allocation2 + $0x22] sm:$0xff]
        %v770 = vld [vmem:[#allocation2 + $0x32] sm:$0xff]
        %v771 = vld [vmem:[#allocation2 + $0x3a] sm:$0xff]
        %v772 = vld [vmem:[#allocation2 + $0x4a] sm:$0xff]
        %v773 = vld [vmem:[#allocation2 + $0x52] sm:$0xff]
        %v774 = vld [vmem:[#allocation2 + $0x62] sm:$0xff]
        %v775 = vld [vmem:[#allocation2 + $0x6a] sm:$0xff]
        %v776 = vld [vmem:[#allocation2 + $0x7a] sm:$0xff]
        %v777 = vld [vmem:[#allocation2 + $0x82] sm:$0xff]
        %v778 = vld [vmem:[#allocation2 + $0x92] sm:$0xff]
        %v779 = vld [vmem:[#allocation2 + $0x9a] sm:$0xff]
        %v780 = vld [vmem:[#allocation2 + $0xaa] sm:$0xff]
        %v781 = vld [vmem:[#allocation2 + $0xb2] sm:$0xff]
        %v782 = vld [vmem:[#allocation2 + $0xc2] sm:$0xff]
        %v783 = vld [vmem:[#allocation2 + $0xca] sm:$0xff]
        %v784 = vld [vmem:[#allocation2 + $0xda] sm:$0xff]
        %v785 = vld [vmem:[#allocation2 + $0xe2] sm:$0xff]
        %v786 = vld [vmem:[#allocation2 + $0xf2] sm:$0xff]
        %v787 = vld [vmem:[#allocation2 + $0xfa] sm:$0xff]
        %v788 = vld [vmem:[#allocation2 + $0x10a] sm:$0xff]
        %v789 = vld [vmem:[#allocation2 + $0x112] sm:$0xff]
        %v790 = vld [vmem:[#allocation2 + $0x122] sm:$0xff]
        %v791 = vld [vmem:[#allocation2 + $0x12a] sm:$0xff]
        %v792 = vld [vmem:[#allocation2 + $0x13a] sm:$0xff]
        %v793 = vld [vmem:[#allocation2 + $0x142] sm:$0xff]
        %v794 = vld [vmem:[#allocation2 + $0x152] sm:$0xff]
        %v795 = vld [vmem:[#allocation2 + $0x15a] sm:$0xff]
        %v796 = vld [vmem:[#allocation2 + $0x16a] sm:$0xff]
        %v797 = vld [vmem:[#allocation2 + $0x172] sm:$0xff]
        %v798 = vld [vmem:[#allocation2 + $0x182] sm:$0xff]
        %v799 = vld [vmem:[#allocation2 + $0x18a] sm:$0xff]
        %v800 = vld [vmem:[#allocation2 + $0x19a] sm:$0xff]
        %v801 = vld [vmem:[#allocation2 + $0x1a2] sm:$0xff]
        %838 = vrot.lane.b32.xlu0 %v730, 64
        %v839 = vpop.permute.xlu0 %838
        %840 = vrot.lane.b32.xlu0 %v731, 64
        %v841 = vpop.permute.xlu0 %840
        %842 = vrot.lane.b32.xlu0 %v732, 64
        %v843 = vpop.permute.xlu0 %842
        %844 = vrot.lane.b32.xlu0 %v733, 64
        %v845 = vpop.permute.xlu0 %844
        %846 = vrot.lane.b32.xlu0 %v734, 64
        %v847 = vpop.permute.xlu0 %846
        %848 = vrot.lane.b32.xlu0 %v735, 64
        %v849 = vpop.permute.xlu0 %848
        %850 = vrot.lane.b32.xlu0 %v736, 64
        %v851 = vpop.permute.xlu0 %850
        %852 = vrot.lane.b32.xlu0 %v737, 64
        %v853 = vpop.permute.xlu0 %852
        %854 = vrot.lane.b32.xlu0 %v738, 64
        %v855 = vpop.permute.xlu0 %854
        %856 = vrot.lane.b32.xlu0 %v739, 64
        %v857 = vpop.permute.xlu0 %856
        %858 = vrot.lane.b32.xlu0 %v740, 64
        %v859 = vpop.permute.xlu0 %858
        %860 = vrot.lane.b32.xlu0 %v741, 64
        %v861 = vpop.permute.xlu0 %860
        %862 = vrot.lane.b32.xlu0 %v742, 64
        %v863 = vpop.permute.xlu0 %862
        %864 = vrot.lane.b32.xlu0 %v743, 64
        %v865 = vpop.permute.xlu0 %864
        %866 = vrot.lane.b32.xlu0 %v744, 64
        %v867 = vpop.permute.xlu0 %866
        %868 = vrot.lane.b32.xlu0 %v745, 64
        %v869 = vpop.permute.xlu0 %868
        %870 = vrot.lane.b32.xlu0 %v746, 64
        %v871 = vpop.permute.xlu0 %870
        %872 = vrot.lane.b32.xlu0 %v747, 64
        %v873 = vpop.permute.xlu0 %872
        %874 = vrot.lane.b32.xlu0 %v748, 64
        %v875 = vpop.permute.xlu0 %874
        %876 = vrot.lane.b32.xlu0 %v749, 64
        %v877 = vpop.permute.xlu0 %876
        %878 = vrot.lane.b32.xlu0 %v750, 64
        %v879 = vpop.permute.xlu0 %878
        %880 = vrot.lane.b32.xlu0 %v751, 64
        %v881 = vpop.permute.xlu0 %880
        %882 = vrot.lane.b32.xlu0 %v752, 64
        %v883 = vpop.permute.xlu0 %882
        %884 = vrot.lane.b32.xlu0 %v753, 64
        %v885 = vpop.permute.xlu0 %884
        %886 = vrot.lane.b32.xlu0 %v754, 64
        %v887 = vpop.permute.xlu0 %886
        %888 = vrot.lane.b32.xlu0 %v755, 64
        %v889 = vpop.permute.xlu0 %888
        %890 = vrot.lane.b32.xlu0 %v756, 64
        %v891 = vpop.permute.xlu0 %890
        %892 = vrot.lane.b32.xlu0 %v757, 64
        %v893 = vpop.permute.xlu0 %892
        %894 = vrot.lane.b32.xlu0 %v758, 64
        %v895 = vpop.permute.xlu0 %894
        %896 = vrot.lane.b32.xlu0 %v759, 64
        %v897 = vpop.permute.xlu0 %896
        %898 = vrot.lane.b32.xlu0 %v760, 64
        %v899 = vpop.permute.xlu0 %898
        %900 = vrot.lane.b32.xlu0 %v761, 64
        %v901 = vpop.permute.xlu0 %900
        %902 = vrot.lane.b32.xlu0 %v762, 64
        %v903 = vpop.permute.xlu0 %902
        %904 = vrot.lane.b32.xlu0 %v763, 64
        %v905 = vpop.permute.xlu0 %904
        %906 = vrot.lane.b32.xlu0 %v764, 64
        %v907 = vpop.permute.xlu0 %906
        %908 = vrot.lane.b32.xlu0 %v765, 64
        %v909 = vpop.permute.xlu0 %908
        %v946 = vsel %vm541, %v694, %v839
        %v947 = vsel %vm541, %v695, %v841
        %v948 = vsel %vm541, %v696, %v843
        %v949 = vsel %vm541, %v697, %v845
        %v950 = vsel %vm541, %v698, %v847
        %v951 = vsel %vm541, %v699, %v849
        %v952 = vsel %vm541, %v700, %v851
        %v953 = vsel %vm541, %v701, %v853
        %v954 = vsel %vm541, %v702, %v855
        %v955 = vsel %vm541, %v703, %v857
        %v956 = vsel %vm541, %v704, %v859
        %v957 = vsel %vm541, %v705, %v861
        %v958 = vsel %vm541, %v706, %v863
        %v959 = vsel %vm541, %v707, %v865
        %v960 = vsel %vm541, %v708, %v867
        %v961 = vsel %vm541, %v709, %v869
        %v962 = vsel %vm541, %v710, %v871
        %v963 = vsel %vm541, %v711, %v873
        %v964 = vsel %vm541, %v712, %v875
        %v965 = vsel %vm541, %v713, %v877
        %v966 = vsel %vm541, %v714, %v879
        %v967 = vsel %vm541, %v715, %v881
        %v968 = vsel %vm541, %v716, %v883
        %v969 = vsel %vm541, %v717, %v885
        %v970 = vsel %vm541, %v718, %v887
        %v971 = vsel %vm541, %v719, %v889
        %v972 = vsel %vm541, %v720, %v891
        %v973 = vsel %vm541, %v721, %v893
        %v974 = vsel %vm541, %v722, %v895
        %v975 = vsel %vm541, %v723, %v897
        %v976 = vsel %vm541, %v724, %v899
        %v977 = vsel %vm541, %v725, %v901
        %v978 = vsel %vm541, %v726, %v903
        %v979 = vsel %vm541, %v727, %v905
        %v980 = vsel %vm541, %v728, %v907
        %v981 = vsel %vm541, %v729, %v909
        %v982 = vpack.c.bf16 %v947, %v946
        %v983 = vpack.c.bf16 %v767, %v766
        %v984 = vpack.c.bf16 %v949, %v948
        %v985 = vpack.c.bf16 %v769, %v768
        %v986 = vpack.c.bf16 %v951, %v950
        %v987 = vpack.c.bf16 %v771, %v770
        %v988 = vpack.c.bf16 %v953, %v952
        %v989 = vpack.c.bf16 %v773, %v772
        %v990 = vpack.c.bf16 %v955, %v954
        %v991 = vpack.c.bf16 %v775, %v774
        %v992 = vpack.c.bf16 %v957, %v956
        %v993 = vpack.c.bf16 %v777, %v776
        %v994 = vpack.c.bf16 %v959, %v958
        %v995 = vpack.c.bf16 %v779, %v778
        %v996 = vpack.c.bf16 %v961, %v960
        %v997 = vpack.c.bf16 %v781, %v780
        %v998 = vpack.c.bf16 %v963, %v962
        %v999 = vpack.c.bf16 %v783, %v782
        %v1000 = vpack.c.bf16 %v965, %v964
        %v1001 = vpack.c.bf16 %v785, %v784
        %v1002 = vpack.c.bf16 %v967, %v966
        %v1003 = vpack.c.bf16 %v787, %v786
        %v1004 = vpack.c.bf16 %v969, %v968
        %v1005 = vpack.c.bf16 %v789, %v788
        %v1006 = vpack.c.bf16 %v971, %v970
        %v1007 = vpack.c.bf16 %v791, %v790
        %v1008 = vpack.c.bf16 %v973, %v972
        %v1009 = vpack.c.bf16 %v793, %v792
        %v1010 = vpack.c.bf16 %v975, %v974
        %v1011 = vpack.c.bf16 %v795, %v794
        %v1012 = vpack.c.bf16 %v977, %v976
        %v1013 = vpack.c.bf16 %v797, %v796
        %v1014 = vpack.c.bf16 %v979, %v978
        %v1015 = vpack.c.bf16 %v799, %v798
        %v1016 = vpack.c.bf16 %v981, %v980
        %v1017 = vpack.c.bf16 %v801, %v800
        %v1018 = vld [vmem:[#allocation7] sm:$0xf]
        %v1019 = vld [vmem:[#allocation7 + $0x4] sm:$0xf]
        %v1020 = vld [vmem:[#allocation7 + $0x8] sm:$0xf]
        %v1021 = vld [vmem:[#allocation7 + $0xc] sm:$0xf]
        %v1022 = vld [vmem:[#allocation7 + $0x10] sm:$0xf]
        %v1023 = vld [vmem:[#allocation7 + $0x14] sm:$0xf]
        %v1024 = vld [vmem:[#allocation7 + $0x18] sm:$0xf]
        %v1025 = vld [vmem:[#allocation7 + $0x1c] sm:$0xf]
        %v1026 = vld [vmem:[#allocation7 + $0x20] sm:$0xf]
        %v1027 = vld [vmem:[#allocation7 + $0x24] sm:$0xf]
        %v1028 = vld [vmem:[#allocation7 + $0x28] sm:$0xf]
        %v1029 = vld [vmem:[#allocation7 + $0x2c] sm:$0xf]
        %v1030 = vld [vmem:[#allocation7 + $0x30] sm:$0xf]
        %v1031 = vld [vmem:[#allocation7 + $0x34] sm:$0xf]
        %v1032 = vld [vmem:[#allocation7 + $0x38] sm:$0xf]
        %v1033 = vld [vmem:[#allocation7 + $0x3c] sm:$0xf]
        %v1034 = vld [vmem:[#allocation7 + $0x40] sm:$0xf]
        %v1035 = vld [vmem:[#allocation7 + $0x44] sm:$0xf]
        %v1036 = vld [vmem:[#allocation7 + $0x48] sm:$0xf]
        %v1037 = vld [vmem:[#allocation7 + $0x4c] sm:$0xf]
        %v1038 = vld [vmem:[#allocation7 + $0x50] sm:$0xf]
        %v1039 = vld [vmem:[#allocation7 + $0x54] sm:$0xf]
        %v1040 = vld [vmem:[#allocation7 + $0x58] sm:$0xf]
        %v1041 = vld [vmem:[#allocation7 + $0x5c] sm:$0xf]
        %s1042 = scalar_lea.vmem [#allocation7], 96
        %v1043 = vld [vmem:[%s1042] sm:$0xf]
        %v1044 = vld [vmem:[%s1042 + $0x4] sm:$0xf]
        %v1045 = vld [vmem:[%s1042 + $0x8] sm:$0xf]
        %v1046 = vld [vmem:[%s1042 + $0xc] sm:$0xf]
        %v1047 = vld [vmem:[%s1042 + $0x10] sm:$0xf]
        %v1048 = vld [vmem:[%s1042 + $0x14] sm:$0xf]
        %v1049 = vld [vmem:[%s1042 + $0x18] sm:$0xf]
        %v1050 = vld [vmem:[%s1042 + $0x1c] sm:$0xf]
        %v1051 = vld [vmem:[%s1042 + $0x20] sm:$0xf]
        %v1052 = vld [vmem:[%s1042 + $0x24] sm:$0xf]
        %v1053 = vld [vmem:[%s1042 + $0x28] sm:$0xf]
        %v1054 = vld [vmem:[%s1042 + $0x2c] sm:$0xf]
        %v1055 = vld [vmem:[%s1042 + $0x30] sm:$0xf]
        %v1056 = vld [vmem:[%s1042 + $0x34] sm:$0xf]
        %v1057 = vld [vmem:[%s1042 + $0x38] sm:$0xf]
        %v1058 = vld [vmem:[%s1042 + $0x3c] sm:$0xf]
        %v1059 = vld [vmem:[%s1042 + $0x40] sm:$0xf]
        %v1060 = vld [vmem:[%s1042 + $0x44] sm:$0xf]
        %v1061 = vld [vmem:[%s1042 + $0x48] sm:$0xf]
        %v1062 = vld [vmem:[%s1042 + $0x4c] sm:$0xf]
        %v1063 = vld [vmem:[%s1042 + $0x50] sm:$0xf]
        %v1064 = vld [vmem:[%s1042 + $0x54] sm:$0xf]
        %v1065 = vld [vmem:[%s1042 + $0x58] sm:$0xf]
        %v1066 = vld [vmem:[%s1042 + $0x5c] sm:$0xf]
        %v1091 = vunpack.c.l.b16 %v1043
        %v1092 = vunpack.c.l.b16 %v1044
        %v1093 = vunpack.c.l.b16 %v1045
        %v1094 = vunpack.c.l.b16 %v1046
        %v1095 = vunpack.c.l.b16 %v1047
        %v1096 = vunpack.c.l.b16 %v1048
        %v1097 = vunpack.c.l.b16 %v1049
        %v1098 = vunpack.c.l.b16 %v1050
        %v1099 = vunpack.c.l.b16 %v1051
        %v1100 = vunpack.c.l.b16 %v1052
        %v1101 = vunpack.c.l.b16 %v1053
        %v1102 = vunpack.c.l.b16 %v1054
        %v1103 = vunpack.c.l.b16 %v1055
        %v1104 = vunpack.c.l.b16 %v1056
        %v1105 = vunpack.c.l.b16 %v1057
        %v1106 = vunpack.c.l.b16 %v1058
        %v1107 = vunpack.c.l.b16 %v1059
        %v1108 = vunpack.c.l.b16 %v1060
        %v1109 = vunpack.c.l.b16 %v1061
        %v1110 = vunpack.c.l.b16 %v1062
        %v1111 = vunpack.c.l.b16 %v1063
        %v1112 = vunpack.c.l.b16 %v1064
        %v1113 = vunpack.c.l.b16 %v1065
        %v1114 = vunpack.c.l.b16 %v1066
        %v1115 = vpack.c.b16 %v1092, %v1091
        %v1116 = vpack.c.b16 %v1094, %v1093
        %v1117 = vpack.c.b16 %v1096, %v1095
        %v1118 = vpack.c.b16 %v1098, %v1097
        %v1119 = vpack.c.b16 %v1100, %v1099
        %v1120 = vpack.c.b16 %v1102, %v1101
        %v1121 = vpack.c.b16 %v1104, %v1103
        %v1122 = vpack.c.b16 %v1106, %v1105
        %v1123 = vpack.c.b16 %v1108, %v1107
        %v1124 = vpack.c.b16 %v1110, %v1109
        %v1125 = vpack.c.b16 %v1112, %v1111
        %v1126 = vpack.c.b16 %v1114, %v1113
        %v1140 = vsel %vm541, %v985, 0
        %v1143 = vsel %vm541, %v987, 0
        %v1146 = vsel %vm541, %v989, 0
        %v1149 = vsel %vm541, %v991, 0
        %v1152 = vsel %vm541, %v993, 0
        %v1155 = vsel %vm541, %v995, 0
        %v1158 = vsel %vm541, %v997, 0
        %v1161 = vsel %vm541, %v999, 0
        %v1164 = vsel %vm541, %v1001, 0
        %v1167 = vsel %vm541, %v1003, 0
        %v1170 = vsel %vm541, %v1005, 0
        %v1173 = vsel %vm541, %v1007, 0
        %v1176 = vsel %vm541, %v1009, 0
        %v1179 = vsel %vm541, %v1011, 0
        %v1182 = vsel %vm541, %v1013, 0
        %v1185 = vsel %vm541, %v1015, 0
        %1187 = vmatprep.subr.bf16.mxu0 0
        %1188 = vmatpush1.bf16.msra.mxu0 %v1115
        %1189 = vmatprep.subr.bf16.mxu0 0
        %1190 = vmatpush1.bf16.msra.mxu0 %v1116
        %1191 = vmatprep.subr.bf16.mxu0 0
        %1192 = vmatpush1.bf16.msra.mxu0 %v1117
        %1193 = vmatprep.subr.bf16.mxu0 0
        %1194 = vmatpush1.bf16.msra.mxu0 %v1118
        %1195 = vmatprep.subr.bf16.mxu0 0
        %1196 = vmatpush1.bf16.msra.mxu0 %v1119
        %1197 = vmatprep.subr.bf16.mxu0 0
        %1198 = vmatpush1.bf16.msra.mxu0 %v1120
        %1199 = vmatprep.subr.bf16.mxu0 0
        %1200 = vmatpush1.bf16.msra.mxu0 %v1121
        %1201 = vmatprep.subr.bf16.mxu0 0
        %1202 = vmatpush1.bf16.msra.mxu0 %v1122
        %1203 = vmatprep.subr.bf16.mxu0 0
        %1204 = vmatpush1.bf16.msra.mxu0 %v1123
        %1205 = vmatprep.subr.bf16.mxu0 0
        %1206 = vmatpush1.bf16.msra.mxu0 %v1124
        %1207 = vmatprep.subr.bf16.mxu0 0
        %1208 = vmatpush1.bf16.msra.mxu0 %v1125
        %1209 = vmatprep.subr.bf16.mxu0 0
        %1210 = vmatpush1.bf16.msra.mxu0 %v1126
        %1211 = vmatprep.subr.bf16.mxu0 0
        %1212 = vmatpush1.bf16.msra.mxu0 0
        %1213 = vmatprep.subr.bf16.mxu0 0
        %1214 = vmatpush1.bf16.msra.mxu0 0
        %1215 = vmatprep.subr.bf16.mxu0 0
        %1216 = vmatpush1.bf16.msra.mxu0 0
        %1217 = vmatprep.subr.bf16.mxu0 0
        %1218 = vmatpush1.bf16.msra.mxu0 0
        %1219 = vmatprep.mubr.bf16.mxu0 %v1140
        %1220 = vmatmul.mubr.bf16.gmra.mrb[0].mxu0 %v984
        %v1221 = vpop.f32.mrb[0].mxu0
        %v1222 = vadd.f32 0.0, %v1221
        %v1223 = vpop.f32.mrb[0].mxu0
        %v1224 = vpop.f32.mrb[0].mxu0
        %v1225 = vadd.f32 0.0, %v1224
        %v1226 = vpop.f32.mrb[0].mxu0
        %1227 = vmatprep.mubr.bf16.mxu0 %v1143
        %1228 = vmatmul.mubr.bf16.gmra.mrb[0].mxu0 %v986
        %v1229 = vpop.f32.mrb[0].mxu0
        %v1230 = vadd.f32 0.0, %v1229
        %v1231 = vpop.f32.mrb[0].mxu0
        %v1232 = vpop.f32.mrb[0].mxu0
        %v1233 = vadd.f32 0.0, %v1232
        %v1234 = vpop.f32.mrb[0].mxu0
        %1235 = vmatprep.mubr.bf16.mxu0 %v1146
        %1236 = vmatmul.mubr.bf16.gmra.mrb[0].mxu0 %v988
        %v1237 = vpop.f32.mrb[0].mxu0
        %v1238 = vadd.f32 0.0, %v1237
        %v1239 = vpop.f32.mrb[0].mxu0
        %v1240 = vpop.f32.mrb[0].mxu0
        %v1241 = vadd.f32 0.0, %v1240
        %v1242 = vpop.f32.mrb[0].mxu0
        %1243 = vmatprep.mubr.bf16.mxu0 %v1149
        %1244 = vmatmul.mubr.bf16.gmra.mrb[0].mxu0 %v990
        %v1245 = vpop.f32.mrb[0].mxu0
        %v1246 = vadd.f32 0.0, %v1245
        %v1247 = vpop.f32.mrb[0].mxu0
        %v1248 = vpop.f32.mrb[0].mxu0
        %v1249 = vadd.f32 0.0, %v1248
        %v1250 = vpop.f32.mrb[0].mxu0
        %1251 = vmatprep.mubr.bf16.mxu0 %v1152
        %1252 = vmatmul.mubr.bf16.gmra.mrb[0].mxu0 %v992
        %v1253 = vpop.f32.mrb[0].mxu0
        %v1254 = vadd.f32 0.0, %v1253
        %v1255 = vpop.f32.mrb[0].mxu0
        %v1256 = vpop.f32.mrb[0].mxu0
        %v1257 = vadd.f32 0.0, %v1256
        %v1258 = vpop.f32.mrb[0].mxu0
        %1259 = vmatprep.mubr.bf16.mxu0 %v1155
        %1260 = vmatmul.mubr.bf16.gmra.mrb[0].mxu0 %v994
        %v1261 = vpop.f32.mrb[0].mxu0
        %v1262 = vadd.f32 0.0, %v1261
        %v1263 = vpop.f32.mrb[0].mxu0
        %v1264 = vpop.f32.mrb[0].mxu0
        %v1265 = vadd.f32 0.0, %v1264
        %v1266 = vpop.f32.mrb[0].mxu0
        %1267 = vmatprep.mubr.bf16.mxu0 %v1158
        %1268 = vmatmul.mubr.bf16.gmra.mrb[0].mxu0 %v996
        %v1269 = vpop.f32.mrb[0].mxu0
        %v1270 = vadd.f32 0.0, %v1269
        %v1271 = vpop.f32.mrb[0].mxu0
        %v1272 = vpop.f32.mrb[0].mxu0
        %v1273 = vadd.f32 0.0, %v1272
        %v1274 = vpop.f32.mrb[0].mxu0
        %1275 = vmatprep.mubr.bf16.mxu0 %v1161
        %1276 = vmatmul.mubr.bf16.gmra.mrb[0].mxu0 %v998
        %v1277 = vpop.f32.mrb[0].mxu0
        %v1278 = vadd.f32 0.0, %v1277
        %v1279 = vpop.f32.mrb[0].mxu0
        %v1280 = vpop.f32.mrb[0].mxu0
        %v1281 = vadd.f32 0.0, %v1280
        %v1282 = vpop.f32.mrb[0].mxu0
        %1283 = vmatprep.mubr.bf16.mxu0 %v1164
        %1284 = vmatmul.mubr.bf16.gmra.mrb[0].mxu0 %v1000
        %v1285 = vpop.f32.mrb[0].mxu0
        %v1286 = vadd.f32 0.0, %v1285
        %v1287 = vpop.f32.mrb[0].mxu0
        %v1288 = vpop.f32.mrb[0].mxu0
        %v1289 = vadd.f32 0.0, %v1288
        %v1290 = vpop.f32.mrb[0].mxu0
        %1291 = vmatprep.mubr.bf16.mxu0 %v1167
        %1292 = vmatmul.mubr.bf16.gmra.mrb[0].mxu0 %v1002
        %v1293 = vpop.f32.mrb[0].mxu0
        %v1294 = vadd.f32 0.0, %v1293
        %v1295 = vpop.f32.mrb[0].mxu0
        %v1296 = vpop.f32.mrb[0].mxu0
        %v1297 = vadd.f32 0.0, %v1296
        %v1298 = vpop.f32.mrb[0].mxu0
        %1299 = vmatprep.mubr.bf16.mxu0 %v1170
        %1300 = vmatmul.mubr.bf16.gmra.mrb[0].mxu0 %v1004
        %v1301 = vpop.f32.mrb[0].mxu0
        %v1302 = vadd.f32 0.0, %v1301
        %v1303 = vpop.f32.mrb[0].mxu0
        %v1304 = vpop.f32.mrb[0].mxu0
        %v1305 = vadd.f32 0.0, %v1304
        %v1306 = vpop.f32.mrb[0].mxu0
        %1307 = vmatprep.mubr.bf16.mxu0 %v1173
        %1308 = vmatmul.mubr.bf16.gmra.mrb[0].mxu0 %v1006
        %v1309 = vpop.f32.mrb[0].mxu0
        %v1310 = vadd.f32 0.0, %v1309
        %v1311 = vpop.f32.mrb[0].mxu0
        %v1312 = vpop.f32.mrb[0].mxu0
        %v1313 = vadd.f32 0.0, %v1312
        %v1314 = vpop.f32.mrb[0].mxu0
        %1315 = vmatprep.mubr.bf16.mxu0 %v1176
        %1316 = vmatmul.mubr.bf16.gmra.mrb[0].mxu0 %v1008
        %v1317 = vpop.f32.mrb[0].mxu0
        %v1318 = vadd.f32 0.0, %v1317
        %v1319 = vpop.f32.mrb[0].mxu0
        %v1320 = vpop.f32.mrb[0].mxu0
        %v1321 = vadd.f32 0.0, %v1320
        %v1322 = vpop.f32.mrb[0].mxu0
        %1323 = vmatprep.mubr.bf16.mxu0 %v1179
        %1324 = vmatmul.mubr.bf16.gmra.mrb[0].mxu0 %v1010
        %v1325 = vpop.f32.mrb[0].mxu0
        %v1326 = vadd.f32 0.0, %v1325
        %v1327 = vpop.f32.mrb[0].mxu0
        %v1328 = vpop.f32.mrb[0].mxu0
        %v1329 = vadd.f32 0.0, %v1328
        %v1330 = vpop.f32.mrb[0].mxu0
        %1331 = vmatprep.mubr.bf16.mxu0 %v1182
        %1332 = vmatmul.mubr.bf16.gmra.mrb[0].mxu0 %v1012
        %v1333 = vpop.f32.mrb[0].mxu0
        %v1334 = vadd.f32 0.0, %v1333
        %v1335 = vpop.f32.mrb[0].mxu0
        %v1336 = vpop.f32.mrb[0].mxu0
        %v1337 = vadd.f32 0.0, %v1336
        %v1338 = vpop.f32.mrb[0].mxu0
        %1339 = vmatprep.mubr.bf16.mxu0 %v1185
        %1340 = vmatmul.mubr.bf16.gmra.mrb[0].mxu0 %v1014
        %v1341 = vpop.f32.mrb[0].mxu0
        %v1342 = vadd.f32 0.0, %v1341
        %v1343 = vpop.f32.mrb[0].mxu0
        %v1344 = vpop.f32.mrb[0].mxu0
        %v1345 = vadd.f32 0.0, %v1344
        %v1346 = vpop.f32.mrb[0].mxu0
        %1347 = vdwg.mxu0
        %v1372 = vunpack.c.l.b16 %v1018
        %v1373 = vunpack.c.l.b16 %v1019
        %v1374 = vunpack.c.l.b16 %v1020
        %v1375 = vunpack.c.l.b16 %v1021
        %v1376 = vunpack.c.l.b16 %v1022
        %v1377 = vunpack.c.l.b16 %v1023
        %v1378 = vunpack.c.l.b16 %v1024
        %v1379 = vunpack.c.l.b16 %v1025
        %v1380 = vunpack.c.l.b16 %v1026
        %v1381 = vunpack.c.l.b16 %v1027
        %v1382 = vunpack.c.l.b16 %v1028
        %v1383 = vunpack.c.l.b16 %v1029
        %v1384 = vunpack.c.l.b16 %v1030
        %v1385 = vunpack.c.l.b16 %v1031
        %v1386 = vunpack.c.l.b16 %v1032
        %v1387 = vunpack.c.l.b16 %v1033
        %v1388 = vunpack.c.l.b16 %v1034
        %v1389 = vunpack.c.l.b16 %v1035
        %v1390 = vunpack.c.l.b16 %v1036
        %v1391 = vunpack.c.l.b16 %v1037
        %v1392 = vunpack.c.l.b16 %v1038
        %v1393 = vunpack.c.l.b16 %v1039
        %v1394 = vunpack.c.l.b16 %v1040
        %v1395 = vunpack.c.l.b16 %v1041
        %v1396 = vpack.c.b16 %v1373, %v1372
        %v1397 = vpack.c.b16 %v1375, %v1374
        %v1398 = vpack.c.b16 %v1377, %v1376
        %v1399 = vpack.c.b16 %v1379, %v1378
        %v1400 = vpack.c.b16 %v1381, %v1380
        %v1401 = vpack.c.b16 %v1383, %v1382
        %v1402 = vpack.c.b16 %v1385, %v1384
        %v1403 = vpack.c.b16 %v1387, %v1386
        %v1404 = vpack.c.b16 %v1389, %v1388
        %v1405 = vpack.c.b16 %v1391, %v1390
        %v1406 = vpack.c.b16 %v1393, %v1392
        %v1407 = vpack.c.b16 %v1395, %v1394
        %v1421 = vsel %vm541, %v983, 0
        %1423 = vmatprep.subr.bf16.mxu0 0
        %1424 = vmatpush1.bf16.msra.mxu0 %v1396
        %1425 = vmatprep.subr.bf16.mxu0 0
        %1426 = vmatpush1.bf16.msra.mxu0 %v1397
        %1427 = vmatprep.subr.bf16.mxu0 0
        %1428 = vmatpush1.bf16.msra.mxu0 %v1398
        %1429 = vmatprep.subr.bf16.mxu0 0
        %1430 = vmatpush1.bf16.msra.mxu0 %v1399
        %1431 = vmatprep.subr.bf16.mxu0 0
        %1432 = vmatpush1.bf16.msra.mxu0 %v1400
        %1433 = vmatprep.subr.bf16.mxu0 0
        %1434 = vmatpush1.bf16.msra.mxu0 %v1401
        %1435 = vmatprep.subr.bf16.mxu0 0
        %1436 = vmatpush1.bf16.msra.mxu0 %v1402
        %1437 = vmatprep.subr.bf16.mxu0 0
        %1438 = vmatpush1.bf16.msra.mxu0 %v1403
        %1439 = vmatprep.subr.bf16.mxu0 0
        %1440 = vmatpush1.bf16.msra.mxu0 %v1404
        %1441 = vmatprep.subr.bf16.mxu0 0
        %1442 = vmatpush1.bf16.msra.mxu0 %v1405
        %1443 = vmatprep.subr.bf16.mxu0 0
        %1444 = vmatpush1.bf16.msra.mxu0 %v1406
        %1445 = vmatprep.subr.bf16.mxu0 0
        %1446 = vmatpush1.bf16.msra.mxu0 %v1407
        %1447 = vmatprep.subr.bf16.mxu0 0
        %1448 = vmatpush1.bf16.msra.mxu0 0
        %1449 = vmatprep.subr.bf16.mxu0 0
        %1450 = vmatpush1.bf16.msra.mxu0 0
        %1451 = vmatprep.subr.bf16.mxu0 0
        %1452 = vmatpush1.bf16.msra.mxu0 0
        %1453 = vmatprep.subr.bf16.mxu0 0
        %1454 = vmatpush1.bf16.msra.mxu0 0
        %1455 = vmatprep.mubr.bf16.mxu0 %v1421
        %1456 = vmatmul.mubr.bf16.gmra.mrb[0].mxu0 %v982
        %v1457 = vpop.f32.mrb[0].mxu0
        %v1458 = vadd.f32 %v1222, %v1457
        %v1459 = vpop.f32.mrb[0].mxu0
        %v1460 = vpop.f32.mrb[0].mxu0
        %v1461 = vadd.f32 %v1225, %v1460
        %v1462 = vpop.f32.mrb[0].mxu0
        %1463 = vmatprep.mubr.bf16.mxu0 %v1140
        %1464 = vmatmul.mubr.bf16.gmra.mrb[0].mxu0 %v984
        %v1465 = vpop.f32.mrb[0].mxu0
        %v1466 = vadd.f32 %v1230, %v1465
        %v1467 = vpop.f32.mrb[0].mxu0
        %v1468 = vpop.f32.mrb[0].mxu0
        %v1469 = vadd.f32 %v1233, %v1468
        %v1470 = vpop.f32.mrb[0].mxu0
        %1471 = vmatprep.mubr.bf16.mxu0 %v1143
        %1472 = vmatmul.mubr.bf16.gmra.mrb[0].mxu0 %v986
        %v1473 = vpop.f32.mrb[0].mxu0
        %v1474 = vadd.f32 %v1238, %v1473
        %v1475 = vpop.f32.mrb[0].mxu0
        %v1476 = vpop.f32.mrb[0].mxu0
        %v1477 = vadd.f32 %v1241, %v1476
        %v1478 = vpop.f32.mrb[0].mxu0
        %1479 = vmatprep.mubr.bf16.mxu0 %v1146
        %1480 = vmatmul.mubr.bf16.gmra.mrb[0].mxu0 %v988
        %v1481 = vpop.f32.mrb[0].mxu0
        %v1482 = vadd.f32 %v1246, %v1481
        %v1483 = vpop.f32.mrb[0].mxu0
        %v1484 = vpop.f32.mrb[0].mxu0
        %v1485 = vadd.f32 %v1249, %v1484
        %v1486 = vpop.f32.mrb[0].mxu0
        %1487 = vmatprep.mubr.bf16.mxu0 %v1149
        %1488 = vmatmul.mubr.bf16.gmra.mrb[0].mxu0 %v990
        %v1489 = vpop.f32.mrb[0].mxu0
        %v1490 = vadd.f32 %v1254, %v1489
        %v1491 = vpop.f32.mrb[0].mxu0
        %v1492 = vpop.f32.mrb[0].mxu0
        %v1493 = vadd.f32 %v1257, %v1492
        %v1494 = vpop.f32.mrb[0].mxu0
        %1495 = vmatprep.mubr.bf16.mxu0 %v1152
        %1496 = vmatmul.mubr.bf16.gmra.mrb[0].mxu0 %v992
        %v1497 = vpop.f32.mrb[0].mxu0
        %v1498 = vadd.f32 %v1262, %v1497
        %v1499 = vpop.f32.mrb[0].mxu0
        %v1500 = vpop.f32.mrb[0].mxu0
        %v1501 = vadd.f32 %v1265, %v1500
        %v1502 = vpop.f32.mrb[0].mxu0
        %1503 = vmatprep.mubr.bf16.mxu0 %v1155
        %1504 = vmatmul.mubr.bf16.gmra.mrb[0].mxu0 %v994
        %v1505 = vpop.f32.mrb[0].mxu0
        %v1506 = vadd.f32 %v1270, %v1505
        %v1507 = vpop.f32.mrb[0].mxu0
        %v1508 = vpop.f32.mrb[0].mxu0
        %v1509 = vadd.f32 %v1273, %v1508
        %v1510 = vpop.f32.mrb[0].mxu0
        %1511 = vmatprep.mubr.bf16.mxu0 %v1158
        %1512 = vmatmul.mubr.bf16.gmra.mrb[0].mxu0 %v996
        %v1513 = vpop.f32.mrb[0].mxu0
        %v1514 = vadd.f32 %v1278, %v1513
        %v1515 = vpop.f32.mrb[0].mxu0
        %v1516 = vpop.f32.mrb[0].mxu0
        %v1517 = vadd.f32 %v1281, %v1516
        %v1518 = vpop.f32.mrb[0].mxu0
        %1519 = vmatprep.mubr.bf16.mxu0 %v1161
        %1520 = vmatmul.mubr.bf16.gmra.mrb[0].mxu0 %v998
        %v1521 = vpop.f32.mrb[0].mxu0
        %v1522 = vadd.f32 %v1286, %v1521
        %v1523 = vpop.f32.mrb[0].mxu0
        %v1524 = vpop.f32.mrb[0].mxu0
        %v1525 = vadd.f32 %v1289, %v1524
        %v1526 = vpop.f32.mrb[0].mxu0
        %1527 = vmatprep.mubr.bf16.mxu0 %v1164
        %1528 = vmatmul.mubr.bf16.gmra.mrb[0].mxu0 %v1000
        %v1529 = vpop.f32.mrb[0].mxu0
        %v1530 = vadd.f32 %v1294, %v1529
        %v1531 = vpop.f32.mrb[0].mxu0
        %v1532 = vpop.f32.mrb[0].mxu0
        %v1533 = vadd.f32 %v1297, %v1532
        %v1534 = vpop.f32.mrb[0].mxu0
        %1535 = vmatprep.mubr.bf16.mxu0 %v1167
        %1536 = vmatmul.mubr.bf16.gmra.mrb[0].mxu0 %v1002
        %v1537 = vpop.f32.mrb[0].mxu0
        %v1538 = vadd.f32 %v1302, %v1537
        %v1539 = vpop.f32.mrb[0].mxu0
        %v1540 = vpop.f32.mrb[0].mxu0
        %v1541 = vadd.f32 %v1305, %v1540
        %v1542 = vpop.f32.mrb[0].mxu0
        %1543 = vmatprep.mubr.bf16.mxu0 %v1170
        %1544 = vmatmul.mubr.bf16.gmra.mrb[0].mxu0 %v1004
        %v1545 = vpop.f32.mrb[0].mxu0
        %v1546 = vadd.f32 %v1310, %v1545
        %v1547 = vpop.f32.mrb[0].mxu0
        %v1548 = vpop.f32.mrb[0].mxu0
        %v1549 = vadd.f32 %v1313, %v1548
        %v1550 = vpop.f32.mrb[0].mxu0
        %1551 = vmatprep.mubr.bf16.mxu0 %v1173
        %1552 = vmatmul.mubr.bf16.gmra.mrb[0].mxu0 %v1006
        %v1553 = vpop.f32.mrb[0].mxu0
        %v1554 = vadd.f32 %v1318, %v1553
        %v1555 = vpop.f32.mrb[0].mxu0
        %v1556 = vpop.f32.mrb[0].mxu0
        %v1557 = vadd.f32 %v1321, %v1556
        %v1558 = vpop.f32.mrb[0].mxu0
        %1559 = vmatprep.mubr.bf16.mxu0 %v1176
        %1560 = vmatmul.mubr.bf16.gmra.mrb[0].mxu0 %v1008
        %v1561 = vpop.f32.mrb[0].mxu0
        %v1562 = vadd.f32 %v1326, %v1561
        %v1563 = vpop.f32.mrb[0].mxu0
        %v1564 = vpop.f32.mrb[0].mxu0
        %v1565 = vadd.f32 %v1329, %v1564
        %v1566 = vpop.f32.mrb[0].mxu0
        %1567 = vmatprep.mubr.bf16.mxu0 %v1179
        %1568 = vmatmul.mubr.bf16.gmra.mrb[0].mxu0 %v1010
        %v1569 = vpop.f32.mrb[0].mxu0
        %v1570 = vadd.f32 %v1334, %v1569
        %v1571 = vpop.f32.mrb[0].mxu0
        %v1572 = vpop.f32.mrb[0].mxu0
        %v1573 = vadd.f32 %v1337, %v1572
        %v1574 = vpop.f32.mrb[0].mxu0
        %1575 = vmatprep.mubr.bf16.mxu0 %v1182
        %1576 = vmatmul.mubr.bf16.gmra.mrb[0].mxu0 %v1012
        %v1577 = vpop.f32.mrb[0].mxu0
        %v1578 = vadd.f32 %v1342, %v1577
        %v1579 = vpop.f32.mrb[0].mxu0
        %v1580 = vpop.f32.mrb[0].mxu0
        %v1581 = vadd.f32 %v1345, %v1580
        %v1582 = vpop.f32.mrb[0].mxu0
        %1583 = vdwg.mxu0
        %s1584 = scalar_lea.vmem [#allocation7], 192
        %v1585 = vld [vmem:[%s1584] sm:$0xf]
        %v1586 = vld [vmem:[%s1584 + $0x4] sm:$0xf]
        %v1587 = vld [vmem:[%s1584 + $0x8] sm:$0xf]
        %v1588 = vld [vmem:[%s1584 + $0xc] sm:$0xf]
        %v1589 = vld [vmem:[%s1584 + $0x10] sm:$0xf]
        %v1590 = vld [vmem:[%s1584 + $0x14] sm:$0xf]
        %v1591 = vld [vmem:[%s1584 + $0x18] sm:$0xf]
        %v1592 = vld [vmem:[%s1584 + $0x1c] sm:$0xf]
        %v1593 = vld [vmem:[%s1584 + $0x20] sm:$0xf]
        %v1594 = vld [vmem:[%s1584 + $0x24] sm:$0xf]
        %v1595 = vld [vmem:[%s1584 + $0x28] sm:$0xf]
        %v1596 = vld [vmem:[%s1584 + $0x2c] sm:$0xf]
        %v1597 = vld [vmem:[%s1584 + $0x30] sm:$0xf]
        %v1598 = vld [vmem:[%s1584 + $0x34] sm:$0xf]
        %v1599 = vld [vmem:[%s1584 + $0x38] sm:$0xf]
        %v1600 = vld [vmem:[%s1584 + $0x3c] sm:$0xf]
        %v1601 = vld [vmem:[%s1584 + $0x40] sm:$0xf]
        %v1602 = vld [vmem:[%s1584 + $0x44] sm:$0xf]
        %v1603 = vld [vmem:[%s1584 + $0x48] sm:$0xf]
        %v1604 = vld [vmem:[%s1584 + $0x4c] sm:$0xf]
        %v1605 = vld [vmem:[%s1584 + $0x50] sm:$0xf]
        %v1606 = vld [vmem:[%s1584 + $0x54] sm:$0xf]
        %v1607 = vld [vmem:[%s1584 + $0x58] sm:$0xf]
        %v1608 = vld [vmem:[%s1584 + $0x5c] sm:$0xf]
        %v1633 = vunpack.c.l.b16 %v1585
        %v1634 = vunpack.c.l.b16 %v1586
        %v1635 = vunpack.c.l.b16 %v1587
        %v1636 = vunpack.c.l.b16 %v1588
        %v1637 = vunpack.c.l.b16 %v1589
        %v1638 = vunpack.c.l.b16 %v1590
        %v1639 = vunpack.c.l.b16 %v1591
        %v1640 = vunpack.c.l.b16 %v1592
        %v1641 = vunpack.c.l.b16 %v1593
        %v1642 = vunpack.c.l.b16 %v1594
        %v1643 = vunpack.c.l.b16 %v1595
        %v1644 = vunpack.c.l.b16 %v1596
        %v1645 = vunpack.c.l.b16 %v1597
        %v1646 = vunpack.c.l.b16 %v1598
        %v1647 = vunpack.c.l.b16 %v1599
        %v1648 = vunpack.c.l.b16 %v1600
        %v1649 = vunpack.c.l.b16 %v1601
        %v1650 = vunpack.c.l.b16 %v1602
        %v1651 = vunpack.c.l.b16 %v1603
        %v1652 = vunpack.c.l.b16 %v1604
        %v1653 = vunpack.c.l.b16 %v1605
        %v1654 = vunpack.c.l.b16 %v1606
        %v1655 = vunpack.c.l.b16 %v1607
        %v1656 = vunpack.c.l.b16 %v1608
        %v1657 = vpack.c.b16 %v1634, %v1633
        %v1658 = vpack.c.b16 %v1636, %v1635
        %v1659 = vpack.c.b16 %v1638, %v1637
        %v1660 = vpack.c.b16 %v1640, %v1639
        %v1661 = vpack.c.b16 %v1642, %v1641
        %v1662 = vpack.c.b16 %v1644, %v1643
        %v1663 = vpack.c.b16 %v1646, %v1645
        %v1664 = vpack.c.b16 %v1648, %v1647
        %v1665 = vpack.c.b16 %v1650, %v1649
        %v1666 = vpack.c.b16 %v1652, %v1651
        %v1667 = vpack.c.b16 %v1654, %v1653
        %v1668 = vpack.c.b16 %v1656, %v1655
        %v1682 = vsel %vm541, %v1017, 0
        %1684 = vmatprep.subr.bf16.mxu0 0
        %1685 = vmatpush1.bf16.msra.mxu0 %v1657
        %1686 = vmatprep.subr.bf16.mxu0 0
        %1687 = vmatpush1.bf16.msra.mxu0 %v1658
        %1688 = vmatprep.subr.bf16.mxu0 0
        %1689 = vmatpush1.bf16.msra.mxu0 %v1659
        %1690 = vmatprep.subr.bf16.mxu0 0
        %1691 = vmatpush1.bf16.msra.mxu0 %v1660
        %1692 = vmatprep.subr.bf16.mxu0 0
        %1693 = vmatpush1.bf16.msra.mxu0 %v1661
        %1694 = vmatprep.subr.bf16.mxu0 0
        %1695 = vmatpush1.bf16.msra.mxu0 %v1662
        %1696 = vmatprep.subr.bf16.mxu0 0
        %1697 = vmatpush1.bf16.msra.mxu0 %v1663
        %1698 = vmatprep.subr.bf16.mxu0 0
        %1699 = vmatpush1.bf16.msra.mxu0 %v1664
        %1700 = vmatprep.subr.bf16.mxu0 0
        %1701 = vmatpush1.bf16.msra.mxu0 %v1665
        %1702 = vmatprep.subr.bf16.mxu0 0
        %1703 = vmatpush1.bf16.msra.mxu0 %v1666
        %1704 = vmatprep.subr.bf16.mxu0 0
        %1705 = vmatpush1.bf16.msra.mxu0 %v1667
        %1706 = vmatprep.subr.bf16.mxu0 0
        %1707 = vmatpush1.bf16.msra.mxu0 %v1668
        %1708 = vmatprep.subr.bf16.mxu0 0
        %1709 = vmatpush1.bf16.msra.mxu0 0
        %1710 = vmatprep.subr.bf16.mxu0 0
        %1711 = vmatpush1.bf16.msra.mxu0 0
        %1712 = vmatprep.subr.bf16.mxu0 0
        %1713 = vmatpush1.bf16.msra.mxu0 0
        %1714 = vmatprep.subr.bf16.mxu0 0
        %1715 = vmatpush1.bf16.msra.mxu0 0
        %1716 = vmatprep.mubr.bf16.mxu0 %v1143
        %1717 = vmatmul.mubr.bf16.gmra.mrb[0].mxu0 %v986
        %v1718 = vpop.f32.mrb[0].mxu0
        %v1719 = vadd.f32 0.0, %v1718
        %v1720 = vpop.f32.mrb[0].mxu0
        %v1721 = vpop.f32.mrb[0].mxu0
        %v1722 = vadd.f32 0.0, %v1721
        %v1723 = vpop.f32.mrb[0].mxu0
        %1724 = vmatprep.mubr.bf16.mxu0 %v1146
        %1725 = vmatmul.mubr.bf16.gmra.mrb[0].mxu0 %v988
        %v1726 = vpop.f32.mrb[0].mxu0
        %v1727 = vadd.f32 0.0, %v1726
        %v1728 = vpop.f32.mrb[0].mxu0
        %v1729 = vpop.f32.mrb[0].mxu0
        %v1730 = vadd.f32 0.0, %v1729
        %v1731 = vpop.f32.mrb[0].mxu0
        %1732 = vmatprep.mubr.bf16.mxu0 %v1149
        %1733 = vmatmul.mubr.bf16.gmra.mrb[0].mxu0 %v990
        %v1734 = vpop.f32.mrb[0].mxu0
        %v1735 = vadd.f32 0.0, %v1734
        %v1736 = vpop.f32.mrb[0].mxu0
        %v1737 = vpop.f32.mrb[0].mxu0
        %v1738 = vadd.f32 0.0, %v1737
        %v1739 = vpop.f32.mrb[0].mxu0
        %1740 = vmatprep.mubr.bf16.mxu0 %v1152
        %1741 = vmatmul.mubr.bf16.gmra.mrb[0].mxu0 %v992
        %v1742 = vpop.f32.mrb[0].mxu0
        %v1743 = vadd.f32 0.0, %v1742
        %v1744 = vpop.f32.mrb[0].mxu0
        %v1745 = vpop.f32.mrb[0].mxu0
        %v1746 = vadd.f32 0.0, %v1745
        %v1747 = vpop.f32.mrb[0].mxu0
        %1748 = vmatprep.mubr.bf16.mxu0 %v1155
        %1749 = vmatmul.mubr.bf16.gmra.mrb[0].mxu0 %v994
        %v1750 = vpop.f32.mrb[0].mxu0
        %v1751 = vadd.f32 0.0, %v1750
        %v1752 = vpop.f32.mrb[0].mxu0
        %v1753 = vpop.f32.mrb[0].mxu0
        %v1754 = vadd.f32 0.0, %v1753
        %v1755 = vpop.f32.mrb[0].mxu0
        %1756 = vmatprep.mubr.bf16.mxu0 %v1158
        %1757 = vmatmul.mubr.bf16.gmra.mrb[0].mxu0 %v996
        %v1758 = vpop.f32.mrb[0].mxu0
        %v1759 = vadd.f32 0.0, %v1758
        %v1760 = vpop.f32.mrb[0].mxu0
        %v1761 = vpop.f32.mrb[0].mxu0
        %v1762 = vadd.f32 0.0, %v1761
        %v1763 = vpop.f32.mrb[0].mxu0
        %1764 = vmatprep.mubr.bf16.mxu0 %v1161
        %1765 = vmatmul.mubr.bf16.gmra.mrb[0].mxu0 %v998
        %v1766 = vpop.f32.mrb[0].mxu0
        %v1767 = vadd.f32 0.0, %v1766
        %v1768 = vpop.f32.mrb[0].mxu0
        %v1769 = vpop.f32.mrb[0].mxu0
        %v1770 = vadd.f32 0.0, %v1769
        %v1771 = vpop.f32.mrb[0].mxu0
        %1772 = vmatprep.mubr.bf16.mxu0 %v1164
        %1773 = vmatmul.mubr.bf16.gmra.mrb[0].mxu0 %v1000
        %v1774 = vpop.f32.mrb[0].mxu0
        %v1775 = vadd.f32 0.0, %v1774
        %v1776 = vpop.f32.mrb[0].mxu0
        %v1777 = vpop.f32.mrb[0].mxu0
        %v1778 = vadd.f32 0.0, %v1777
        %v1779 = vpop.f32.mrb[0].mxu0
        %1780 = vmatprep.mubr.bf16.mxu0 %v1167
        %1781 = vmatmul.mubr.bf16.gmra.mrb[0].mxu0 %v1002
        %v1782 = vpop.f32.mrb[0].mxu0
        %v1783 = vadd.f32 0.0, %v1782
        %v1784 = vpop.f32.mrb[0].mxu0
        %v1785 = vpop.f32.mrb[0].mxu0
        %v1786 = vadd.f32 0.0, %v1785
        %v1787 = vpop.f32.mrb[0].mxu0
        %1788 = vmatprep.mubr.bf16.mxu0 %v1170
        %1789 = vmatmul.mubr.bf16.gmra.mrb[0].mxu0 %v1004
        %v1790 = vpop.f32.mrb[0].mxu0
        %v1791 = vadd.f32 0.0, %v1790
        %v1792 = vpop.f32.mrb[0].mxu0
        %v1793 = vpop.f32.mrb[0].mxu0
        %v1794 = vadd.f32 0.0, %v1793
        %v1795 = vpop.f32.mrb[0].mxu0
        %1796 = vmatprep.mubr.bf16.mxu0 %v1173
        %1797 = vmatmul.mubr.bf16.gmra.mrb[0].mxu0 %v1006
        %v1798 = vpop.f32.mrb[0].mxu0
        %v1799 = vadd.f32 0.0, %v1798
        %v1800 = vpop.f32.mrb[0].mxu0
        %v1801 = vpop.f32.mrb[0].mxu0
        %v1802 = vadd.f32 0.0, %v1801
        %v1803 = vpop.f32.mrb[0].mxu0
        %1804 = vmatprep.mubr.bf16.mxu0 %v1176
        %1805 = vmatmul.mubr.bf16.gmra.mrb[0].mxu0 %v1008
        %v1806 = vpop.f32.mrb[0].mxu0
        %v1807 = vadd.f32 0.0, %v1806
        %v1808 = vpop.f32.mrb[0].mxu0
        %v1809 = vpop.f32.mrb[0].mxu0
        %v1810 = vadd.f32 0.0, %v1809
        %v1811 = vpop.f32.mrb[0].mxu0
        %1812 = vmatprep.mubr.bf16.mxu0 %v1179
        %1813 = vmatmul.mubr.bf16.gmra.mrb[0].mxu0 %v1010
        %v1814 = vpop.f32.mrb[0].mxu0
        %v1815 = vadd.f32 0.0, %v1814
        %v1816 = vpop.f32.mrb[0].mxu0
        %v1817 = vpop.f32.mrb[0].mxu0
        %v1818 = vadd.f32 0.0, %v1817
        %v1819 = vpop.f32.mrb[0].mxu0
        %1820 = vmatprep.mubr.bf16.mxu0 %v1182
        %1821 = vmatmul.mubr.bf16.gmra.mrb[0].mxu0 %v1012
        %v1822 = vpop.f32.mrb[0].mxu0
        %v1823 = vadd.f32 0.0, %v1822
        %v1824 = vpop.f32.mrb[0].mxu0
        %v1825 = vpop.f32.mrb[0].mxu0
        %v1826 = vadd.f32 0.0, %v1825
        %v1827 = vpop.f32.mrb[0].mxu0
        %1828 = vmatprep.mubr.bf16.mxu0 %v1185
        %1829 = vmatmul.mubr.bf16.gmra.mrb[0].mxu0 %v1014
        %v1830 = vpop.f32.mrb[0].mxu0
        %v1831 = vadd.f32 0.0, %v1830
        %v1832 = vpop.f32.mrb[0].mxu0
        %v1833 = vpop.f32.mrb[0].mxu0
        %v1834 = vadd.f32 0.0, %v1833
        %v1835 = vpop.f32.mrb[0].mxu0
        %1836 = vmatprep.mubr.bf16.mxu0 %v1682
        %1837 = vmatmul.mubr.bf16.gmra.mrb[0].mxu0 %v1016
        %v1838 = vpop.f32.mrb[0].mxu0
        %v1839 = vadd.f32 0.0, %v1838
        %v1840 = vpop.f32.mrb[0].mxu0
        %v1841 = vpop.f32.mrb[0].mxu0
        %v1842 = vadd.f32 0.0, %v1841
        %v1843 = vpop.f32.mrb[0].mxu0
        %1844 = vdwg.mxu0
        %v1845 = vadd.f32 %v1458, %v1719
        %v1846 = vadd.f32 %v1461, %v1722
        %v1847 = vadd.f32 %v1466, %v1727
        %v1848 = vadd.f32 %v1469, %v1730
        %v1849 = vadd.f32 %v1474, %v1735
        %v1850 = vadd.f32 %v1477, %v1738
        %v1851 = vadd.f32 %v1482, %v1743
        %v1852 = vadd.f32 %v1485, %v1746
        %v1853 = vadd.f32 %v1490, %v1751
        %v1854 = vadd.f32 %v1493, %v1754
        %v1855 = vadd.f32 %v1498, %v1759
        %v1856 = vadd.f32 %v1501, %v1762
        %v1857 = vadd.f32 %v1506, %v1767
        %v1858 = vadd.f32 %v1509, %v1770
        %v1859 = vadd.f32 %v1514, %v1775
        %v1860 = vadd.f32 %v1517, %v1778
        %v1861 = vadd.f32 %v1522, %v1783
        %v1862 = vadd.f32 %v1525, %v1786
        %v1863 = vadd.f32 %v1530, %v1791
        %v1864 = vadd.f32 %v1533, %v1794
        %v1865 = vadd.f32 %v1538, %v1799
        %v1866 = vadd.f32 %v1541, %v1802
        %v1867 = vadd.f32 %v1546, %v1807
        %v1868 = vadd.f32 %v1549, %v1810
        %v1869 = vadd.f32 %v1554, %v1815
        %v1870 = vadd.f32 %v1557, %v1818
        %v1871 = vadd.f32 %v1562, %v1823
        %v1872 = vadd.f32 %v1565, %v1826
        %v1873 = vadd.f32 %v1570, %v1831
        %v1874 = vadd.f32 %v1573, %v1834
        %v1875 = vadd.f32 %v1578, %v1839
        %v1876 = vadd.f32 %v1581, %v1842
        %v1877 = vld [vmem:[#allocation9] sm:$0x1]
        %v1879 = vlaneseq
        %v1880 = vshrl.u32 %v1879, 7
        %v1881 = vsub.s32 0, %v1880
        %v1882 = vrot.slane %v1877, %v1881
        %v1884 = vadd.f32 %v1845, %v1882
        %v1885 = vadd.f32 %v1846, %v1882
        %v1886 = vadd.f32 %v1847, %v1882
        %v1887 = vadd.f32 %v1848, %v1882
        %v1888 = vadd.f32 %v1849, %v1882
        %v1889 = vadd.f32 %v1850, %v1882
        %v1890 = vadd.f32 %v1851, %v1882
        %v1891 = vadd.f32 %v1852, %v1882
        %v1892 = vadd.f32 %v1853, %v1882
        %v1893 = vadd.f32 %v1854, %v1882
        %v1894 = vadd.f32 %v1855, %v1882
        %v1895 = vadd.f32 %v1856, %v1882
        %v1896 = vadd.f32 %v1857, %v1882
        %v1897 = vadd.f32 %v1858, %v1882
        %v1898 = vadd.f32 %v1859, %v1882
        %v1899 = vadd.f32 %v1860, %v1882
        %v1900 = vadd.f32 %v1861, %v1882
        %v1901 = vadd.f32 %v1862, %v1882
        %v1902 = vadd.f32 %v1863, %v1882
        %v1903 = vadd.f32 %v1864, %v1882
        %v1904 = vadd.f32 %v1865, %v1882
        %v1905 = vadd.f32 %v1866, %v1882
        %v1906 = vadd.f32 %v1867, %v1882
        %v1907 = vadd.f32 %v1868, %v1882
        %v1908 = vadd.f32 %v1869, %v1882
        %v1909 = vadd.f32 %v1870, %v1882
        %v1910 = vadd.f32 %v1871, %v1882
        %v1911 = vadd.f32 %v1872, %v1882
        %v1912 = vadd.f32 %v1873, %v1882
        %v1913 = vadd.f32 %v1874, %v1882
        %v1914 = vadd.f32 %v1875, %v1882
        %v1915 = vadd.f32 %v1876, %v1882
        %v1916 = vmax.f32 %v1884, 0.0
        %v1917 = vmax.f32 %v1885, 0.0
        %v1918 = vmax.f32 %v1886, 0.0
        %v1919 = vmax.f32 %v1887, 0.0
        %v1920 = vmax.f32 %v1888, 0.0
        %v1921 = vmax.f32 %v1889, 0.0
        %v1922 = vmax.f32 %v1890, 0.0
        %v1923 = vmax.f32 %v1891, 0.0
        %v1924 = vmax.f32 %v1892, 0.0
        %v1925 = vmax.f32 %v1893, 0.0
        %v1926 = vmax.f32 %v1894, 0.0
        %v1927 = vmax.f32 %v1895, 0.0
        %v1928 = vmax.f32 %v1896, 0.0
        %v1929 = vmax.f32 %v1897, 0.0
        %v1930 = vmax.f32 %v1898, 0.0
        %v1931 = vmax.f32 %v1899, 0.0
        %v1932 = vmax.f32 %v1900, 0.0
        %v1933 = vmax.f32 %v1901, 0.0
        %v1934 = vmax.f32 %v1902, 0.0
        %v1935 = vmax.f32 %v1903, 0.0
        %v1936 = vmax.f32 %v1904, 0.0
        %v1937 = vmax.f32 %v1905, 0.0
        %v1938 = vmax.f32 %v1906, 0.0
        %v1939 = vmax.f32 %v1907, 0.0
        %v1940 = vmax.f32 %v1908, 0.0
        %v1941 = vmax.f32 %v1909, 0.0
        %v1942 = vmax.f32 %v1910, 0.0
        %v1943 = vmax.f32 %v1911, 0.0
        %v1944 = vmax.f32 %v1912, 0.0
        %v1945 = vmax.f32 %v1913, 0.0
        %v1946 = vmax.f32 %v1914, 0.0
        %v1947 = vmax.f32 %v1915, 0.0
        %s1948 = scalar_lea.vmem [#allocation3], 24
        %1949 = vst.msk [vmem:[%s1948 + $0x1] sm:$0xff] %vm541, %v1916
        %1950 = vst.msk [vmem:[%s1948 + $0x9] sm:$0xff] %vm541, %v1917
        %1951 = vst.msk [vmem:[%s1948 + $0x19] sm:$0xff] %vm541, %v1918
        %1952 = vst.msk [vmem:[%s1948 + $0x21] sm:$0xff] %vm541, %v1919
        %1953 = vst.msk [vmem:[%s1948 + $0x31] sm:$0xff] %vm541, %v1920
        %1954 = vst.msk [vmem:[%s1948 + $0x39] sm:$0xff] %vm541, %v1921
        %1955 = vst.msk [vmem:[%s1948 + $0x49] sm:$0xff] %vm541, %v1922
        %1956 = vst.msk [vmem:[%s1948 + $0x51] sm:$0xff] %vm541, %v1923
        %1957 = vst.msk [vmem:[%s1948 + $0x61] sm:$0xff] %vm541, %v1924
        %1958 = vst.msk [vmem:[%s1948 + $0x69] sm:$0xff] %vm541, %v1925
        %1959 = vst.msk [vmem:[%s1948 + $0x79] sm:$0xff] %vm541, %v1926
        %1960 = vst.msk [vmem:[%s1948 + $0x81] sm:$0xff] %vm541, %v1927
        %1961 = vst.msk [vmem:[%s1948 + $0x91] sm:$0xff] %vm541, %v1928
        %1962 = vst.msk [vmem:[%s1948 + $0x99] sm:$0xff] %vm541, %v1929
        %1963 = vst.msk [vmem:[%s1948 + $0xa9] sm:$0xff] %vm541, %v1930
        %1964 = vst.msk [vmem:[%s1948 + $0xb1] sm:$0xff] %vm541, %v1931
        %1965 = vst.msk [vmem:[%s1948 + $0xc1] sm:$0xff] %vm541, %v1932
        %1966 = vst.msk [vmem:[%s1948 + $0xc9] sm:$0xff] %vm541, %v1933
        %1967 = vst.msk [vmem:[%s1948 + $0xd9] sm:$0xff] %vm541, %v1934
        %1968 = vst.msk [vmem:[%s1948 + $0xe1] sm:$0xff] %vm541, %v1935
        %1969 = vst.msk [vmem:[%s1948 + $0xf1] sm:$0xff] %vm541, %v1936
        %1970 = vst.msk [vmem:[%s1948 + $0xf9] sm:$0xff] %vm541, %v1937
        %1971 = vst.msk [vmem:[%s1948 + $0x109] sm:$0xff] %vm541, %v1938
        %1972 = vst.msk [vmem:[%s1948 + $0x111] sm:$0xff] %vm541, %v1939
        %1973 = vst.msk [vmem:[%s1948 + $0x121] sm:$0xff] %vm541, %v1940
        %1974 = vst.msk [vmem:[%s1948 + $0x129] sm:$0xff] %vm541, %v1941
        %1975 = vst.msk [vmem:[%s1948 + $0x139] sm:$0xff] %vm541, %v1942
        %1976 = vst.msk [vmem:[%s1948 + $0x141] sm:$0xff] %vm541, %v1943
        %1977 = vst.msk [vmem:[%s1948 + $0x151] sm:$0xff] %vm541, %v1944
        %1978 = vst.msk [vmem:[%s1948 + $0x159] sm:$0xff] %vm541, %v1945
        %1979 = vst.msk [vmem:[%s1948 + $0x169] sm:$0xff] %vm541, %v1946
        %1980 = vst.msk [vmem:[%s1948 + $0x171] sm:$0xff] %vm541, %v1947
        %v1981 = vld [vmem:[#allocation3] sm:$0xff]
        %v1982 = vld [vmem:[#allocation3 + $0x8] sm:$0xff]
        %v1983 = vld [vmem:[#allocation3 + $0x18] sm:$0xff]
        %v1984 = vld [vmem:[#allocation3 + $0x20] sm:$0xff]
        %v1985 = vld [vmem:[#allocation3 + $0x30] sm:$0xff]
        %v1986 = vld [vmem:[#allocation3 + $0x38] sm:$0xff]
        %v1987 = vld [vmem:[#allocation3 + $0x48] sm:$0xff]
        %v1988 = vld [vmem:[#allocation3 + $0x50] sm:$0xff]
        %v1989 = vld [vmem:[#allocation3 + $0x60] sm:$0xff]
        %v1990 = vld [vmem:[#allocation3 + $0x68] sm:$0xff]
        %v1991 = vld [vmem:[#allocation3 + $0x78] sm:$0xff]
        %v1992 = vld [vmem:[#allocation3 + $0x80] sm:$0xff]
        %v1993 = vld [vmem:[#allocation3 + $0x90] sm:$0xff]
        %v1994 = vld [vmem:[#allocation3 + $0x98] sm:$0xff]
        %v1995 = vld [vmem:[#allocation3 + $0xa8] sm:$0xff]
        %v1996 = vld [vmem:[#allocation3 + $0xb0] sm:$0xff]
        %v1997 = vld [vmem:[#allocation3 + $0xc0] sm:$0xff]
        %v1998 = vld [vmem:[#allocation3 + $0xc8] sm:$0xff]
        %v1999 = vld [vmem:[#allocation3 + $0xd8] sm:$0xff]
        %v2000 = vld [vmem:[#allocation3 + $0xe0] sm:$0xff]
        %v2001 = vld [vmem:[#allocation3 + $0xf0] sm:$0xff]
        %v2002 = vld [vmem:[#allocation3 + $0xf8] sm:$0xff]
        %v2003 = vld [vmem:[#allocation3 + $0x108] sm:$0xff]
        %v2004 = vld [vmem:[#allocation3 + $0x110] sm:$0xff]
        %v2005 = vld [vmem:[#allocation3 + $0x120] sm:$0xff]
        %v2006 = vld [vmem:[#allocation3 + $0x128] sm:$0xff]
        %v2007 = vld [vmem:[#allocation3 + $0x138] sm:$0xff]
        %v2008 = vld [vmem:[#allocation3 + $0x140] sm:$0xff]
        %v2009 = vld [vmem:[#allocation3 + $0x150] sm:$0xff]
        %v2010 = vld [vmem:[#allocation3 + $0x158] sm:$0xff]
        %v2011 = vld [vmem:[#allocation3 + $0x168] sm:$0xff]
        %v2012 = vld [vmem:[#allocation3 + $0x170] sm:$0xff]
        %v2013 = vld [vmem:[#allocation3 + $0x180] sm:$0xff]
        %v2014 = vld [vmem:[#allocation3 + $0x188] sm:$0xff]
        %v2015 = vld [vmem:[#allocation3 + $0x198] sm:$0xff]
        %v2016 = vld [vmem:[#allocation3 + $0x1a0] sm:$0xff]
        %v2017 = vld [vmem:[#allocation3 + $0x1] sm:$0xff]
        %v2018 = vld [vmem:[#allocation3 + $0x9] sm:$0xff]
        %v2019 = vld [vmem:[#allocation3 + $0x19] sm:$0xff]
        %v2020 = vld [vmem:[#allocation3 + $0x21] sm:$0xff]
        %v2021 = vld [vmem:[#allocation3 + $0x31] sm:$0xff]
        %v2022 = vld [vmem:[#allocation3 + $0x39] sm:$0xff]
        %v2023 = vld [vmem:[#allocation3 + $0x49] sm:$0xff]
        %v2024 = vld [vmem:[#allocation3 + $0x51] sm:$0xff]
        %v2025 = vld [vmem:[#allocation3 + $0x61] sm:$0xff]
        %v2026 = vld [vmem:[#allocation3 + $0x69] sm:$0xff]
        %v2027 = vld [vmem:[#allocation3 + $0x79] sm:$0xff]
        %v2028 = vld [vmem:[#allocation3 + $0x81] sm:$0xff]
        %v2029 = vld [vmem:[#allocation3 + $0x91] sm:$0xff]
        %v2030 = vld [vmem:[#allocation3 + $0x99] sm:$0xff]
        %v2031 = vld [vmem:[#allocation3 + $0xa9] sm:$0xff]
        %v2032 = vld [vmem:[#allocation3 + $0xb1] sm:$0xff]
        %v2033 = vld [vmem:[#allocation3 + $0xc1] sm:$0xff]
        %v2034 = vld [vmem:[#allocation3 + $0xc9] sm:$0xff]
        %v2035 = vld [vmem:[#allocation3 + $0xd9] sm:$0xff]
        %v2036 = vld [vmem:[#allocation3 + $0xe1] sm:$0xff]
        %v2037 = vld [vmem:[#allocation3 + $0xf1] sm:$0xff]
        %v2038 = vld [vmem:[#allocation3 + $0xf9] sm:$0xff]
        %v2039 = vld [vmem:[#allocation3 + $0x109] sm:$0xff]
        %v2040 = vld [vmem:[#allocation3 + $0x111] sm:$0xff]
        %v2041 = vld [vmem:[#allocation3 + $0x121] sm:$0xff]
        %v2042 = vld [vmem:[#allocation3 + $0x129] sm:$0xff]
        %v2043 = vld [vmem:[#allocation3 + $0x139] sm:$0xff]
        %v2044 = vld [vmem:[#allocation3 + $0x141] sm:$0xff]
        %v2045 = vld [vmem:[#allocation3 + $0x151] sm:$0xff]
        %v2046 = vld [vmem:[#allocation3 + $0x159] sm:$0xff]
        %v2047 = vld [vmem:[#allocation3 + $0x169] sm:$0xff]
        %v2048 = vld [vmem:[#allocation3 + $0x171] sm:$0xff]
        %v2049 = vld [vmem:[#allocation3 + $0x181] sm:$0xff]
        %v2050 = vld [vmem:[#allocation3 + $0x189] sm:$0xff]
        %v2051 = vld [vmem:[#allocation3 + $0x199] sm:$0xff]
        %v2052 = vld [vmem:[#allocation3 + $0x1a1] sm:$0xff]
        %v2053 = vld [vmem:[#allocation3 + $0x2] sm:$0xff]
        %v2054 = vld [vmem:[#allocation3 + $0xa] sm:$0xff]
        %v2055 = vld [vmem:[#allocation3 + $0x1a] sm:$0xff]
        %v2056 = vld [vmem:[#allocation3 + $0x22] sm:$0xff]
        %v2057 = vld [vmem:[#allocation3 + $0x32] sm:$0xff]
        %v2058 = vld [vmem:[#allocation3 + $0x3a] sm:$0xff]
        %v2059 = vld [vmem:[#allocation3 + $0x4a] sm:$0xff]
        %v2060 = vld [vmem:[#allocation3 + $0x52] sm:$0xff]
        %v2061 = vld [vmem:[#allocation3 + $0x62] sm:$0xff]
        %v2062 = vld [vmem:[#allocation3 + $0x6a] sm:$0xff]
        %v2063 = vld [vmem:[#allocation3 + $0x7a] sm:$0xff]
        %v2064 = vld [vmem:[#allocation3 + $0x82] sm:$0xff]
        %v2065 = vld [vmem:[#allocation3 + $0x92] sm:$0xff]
        %v2066 = vld [vmem:[#allocation3 + $0x9a] sm:$0xff]
        %v2067 = vld [vmem:[#allocation3 + $0xaa] sm:$0xff]
        %v2068 = vld [vmem:[#allocation3 + $0xb2] sm:$0xff]
        %v2069 = vld [vmem:[#allocation3 + $0xc2] sm:$0xff]
        %v2070 = vld [vmem:[#allocation3 + $0xca] sm:$0xff]
        %v2071 = vld [vmem:[#allocation3 + $0xda] sm:$0xff]
        %v2072 = vld [vmem:[#allocation3 + $0xe2] sm:$0xff]
        %v2073 = vld [vmem:[#allocation3 + $0xf2] sm:$0xff]
        %v2074 = vld [vmem:[#allocation3 + $0xfa] sm:$0xff]
        %v2075 = vld [vmem:[#allocation3 + $0x10a] sm:$0xff]
        %v2076 = vld [vmem:[#allocation3 + $0x112] sm:$0xff]
        %v2077 = vld [vmem:[#allocation3 + $0x122] sm:$0xff]
        %v2078 = vld [vmem:[#allocation3 + $0x12a] sm:$0xff]
        %v2079 = vld [vmem:[#allocation3 + $0x13a] sm:$0xff]
        %v2080 = vld [vmem:[#allocation3 + $0x142] sm:$0xff]
        %v2081 = vld [vmem:[#allocation3 + $0x152] sm:$0xff]
        %v2082 = vld [vmem:[#allocation3 + $0x15a] sm:$0xff]
        %v2083 = vld [vmem:[#allocation3 + $0x16a] sm:$0xff]
        %v2084 = vld [vmem:[#allocation3 + $0x172] sm:$0xff]
        %v2085 = vld [vmem:[#allocation3 + $0x182] sm:$0xff]
        %v2086 = vld [vmem:[#allocation3 + $0x18a] sm:$0xff]
        %v2087 = vld [vmem:[#allocation3 + $0x19a] sm:$0xff]
        %v2088 = vld [vmem:[#allocation3 + $0x1a2] sm:$0xff]
        %2125 = vrot.lane.b32.xlu0 %v2017, 64
        %v2126 = vpop.permute.xlu0 %2125
        %2127 = vrot.lane.b32.xlu0 %v2018, 64
        %v2128 = vpop.permute.xlu0 %2127
        %2129 = vrot.lane.b32.xlu0 %v2019, 64
        %v2130 = vpop.permute.xlu0 %2129
        %2131 = vrot.lane.b32.xlu0 %v2020, 64
        %v2132 = vpop.permute.xlu0 %2131
        %2133 = vrot.lane.b32.xlu0 %v2021, 64
        %v2134 = vpop.permute.xlu0 %2133
        %2135 = vrot.lane.b32.xlu0 %v2022, 64
        %v2136 = vpop.permute.xlu0 %2135
        %2137 = vrot.lane.b32.xlu0 %v2023, 64
        %v2138 = vpop.permute.xlu0 %2137
        %2139 = vrot.lane.b32.xlu0 %v2024, 64
        %v2140 = vpop.permute.xlu0 %2139
        %2141 = vrot.lane.b32.xlu0 %v2025, 64
        %v2142 = vpop.permute.xlu0 %2141
        %2143 = vrot.lane.b32.xlu0 %v2026, 64
        %v2144 = vpop.permute.xlu0 %2143
        %2145 = vrot.lane.b32.xlu0 %v2027, 64
        %v2146 = vpop.permute.xlu0 %2145
        %2147 = vrot.lane.b32.xlu0 %v2028, 64
        %v2148 = vpop.permute.xlu0 %2147
        %2149 = vrot.lane.b32.xlu0 %v2029, 64
        %v2150 = vpop.permute.xlu0 %2149
        %2151 = vrot.lane.b32.xlu0 %v2030, 64
        %v2152 = vpop.permute.xlu0 %2151
        %2153 = vrot.lane.b32.xlu0 %v2031, 64
        %v2154 = vpop.permute.xlu0 %2153
        %2155 = vrot.lane.b32.xlu0 %v2032, 64
        %v2156 = vpop.permute.xlu0 %2155
        %2157 = vrot.lane.b32.xlu0 %v2033, 64
        %v2158 = vpop.permute.xlu0 %2157
        %2159 = vrot.lane.b32.xlu0 %v2034, 64
        %v2160 = vpop.permute.xlu0 %2159
        %2161 = vrot.lane.b32.xlu0 %v2035, 64
        %v2162 = vpop.permute.xlu0 %2161
        %2163 = vrot.lane.b32.xlu0 %v2036, 64
        %v2164 = vpop.permute.xlu0 %2163
        %2165 = vrot.lane.b32.xlu0 %v2037, 64
        %v2166 = vpop.permute.xlu0 %2165
        %2167 = vrot.lane.b32.xlu0 %v2038, 64
        %v2168 = vpop.permute.xlu0 %2167
        %2169 = vrot.lane.b32.xlu0 %v2039, 64
        %v2170 = vpop.permute.xlu0 %2169
        %2171 = vrot.lane.b32.xlu0 %v2040, 64
        %v2172 = vpop.permute.xlu0 %2171
        %2173 = vrot.lane.b32.xlu0 %v2041, 64
        %v2174 = vpop.permute.xlu0 %2173
        %2175 = vrot.lane.b32.xlu0 %v2042, 64
        %v2176 = vpop.permute.xlu0 %2175
        %2177 = vrot.lane.b32.xlu0 %v2043, 64
        %v2178 = vpop.permute.xlu0 %2177
        %2179 = vrot.lane.b32.xlu0 %v2044, 64
        %v2180 = vpop.permute.xlu0 %2179
        %2181 = vrot.lane.b32.xlu0 %v2045, 64
        %v2182 = vpop.permute.xlu0 %2181
        %2183 = vrot.lane.b32.xlu0 %v2046, 64
        %v2184 = vpop.permute.xlu0 %2183
        %2185 = vrot.lane.b32.xlu0 %v2047, 64
        %v2186 = vpop.permute.xlu0 %2185
        %2187 = vrot.lane.b32.xlu0 %v2048, 64
        %v2188 = vpop.permute.xlu0 %2187
        %2189 = vrot.lane.b32.xlu0 %v2049, 64
        %v2190 = vpop.permute.xlu0 %2189
        %2191 = vrot.lane.b32.xlu0 %v2050, 64
        %v2192 = vpop.permute.xlu0 %2191
        %2193 = vrot.lane.b32.xlu0 %v2051, 64
        %v2194 = vpop.permute.xlu0 %2193
        %2195 = vrot.lane.b32.xlu0 %v2052, 64
        %v2196 = vpop.permute.xlu0 %2195
        %v2233 = vsel %vm541, %v1981, %v2126
        %v2234 = vsel %vm541, %v1982, %v2128
        %v2235 = vsel %vm541, %v1983, %v2130
        %v2236 = vsel %vm541, %v1984, %v2132
        %v2237 = vsel %vm541, %v1985, %v2134
        %v2238 = vsel %vm541, %v1986, %v2136
        %v2239 = vsel %vm541, %v1987, %v2138
        %v2240 = vsel %vm541, %v1988, %v2140
        %v2241 = vsel %vm541, %v1989, %v2142
        %v2242 = vsel %vm541, %v1990, %v2144
        %v2243 = vsel %vm541, %v1991, %v2146
        %v2244 = vsel %vm541, %v1992, %v2148
        %v2245 = vsel %vm541, %v1993, %v2150
        %v2246 = vsel %vm541, %v1994, %v2152
        %v2247 = vsel %vm541, %v1995, %v2154
        %v2248 = vsel %vm541, %v1996, %v2156
        %v2249 = vsel %vm541, %v1997, %v2158
        %v2250 = vsel %vm541, %v1998, %v2160
        %v2251 = vsel %vm541, %v1999, %v2162
        %v2252 = vsel %vm541, %v2000, %v2164
        %v2253 = vsel %vm541, %v2001, %v2166
        %v2254 = vsel %vm541, %v2002, %v2168
        %v2255 = vsel %vm541, %v2003, %v2170
        %v2256 = vsel %vm541, %v2004, %v2172
        %v2257 = vsel %vm541, %v2005, %v2174
        %v2258 = vsel %vm541, %v2006, %v2176
        %v2259 = vsel %vm541, %v2007, %v2178
        %v2260 = vsel %vm541, %v2008, %v2180
        %v2261 = vsel %vm541, %v2009, %v2182
        %v2262 = vsel %vm541, %v2010, %v2184
        %v2263 = vsel %vm541, %v2011, %v2186
        %v2264 = vsel %vm541, %v2012, %v2188
        %v2265 = vsel %vm541, %v2013, %v2190
        %v2266 = vsel %vm541, %v2014, %v2192
        %v2267 = vsel %vm541, %v2015, %v2194
        %v2268 = vsel %vm541, %v2016, %v2196
        %v2269 = vpack.c.bf16 %v2234, %v2233
        %v2270 = vpack.c.bf16 %v2054, %v2053
        %v2271 = vpack.c.bf16 %v2236, %v2235
        %v2272 = vpack.c.bf16 %v2056, %v2055
        %v2273 = vpack.c.bf16 %v2238, %v2237
        %v2274 = vpack.c.bf16 %v2058, %v2057
        %v2275 = vpack.c.bf16 %v2240, %v2239
        %v2276 = vpack.c.bf16 %v2060, %v2059
        %v2277 = vpack.c.bf16 %v2242, %v2241
        %v2278 = vpack.c.bf16 %v2062, %v2061
        %v2279 = vpack.c.bf16 %v2244, %v2243
        %v2280 = vpack.c.bf16 %v2064, %v2063
        %v2281 = vpack.c.bf16 %v2246, %v2245
        %v2282 = vpack.c.bf16 %v2066, %v2065
        %v2283 = vpack.c.bf16 %v2248, %v2247
        %v2284 = vpack.c.bf16 %v2068, %v2067
        %v2285 = vpack.c.bf16 %v2250, %v2249
        %v2286 = vpack.c.bf16 %v2070, %v2069
        %v2287 = vpack.c.bf16 %v2252, %v2251
        %v2288 = vpack.c.bf16 %v2072, %v2071
        %v2289 = vpack.c.bf16 %v2254, %v2253
        %v2290 = vpack.c.bf16 %v2074, %v2073
        %v2291 = vpack.c.bf16 %v2256, %v2255
        %v2292 = vpack.c.bf16 %v2076, %v2075
        %v2293 = vpack.c.bf16 %v2258, %v2257
        %v2294 = vpack.c.bf16 %v2078, %v2077
        %v2295 = vpack.c.bf16 %v2260, %v2259
        %v2296 = vpack.c.bf16 %v2080, %v2079
        %v2297 = vpack.c.bf16 %v2262, %v2261
        %v2298 = vpack.c.bf16 %v2082, %v2081
        %v2299 = vpack.c.bf16 %v2264, %v2263
        %v2300 = vpack.c.bf16 %v2084, %v2083
        %v2301 = vpack.c.bf16 %v2266, %v2265
        %v2302 = vpack.c.bf16 %v2086, %v2085
        %v2303 = vpack.c.bf16 %v2268, %v2267
        %v2304 = vpack.c.bf16 %v2088, %v2087
        %v2305 = vld [vmem:[#allocation10] sm:$0xf]
        %v2306 = vld [vmem:[#allocation10 + $0x4] sm:$0xf]
        %v2307 = vld [vmem:[#allocation10 + $0x8] sm:$0xf]
        %v2308 = vld [vmem:[#allocation10 + $0xc] sm:$0xf]
        %v2309 = vld [vmem:[#allocation10 + $0x10] sm:$0xf]
        %v2310 = vld [vmem:[#allocation10 + $0x14] sm:$0xf]
        %v2311 = vld [vmem:[#allocation10 + $0x18] sm:$0xf]
        %v2312 = vld [vmem:[#allocation10 + $0x1c] sm:$0xf]
        %v2313 = vld [vmem:[#allocation10 + $0x20] sm:$0xf]
        %v2314 = vld [vmem:[#allocation10 + $0x24] sm:$0xf]
        %v2315 = vld [vmem:[#allocation10 + $0x28] sm:$0xf]
        %v2316 = vld [vmem:[#allocation10 + $0x2c] sm:$0xf]
        %v2317 = vld [vmem:[#allocation10 + $0x30] sm:$0xf]
        %v2318 = vld [vmem:[#allocation10 + $0x34] sm:$0xf]
        %v2319 = vld [vmem:[#allocation10 + $0x38] sm:$0xf]
        %v2320 = vld [vmem:[#allocation10 + $0x3c] sm:$0xf]
        %v2321 = vld [vmem:[#allocation10 + $0x40] sm:$0xf]
        %v2322 = vld [vmem:[#allocation10 + $0x44] sm:$0xf]
        %v2323 = vld [vmem:[#allocation10 + $0x48] sm:$0xf]
        %v2324 = vld [vmem:[#allocation10 + $0x4c] sm:$0xf]
        %v2325 = vld [vmem:[#allocation10 + $0x50] sm:$0xf]
        %v2326 = vld [vmem:[#allocation10 + $0x54] sm:$0xf]
        %v2327 = vld [vmem:[#allocation10 + $0x58] sm:$0xf]
        %v2328 = vld [vmem:[#allocation10 + $0x5c] sm:$0xf]
        %s2329 = scalar_lea.vmem [#allocation10], 96
        %v2330 = vld [vmem:[%s2329] sm:$0xf]
        %v2331 = vld [vmem:[%s2329 + $0x4] sm:$0xf]
        %v2332 = vld [vmem:[%s2329 + $0x8] sm:$0xf]
        %v2333 = vld [vmem:[%s2329 + $0xc] sm:$0xf]
        %v2334 = vld [vmem:[%s2329 + $0x10] sm:$0xf]
        %v2335 = vld [vmem:[%s2329 + $0x14] sm:$0xf]
        %v2336 = vld [vmem:[%s2329 + $0x18] sm:$0xf]
        %v2337 = vld [vmem:[%s2329 + $0x1c] sm:$0xf]
        %v2338 = vld [vmem:[%s2329 + $0x20] sm:$0xf]
        %v2339 = vld [vmem:[%s2329 + $0x24] sm:$0xf]
        %v2340 = vld [vmem:[%s2329 + $0x28] sm:$0xf]
        %v2341 = vld [vmem:[%s2329 + $0x2c] sm:$0xf]
        %v2342 = vld [vmem:[%s2329 + $0x30] sm:$0xf]
        %v2343 = vld [vmem:[%s2329 + $0x34] sm:$0xf]
        %v2344 = vld [vmem:[%s2329 + $0x38] sm:$0xf]
        %v2345 = vld [vmem:[%s2329 + $0x3c] sm:$0xf]
        %v2346 = vld [vmem:[%s2329 + $0x40] sm:$0xf]
        %v2347 = vld [vmem:[%s2329 + $0x44] sm:$0xf]
        %v2348 = vld [vmem:[%s2329 + $0x48] sm:$0xf]
        %v2349 = vld [vmem:[%s2329 + $0x4c] sm:$0xf]
        %v2350 = vld [vmem:[%s2329 + $0x50] sm:$0xf]
        %v2351 = vld [vmem:[%s2329 + $0x54] sm:$0xf]
        %v2352 = vld [vmem:[%s2329 + $0x58] sm:$0xf]
        %v2353 = vld [vmem:[%s2329 + $0x5c] sm:$0xf]
        %v2378 = vunpack.c.l.b16 %v2330
        %v2379 = vunpack.c.l.b16 %v2331
        %v2380 = vunpack.c.l.b16 %v2332
        %v2381 = vunpack.c.l.b16 %v2333
        %v2382 = vunpack.c.l.b16 %v2334
        %v2383 = vunpack.c.l.b16 %v2335
        %v2384 = vunpack.c.l.b16 %v2336
        %v2385 = vunpack.c.l.b16 %v2337
        %v2386 = vunpack.c.l.b16 %v2338
        %v2387 = vunpack.c.l.b16 %v2339
        %v2388 = vunpack.c.l.b16 %v2340
        %v2389 = vunpack.c.l.b16 %v2341
        %v2390 = vunpack.c.l.b16 %v2342
        %v2391 = vunpack.c.l.b16 %v2343
        %v2392 = vunpack.c.l.b16 %v2344
        %v2393 = vunpack.c.l.b16 %v2345
        %v2394 = vunpack.c.l.b16 %v2346
        %v2395 = vunpack.c.l.b16 %v2347
        %v2396 = vunpack.c.l.b16 %v2348
        %v2397 = vunpack.c.l.b16 %v2349
        %v2398 = vunpack.c.l.b16 %v2350
        %v2399 = vunpack.c.l.b16 %v2351
        %v2400 = vunpack.c.l.b16 %v2352
        %v2401 = vunpack.c.l.b16 %v2353
        %v2402 = vpack.c.b16 %v2379, %v2378
        %v2403 = vpack.c.b16 %v2381, %v2380
        %v2404 = vpack.c.b16 %v2383, %v2382
        %v2405 = vpack.c.b16 %v2385, %v2384
        %v2406 = vpack.c.b16 %v2387, %v2386
        %v2407 = vpack.c.b16 %v2389, %v2388
        %v2408 = vpack.c.b16 %v2391, %v2390
        %v2409 = vpack.c.b16 %v2393, %v2392
        %v2410 = vpack.c.b16 %v2395, %v2394
        %v2411 = vpack.c.b16 %v2397, %v2396
        %v2412 = vpack.c.b16 %v2399, %v2398
        %v2413 = vpack.c.b16 %v2401, %v2400
        %v2427 = vsel %vm541, %v2272, 0
        %v2430 = vsel %vm541, %v2274, 0
        %v2433 = vsel %vm541, %v2276, 0
        %v2436 = vsel %vm541, %v2278, 0
        %v2439 = vsel %vm541, %v2280, 0
        %v2442 = vsel %vm541, %v2282, 0
        %v2445 = vsel %vm541, %v2284, 0
        %v2448 = vsel %vm541, %v2286, 0
        %v2451 = vsel %vm541, %v2288, 0
        %v2454 = vsel %vm541, %v2290, 0
        %v2457 = vsel %vm541, %v2292, 0
        %v2460 = vsel %vm541, %v2294, 0
        %v2463 = vsel %vm541, %v2296, 0
        %v2466 = vsel %vm541, %v2298, 0
        %v2469 = vsel %vm541, %v2300, 0
        %v2472 = vsel %vm541, %v2302, 0
        %2474 = vmatprep.subr.bf16.mxu0 0
        %2475 = vmatpush1.bf16.msra.mxu0 %v2402
        %2476 = vmatprep.subr.bf16.mxu0 0
        %2477 = vmatpush1.bf16.msra.mxu0 %v2403
        %2478 = vmatprep.subr.bf16.mxu0 0
        %2479 = vmatpush1.bf16.msra.mxu0 %v2404
        %2480 = vmatprep.subr.bf16.mxu0 0
        %2481 = vmatpush1.bf16.msra.mxu0 %v2405
        %2482 = vmatprep.subr.bf16.mxu0 0
        %2483 = vmatpush1.bf16.msra.mxu0 %v2406
        %2484 = vmatprep.subr.bf16.mxu0 0
        %2485 = vmatpush1.bf16.msra.mxu0 %v2407
        %2486 = vmatprep.subr.bf16.mxu0 0
        %2487 = vmatpush1.bf16.msra.mxu0 %v2408
        %2488 = vmatprep.subr.bf16.mxu0 0
        %2489 = vmatpush1.bf16.msra.mxu0 %v2409
        %2490 = vmatprep.subr.bf16.mxu0 0
        %2491 = vmatpush1.bf16.msra.mxu0 %v2410
        %2492 = vmatprep.subr.bf16.mxu0 0
        %2493 = vmatpush1.bf16.msra.mxu0 %v2411
        %2494 = vmatprep.subr.bf16.mxu0 0
        %2495 = vmatpush1.bf16.msra.mxu0 %v2412
        %2496 = vmatprep.subr.bf16.mxu0 0
        %2497 = vmatpush1.bf16.msra.mxu0 %v2413
        %2498 = vmatprep.subr.bf16.mxu0 0
        %2499 = vmatpush1.bf16.msra.mxu0 0
        %2500 = vmatprep.subr.bf16.mxu0 0
        %2501 = vmatpush1.bf16.msra.mxu0 0
        %2502 = vmatprep.subr.bf16.mxu0 0
        %2503 = vmatpush1.bf16.msra.mxu0 0
        %2504 = vmatprep.subr.bf16.mxu0 0
        %2505 = vmatpush1.bf16.msra.mxu0 0
        %2506 = vmatprep.mubr.bf16.mxu0 %v2427
        %2507 = vmatmul.mubr.bf16.gmra.mrb[0].mxu0 %v2271
        %v2508 = vpop.f32.mrb[0].mxu0
        %v2509 = vadd.f32 0.0, %v2508
        %v2510 = vpop.f32.mrb[0].mxu0
        %v2511 = vpop.f32.mrb[0].mxu0
        %v2512 = vadd.f32 0.0, %v2511
        %v2513 = vpop.f32.mrb[0].mxu0
        %2514 = vmatprep.mubr.bf16.mxu0 %v2430
        %2515 = vmatmul.mubr.bf16.gmra.mrb[0].mxu0 %v2273
        %v2516 = vpop.f32.mrb[0].mxu0
        %v2517 = vadd.f32 0.0, %v2516
        %v2518 = vpop.f32.mrb[0].mxu0
        %v2519 = vpop.f32.mrb[0].mxu0
        %v2520 = vadd.f32 0.0, %v2519
        %v2521 = vpop.f32.mrb[0].mxu0
        %2522 = vmatprep.mubr.bf16.mxu0 %v2433
        %2523 = vmatmul.mubr.bf16.gmra.mrb[0].mxu0 %v2275
        %v2524 = vpop.f32.mrb[0].mxu0
        %v2525 = vadd.f32 0.0, %v2524
        %v2526 = vpop.f32.mrb[0].mxu0
        %v2527 = vpop.f32.mrb[0].mxu0
        %v2528 = vadd.f32 0.0, %v2527
        %v2529 = vpop.f32.mrb[0].mxu0
        %2530 = vmatprep.mubr.bf16.mxu0 %v2436
        %2531 = vmatmul.mubr.bf16.gmra.mrb[0].mxu0 %v2277
        %v2532 = vpop.f32.mrb[0].mxu0
        %v2533 = vadd.f32 0.0, %v2532
        %v2534 = vpop.f32.mrb[0].mxu0
        %v2535 = vpop.f32.mrb[0].mxu0
        %v2536 = vadd.f32 0.0, %v2535
        %v2537 = vpop.f32.mrb[0].mxu0
        %2538 = vmatprep.mubr.bf16.mxu0 %v2439
        %2539 = vmatmul.mubr.bf16.gmra.mrb[0].mxu0 %v2279
        %v2540 = vpop.f32.mrb[0].mxu0
        %v2541 = vadd.f32 0.0, %v2540
        %v2542 = vpop.f32.mrb[0].mxu0
        %v2543 = vpop.f32.mrb[0].mxu0
        %v2544 = vadd.f32 0.0, %v2543
        %v2545 = vpop.f32.mrb[0].mxu0
        %2546 = vmatprep.mubr.bf16.mxu0 %v2442
        %2547 = vmatmul.mubr.bf16.gmra.mrb[0].mxu0 %v2281
        %v2548 = vpop.f32.mrb[0].mxu0
        %v2549 = vadd.f32 0.0, %v2548
        %v2550 = vpop.f32.mrb[0].mxu0
        %v2551 = vpop.f32.mrb[0].mxu0
        %v2552 = vadd.f32 0.0, %v2551
        %v2553 = vpop.f32.mrb[0].mxu0
        %2554 = vmatprep.mubr.bf16.mxu0 %v2445
        %2555 = vmatmul.mubr.bf16.gmra.mrb[0].mxu0 %v2283
        %v2556 = vpop.f32.mrb[0].mxu0
        %v2557 = vadd.f32 0.0, %v2556
        %v2558 = vpop.f32.mrb[0].mxu0
        %v2559 = vpop.f32.mrb[0].mxu0
        %v2560 = vadd.f32 0.0, %v2559
        %v2561 = vpop.f32.mrb[0].mxu0
        %2562 = vmatprep.mubr.bf16.mxu0 %v2448
        %2563 = vmatmul.mubr.bf16.gmra.mrb[0].mxu0 %v2285
        %v2564 = vpop.f32.mrb[0].mxu0
        %v2565 = vadd.f32 0.0, %v2564
        %v2566 = vpop.f32.mrb[0].mxu0
        %v2567 = vpop.f32.mrb[0].mxu0
        %v2568 = vadd.f32 0.0, %v2567
        %v2569 = vpop.f32.mrb[0].mxu0
        %2570 = vmatprep.mubr.bf16.mxu0 %v2451
        %2571 = vmatmul.mubr.bf16.gmra.mrb[0].mxu0 %v2287
        %v2572 = vpop.f32.mrb[0].mxu0
        %v2573 = vadd.f32 0.0, %v2572
        %v2574 = vpop.f32.mrb[0].mxu0
        %v2575 = vpop.f32.mrb[0].mxu0
        %v2576 = vadd.f32 0.0, %v2575
        %v2577 = vpop.f32.mrb[0].mxu0
        %2578 = vmatprep.mubr.bf16.mxu0 %v2454
        %2579 = vmatmul.mubr.bf16.gmra.mrb[0].mxu0 %v2289
        %v2580 = vpop.f32.mrb[0].mxu0
        %v2581 = vadd.f32 0.0, %v2580
        %v2582 = vpop.f32.mrb[0].mxu0
        %v2583 = vpop.f32.mrb[0].mxu0
        %v2584 = vadd.f32 0.0, %v2583
        %v2585 = vpop.f32.mrb[0].mxu0
        %2586 = vmatprep.mubr.bf16.mxu0 %v2457
        %2587 = vmatmul.mubr.bf16.gmra.mrb[0].mxu0 %v2291
        %v2588 = vpop.f32.mrb[0].mxu0
        %v2589 = vadd.f32 0.0, %v2588
        %v2590 = vpop.f32.mrb[0].mxu0
        %v2591 = vpop.f32.mrb[0].mxu0
        %v2592 = vadd.f32 0.0, %v2591
        %v2593 = vpop.f32.mrb[0].mxu0
        %2594 = vmatprep.mubr.bf16.mxu0 %v2460
        %2595 = vmatmul.mubr.bf16.gmra.mrb[0].mxu0 %v2293
        %v2596 = vpop.f32.mrb[0].mxu0
        %v2597 = vadd.f32 0.0, %v2596
        %v2598 = vpop.f32.mrb[0].mxu0
        %v2599 = vpop.f32.mrb[0].mxu0
        %v2600 = vadd.f32 0.0, %v2599
        %v2601 = vpop.f32.mrb[0].mxu0
        %2602 = vmatprep.mubr.bf16.mxu0 %v2463
        %2603 = vmatmul.mubr.bf16.gmra.mrb[0].mxu0 %v2295
        %v2604 = vpop.f32.mrb[0].mxu0
        %v2605 = vadd.f32 0.0, %v2604
        %v2606 = vpop.f32.mrb[0].mxu0
        %v2607 = vpop.f32.mrb[0].mxu0
        %v2608 = vadd.f32 0.0, %v2607
        %v2609 = vpop.f32.mrb[0].mxu0
        %2610 = vmatprep.mubr.bf16.mxu0 %v2466
        %2611 = vmatmul.mubr.bf16.gmra.mrb[0].mxu0 %v2297
        %v2612 = vpop.f32.mrb[0].mxu0
        %v2613 = vadd.f32 0.0, %v2612
        %v2614 = vpop.f32.mrb[0].mxu0
        %v2615 = vpop.f32.mrb[0].mxu0
        %v2616 = vadd.f32 0.0, %v2615
        %v2617 = vpop.f32.mrb[0].mxu0
        %2618 = vmatprep.mubr.bf16.mxu0 %v2469
        %2619 = vmatmul.mubr.bf16.gmra.mrb[0].mxu0 %v2299
        %v2620 = vpop.f32.mrb[0].mxu0
        %v2621 = vadd.f32 0.0, %v2620
        %v2622 = vpop.f32.mrb[0].mxu0
        %v2623 = vpop.f32.mrb[0].mxu0
        %v2624 = vadd.f32 0.0, %v2623
        %v2625 = vpop.f32.mrb[0].mxu0
        %2626 = vmatprep.mubr.bf16.mxu0 %v2472
        %2627 = vmatmul.mubr.bf16.gmra.mrb[0].mxu0 %v2301
        %v2628 = vpop.f32.mrb[0].mxu0
        %v2629 = vadd.f32 0.0, %v2628
        %v2630 = vpop.f32.mrb[0].mxu0
        %v2631 = vpop.f32.mrb[0].mxu0
        %v2632 = vadd.f32 0.0, %v2631
        %v2633 = vpop.f32.mrb[0].mxu0
        %2634 = vdwg.mxu0
        %v2659 = vunpack.c.l.b16 %v2305
        %v2660 = vunpack.c.l.b16 %v2306
        %v2661 = vunpack.c.l.b16 %v2307
        %v2662 = vunpack.c.l.b16 %v2308
        %v2663 = vunpack.c.l.b16 %v2309
        %v2664 = vunpack.c.l.b16 %v2310
        %v2665 = vunpack.c.l.b16 %v2311
        %v2666 = vunpack.c.l.b16 %v2312
        %v2667 = vunpack.c.l.b16 %v2313
        %v2668 = vunpack.c.l.b16 %v2314
        %v2669 = vunpack.c.l.b16 %v2315
        %v2670 = vunpack.c.l.b16 %v2316
        %v2671 = vunpack.c.l.b16 %v2317
        %v2672 = vunpack.c.l.b16 %v2318
        %v2673 = vunpack.c.l.b16 %v2319
        %v2674 = vunpack.c.l.b16 %v2320
        %v2675 = vunpack.c.l.b16 %v2321
        %v2676 = vunpack.c.l.b16 %v2322
        %v2677 = vunpack.c.l.b16 %v2323
        %v2678 = vunpack.c.l.b16 %v2324
        %v2679 = vunpack.c.l.b16 %v2325
        %v2680 = vunpack.c.l.b16 %v2326
        %v2681 = vunpack.c.l.b16 %v2327
        %v2682 = vunpack.c.l.b16 %v2328
        %v2683 = vpack.c.b16 %v2660, %v2659
        %v2684 = vpack.c.b16 %v2662, %v2661
        %v2685 = vpack.c.b16 %v2664, %v2663
        %v2686 = vpack.c.b16 %v2666, %v2665
        %v2687 = vpack.c.b16 %v2668, %v2667
        %v2688 = vpack.c.b16 %v2670, %v2669
        %v2689 = vpack.c.b16 %v2672, %v2671
        %v2690 = vpack.c.b16 %v2674, %v2673
        %v2691 = vpack.c.b16 %v2676, %v2675
        %v2692 = vpack.c.b16 %v2678, %v2677
        %v2693 = vpack.c.b16 %v2680, %v2679
        %v2694 = vpack.c.b16 %v2682, %v2681
        %v2708 = vsel %vm541, %v2270, 0
        %2710 = vmatprep.subr.bf16.mxu0 0
        %2711 = vmatpush1.bf16.msra.mxu0 %v2683
        %2712 = vmatprep.subr.bf16.mxu0 0
        %2713 = vmatpush1.bf16.msra.mxu0 %v2684
        %2714 = vmatprep.subr.bf16.mxu0 0
        %2715 = vmatpush1.bf16.msra.mxu0 %v2685
        %2716 = vmatprep.subr.bf16.mxu0 0
        %2717 = vmatpush1.bf16.msra.mxu0 %v2686
        %2718 = vmatprep.subr.bf16.mxu0 0
        %2719 = vmatpush1.bf16.msra.mxu0 %v2687
        %2720 = vmatprep.subr.bf16.mxu0 0
        %2721 = vmatpush1.bf16.msra.mxu0 %v2688
        %2722 = vmatprep.subr.bf16.mxu0 0
        %2723 = vmatpush1.bf16.msra.mxu0 %v2689
        %2724 = vmatprep.subr.bf16.mxu0 0
        %2725 = vmatpush1.bf16.msra.mxu0 %v2690
        %2726 = vmatprep.subr.bf16.mxu0 0
        %2727 = vmatpush1.bf16.msra.mxu0 %v2691
        %2728 = vmatprep.subr.bf16.mxu0 0
        %2729 = vmatpush1.bf16.msra.mxu0 %v2692
        %2730 = vmatprep.subr.bf16.mxu0 0
        %2731 = vmatpush1.bf16.msra.mxu0 %v2693
        %2732 = vmatprep.subr.bf16.mxu0 0
        %2733 = vmatpush1.bf16.msra.mxu0 %v2694
        %2734 = vmatprep.subr.bf16.mxu0 0
        %2735 = vmatpush1.bf16.msra.mxu0 0
        %2736 = vmatprep.subr.bf16.mxu0 0
        %2737 = vmatpush1.bf16.msra.mxu0 0
        %2738 = vmatprep.subr.bf16.mxu0 0
        %2739 = vmatpush1.bf16.msra.mxu0 0
        %2740 = vmatprep.subr.bf16.mxu0 0
        %2741 = vmatpush1.bf16.msra.mxu0 0
        %2742 = vmatprep.mubr.bf16.mxu0 %v2708
        %2743 = vmatmul.mubr.bf16.gmra.mrb[0].mxu0 %v2269
        %v2744 = vpop.f32.mrb[0].mxu0
        %v2745 = vadd.f32 %v2509, %v2744
        %v2746 = vpop.f32.mrb[0].mxu0
        %v2747 = vpop.f32.mrb[0].mxu0
        %v2748 = vadd.f32 %v2512, %v2747
        %v2749 = vpop.f32.mrb[0].mxu0
        %2750 = vmatprep.mubr.bf16.mxu0 %v2427
        %2751 = vmatmul.mubr.bf16.gmra.mrb[0].mxu0 %v2271
        %v2752 = vpop.f32.mrb[0].mxu0
        %v2753 = vadd.f32 %v2517, %v2752
        %v2754 = vpop.f32.mrb[0].mxu0
        %v2755 = vpop.f32.mrb[0].mxu0
        %v2756 = vadd.f32 %v2520, %v2755
        %v2757 = vpop.f32.mrb[0].mxu0
        %2758 = vmatprep.mubr.bf16.mxu0 %v2430
        %2759 = vmatmul.mubr.bf16.gmra.mrb[0].mxu0 %v2273
        %v2760 = vpop.f32.mrb[0].mxu0
        %v2761 = vadd.f32 %v2525, %v2760
        %v2762 = vpop.f32.mrb[0].mxu0
        %v2763 = vpop.f32.mrb[0].mxu0
        %v2764 = vadd.f32 %v2528, %v2763
        %v2765 = vpop.f32.mrb[0].mxu0
        %2766 = vmatprep.mubr.bf16.mxu0 %v2433
        %2767 = vmatmul.mubr.bf16.gmra.mrb[0].mxu0 %v2275
        %v2768 = vpop.f32.mrb[0].mxu0
        %v2769 = vadd.f32 %v2533, %v2768
        %v2770 = vpop.f32.mrb[0].mxu0
        %v2771 = vpop.f32.mrb[0].mxu0
        %v2772 = vadd.f32 %v2536, %v2771
        %v2773 = vpop.f32.mrb[0].mxu0
        %2774 = vmatprep.mubr.bf16.mxu0 %v2436
        %2775 = vmatmul.mubr.bf16.gmra.mrb[0].mxu0 %v2277
        %v2776 = vpop.f32.mrb[0].mxu0
        %v2777 = vadd.f32 %v2541, %v2776
        %v2778 = vpop.f32.mrb[0].mxu0
        %v2779 = vpop.f32.mrb[0].mxu0
        %v2780 = vadd.f32 %v2544, %v2779
        %v2781 = vpop.f32.mrb[0].mxu0
        %2782 = vmatprep.mubr.bf16.mxu0 %v2439
        %2783 = vmatmul.mubr.bf16.gmra.mrb[0].mxu0 %v2279
        %v2784 = vpop.f32.mrb[0].mxu0
        %v2785 = vadd.f32 %v2549, %v2784
        %v2786 = vpop.f32.mrb[0].mxu0
        %v2787 = vpop.f32.mrb[0].mxu0
        %v2788 = vadd.f32 %v2552, %v2787
        %v2789 = vpop.f32.mrb[0].mxu0
        %2790 = vmatprep.mubr.bf16.mxu0 %v2442
        %2791 = vmatmul.mubr.bf16.gmra.mrb[0].mxu0 %v2281
        %v2792 = vpop.f32.mrb[0].mxu0
        %v2793 = vadd.f32 %v2557, %v2792
        %v2794 = vpop.f32.mrb[0].mxu0
        %v2795 = vpop.f32.mrb[0].mxu0
        %v2796 = vadd.f32 %v2560, %v2795
        %v2797 = vpop.f32.mrb[0].mxu0
        %2798 = vmatprep.mubr.bf16.mxu0 %v2445
        %2799 = vmatmul.mubr.bf16.gmra.mrb[0].mxu0 %v2283
        %v2800 = vpop.f32.mrb[0].mxu0
        %v2801 = vadd.f32 %v2565, %v2800
        %v2802 = vpop.f32.mrb[0].mxu0
        %v2803 = vpop.f32.mrb[0].mxu0
        %v2804 = vadd.f32 %v2568, %v2803
        %v2805 = vpop.f32.mrb[0].mxu0
        %2806 = vmatprep.mubr.bf16.mxu0 %v2448
        %2807 = vmatmul.mubr.bf16.gmra.mrb[0].mxu0 %v2285
        %v2808 = vpop.f32.mrb[0].mxu0
        %v2809 = vadd.f32 %v2573, %v2808
        %v2810 = vpop.f32.mrb[0].mxu0
        %v2811 = vpop.f32.mrb[0].mxu0
        %v2812 = vadd.f32 %v2576, %v2811
        %v2813 = vpop.f32.mrb[0].mxu0
        %2814 = vmatprep.mubr.bf16.mxu0 %v2451
        %2815 = vmatmul.mubr.bf16.gmra.mrb[0].mxu0 %v2287
        %v2816 = vpop.f32.mrb[0].mxu0
        %v2817 = vadd.f32 %v2581, %v2816
        %v2818 = vpop.f32.mrb[0].mxu0
        %v2819 = vpop.f32.mrb[0].mxu0
        %v2820 = vadd.f32 %v2584, %v2819
        %v2821 = vpop.f32.mrb[0].mxu0
        %2822 = vmatprep.mubr.bf16.mxu0 %v2454
        %2823 = vmatmul.mubr.bf16.gmra.mrb[0].mxu0 %v2289
        %v2824 = vpop.f32.mrb[0].mxu0
        %v2825 = vadd.f32 %v2589, %v2824
        %v2826 = vpop.f32.mrb[0].mxu0
        %v2827 = vpop.f32.mrb[0].mxu0
        %v2828 = vadd.f32 %v2592, %v2827
        %v2829 = vpop.f32.mrb[0].mxu0
        %2830 = vmatprep.mubr.bf16.mxu0 %v2457
        %2831 = vmatmul.mubr.bf16.gmra.mrb[0].mxu0 %v2291
        %v2832 = vpop.f32.mrb[0].mxu0
        %v2833 = vadd.f32 %v2597, %v2832
        %v2834 = vpop.f32.mrb[0].mxu0
        %v2835 = vpop.f32.mrb[0].mxu0
        %v2836 = vadd.f32 %v2600, %v2835
        %v2837 = vpop.f32.mrb[0].mxu0
        %2838 = vmatprep.mubr.bf16.mxu0 %v2460
        %2839 = vmatmul.mubr.bf16.gmra.mrb[0].mxu0 %v2293
        %v2840 = vpop.f32.mrb[0].mxu0
        %v2841 = vadd.f32 %v2605, %v2840
        %v2842 = vpop.f32.mrb[0].mxu0
        %v2843 = vpop.f32.mrb[0].mxu0
        %v2844 = vadd.f32 %v2608, %v2843
        %v2845 = vpop.f32.mrb[0].mxu0
        %2846 = vmatprep.mubr.bf16.mxu0 %v2463
        %2847 = vmatmul.mubr.bf16.gmra.mrb[0].mxu0 %v2295
        %v2848 = vpop.f32.mrb[0].mxu0
        %v2849 = vadd.f32 %v2613, %v2848
        %v2850 = vpop.f32.mrb[0].mxu0
        %v2851 = vpop.f32.mrb[0].mxu0
        %v2852 = vadd.f32 %v2616, %v2851
        %v2853 = vpop.f32.mrb[0].mxu0
        %2854 = vmatprep.mubr.bf16.mxu0 %v2466
        %2855 = vmatmul.mubr.bf16.gmra.mrb[0].mxu0 %v2297
        %v2856 = vpop.f32.mrb[0].mxu0
        %v2857 = vadd.f32 %v2621, %v2856
        %v2858 = vpop.f32.mrb[0].mxu0
        %v2859 = vpop.f32.mrb[0].mxu0
        %v2860 = vadd.f32 %v2624, %v2859
        %v2861 = vpop.f32.mrb[0].mxu0
        %2862 = vmatprep.mubr.bf16.mxu0 %v2469
        %2863 = vmatmul.mubr.bf16.gmra.mrb[0].mxu0 %v2299
        %v2864 = vpop.f32.mrb[0].mxu0
        %v2865 = vadd.f32 %v2629, %v2864
        %v2866 = vpop.f32.mrb[0].mxu0
        %v2867 = vpop.f32.mrb[0].mxu0
        %v2868 = vadd.f32 %v2632, %v2867
        %v2869 = vpop.f32.mrb[0].mxu0
        %2870 = vdwg.mxu0
        %s2871 = scalar_lea.vmem [#allocation10], 192
        %v2872 = vld [vmem:[%s2871] sm:$0xf]
        %v2873 = vld [vmem:[%s2871 + $0x4] sm:$0xf]
        %v2874 = vld [vmem:[%s2871 + $0x8] sm:$0xf]
        %v2875 = vld [vmem:[%s2871 + $0xc] sm:$0xf]
        %v2876 = vld [vmem:[%s2871 + $0x10] sm:$0xf]
        %v2877 = vld [vmem:[%s2871 + $0x14] sm:$0xf]
        %v2878 = vld [vmem:[%s2871 + $0x18] sm:$0xf]
        %v2879 = vld [vmem:[%s2871 + $0x1c] sm:$0xf]
        %v2880 = vld [vmem:[%s2871 + $0x20] sm:$0xf]
        %v2881 = vld [vmem:[%s2871 + $0x24] sm:$0xf]
        %v2882 = vld [vmem:[%s2871 + $0x28] sm:$0xf]
        %v2883 = vld [vmem:[%s2871 + $0x2c] sm:$0xf]
        %v2884 = vld [vmem:[%s2871 + $0x30] sm:$0xf]
        %v2885 = vld [vmem:[%s2871 + $0x34] sm:$0xf]
        %v2886 = vld [vmem:[%s2871 + $0x38] sm:$0xf]
        %v2887 = vld [vmem:[%s2871 + $0x3c] sm:$0xf]
        %v2888 = vld [vmem:[%s2871 + $0x40] sm:$0xf]
        %v2889 = vld [vmem:[%s2871 + $0x44] sm:$0xf]
        %v2890 = vld [vmem:[%s2871 + $0x48] sm:$0xf]
        %v2891 = vld [vmem:[%s2871 + $0x4c] sm:$0xf]
        %v2892 = vld [vmem:[%s2871 + $0x50] sm:$0xf]
        %v2893 = vld [vmem:[%s2871 + $0x54] sm:$0xf]
        %v2894 = vld [vmem:[%s2871 + $0x58] sm:$0xf]
        %v2895 = vld [vmem:[%s2871 + $0x5c] sm:$0xf]
        %v2920 = vunpack.c.l.b16 %v2872
        %v2921 = vunpack.c.l.b16 %v2873
        %v2922 = vunpack.c.l.b16 %v2874
        %v2923 = vunpack.c.l.b16 %v2875
        %v2924 = vunpack.c.l.b16 %v2876
        %v2925 = vunpack.c.l.b16 %v2877
        %v2926 = vunpack.c.l.b16 %v2878
        %v2927 = vunpack.c.l.b16 %v2879
        %v2928 = vunpack.c.l.b16 %v2880
        %v2929 = vunpack.c.l.b16 %v2881
        %v2930 = vunpack.c.l.b16 %v2882
        %v2931 = vunpack.c.l.b16 %v2883
        %v2932 = vunpack.c.l.b16 %v2884
        %v2933 = vunpack.c.l.b16 %v2885
        %v2934 = vunpack.c.l.b16 %v2886
        %v2935 = vunpack.c.l.b16 %v2887
        %v2936 = vunpack.c.l.b16 %v2888
        %v2937 = vunpack.c.l.b16 %v2889
        %v2938 = vunpack.c.l.b16 %v2890
        %v2939 = vunpack.c.l.b16 %v2891
        %v2940 = vunpack.c.l.b16 %v2892
        %v2941 = vunpack.c.l.b16 %v2893
        %v2942 = vunpack.c.l.b16 %v2894
        %v2943 = vunpack.c.l.b16 %v2895
        %v2944 = vpack.c.b16 %v2921, %v2920
        %v2945 = vpack.c.b16 %v2923, %v2922
        %v2946 = vpack.c.b16 %v2925, %v2924
        %v2947 = vpack.c.b16 %v2927, %v2926
        %v2948 = vpack.c.b16 %v2929, %v2928
        %v2949 = vpack.c.b16 %v2931, %v2930
        %v2950 = vpack.c.b16 %v2933, %v2932
        %v2951 = vpack.c.b16 %v2935, %v2934
        %v2952 = vpack.c.b16 %v2937, %v2936
        %v2953 = vpack.c.b16 %v2939, %v2938
        %v2954 = vpack.c.b16 %v2941, %v2940
        %v2955 = vpack.c.b16 %v2943, %v2942
        %v2969 = vsel %vm541, %v2304, 0
        %2971 = vmatprep.subr.bf16.mxu0 0
        %2972 = vmatpush1.bf16.msra.mxu0 %v2944
        %2973 = vmatprep.subr.bf16.mxu0 0
        %2974 = vmatpush1.bf16.msra.mxu0 %v2945
        %2975 = vmatprep.subr.bf16.mxu0 0
        %2976 = vmatpush1.bf16.msra.mxu0 %v2946
        %2977 = vmatprep.subr.bf16.mxu0 0
        %2978 = vmatpush1.bf16.msra.mxu0 %v2947
        %2979 = vmatprep.subr.bf16.mxu0 0
        %2980 = vmatpush1.bf16.msra.mxu0 %v2948
        %2981 = vmatprep.subr.bf16.mxu0 0
        %2982 = vmatpush1.bf16.msra.mxu0 %v2949
        %2983 = vmatprep.subr.bf16.mxu0 0
        %2984 = vmatpush1.bf16.msra.mxu0 %v2950
        %2985 = vmatprep.subr.bf16.mxu0 0
        %2986 = vmatpush1.bf16.msra.mxu0 %v2951
        %2987 = vmatprep.subr.bf16.mxu0 0
        %2988 = vmatpush1.bf16.msra.mxu0 %v2952
        %2989 = vmatprep.subr.bf16.mxu0 0
        %2990 = vmatpush1.bf16.msra.mxu0 %v2953
        %2991 = vmatprep.subr.bf16.mxu0 0
        %2992 = vmatpush1.bf16.msra.mxu0 %v2954
        %2993 = vmatprep.subr.bf16.mxu0 0
        %2994 = vmatpush1.bf16.msra.mxu0 %v2955
        %2995 = vmatprep.subr.bf16.mxu0 0
        %2996 = vmatpush1.bf16.msra.mxu0 0
        %2997 = vmatprep.subr.bf16.mxu0 0
        %2998 = vmatpush1.bf16.msra.mxu0 0
        %2999 = vmatprep.subr.bf16.mxu0 0
        %3000 = vmatpush1.bf16.msra.mxu0 0
        %3001 = vmatprep.subr.bf16.mxu0 0
        %3002 = vmatpush1.bf16.msra.mxu0 0
        %3003 = vmatprep.mubr.bf16.mxu0 %v2430
        %3004 = vmatmul.mubr.bf16.gmra.mrb[0].mxu0 %v2273
        %v3005 = vpop.f32.mrb[0].mxu0
        %v3006 = vadd.f32 0.0, %v3005
        %v3007 = vpop.f32.mrb[0].mxu0
        %v3008 = vpop.f32.mrb[0].mxu0
        %v3009 = vadd.f32 0.0, %v3008
        %v3010 = vpop.f32.mrb[0].mxu0
        %3011 = vmatprep.mubr.bf16.mxu0 %v2433
        %3012 = vmatmul.mubr.bf16.gmra.mrb[0].mxu0 %v2275
        %v3013 = vpop.f32.mrb[0].mxu0
        %v3014 = vadd.f32 0.0, %v3013
        %v3015 = vpop.f32.mrb[0].mxu0
        %v3016 = vpop.f32.mrb[0].mxu0
        %v3017 = vadd.f32 0.0, %v3016
        %v3018 = vpop.f32.mrb[0].mxu0
        %3019 = vmatprep.mubr.bf16.mxu0 %v2436
        %3020 = vmatmul.mubr.bf16.gmra.mrb[0].mxu0 %v2277
        %v3021 = vpop.f32.mrb[0].mxu0
        %v3022 = vadd.f32 0.0, %v3021
        %v3023 = vpop.f32.mrb[0].mxu0
        %v3024 = vpop.f32.mrb[0].mxu0
        %v3025 = vadd.f32 0.0, %v3024
        %v3026 = vpop.f32.mrb[0].mxu0
        %3027 = vmatprep.mubr.bf16.mxu0 %v2439
        %3028 = vmatmul.mubr.bf16.gmra.mrb[0].mxu0 %v2279
        %v3029 = vpop.f32.mrb[0].mxu0
        %v3030 = vadd.f32 0.0, %v3029
        %v3031 = vpop.f32.mrb[0].mxu0
        %v3032 = vpop.f32.mrb[0].mxu0
        %v3033 = vadd.f32 0.0, %v3032
        %v3034 = vpop.f32.mrb[0].mxu0
        %3035 = vmatprep.mubr.bf16.mxu0 %v2442
        %3036 = vmatmul.mubr.bf16.gmra.mrb[0].mxu0 %v2281
        %v3037 = vpop.f32.mrb[0].mxu0
        %v3038 = vadd.f32 0.0, %v3037
        %v3039 = vpop.f32.mrb[0].mxu0
        %v3040 = vpop.f32.mrb[0].mxu0
        %v3041 = vadd.f32 0.0, %v3040
        %v3042 = vpop.f32.mrb[0].mxu0
        %3043 = vmatprep.mubr.bf16.mxu0 %v2445
        %3044 = vmatmul.mubr.bf16.gmra.mrb[0].mxu0 %v2283
        %v3045 = vpop.f32.mrb[0].mxu0
        %v3046 = vadd.f32 0.0, %v3045
        %v3047 = vpop.f32.mrb[0].mxu0
        %v3048 = vpop.f32.mrb[0].mxu0
        %v3049 = vadd.f32 0.0, %v3048
        %v3050 = vpop.f32.mrb[0].mxu0
        %3051 = vmatprep.mubr.bf16.mxu0 %v2448
        %3052 = vmatmul.mubr.bf16.gmra.mrb[0].mxu0 %v2285
        %v3053 = vpop.f32.mrb[0].mxu0
        %v3054 = vadd.f32 0.0, %v3053
        %v3055 = vpop.f32.mrb[0].mxu0
        %v3056 = vpop.f32.mrb[0].mxu0
        %v3057 = vadd.f32 0.0, %v3056
        %v3058 = vpop.f32.mrb[0].mxu0
        %3059 = vmatprep.mubr.bf16.mxu0 %v2451
        %3060 = vmatmul.mubr.bf16.gmra.mrb[0].mxu0 %v2287
        %v3061 = vpop.f32.mrb[0].mxu0
        %v3062 = vadd.f32 0.0, %v3061
        %v3063 = vpop.f32.mrb[0].mxu0
        %v3064 = vpop.f32.mrb[0].mxu0
        %v3065 = vadd.f32 0.0, %v3064
        %v3066 = vpop.f32.mrb[0].mxu0
        %3067 = vmatprep.mubr.bf16.mxu0 %v2454
        %3068 = vmatmul.mubr.bf16.gmra.mrb[0].mxu0 %v2289
        %v3069 = vpop.f32.mrb[0].mxu0
        %v3070 = vadd.f32 0.0, %v3069
        %v3071 = vpop.f32.mrb[0].mxu0
        %v3072 = vpop.f32.mrb[0].mxu0
        %v3073 = vadd.f32 0.0, %v3072
        %v3074 = vpop.f32.mrb[0].mxu0
        %3075 = vmatprep.mubr.bf16.mxu0 %v2457
        %3076 = vmatmul.mubr.bf16.gmra.mrb[0].mxu0 %v2291
        %v3077 = vpop.f32.mrb[0].mxu0
        %v3078 = vadd.f32 0.0, %v3077
        %v3079 = vpop.f32.mrb[0].mxu0
        %v3080 = vpop.f32.mrb[0].mxu0
        %v3081 = vadd.f32 0.0, %v3080
        %v3082 = vpop.f32.mrb[0].mxu0
        %3083 = vmatprep.mubr.bf16.mxu0 %v2460
        %3084 = vmatmul.mubr.bf16.gmra.mrb[0].mxu0 %v2293
        %v3085 = vpop.f32.mrb[0].mxu0
        %v3086 = vadd.f32 0.0, %v3085
        %v3087 = vpop.f32.mrb[0].mxu0
        %v3088 = vpop.f32.mrb[0].mxu0
        %v3089 = vadd.f32 0.0, %v3088
        %v3090 = vpop.f32.mrb[0].mxu0
        %3091 = vmatprep.mubr.bf16.mxu0 %v2463
        %3092 = vmatmul.mubr.bf16.gmra.mrb[0].mxu0 %v2295
        %v3093 = vpop.f32.mrb[0].mxu0
        %v3094 = vadd.f32 0.0, %v3093
        %v3095 = vpop.f32.mrb[0].mxu0
        %v3096 = vpop.f32.mrb[0].mxu0
        %v3097 = vadd.f32 0.0, %v3096
        %v3098 = vpop.f32.mrb[0].mxu0
        %3099 = vmatprep.mubr.bf16.mxu0 %v2466
        %3100 = vmatmul.mubr.bf16.gmra.mrb[0].mxu0 %v2297
        %v3101 = vpop.f32.mrb[0].mxu0
        %v3102 = vadd.f32 0.0, %v3101
        %v3103 = vpop.f32.mrb[0].mxu0
        %v3104 = vpop.f32.mrb[0].mxu0
        %v3105 = vadd.f32 0.0, %v3104
        %v3106 = vpop.f32.mrb[0].mxu0
        %3107 = vmatprep.mubr.bf16.mxu0 %v2469
        %3108 = vmatmul.mubr.bf16.gmra.mrb[0].mxu0 %v2299
        %v3109 = vpop.f32.mrb[0].mxu0
        %v3110 = vadd.f32 0.0, %v3109
        %v3111 = vpop.f32.mrb[0].mxu0
        %v3112 = vpop.f32.mrb[0].mxu0
        %v3113 = vadd.f32 0.0, %v3112
        %v3114 = vpop.f32.mrb[0].mxu0
        %3115 = vmatprep.mubr.bf16.mxu0 %v2472
        %3116 = vmatmul.mubr.bf16.gmra.mrb[0].mxu0 %v2301
        %v3117 = vpop.f32.mrb[0].mxu0
        %v3118 = vadd.f32 0.0, %v3117
        %v3119 = vpop.f32.mrb[0].mxu0
        %v3120 = vpop.f32.mrb[0].mxu0
        %v3121 = vadd.f32 0.0, %v3120
        %v3122 = vpop.f32.mrb[0].mxu0
        %3123 = vmatprep.mubr.bf16.mxu0 %v2969
        %3124 = vmatmul.mubr.bf16.gmra.mrb[0].mxu0 %v2303
        %v3125 = vpop.f32.mrb[0].mxu0
        %v3126 = vadd.f32 0.0, %v3125
        %v3127 = vpop.f32.mrb[0].mxu0
        %v3128 = vpop.f32.mrb[0].mxu0
        %v3129 = vadd.f32 0.0, %v3128
        %v3130 = vpop.f32.mrb[0].mxu0
        %3131 = vdwg.mxu0
        %v3132 = vadd.f32 %v2745, %v3006
        %v3133 = vadd.f32 %v2748, %v3009
        %v3134 = vadd.f32 %v2753, %v3014
        %v3135 = vadd.f32 %v2756, %v3017
        %v3136 = vadd.f32 %v2761, %v3022
        %v3137 = vadd.f32 %v2764, %v3025
        %v3138 = vadd.f32 %v2769, %v3030
        %v3139 = vadd.f32 %v2772, %v3033
        %v3140 = vadd.f32 %v2777, %v3038
        %v3141 = vadd.f32 %v2780, %v3041
        %v3142 = vadd.f32 %v2785, %v3046
        %v3143 = vadd.f32 %v2788, %v3049
        %v3144 = vadd.f32 %v2793, %v3054
        %v3145 = vadd.f32 %v2796, %v3057
        %v3146 = vadd.f32 %v2801, %v3062
        %v3147 = vadd.f32 %v2804, %v3065
        %v3148 = vadd.f32 %v2809, %v3070
        %v3149 = vadd.f32 %v2812, %v3073
        %v3150 = vadd.f32 %v2817, %v3078
        %v3151 = vadd.f32 %v2820, %v3081
        %v3152 = vadd.f32 %v2825, %v3086
        %v3153 = vadd.f32 %v2828, %v3089
        %v3154 = vadd.f32 %v2833, %v3094
        %v3155 = vadd.f32 %v2836, %v3097
        %v3156 = vadd.f32 %v2841, %v3102
        %v3157 = vadd.f32 %v2844, %v3105
        %v3158 = vadd.f32 %v2849, %v3110
        %v3159 = vadd.f32 %v2852, %v3113
        %v3160 = vadd.f32 %v2857, %v3118
        %v3161 = vadd.f32 %v2860, %v3121
        %v3162 = vadd.f32 %v2865, %v3126
        %v3163 = vadd.f32 %v2868, %v3129
        %v3164 = vld [vmem:[#allocation12] sm:$0x1]
        %v3166 = vlaneseq
        %v3167 = vshrl.u32 %v3166, 7
        %v3168 = vsub.s32 0, %v3167
        %v3169 = vrot.slane %v3164, %v3168
        %v3171 = vadd.f32 %v3132, %v3169
        %v3172 = vadd.f32 %v3133, %v3169
        %v3173 = vadd.f32 %v3134, %v3169
        %v3174 = vadd.f32 %v3135, %v3169
        %v3175 = vadd.f32 %v3136, %v3169
        %v3176 = vadd.f32 %v3137, %v3169
        %v3177 = vadd.f32 %v3138, %v3169
        %v3178 = vadd.f32 %v3139, %v3169
        %v3179 = vadd.f32 %v3140, %v3169
        %v3180 = vadd.f32 %v3141, %v3169
        %v3181 = vadd.f32 %v3142, %v3169
        %v3182 = vadd.f32 %v3143, %v3169
        %v3183 = vadd.f32 %v3144, %v3169
        %v3184 = vadd.f32 %v3145, %v3169
        %v3185 = vadd.f32 %v3146, %v3169
        %v3186 = vadd.f32 %v3147, %v3169
        %v3187 = vadd.f32 %v3148, %v3169
        %v3188 = vadd.f32 %v3149, %v3169
        %v3189 = vadd.f32 %v3150, %v3169
        %v3190 = vadd.f32 %v3151, %v3169
        %v3191 = vadd.f32 %v3152, %v3169
        %v3192 = vadd.f32 %v3153, %v3169
        %v3193 = vadd.f32 %v3154, %v3169
        %v3194 = vadd.f32 %v3155, %v3169
        %v3195 = vadd.f32 %v3156, %v3169
        %v3196 = vadd.f32 %v3157, %v3169
        %v3197 = vadd.f32 %v3158, %v3169
        %v3198 = vadd.f32 %v3159, %v3169
        %v3199 = vadd.f32 %v3160, %v3169
        %v3200 = vadd.f32 %v3161, %v3169
        %v3201 = vadd.f32 %v3162, %v3169
        %v3202 = vadd.f32 %v3163, %v3169
        %v3203 = vmax.f32 %v3171, 0.0
        %v3204 = vmax.f32 %v3172, 0.0
        %v3205 = vmax.f32 %v3173, 0.0
        %v3206 = vmax.f32 %v3174, 0.0
        %v3207 = vmax.f32 %v3175, 0.0
        %v3208 = vmax.f32 %v3176, 0.0
        %v3209 = vmax.f32 %v3177, 0.0
        %v3210 = vmax.f32 %v3178, 0.0
        %v3211 = vmax.f32 %v3179, 0.0
        %v3212 = vmax.f32 %v3180, 0.0
        %v3213 = vmax.f32 %v3181, 0.0
        %v3214 = vmax.f32 %v3182, 0.0
        %v3215 = vmax.f32 %v3183, 0.0
        %v3216 = vmax.f32 %v3184, 0.0
        %v3217 = vmax.f32 %v3185, 0.0
        %v3218 = vmax.f32 %v3186, 0.0
        %v3219 = vmax.f32 %v3187, 0.0
        %v3220 = vmax.f32 %v3188, 0.0
        %v3221 = vmax.f32 %v3189, 0.0
        %v3222 = vmax.f32 %v3190, 0.0
        %v3223 = vmax.f32 %v3191, 0.0
        %v3224 = vmax.f32 %v3192, 0.0
        %v3225 = vmax.f32 %v3193, 0.0
        %v3226 = vmax.f32 %v3194, 0.0
        %v3227 = vmax.f32 %v3195, 0.0
        %v3228 = vmax.f32 %v3196, 0.0
        %v3229 = vmax.f32 %v3197, 0.0
        %v3230 = vmax.f32 %v3198, 0.0
        %v3231 = vmax.f32 %v3199, 0.0
        %v3232 = vmax.f32 %v3200, 0.0
        %v3233 = vmax.f32 %v3201, 0.0
        %v3234 = vmax.f32 %v3202, 0.0
        %3235 = vst.msk [vmem:[%s661 + $0x1] sm:$0xff] %vm541, %v3203
        %3236 = vst.msk [vmem:[%s661 + $0x9] sm:$0xff] %vm541, %v3204
        %3237 = vst.msk [vmem:[%s661 + $0x19] sm:$0xff] %vm541, %v3205
        %3238 = vst.msk [vmem:[%s661 + $0x21] sm:$0xff] %vm541, %v3206
        %3239 = vst.msk [vmem:[%s661 + $0x31] sm:$0xff] %vm541, %v3207
        %3240 = vst.msk [vmem:[%s661 + $0x39] sm:$0xff] %vm541, %v3208
        %3241 = vst.msk [vmem:[%s661 + $0x49] sm:$0xff] %vm541, %v3209
        %3242 = vst.msk [vmem:[%s661 + $0x51] sm:$0xff] %vm541, %v3210
        %3243 = vst.msk [vmem:[%s661 + $0x61] sm:$0xff] %vm541, %v3211
        %3244 = vst.msk [vmem:[%s661 + $0x69] sm:$0xff] %vm541, %v3212
        %3245 = vst.msk [vmem:[%s661 + $0x79] sm:$0xff] %vm541, %v3213
        %3246 = vst.msk [vmem:[%s661 + $0x81] sm:$0xff] %vm541, %v3214
        %3247 = vst.msk [vmem:[%s661 + $0x91] sm:$0xff] %vm541, %v3215
        %3248 = vst.msk [vmem:[%s661 + $0x99] sm:$0xff] %vm541, %v3216
        %3249 = vst.msk [vmem:[%s661 + $0xa9] sm:$0xff] %vm541, %v3217
        %3250 = vst.msk [vmem:[%s661 + $0xb1] sm:$0xff] %vm541, %v3218
        %3251 = vst.msk [vmem:[%s661 + $0xc1] sm:$0xff] %vm541, %v3219
        %3252 = vst.msk [vmem:[%s661 + $0xc9] sm:$0xff] %vm541, %v3220
        %3253 = vst.msk [vmem:[%s661 + $0xd9] sm:$0xff] %vm541, %v3221
        %3254 = vst.msk [vmem:[%s661 + $0xe1] sm:$0xff] %vm541, %v3222
        %3255 = vst.msk [vmem:[%s661 + $0xf1] sm:$0xff] %vm541, %v3223
        %3256 = vst.msk [vmem:[%s661 + $0xf9] sm:$0xff] %vm541, %v3224
        %3257 = vst.msk [vmem:[%s661 + $0x109] sm:$0xff] %vm541, %v3225
        %3258 = vst.msk [vmem:[%s661 + $0x111] sm:$0xff] %vm541, %v3226
        %3259 = vst.msk [vmem:[%s661 + $0x121] sm:$0xff] %vm541, %v3227
        %3260 = vst.msk [vmem:[%s661 + $0x129] sm:$0xff] %vm541, %v3228
        %3261 = vst.msk [vmem:[%s661 + $0x139] sm:$0xff] %vm541, %v3229
        %3262 = vst.msk [vmem:[%s661 + $0x141] sm:$0xff] %vm541, %v3230
        %3263 = vst.msk [vmem:[%s661 + $0x151] sm:$0xff] %vm541, %v3231
        %3264 = vst.msk [vmem:[%s661 + $0x159] sm:$0xff] %vm541, %v3232
        %3265 = vst.msk [vmem:[%s661 + $0x169] sm:$0xff] %vm541, %v3233
        %3266 = vst.msk [vmem:[%s661 + $0x171] sm:$0xff] %vm541, %v3234
        %v3267 = vld [vmem:[#allocation2] sm:$0xff]
        %v3268 = vld [vmem:[#allocation2 + $0x8] sm:$0xff]
        %v3269 = vld [vmem:[#allocation2 + $0x18] sm:$0xff]
        %v3270 = vld [vmem:[#allocation2 + $0x20] sm:$0xff]
        %v3271 = vld [vmem:[#allocation2 + $0x30] sm:$0xff]
        %v3272 = vld [vmem:[#allocation2 + $0x38] sm:$0xff]
        %v3273 = vld [vmem:[#allocation2 + $0x48] sm:$0xff]
        %v3274 = vld [vmem:[#allocation2 + $0x50] sm:$0xff]
        %v3275 = vld [vmem:[#allocation2 + $0x60] sm:$0xff]
        %v3276 = vld [vmem:[#allocation2 + $0x68] sm:$0xff]
        %v3277 = vld [vmem:[#allocation2 + $0x78] sm:$0xff]
        %v3278 = vld [vmem:[#allocation2 + $0x80] sm:$0xff]
        %v3279 = vld [vmem:[#allocation2 + $0x90] sm:$0xff]
        %v3280 = vld [vmem:[#allocation2 + $0x98] sm:$0xff]
        %v3281 = vld [vmem:[#allocation2 + $0xa8] sm:$0xff]
        %v3282 = vld [vmem:[#allocation2 + $0xb0] sm:$0xff]
        %v3283 = vld [vmem:[#allocation2 + $0xc0] sm:$0xff]
        %v3284 = vld [vmem:[#allocation2 + $0xc8] sm:$0xff]
        %v3285 = vld [vmem:[#allocation2 + $0xd8] sm:$0xff]
        %v3286 = vld [vmem:[#allocation2 + $0xe0] sm:$0xff]
        %v3287 = vld [vmem:[#allocation2 + $0xf0] sm:$0xff]
        %v3288 = vld [vmem:[#allocation2 + $0xf8] sm:$0xff]
        %v3289 = vld [vmem:[#allocation2 + $0x108] sm:$0xff]
        %v3290 = vld [vmem:[#allocation2 + $0x110] sm:$0xff]
        %v3291 = vld [vmem:[#allocation2 + $0x120] sm:$0xff]
        %v3292 = vld [vmem:[#allocation2 + $0x128] sm:$0xff]
        %v3293 = vld [vmem:[#allocation2 + $0x138] sm:$0xff]
        %v3294 = vld [vmem:[#allocation2 + $0x140] sm:$0xff]
        %v3295 = vld [vmem:[#allocation2 + $0x150] sm:$0xff]
        %v3296 = vld [vmem:[#allocation2 + $0x158] sm:$0xff]
        %v3297 = vld [vmem:[#allocation2 + $0x168] sm:$0xff]
        %v3298 = vld [vmem:[#allocation2 + $0x170] sm:$0xff]
        %v3299 = vld [vmem:[#allocation2 + $0x180] sm:$0xff]
        %v3300 = vld [vmem:[#allocation2 + $0x188] sm:$0xff]
        %v3301 = vld [vmem:[#allocation2 + $0x198] sm:$0xff]
        %v3302 = vld [vmem:[#allocation2 + $0x1a0] sm:$0xff]
        %v3303 = vld [vmem:[#allocation2 + $0x1] sm:$0xff]
        %v3304 = vld [vmem:[#allocation2 + $0x9] sm:$0xff]
        %v3305 = vld [vmem:[#allocation2 + $0x19] sm:$0xff]
        %v3306 = vld [vmem:[#allocation2 + $0x21] sm:$0xff]
        %v3307 = vld [vmem:[#allocation2 + $0x31] sm:$0xff]
        %v3308 = vld [vmem:[#allocation2 + $0x39] sm:$0xff]
        %v3309 = vld [vmem:[#allocation2 + $0x49] sm:$0xff]
        %v3310 = vld [vmem:[#allocation2 + $0x51] sm:$0xff]
        %v3311 = vld [vmem:[#allocation2 + $0x61] sm:$0xff]
        %v3312 = vld [vmem:[#allocation2 + $0x69] sm:$0xff]
        %v3313 = vld [vmem:[#allocation2 + $0x79] sm:$0xff]
        %v3314 = vld [vmem:[#allocation2 + $0x81] sm:$0xff]
        %v3315 = vld [vmem:[#allocation2 + $0x91] sm:$0xff]
        %v3316 = vld [vmem:[#allocation2 + $0x99] sm:$0xff]
        %v3317 = vld [vmem:[#allocation2 + $0xa9] sm:$0xff]
        %v3318 = vld [vmem:[#allocation2 + $0xb1] sm:$0xff]
        %v3319 = vld [vmem:[#allocation2 + $0xc1] sm:$0xff]
        %v3320 = vld [vmem:[#allocation2 + $0xc9] sm:$0xff]
        %v3321 = vld [vmem:[#allocation2 + $0xd9] sm:$0xff]
        %v3322 = vld [vmem:[#allocation2 + $0xe1] sm:$0xff]
        %v3323 = vld [vmem:[#allocation2 + $0xf1] sm:$0xff]
        %v3324 = vld [vmem:[#allocation2 + $0xf9] sm:$0xff]
        %v3325 = vld [vmem:[#allocation2 + $0x109] sm:$0xff]
        %v3326 = vld [vmem:[#allocation2 + $0x111] sm:$0xff]
        %v3327 = vld [vmem:[#allocation2 + $0x121] sm:$0xff]
        %v3328 = vld [vmem:[#allocation2 + $0x129] sm:$0xff]
        %v3329 = vld [vmem:[#allocation2 + $0x139] sm:$0xff]
        %v3330 = vld [vmem:[#allocation2 + $0x141] sm:$0xff]
        %v3331 = vld [vmem:[#allocation2 + $0x151] sm:$0xff]
        %v3332 = vld [vmem:[#allocation2 + $0x159] sm:$0xff]
        %v3333 = vld [vmem:[#allocation2 + $0x169] sm:$0xff]
        %v3334 = vld [vmem:[#allocation2 + $0x171] sm:$0xff]
        %v3335 = vld [vmem:[#allocation2 + $0x181] sm:$0xff]
        %v3336 = vld [vmem:[#allocation2 + $0x189] sm:$0xff]
        %v3337 = vld [vmem:[#allocation2 + $0x199] sm:$0xff]
        %v3338 = vld [vmem:[#allocation2 + $0x1a1] sm:$0xff]
        %v3339 = vld [vmem:[#allocation2 + $0x2] sm:$0xff]
        %v3340 = vld [vmem:[#allocation2 + $0xa] sm:$0xff]
        %v3341 = vld [vmem:[#allocation2 + $0x1a] sm:$0xff]
        %v3342 = vld [vmem:[#allocation2 + $0x22] sm:$0xff]
        %v3343 = vld [vmem:[#allocation2 + $0x32] sm:$0xff]
        %v3344 = vld [vmem:[#allocation2 + $0x3a] sm:$0xff]
        %v3345 = vld [vmem:[#allocation2 + $0x4a] sm:$0xff]
        %v3346 = vld [vmem:[#allocation2 + $0x52] sm:$0xff]
        %v3347 = vld [vmem:[#allocation2 + $0x62] sm:$0xff]
        %v3348 = vld [vmem:[#allocation2 + $0x6a] sm:$0xff]
        %v3349 = vld [vmem:[#allocation2 + $0x7a] sm:$0xff]
        %v3350 = vld [vmem:[#allocation2 + $0x82] sm:$0xff]
        %v3351 = vld [vmem:[#allocation2 + $0x92] sm:$0xff]
        %v3352 = vld [vmem:[#allocation2 + $0x9a] sm:$0xff]
        %v3353 = vld [vmem:[#allocation2 + $0xaa] sm:$0xff]
        %v3354 = vld [vmem:[#allocation2 + $0xb2] sm:$0xff]
        %v3355 = vld [vmem:[#allocation2 + $0xc2] sm:$0xff]
        %v3356 = vld [vmem:[#allocation2 + $0xca] sm:$0xff]
        %v3357 = vld [vmem:[#allocation2 + $0xda] sm:$0xff]
        %v3358 = vld [vmem:[#allocation2 + $0xe2] sm:$0xff]
        %v3359 = vld [vmem:[#allocation2 + $0xf2] sm:$0xff]
        %v3360 = vld [vmem:[#allocation2 + $0xfa] sm:$0xff]
        %v3361 = vld [vmem:[#allocation2 + $0x10a] sm:$0xff]
        %v3362 = vld [vmem:[#allocation2 + $0x112] sm:$0xff]
        %v3363 = vld [vmem:[#allocation2 + $0x122] sm:$0xff]
        %v3364 = vld [vmem:[#allocation2 + $0x12a] sm:$0xff]
        %v3365 = vld [vmem:[#allocation2 + $0x13a] sm:$0xff]
        %v3366 = vld [vmem:[#allocation2 + $0x142] sm:$0xff]
        %v3367 = vld [vmem:[#allocation2 + $0x152] sm:$0xff]
        %v3368 = vld [vmem:[#allocation2 + $0x15a] sm:$0xff]
        %v3369 = vld [vmem:[#allocation2 + $0x16a] sm:$0xff]
        %v3370 = vld [vmem:[#allocation2 + $0x172] sm:$0xff]
        %v3371 = vld [vmem:[#allocation2 + $0x182] sm:$0xff]
        %v3372 = vld [vmem:[#allocation2 + $0x18a] sm:$0xff]
        %v3373 = vld [vmem:[#allocation2 + $0x19a] sm:$0xff]
        %v3374 = vld [vmem:[#allocation2 + $0x1a2] sm:$0xff]
        %3411 = vrot.lane.b32.xlu0 %v3303, 64
        %v3412 = vpop.permute.xlu0 %3411
        %3413 = vrot.lane.b32.xlu0 %v3304, 64
        %v3414 = vpop.permute.xlu0 %3413
        %3415 = vrot.lane.b32.xlu0 %v3305, 64
        %v3416 = vpop.permute.xlu0 %3415
        %3417 = vrot.lane.b32.xlu0 %v3306, 64
        %v3418 = vpop.permute.xlu0 %3417
        %3419 = vrot.lane.b32.xlu0 %v3307, 64
        %v3420 = vpop.permute.xlu0 %3419
        %3421 = vrot.lane.b32.xlu0 %v3308, 64
        %v3422 = vpop.permute.xlu0 %3421
        %3423 = vrot.lane.b32.xlu0 %v3309, 64
        %v3424 = vpop.permute.xlu0 %3423
        %3425 = vrot.lane.b32.xlu0 %v3310, 64
        %v3426 = vpop.permute.xlu0 %3425
        %3427 = vrot.lane.b32.xlu0 %v3311, 64
        %v3428 = vpop.permute.xlu0 %3427
        %3429 = vrot.lane.b32.xlu0 %v3312, 64
        %v3430 = vpop.permute.xlu0 %3429
        %3431 = vrot.lane.b32.xlu0 %v3313, 64
        %v3432 = vpop.permute.xlu0 %3431
        %3433 = vrot.lane.b32.xlu0 %v3314, 64
        %v3434 = vpop.permute.xlu0 %3433
        %3435 = vrot.lane.b32.xlu0 %v3315, 64
        %v3436 = vpop.permute.xlu0 %3435
        %3437 = vrot.lane.b32.xlu0 %v3316, 64
        %v3438 = vpop.permute.xlu0 %3437
        %3439 = vrot.lane.b32.xlu0 %v3317, 64
        %v3440 = vpop.permute.xlu0 %3439
        %3441 = vrot.lane.b32.xlu0 %v3318, 64
        %v3442 = vpop.permute.xlu0 %3441
        %3443 = vrot.lane.b32.xlu0 %v3319, 64
        %v3444 = vpop.permute.xlu0 %3443
        %3445 = vrot.lane.b32.xlu0 %v3320, 64
        %v3446 = vpop.permute.xlu0 %3445
        %3447 = vrot.lane.b32.xlu0 %v3321, 64
        %v3448 = vpop.permute.xlu0 %3447
        %3449 = vrot.lane.b32.xlu0 %v3322, 64
        %v3450 = vpop.permute.xlu0 %3449
        %3451 = vrot.lane.b32.xlu0 %v3323, 64
        %v3452 = vpop.permute.xlu0 %3451
        %3453 = vrot.lane.b32.xlu0 %v3324, 64
        %v3454 = vpop.permute.xlu0 %3453
        %3455 = vrot.lane.b32.xlu0 %v3325, 64
        %v3456 = vpop.permute.xlu0 %3455
        %3457 = vrot.lane.b32.xlu0 %v3326, 64
        %v3458 = vpop.permute.xlu0 %3457
        %3459 = vrot.lane.b32.xlu0 %v3327, 64
        %v3460 = vpop.permute.xlu0 %3459
        %3461 = vrot.lane.b32.xlu0 %v3328, 64
        %v3462 = vpop.permute.xlu0 %3461
        %3463 = vrot.lane.b32.xlu0 %v3329, 64
        %v3464 = vpop.permute.xlu0 %3463
        %3465 = vrot.lane.b32.xlu0 %v3330, 64
        %v3466 = vpop.permute.xlu0 %3465
        %3467 = vrot.lane.b32.xlu0 %v3331, 64
        %v3468 = vpop.permute.xlu0 %3467
        %3469 = vrot.lane.b32.xlu0 %v3332, 64
        %v3470 = vpop.permute.xlu0 %3469
        %3471 = vrot.lane.b32.xlu0 %v3333, 64
        %v3472 = vpop.permute.xlu0 %3471
        %3473 = vrot.lane.b32.xlu0 %v3334, 64
        %v3474 = vpop.permute.xlu0 %3473
        %3475 = vrot.lane.b32.xlu0 %v3335, 64
        %v3476 = vpop.permute.xlu0 %3475
        %3477 = vrot.lane.b32.xlu0 %v3336, 64
        %v3478 = vpop.permute.xlu0 %3477
        %3479 = vrot.lane.b32.xlu0 %v3337, 64
        %v3480 = vpop.permute.xlu0 %3479
        %3481 = vrot.lane.b32.xlu0 %v3338, 64
        %v3482 = vpop.permute.xlu0 %3481
        %v3519 = vsel %vm541, %v3267, %v3412
        %v3520 = vsel %vm541, %v3268, %v3414
        %v3521 = vsel %vm541, %v3269, %v3416
        %v3522 = vsel %vm541, %v3270, %v3418
        %v3523 = vsel %vm541, %v3271, %v3420
        %v3524 = vsel %vm541, %v3272, %v3422
        %v3525 = vsel %vm541, %v3273, %v3424
        %v3526 = vsel %vm541, %v3274, %v3426
        %v3527 = vsel %vm541, %v3275, %v3428
        %v3528 = vsel %vm541, %v3276, %v3430
        %v3529 = vsel %vm541, %v3277, %v3432
        %v3530 = vsel %vm541, %v3278, %v3434
        %v3531 = vsel %vm541, %v3279, %v3436
        %v3532 = vsel %vm541, %v3280, %v3438
        %v3533 = vsel %vm541, %v3281, %v3440
        %v3534 = vsel %vm541, %v3282, %v3442
        %v3535 = vsel %vm541, %v3283, %v3444
        %v3536 = vsel %vm541, %v3284, %v3446
        %v3537 = vsel %vm541, %v3285, %v3448
        %v3538 = vsel %vm541, %v3286, %v3450
        %v3539 = vsel %vm541, %v3287, %v3452
        %v3540 = vsel %vm541, %v3288, %v3454
        %v3541 = vsel %vm541, %v3289, %v3456
        %v3542 = vsel %vm541, %v3290, %v3458
        %v3543 = vsel %vm541, %v3291, %v3460
        %v3544 = vsel %vm541, %v3292, %v3462
        %v3545 = vsel %vm541, %v3293, %v3464
        %v3546 = vsel %vm541, %v3294, %v3466
        %v3547 = vsel %vm541, %v3295, %v3468
        %v3548 = vsel %vm541, %v3296, %v3470
        %v3549 = vsel %vm541, %v3297, %v3472
        %v3550 = vsel %vm541, %v3298, %v3474
        %v3551 = vsel %vm541, %v3299, %v3476
        %v3552 = vsel %vm541, %v3300, %v3478
        %v3553 = vsel %vm541, %v3301, %v3480
        %v3554 = vsel %vm541, %v3302, %v3482
        %v3555 = vpack.c.bf16 %v3520, %v3519
        %v3556 = vpack.c.bf16 %v3340, %v3339
        %v3557 = vpack.c.bf16 %v3522, %v3521
        %v3558 = vpack.c.bf16 %v3342, %v3341
        %v3559 = vpack.c.bf16 %v3524, %v3523
        %v3560 = vpack.c.bf16 %v3344, %v3343
        %v3561 = vpack.c.bf16 %v3526, %v3525
        %v3562 = vpack.c.bf16 %v3346, %v3345
        %v3563 = vpack.c.bf16 %v3528, %v3527
        %v3564 = vpack.c.bf16 %v3348, %v3347
        %v3565 = vpack.c.bf16 %v3530, %v3529
        %v3566 = vpack.c.bf16 %v3350, %v3349
        %v3567 = vpack.c.bf16 %v3532, %v3531
        %v3568 = vpack.c.bf16 %v3352, %v3351
        %v3569 = vpack.c.bf16 %v3534, %v3533
        %v3570 = vpack.c.bf16 %v3354, %v3353
        %v3571 = vpack.c.bf16 %v3536, %v3535
        %v3572 = vpack.c.bf16 %v3356, %v3355
        %v3573 = vpack.c.bf16 %v3538, %v3537
        %v3574 = vpack.c.bf16 %v3358, %v3357
        %v3575 = vpack.c.bf16 %v3540, %v3539
        %v3576 = vpack.c.bf16 %v3360, %v3359
        %v3577 = vpack.c.bf16 %v3542, %v3541
        %v3578 = vpack.c.bf16 %v3362, %v3361
        %v3579 = vpack.c.bf16 %v3544, %v3543
        %v3580 = vpack.c.bf16 %v3364, %v3363
        %v3581 = vpack.c.bf16 %v3546, %v3545
        %v3582 = vpack.c.bf16 %v3366, %v3365
        %v3583 = vpack.c.bf16 %v3548, %v3547
        %v3584 = vpack.c.bf16 %v3368, %v3367
        %v3585 = vpack.c.bf16 %v3550, %v3549
        %v3586 = vpack.c.bf16 %v3370, %v3369
        %v3587 = vpack.c.bf16 %v3552, %v3551
        %v3588 = vpack.c.bf16 %v3372, %v3371
        %v3589 = vpack.c.bf16 %v3554, %v3553
        %v3590 = vpack.c.bf16 %v3374, %v3373
        %v3591 = vld [vmem:[#allocation13] sm:$0xf]
        %v3592 = vld [vmem:[#allocation13 + $0x4] sm:$0xf]
        %v3593 = vld [vmem:[#allocation13 + $0x8] sm:$0xf]
        %v3594 = vld [vmem:[#allocation13 + $0xc] sm:$0xf]
        %v3595 = vld [vmem:[#allocation13 + $0x10] sm:$0xf]
        %v3596 = vld [vmem:[#allocation13 + $0x14] sm:$0xf]
        %v3597 = vld [vmem:[#allocation13 + $0x18] sm:$0xf]
        %v3598 = vld [vmem:[#allocation13 + $0x1c] sm:$0xf]
        %v3599 = vld [vmem:[#allocation13 + $0x20] sm:$0xf]
        %v3600 = vld [vmem:[#allocation13 + $0x24] sm:$0xf]
        %v3601 = vld [vmem:[#allocation13 + $0x28] sm:$0xf]
        %v3602 = vld [vmem:[#allocation13 + $0x2c] sm:$0xf]
        %v3603 = vld [vmem:[#allocation13 + $0x30] sm:$0xf]
        %v3604 = vld [vmem:[#allocation13 + $0x34] sm:$0xf]
        %v3605 = vld [vmem:[#allocation13 + $0x38] sm:$0xf]
        %v3606 = vld [vmem:[#allocation13 + $0x3c] sm:$0xf]
        %v3607 = vld [vmem:[#allocation13 + $0x40] sm:$0xf]
        %v3608 = vld [vmem:[#allocation13 + $0x44] sm:$0xf]
        %v3609 = vld [vmem:[#allocation13 + $0x48] sm:$0xf]
        %v3610 = vld [vmem:[#allocation13 + $0x4c] sm:$0xf]
        %v3611 = vld [vmem:[#allocation13 + $0x50] sm:$0xf]
        %v3612 = vld [vmem:[#allocation13 + $0x54] sm:$0xf]
        %v3613 = vld [vmem:[#allocation13 + $0x58] sm:$0xf]
        %v3614 = vld [vmem:[#allocation13 + $0x5c] sm:$0xf]
        %s3615 = scalar_lea.vmem [#allocation13], 96
        %v3616 = vld [vmem:[%s3615] sm:$0xf]
        %v3617 = vld [vmem:[%s3615 + $0x4] sm:$0xf]
        %v3618 = vld [vmem:[%s3615 + $0x8] sm:$0xf]
        %v3619 = vld [vmem:[%s3615 + $0xc] sm:$0xf]
        %v3620 = vld [vmem:[%s3615 + $0x10] sm:$0xf]
        %v3621 = vld [vmem:[%s3615 + $0x14] sm:$0xf]
        %v3622 = vld [vmem:[%s3615 + $0x18] sm:$0xf]
        %v3623 = vld [vmem:[%s3615 + $0x1c] sm:$0xf]
        %v3624 = vld [vmem:[%s3615 + $0x20] sm:$0xf]
        %v3625 = vld [vmem:[%s3615 + $0x24] sm:$0xf]
        %v3626 = vld [vmem:[%s3615 + $0x28] sm:$0xf]
        %v3627 = vld [vmem:[%s3615 + $0x2c] sm:$0xf]
        %v3628 = vld [vmem:[%s3615 + $0x30] sm:$0xf]
        %v3629 = vld [vmem:[%s3615 + $0x34] sm:$0xf]
        %v3630 = vld [vmem:[%s3615 + $0x38] sm:$0xf]
        %v3631 = vld [vmem:[%s3615 + $0x3c] sm:$0xf]
        %v3632 = vld [vmem:[%s3615 + $0x40] sm:$0xf]
        %v3633 = vld [vmem:[%s3615 + $0x44] sm:$0xf]
        %v3634 = vld [vmem:[%s3615 + $0x48] sm:$0xf]
        %v3635 = vld [vmem:[%s3615 + $0x4c] sm:$0xf]
        %v3636 = vld [vmem:[%s3615 + $0x50] sm:$0xf]
        %v3637 = vld [vmem:[%s3615 + $0x54] sm:$0xf]
        %v3638 = vld [vmem:[%s3615 + $0x58] sm:$0xf]
        %v3639 = vld [vmem:[%s3615 + $0x5c] sm:$0xf]
        %v3664 = vunpack.c.l.b16 %v3616
        %v3665 = vunpack.c.l.b16 %v3617
        %v3666 = vunpack.c.l.b16 %v3618
        %v3667 = vunpack.c.l.b16 %v3619
        %v3668 = vunpack.c.l.b16 %v3620
        %v3669 = vunpack.c.l.b16 %v3621
        %v3670 = vunpack.c.l.b16 %v3622
        %v3671 = vunpack.c.l.b16 %v3623
        %v3672 = vunpack.c.l.b16 %v3624
        %v3673 = vunpack.c.l.b16 %v3625
        %v3674 = vunpack.c.l.b16 %v3626
        %v3675 = vunpack.c.l.b16 %v3627
        %v3676 = vunpack.c.l.b16 %v3628
        %v3677 = vunpack.c.l.b16 %v3629
        %v3678 = vunpack.c.l.b16 %v3630
        %v3679 = vunpack.c.l.b16 %v3631
        %v3680 = vunpack.c.l.b16 %v3632
        %v3681 = vunpack.c.l.b16 %v3633
        %v3682 = vunpack.c.l.b16 %v3634
        %v3683 = vunpack.c.l.b16 %v3635
        %v3684 = vunpack.c.l.b16 %v3636
        %v3685 = vunpack.c.l.b16 %v3637
        %v3686 = vunpack.c.l.b16 %v3638
        %v3687 = vunpack.c.l.b16 %v3639
        %v3688 = vpack.c.b16 %v3665, %v3664
        %v3689 = vpack.c.b16 %v3667, %v3666
        %v3690 = vpack.c.b16 %v3669, %v3668
        %v3691 = vpack.c.b16 %v3671, %v3670
        %v3692 = vpack.c.b16 %v3673, %v3672
        %v3693 = vpack.c.b16 %v3675, %v3674
        %v3694 = vpack.c.b16 %v3677, %v3676
        %v3695 = vpack.c.b16 %v3679, %v3678
        %v3696 = vpack.c.b16 %v3681, %v3680
        %v3697 = vpack.c.b16 %v3683, %v3682
        %v3698 = vpack.c.b16 %v3685, %v3684
        %v3699 = vpack.c.b16 %v3687, %v3686
        %v3713 = vsel %vm541, %v3558, 0
        %v3716 = vsel %vm541, %v3560, 0
        %v3719 = vsel %vm541, %v3562, 0
        %v3722 = vsel %vm541, %v3564, 0
        %v3725 = vsel %vm541, %v3566, 0
        %v3728 = vsel %vm541, %v3568, 0
        %v3731 = vsel %vm541, %v3570, 0
        %v3734 = vsel %vm541, %v3572, 0
        %v3737 = vsel %vm541, %v3574, 0
        %v3740 = vsel %vm541, %v3576, 0
        %v3743 = vsel %vm541, %v3578, 0
        %v3746 = vsel %vm541, %v3580, 0
        %v3749 = vsel %vm541, %v3582, 0
        %v3752 = vsel %vm541, %v3584, 0
        %v3755 = vsel %vm541, %v3586, 0
        %v3758 = vsel %vm541, %v3588, 0
        %3760 = vmatprep.subr.bf16.mxu0 0
        %3761 = vmatpush1.bf16.msra.mxu0 %v3688
        %3762 = vmatprep.subr.bf16.mxu0 0
        %3763 = vmatpush1.bf16.msra.mxu0 %v3689
        %3764 = vmatprep.subr.bf16.mxu0 0
        %3765 = vmatpush1.bf16.msra.mxu0 %v3690
        %3766 = vmatprep.subr.bf16.mxu0 0
        %3767 = vmatpush1.bf16.msra.mxu0 %v3691
        %3768 = vmatprep.subr.bf16.mxu0 0
        %3769 = vmatpush1.bf16.msra.mxu0 %v3692
        %3770 = vmatprep.subr.bf16.mxu0 0
        %3771 = vmatpush1.bf16.msra.mxu0 %v3693
        %3772 = vmatprep.subr.bf16.mxu0 0
        %3773 = vmatpush1.bf16.msra.mxu0 %v3694
        %3774 = vmatprep.subr.bf16.mxu0 0
        %3775 = vmatpush1.bf16.msra.mxu0 %v3695
        %3776 = vmatprep.subr.bf16.mxu0 0
        %3777 = vmatpush1.bf16.msra.mxu0 %v3696
        %3778 = vmatprep.subr.bf16.mxu0 0
        %3779 = vmatpush1.bf16.msra.mxu0 %v3697
        %3780 = vmatprep.subr.bf16.mxu0 0
        %3781 = vmatpush1.bf16.msra.mxu0 %v3698
        %3782 = vmatprep.subr.bf16.mxu0 0
        %3783 = vmatpush1.bf16.msra.mxu0 %v3699
        %3784 = vmatprep.subr.bf16.mxu0 0
        %3785 = vmatpush1.bf16.msra.mxu0 0
        %3786 = vmatprep.subr.bf16.mxu0 0
        %3787 = vmatpush1.bf16.msra.mxu0 0
        %3788 = vmatprep.subr.bf16.mxu0 0
        %3789 = vmatpush1.bf16.msra.mxu0 0
        %3790 = vmatprep.subr.bf16.mxu0 0
        %3791 = vmatpush1.bf16.msra.mxu0 0
        %3792 = vmatprep.mubr.bf16.mxu0 %v3713
        %3793 = vmatmul.mubr.bf16.gmra.mrb[0].mxu0 %v3557
        %v3794 = vpop.f32.mrb[0].mxu0
        %v3795 = vadd.f32 0.0, %v3794
        %v3796 = vpop.f32.mrb[0].mxu0
        %v3797 = vpop.f32.mrb[0].mxu0
        %v3798 = vadd.f32 0.0, %v3797
        %v3799 = vpop.f32.mrb[0].mxu0
        %3800 = vmatprep.mubr.bf16.mxu0 %v3716
        %3801 = vmatmul.mubr.bf16.gmra.mrb[0].mxu0 %v3559
        %v3802 = vpop.f32.mrb[0].mxu0
        %v3803 = vadd.f32 0.0, %v3802
        %v3804 = vpop.f32.mrb[0].mxu0
        %v3805 = vpop.f32.mrb[0].mxu0
        %v3806 = vadd.f32 0.0, %v3805
        %v3807 = vpop.f32.mrb[0].mxu0
        %3808 = vmatprep.mubr.bf16.mxu0 %v3719
        %3809 = vmatmul.mubr.bf16.gmra.mrb[0].mxu0 %v3561
        %v3810 = vpop.f32.mrb[0].mxu0
        %v3811 = vadd.f32 0.0, %v3810
        %v3812 = vpop.f32.mrb[0].mxu0
        %v3813 = vpop.f32.mrb[0].mxu0
        %v3814 = vadd.f32 0.0, %v3813
        %v3815 = vpop.f32.mrb[0].mxu0
        %3816 = vmatprep.mubr.bf16.mxu0 %v3722
        %3817 = vmatmul.mubr.bf16.gmra.mrb[0].mxu0 %v3563
        %v3818 = vpop.f32.mrb[0].mxu0
        %v3819 = vadd.f32 0.0, %v3818
        %v3820 = vpop.f32.mrb[0].mxu0
        %v3821 = vpop.f32.mrb[0].mxu0
        %v3822 = vadd.f32 0.0, %v3821
        %v3823 = vpop.f32.mrb[0].mxu0
        %3824 = vmatprep.mubr.bf16.mxu0 %v3725
        %3825 = vmatmul.mubr.bf16.gmra.mrb[0].mxu0 %v3565
        %v3826 = vpop.f32.mrb[0].mxu0
        %v3827 = vadd.f32 0.0, %v3826
        %v3828 = vpop.f32.mrb[0].mxu0
        %v3829 = vpop.f32.mrb[0].mxu0
        %v3830 = vadd.f32 0.0, %v3829
        %v3831 = vpop.f32.mrb[0].mxu0
        %3832 = vmatprep.mubr.bf16.mxu0 %v3728
        %3833 = vmatmul.mubr.bf16.gmra.mrb[0].mxu0 %v3567
        %v3834 = vpop.f32.mrb[0].mxu0
        %v3835 = vadd.f32 0.0, %v3834
        %v3836 = vpop.f32.mrb[0].mxu0
        %v3837 = vpop.f32.mrb[0].mxu0
        %v3838 = vadd.f32 0.0, %v3837
        %v3839 = vpop.f32.mrb[0].mxu0
        %3840 = vmatprep.mubr.bf16.mxu0 %v3731
        %3841 = vmatmul.mubr.bf16.gmra.mrb[0].mxu0 %v3569
        %v3842 = vpop.f32.mrb[0].mxu0
        %v3843 = vadd.f32 0.0, %v3842
        %v3844 = vpop.f32.mrb[0].mxu0
        %v3845 = vpop.f32.mrb[0].mxu0
        %v3846 = vadd.f32 0.0, %v3845
        %v3847 = vpop.f32.mrb[0].mxu0
        %3848 = vmatprep.mubr.bf16.mxu0 %v3734
        %3849 = vmatmul.mubr.bf16.gmra.mrb[0].mxu0 %v3571
        %v3850 = vpop.f32.mrb[0].mxu0
        %v3851 = vadd.f32 0.0, %v3850
        %v3852 = vpop.f32.mrb[0].mxu0
        %v3853 = vpop.f32.mrb[0].mxu0
        %v3854 = vadd.f32 0.0, %v3853
        %v3855 = vpop.f32.mrb[0].mxu0
        %3856 = vmatprep.mubr.bf16.mxu0 %v3737
        %3857 = vmatmul.mubr.bf16.gmra.mrb[0].mxu0 %v3573
        %v3858 = vpop.f32.mrb[0].mxu0
        %v3859 = vadd.f32 0.0, %v3858
        %v3860 = vpop.f32.mrb[0].mxu0
        %v3861 = vpop.f32.mrb[0].mxu0
        %v3862 = vadd.f32 0.0, %v3861
        %v3863 = vpop.f32.mrb[0].mxu0
        %3864 = vmatprep.mubr.bf16.mxu0 %v3740
        %3865 = vmatmul.mubr.bf16.gmra.mrb[0].mxu0 %v3575
        %v3866 = vpop.f32.mrb[0].mxu0
        %v3867 = vadd.f32 0.0, %v3866
        %v3868 = vpop.f32.mrb[0].mxu0
        %v3869 = vpop.f32.mrb[0].mxu0
        %v3870 = vadd.f32 0.0, %v3869
        %v3871 = vpop.f32.mrb[0].mxu0
        %3872 = vmatprep.mubr.bf16.mxu0 %v3743
        %3873 = vmatmul.mubr.bf16.gmra.mrb[0].mxu0 %v3577
        %v3874 = vpop.f32.mrb[0].mxu0
        %v3875 = vadd.f32 0.0, %v3874
        %v3876 = vpop.f32.mrb[0].mxu0
        %v3877 = vpop.f32.mrb[0].mxu0
        %v3878 = vadd.f32 0.0, %v3877
        %v3879 = vpop.f32.mrb[0].mxu0
        %3880 = vmatprep.mubr.bf16.mxu0 %v3746
        %3881 = vmatmul.mubr.bf16.gmra.mrb[0].mxu0 %v3579
        %v3882 = vpop.f32.mrb[0].mxu0
        %v3883 = vadd.f32 0.0, %v3882
        %v3884 = vpop.f32.mrb[0].mxu0
        %v3885 = vpop.f32.mrb[0].mxu0
        %v3886 = vadd.f32 0.0, %v3885
        %v3887 = vpop.f32.mrb[0].mxu0
        %3888 = vmatprep.mubr.bf16.mxu0 %v3749
        %3889 = vmatmul.mubr.bf16.gmra.mrb[0].mxu0 %v3581
        %v3890 = vpop.f32.mrb[0].mxu0
        %v3891 = vadd.f32 0.0, %v3890
        %v3892 = vpop.f32.mrb[0].mxu0
        %v3893 = vpop.f32.mrb[0].mxu0
        %v3894 = vadd.f32 0.0, %v3893
        %v3895 = vpop.f32.mrb[0].mxu0
        %3896 = vmatprep.mubr.bf16.mxu0 %v3752
        %3897 = vmatmul.mubr.bf16.gmra.mrb[0].mxu0 %v3583
        %v3898 = vpop.f32.mrb[0].mxu0
        %v3899 = vadd.f32 0.0, %v3898
        %v3900 = vpop.f32.mrb[0].mxu0
        %v3901 = vpop.f32.mrb[0].mxu0
        %v3902 = vadd.f32 0.0, %v3901
        %v3903 = vpop.f32.mrb[0].mxu0
        %3904 = vmatprep.mubr.bf16.mxu0 %v3755
        %3905 = vmatmul.mubr.bf16.gmra.mrb[0].mxu0 %v3585
        %v3906 = vpop.f32.mrb[0].mxu0
        %v3907 = vadd.f32 0.0, %v3906
        %v3908 = vpop.f32.mrb[0].mxu0
        %v3909 = vpop.f32.mrb[0].mxu0
        %v3910 = vadd.f32 0.0, %v3909
        %v3911 = vpop.f32.mrb[0].mxu0
        %3912 = vmatprep.mubr.bf16.mxu0 %v3758
        %3913 = vmatmul.mubr.bf16.gmra.mrb[0].mxu0 %v3587
        %v3914 = vpop.f32.mrb[0].mxu0
        %v3915 = vadd.f32 0.0, %v3914
        %v3916 = vpop.f32.mrb[0].mxu0
        %v3917 = vpop.f32.mrb[0].mxu0
        %v3918 = vadd.f32 0.0, %v3917
        %v3919 = vpop.f32.mrb[0].mxu0
        %3920 = vdwg.mxu0
        %v3945 = vunpack.c.l.b16 %v3591
        %v3946 = vunpack.c.l.b16 %v3592
        %v3947 = vunpack.c.l.b16 %v3593
        %v3948 = vunpack.c.l.b16 %v3594
        %v3949 = vunpack.c.l.b16 %v3595
        %v3950 = vunpack.c.l.b16 %v3596
        %v3951 = vunpack.c.l.b16 %v3597
        %v3952 = vunpack.c.l.b16 %v3598
        %v3953 = vunpack.c.l.b16 %v3599
        %v3954 = vunpack.c.l.b16 %v3600
        %v3955 = vunpack.c.l.b16 %v3601
        %v3956 = vunpack.c.l.b16 %v3602
        %v3957 = vunpack.c.l.b16 %v3603
        %v3958 = vunpack.c.l.b16 %v3604
        %v3959 = vunpack.c.l.b16 %v3605
        %v3960 = vunpack.c.l.b16 %v3606
        %v3961 = vunpack.c.l.b16 %v3607
        %v3962 = vunpack.c.l.b16 %v3608
        %v3963 = vunpack.c.l.b16 %v3609
        %v3964 = vunpack.c.l.b16 %v3610
        %v3965 = vunpack.c.l.b16 %v3611
        %v3966 = vunpack.c.l.b16 %v3612
        %v3967 = vunpack.c.l.b16 %v3613
        %v3968 = vunpack.c.l.b16 %v3614
        %v3969 = vpack.c.b16 %v3946, %v3945
        %v3970 = vpack.c.b16 %v3948, %v3947
        %v3971 = vpack.c.b16 %v3950, %v3949
        %v3972 = vpack.c.b16 %v3952, %v3951
        %v3973 = vpack.c.b16 %v3954, %v3953
        %v3974 = vpack.c.b16 %v3956, %v3955
        %v3975 = vpack.c.b16 %v3958, %v3957
        %v3976 = vpack.c.b16 %v3960, %v3959
        %v3977 = vpack.c.b16 %v3962, %v3961
        %v3978 = vpack.c.b16 %v3964, %v3963
        %v3979 = vpack.c.b16 %v3966, %v3965
        %v3980 = vpack.c.b16 %v3968, %v3967
        %v3994 = vsel %vm541, %v3556, 0
        %3996 = vmatprep.subr.bf16.mxu0 0
        %3997 = vmatpush1.bf16.msra.mxu0 %v3969
        %3998 = vmatprep.subr.bf16.mxu0 0
        %3999 = vmatpush1.bf16.msra.mxu0 %v3970
        %4000 = vmatprep.subr.bf16.mxu0 0
        %4001 = vmatpush1.bf16.msra.mxu0 %v3971
        %4002 = vmatprep.subr.bf16.mxu0 0
        %4003 = vmatpush1.bf16.msra.mxu0 %v3972
        %4004 = vmatprep.subr.bf16.mxu0 0
        %4005 = vmatpush1.bf16.msra.mxu0 %v3973
        %4006 = vmatprep.subr.bf16.mxu0 0
        %4007 = vmatpush1.bf16.msra.mxu0 %v3974
        %4008 = vmatprep.subr.bf16.mxu0 0
        %4009 = vmatpush1.bf16.msra.mxu0 %v3975
        %4010 = vmatprep.subr.bf16.mxu0 0
        %4011 = vmatpush1.bf16.msra.mxu0 %v3976
        %4012 = vmatprep.subr.bf16.mxu0 0
        %4013 = vmatpush1.bf16.msra.mxu0 %v3977
        %4014 = vmatprep.subr.bf16.mxu0 0
        %4015 = vmatpush1.bf16.msra.mxu0 %v3978
        %4016 = vmatprep.subr.bf16.mxu0 0
        %4017 = vmatpush1.bf16.msra.mxu0 %v3979
        %4018 = vmatprep.subr.bf16.mxu0 0
        %4019 = vmatpush1.bf16.msra.mxu0 %v3980
        %4020 = vmatprep.subr.bf16.mxu0 0
        %4021 = vmatpush1.bf16.msra.mxu0 0
        %4022 = vmatprep.subr.bf16.mxu0 0
        %4023 = vmatpush1.bf16.msra.mxu0 0
        %4024 = vmatprep.subr.bf16.mxu0 0
        %4025 = vmatpush1.bf16.msra.mxu0 0
        %4026 = vmatprep.subr.bf16.mxu0 0
        %4027 = vmatpush1.bf16.msra.mxu0 0
        %4028 = vmatprep.mubr.bf16.mxu0 %v3994
        %4029 = vmatmul.mubr.bf16.gmra.mrb[0].mxu0 %v3555
        %v4030 = vpop.f32.mrb[0].mxu0
        %v4031 = vadd.f32 %v3795, %v4030
        %v4032 = vpop.f32.mrb[0].mxu0
        %v4033 = vpop.f32.mrb[0].mxu0
        %v4034 = vadd.f32 %v3798, %v4033
        %v4035 = vpop.f32.mrb[0].mxu0
        %4036 = vmatprep.mubr.bf16.mxu0 %v3713
        %4037 = vmatmul.mubr.bf16.gmra.mrb[0].mxu0 %v3557
        %v4038 = vpop.f32.mrb[0].mxu0
        %v4039 = vadd.f32 %v3803, %v4038
        %v4040 = vpop.f32.mrb[0].mxu0
        %v4041 = vpop.f32.mrb[0].mxu0
        %v4042 = vadd.f32 %v3806, %v4041
        %v4043 = vpop.f32.mrb[0].mxu0
        %4044 = vmatprep.mubr.bf16.mxu0 %v3716
        %4045 = vmatmul.mubr.bf16.gmra.mrb[0].mxu0 %v3559
        %v4046 = vpop.f32.mrb[0].mxu0
        %v4047 = vadd.f32 %v3811, %v4046
        %v4048 = vpop.f32.mrb[0].mxu0
        %v4049 = vpop.f32.mrb[0].mxu0
        %v4050 = vadd.f32 %v3814, %v4049
        %v4051 = vpop.f32.mrb[0].mxu0
        %4052 = vmatprep.mubr.bf16.mxu0 %v3719
        %4053 = vmatmul.mubr.bf16.gmra.mrb[0].mxu0 %v3561
        %v4054 = vpop.f32.mrb[0].mxu0
        %v4055 = vadd.f32 %v3819, %v4054
        %v4056 = vpop.f32.mrb[0].mxu0
        %v4057 = vpop.f32.mrb[0].mxu0
        %v4058 = vadd.f32 %v3822, %v4057
        %v4059 = vpop.f32.mrb[0].mxu0
        %4060 = vmatprep.mubr.bf16.mxu0 %v3722
        %4061 = vmatmul.mubr.bf16.gmra.mrb[0].mxu0 %v3563
        %v4062 = vpop.f32.mrb[0].mxu0
        %v4063 = vadd.f32 %v3827, %v4062
        %v4064 = vpop.f32.mrb[0].mxu0
        %v4065 = vpop.f32.mrb[0].mxu0
        %v4066 = vadd.f32 %v3830, %v4065
        %v4067 = vpop.f32.mrb[0].mxu0
        %4068 = vmatprep.mubr.bf16.mxu0 %v3725
        %4069 = vmatmul.mubr.bf16.gmra.mrb[0].mxu0 %v3565
        %v4070 = vpop.f32.mrb[0].mxu0
        %v4071 = vadd.f32 %v3835, %v4070
        %v4072 = vpop.f32.mrb[0].mxu0
        %v4073 = vpop.f32.mrb[0].mxu0
        %v4074 = vadd.f32 %v3838, %v4073
        %v4075 = vpop.f32.mrb[0].mxu0
        %4076 = vmatprep.mubr.bf16.mxu0 %v3728
        %4077 = vmatmul.mubr.bf16.gmra.mrb[0].mxu0 %v3567
        %v4078 = vpop.f32.mrb[0].mxu0
        %v4079 = vadd.f32 %v3843, %v4078
        %v4080 = vpop.f32.mrb[0].mxu0
        %v4081 = vpop.f32.mrb[0].mxu0
        %v4082 = vadd.f32 %v3846, %v4081
        %v4083 = vpop.f32.mrb[0].mxu0
        %4084 = vmatprep.mubr.bf16.mxu0 %v3731
        %4085 = vmatmul.mubr.bf16.gmra.mrb[0].mxu0 %v3569
        %v4086 = vpop.f32.mrb[0].mxu0
        %v4087 = vadd.f32 %v3851, %v4086
        %v4088 = vpop.f32.mrb[0].mxu0
        %v4089 = vpop.f32.mrb[0].mxu0
        %v4090 = vadd.f32 %v3854, %v4089
        %v4091 = vpop.f32.mrb[0].mxu0
        %4092 = vmatprep.mubr.bf16.mxu0 %v3734
        %4093 = vmatmul.mubr.bf16.gmra.mrb[0].mxu0 %v3571
        %v4094 = vpop.f32.mrb[0].mxu0
        %v4095 = vadd.f32 %v3859, %v4094
        %v4096 = vpop.f32.mrb[0].mxu0
        %v4097 = vpop.f32.mrb[0].mxu0
        %v4098 = vadd.f32 %v3862, %v4097
        %v4099 = vpop.f32.mrb[0].mxu0
        %4100 = vmatprep.mubr.bf16.mxu0 %v3737
        %4101 = vmatmul.mubr.bf16.gmra.mrb[0].mxu0 %v3573
        %v4102 = vpop.f32.mrb[0].mxu0
        %v4103 = vadd.f32 %v3867, %v4102
        %v4104 = vpop.f32.mrb[0].mxu0
        %v4105 = vpop.f32.mrb[0].mxu0
        %v4106 = vadd.f32 %v3870, %v4105
        %v4107 = vpop.f32.mrb[0].mxu0
        %4108 = vmatprep.mubr.bf16.mxu0 %v3740
        %4109 = vmatmul.mubr.bf16.gmra.mrb[0].mxu0 %v3575
        %v4110 = vpop.f32.mrb[0].mxu0
        %v4111 = vadd.f32 %v3875, %v4110
        %v4112 = vpop.f32.mrb[0].mxu0
        %v4113 = vpop.f32.mrb[0].mxu0
        %v4114 = vadd.f32 %v3878, %v4113
        %v4115 = vpop.f32.mrb[0].mxu0
        %4116 = vmatprep.mubr.bf16.mxu0 %v3743
        %4117 = vmatmul.mubr.bf16.gmra.mrb[0].mxu0 %v3577
        %v4118 = vpop.f32.mrb[0].mxu0
        %v4119 = vadd.f32 %v3883, %v4118
        %v4120 = vpop.f32.mrb[0].mxu0
        %v4121 = vpop.f32.mrb[0].mxu0
        %v4122 = vadd.f32 %v3886, %v4121
        %v4123 = vpop.f32.mrb[0].mxu0
        %4124 = vmatprep.mubr.bf16.mxu0 %v3746
        %4125 = vmatmul.mubr.bf16.gmra.mrb[0].mxu0 %v3579
        %v4126 = vpop.f32.mrb[0].mxu0
        %v4127 = vadd.f32 %v3891, %v4126
        %v4128 = vpop.f32.mrb[0].mxu0
        %v4129 = vpop.f32.mrb[0].mxu0
        %v4130 = vadd.f32 %v3894, %v4129
        %v4131 = vpop.f32.mrb[0].mxu0
        %4132 = vmatprep.mubr.bf16.mxu0 %v3749
        %4133 = vmatmul.mubr.bf16.gmra.mrb[0].mxu0 %v3581
        %v4134 = vpop.f32.mrb[0].mxu0
        %v4135 = vadd.f32 %v3899, %v4134
        %v4136 = vpop.f32.mrb[0].mxu0
        %v4137 = vpop.f32.mrb[0].mxu0
        %v4138 = vadd.f32 %v3902, %v4137
        %v4139 = vpop.f32.mrb[0].mxu0
        %4140 = vmatprep.mubr.bf16.mxu0 %v3752
        %4141 = vmatmul.mubr.bf16.gmra.mrb[0].mxu0 %v3583
        %v4142 = vpop.f32.mrb[0].mxu0
        %v4143 = vadd.f32 %v3907, %v4142
        %v4144 = vpop.f32.mrb[0].mxu0
        %v4145 = vpop.f32.mrb[0].mxu0
        %v4146 = vadd.f32 %v3910, %v4145
        %v4147 = vpop.f32.mrb[0].mxu0
        %4148 = vmatprep.mubr.bf16.mxu0 %v3755
        %4149 = vmatmul.mubr.bf16.gmra.mrb[0].mxu0 %v3585
        %v4150 = vpop.f32.mrb[0].mxu0
        %v4151 = vadd.f32 %v3915, %v4150
        %v4152 = vpop.f32.mrb[0].mxu0
        %v4153 = vpop.f32.mrb[0].mxu0
        %v4154 = vadd.f32 %v3918, %v4153
        %v4155 = vpop.f32.mrb[0].mxu0
        %4156 = vdwg.mxu0
        %s4157 = scalar_lea.vmem [#allocation13], 192
        %v4158 = vld [vmem:[%s4157] sm:$0xf]
        %v4159 = vld [vmem:[%s4157 + $0x4] sm:$0xf]
        %v4160 = vld [vmem:[%s4157 + $0x8] sm:$0xf]
        %v4161 = vld [vmem:[%s4157 + $0xc] sm:$0xf]
        %v4162 = vld [vmem:[%s4157 + $0x10] sm:$0xf]
        %v4163 = vld [vmem:[%s4157 + $0x14] sm:$0xf]
        %v4164 = vld [vmem:[%s4157 + $0x18] sm:$0xf]
        %v4165 = vld [vmem:[%s4157 + $0x1c] sm:$0xf]
        %v4166 = vld [vmem:[%s4157 + $0x20] sm:$0xf]
        %v4167 = vld [vmem:[%s4157 + $0x24] sm:$0xf]
        %v4168 = vld [vmem:[%s4157 + $0x28] sm:$0xf]
        %v4169 = vld [vmem:[%s4157 + $0x2c] sm:$0xf]
        %v4170 = vld [vmem:[%s4157 + $0x30] sm:$0xf]
        %v4171 = vld [vmem:[%s4157 + $0x34] sm:$0xf]
        %v4172 = vld [vmem:[%s4157 + $0x38] sm:$0xf]
        %v4173 = vld [vmem:[%s4157 + $0x3c] sm:$0xf]
        %v4174 = vld [vmem:[%s4157 + $0x40] sm:$0xf]
        %v4175 = vld [vmem:[%s4157 + $0x44] sm:$0xf]
        %v4176 = vld [vmem:[%s4157 + $0x48] sm:$0xf]
        %v4177 = vld [vmem:[%s4157 + $0x4c] sm:$0xf]
        %v4178 = vld [vmem:[%s4157 + $0x50] sm:$0xf]
        %v4179 = vld [vmem:[%s4157 + $0x54] sm:$0xf]
        %v4180 = vld [vmem:[%s4157 + $0x58] sm:$0xf]
        %v4181 = vld [vmem:[%s4157 + $0x5c] sm:$0xf]
        %v4206 = vunpack.c.l.b16 %v4158
        %v4207 = vunpack.c.l.b16 %v4159
        %v4208 = vunpack.c.l.b16 %v4160
        %v4209 = vunpack.c.l.b16 %v4161
        %v4210 = vunpack.c.l.b16 %v4162
        %v4211 = vunpack.c.l.b16 %v4163
        %v4212 = vunpack.c.l.b16 %v4164
        %v4213 = vunpack.c.l.b16 %v4165
        %v4214 = vunpack.c.l.b16 %v4166
        %v4215 = vunpack.c.l.b16 %v4167
        %v4216 = vunpack.c.l.b16 %v4168
        %v4217 = vunpack.c.l.b16 %v4169
        %v4218 = vunpack.c.l.b16 %v4170
        %v4219 = vunpack.c.l.b16 %v4171
        %v4220 = vunpack.c.l.b16 %v4172
        %v4221 = vunpack.c.l.b16 %v4173
        %v4222 = vunpack.c.l.b16 %v4174
        %v4223 = vunpack.c.l.b16 %v4175
        %v4224 = vunpack.c.l.b16 %v4176
        %v4225 = vunpack.c.l.b16 %v4177
        %v4226 = vunpack.c.l.b16 %v4178
        %v4227 = vunpack.c.l.b16 %v4179
        %v4228 = vunpack.c.l.b16 %v4180
        %v4229 = vunpack.c.l.b16 %v4181
        %v4230 = vpack.c.b16 %v4207, %v4206
        %v4231 = vpack.c.b16 %v4209, %v4208
        %v4232 = vpack.c.b16 %v4211, %v4210
        %v4233 = vpack.c.b16 %v4213, %v4212
        %v4234 = vpack.c.b16 %v4215, %v4214
        %v4235 = vpack.c.b16 %v4217, %v4216
        %v4236 = vpack.c.b16 %v4219, %v4218
        %v4237 = vpack.c.b16 %v4221, %v4220
        %v4238 = vpack.c.b16 %v4223, %v4222
        %v4239 = vpack.c.b16 %v4225, %v4224
        %v4240 = vpack.c.b16 %v4227, %v4226
        %v4241 = vpack.c.b16 %v4229, %v4228
        %v4255 = vsel %vm541, %v3590, 0
        %4257 = vmatprep.subr.bf16.mxu0 0
        %4258 = vmatpush1.bf16.msra.mxu0 %v4230
        %4259 = vmatprep.subr.bf16.mxu0 0
        %4260 = vmatpush1.bf16.msra.mxu0 %v4231
        %4261 = vmatprep.subr.bf16.mxu0 0
        %4262 = vmatpush1.bf16.msra.mxu0 %v4232
        %4263 = vmatprep.subr.bf16.mxu0 0
        %4264 = vmatpush1.bf16.msra.mxu0 %v4233
        %4265 = vmatprep.subr.bf16.mxu0 0
        %4266 = vmatpush1.bf16.msra.mxu0 %v4234
        %4267 = vmatprep.subr.bf16.mxu0 0
        %4268 = vmatpush1.bf16.msra.mxu0 %v4235
        %4269 = vmatprep.subr.bf16.mxu0 0
        %4270 = vmatpush1.bf16.msra.mxu0 %v4236
        %4271 = vmatprep.subr.bf16.mxu0 0
        %4272 = vmatpush1.bf16.msra.mxu0 %v4237
        %4273 = vmatprep.subr.bf16.mxu0 0
        %4274 = vmatpush1.bf16.msra.mxu0 %v4238
        %4275 = vmatprep.subr.bf16.mxu0 0
        %4276 = vmatpush1.bf16.msra.mxu0 %v4239
        %4277 = vmatprep.subr.bf16.mxu0 0
        %4278 = vmatpush1.bf16.msra.mxu0 %v4240
        %4279 = vmatprep.subr.bf16.mxu0 0
        %4280 = vmatpush1.bf16.msra.mxu0 %v4241
        %4281 = vmatprep.subr.bf16.mxu0 0
        %4282 = vmatpush1.bf16.msra.mxu0 0
        %4283 = vmatprep.subr.bf16.mxu0 0
        %4284 = vmatpush1.bf16.msra.mxu0 0
        %4285 = vmatprep.subr.bf16.mxu0 0
        %4286 = vmatpush1.bf16.msra.mxu0 0
        %4287 = vmatprep.subr.bf16.mxu0 0
        %4288 = vmatpush1.bf16.msra.mxu0 0
        %4289 = vmatprep.mubr.bf16.mxu0 %v3716
        %4290 = vmatmul.mubr.bf16.gmra.mrb[0].mxu0 %v3559
        %v4291 = vpop.f32.mrb[0].mxu0
        %v4292 = vadd.f32 0.0, %v4291
        %v4293 = vpop.f32.mrb[0].mxu0
        %v4294 = vpop.f32.mrb[0].mxu0
        %v4295 = vadd.f32 0.0, %v4294
        %v4296 = vpop.f32.mrb[0].mxu0
        %4297 = vmatprep.mubr.bf16.mxu0 %v3719
        %4298 = vmatmul.mubr.bf16.gmra.mrb[0].mxu0 %v3561
        %v4299 = vpop.f32.mrb[0].mxu0
        %v4300 = vadd.f32 0.0, %v4299
        %v4301 = vpop.f32.mrb[0].mxu0
        %v4302 = vpop.f32.mrb[0].mxu0
        %v4303 = vadd.f32 0.0, %v4302
        %v4304 = vpop.f32.mrb[0].mxu0
        %4305 = vmatprep.mubr.bf16.mxu0 %v3722
        %4306 = vmatmul.mubr.bf16.gmra.mrb[0].mxu0 %v3563
        %v4307 = vpop.f32.mrb[0].mxu0
        %v4308 = vadd.f32 0.0, %v4307
        %v4309 = vpop.f32.mrb[0].mxu0
        %v4310 = vpop.f32.mrb[0].mxu0
        %v4311 = vadd.f32 0.0, %v4310
        %v4312 = vpop.f32.mrb[0].mxu0
        %4313 = vmatprep.mubr.bf16.mxu0 %v3725
        %4314 = vmatmul.mubr.bf16.gmra.mrb[0].mxu0 %v3565
        %v4315 = vpop.f32.mrb[0].mxu0
        %v4316 = vadd.f32 0.0, %v4315
        %v4317 = vpop.f32.mrb[0].mxu0
        %v4318 = vpop.f32.mrb[0].mxu0
        %v4319 = vadd.f32 0.0, %v4318
        %v4320 = vpop.f32.mrb[0].mxu0
        %4321 = vmatprep.mubr.bf16.mxu0 %v3728
        %4322 = vmatmul.mubr.bf16.gmra.mrb[0].mxu0 %v3567
        %v4323 = vpop.f32.mrb[0].mxu0
        %v4324 = vadd.f32 0.0, %v4323
        %v4325 = vpop.f32.mrb[0].mxu0
        %v4326 = vpop.f32.mrb[0].mxu0
        %v4327 = vadd.f32 0.0, %v4326
        %v4328 = vpop.f32.mrb[0].mxu0
        %4329 = vmatprep.mubr.bf16.mxu0 %v3731
        %4330 = vmatmul.mubr.bf16.gmra.mrb[0].mxu0 %v3569
        %v4331 = vpop.f32.mrb[0].mxu0
        %v4332 = vadd.f32 0.0, %v4331
        %v4333 = vpop.f32.mrb[0].mxu0
        %v4334 = vpop.f32.mrb[0].mxu0
        %v4335 = vadd.f32 0.0, %v4334
        %v4336 = vpop.f32.mrb[0].mxu0
        %4337 = vmatprep.mubr.bf16.mxu0 %v3734
        %4338 = vmatmul.mubr.bf16.gmra.mrb[0].mxu0 %v3571
        %v4339 = vpop.f32.mrb[0].mxu0
        %v4340 = vadd.f32 0.0, %v4339
        %v4341 = vpop.f32.mrb[0].mxu0
        %v4342 = vpop.f32.mrb[0].mxu0
        %v4343 = vadd.f32 0.0, %v4342
        %v4344 = vpop.f32.mrb[0].mxu0
        %4345 = vmatprep.mubr.bf16.mxu0 %v3737
        %4346 = vmatmul.mubr.bf16.gmra.mrb[0].mxu0 %v3573
        %v4347 = vpop.f32.mrb[0].mxu0
        %v4348 = vadd.f32 0.0, %v4347
        %v4349 = vpop.f32.mrb[0].mxu0
        %v4350 = vpop.f32.mrb[0].mxu0
        %v4351 = vadd.f32 0.0, %v4350
        %v4352 = vpop.f32.mrb[0].mxu0
        %4353 = vmatprep.mubr.bf16.mxu0 %v3740
        %4354 = vmatmul.mubr.bf16.gmra.mrb[0].mxu0 %v3575
        %v4355 = vpop.f32.mrb[0].mxu0
        %v4356 = vadd.f32 0.0, %v4355
        %v4357 = vpop.f32.mrb[0].mxu0
        %v4358 = vpop.f32.mrb[0].mxu0
        %v4359 = vadd.f32 0.0, %v4358
        %v4360 = vpop.f32.mrb[0].mxu0
        %4361 = vmatprep.mubr.bf16.mxu0 %v3743
        %4362 = vmatmul.mubr.bf16.gmra.mrb[0].mxu0 %v3577
        %v4363 = vpop.f32.mrb[0].mxu0
        %v4364 = vadd.f32 0.0, %v4363
        %v4365 = vpop.f32.mrb[0].mxu0
        %v4366 = vpop.f32.mrb[0].mxu0
        %v4367 = vadd.f32 0.0, %v4366
        %v4368 = vpop.f32.mrb[0].mxu0
        %4369 = vmatprep.mubr.bf16.mxu0 %v3746
        %4370 = vmatmul.mubr.bf16.gmra.mrb[0].mxu0 %v3579
        %v4371 = vpop.f32.mrb[0].mxu0
        %v4372 = vadd.f32 0.0, %v4371
        %v4373 = vpop.f32.mrb[0].mxu0
        %v4374 = vpop.f32.mrb[0].mxu0
        %v4375 = vadd.f32 0.0, %v4374
        %v4376 = vpop.f32.mrb[0].mxu0
        %4377 = vmatprep.mubr.bf16.mxu0 %v3749
        %4378 = vmatmul.mubr.bf16.gmra.mrb[0].mxu0 %v3581
        %v4379 = vpop.f32.mrb[0].mxu0
        %v4380 = vadd.f32 0.0, %v4379
        %v4381 = vpop.f32.mrb[0].mxu0
        %v4382 = vpop.f32.mrb[0].mxu0
        %v4383 = vadd.f32 0.0, %v4382
        %v4384 = vpop.f32.mrb[0].mxu0
        %4385 = vmatprep.mubr.bf16.mxu0 %v3752
        %4386 = vmatmul.mubr.bf16.gmra.mrb[0].mxu0 %v3583
        %v4387 = vpop.f32.mrb[0].mxu0
        %v4388 = vadd.f32 0.0, %v4387
        %v4389 = vpop.f32.mrb[0].mxu0
        %v4390 = vpop.f32.mrb[0].mxu0
        %v4391 = vadd.f32 0.0, %v4390
        %v4392 = vpop.f32.mrb[0].mxu0
        %4393 = vmatprep.mubr.bf16.mxu0 %v3755
        %4394 = vmatmul.mubr.bf16.gmra.mrb[0].mxu0 %v3585
        %v4395 = vpop.f32.mrb[0].mxu0
        %v4396 = vadd.f32 0.0, %v4395
        %v4397 = vpop.f32.mrb[0].mxu0
        %v4398 = vpop.f32.mrb[0].mxu0
        %v4399 = vadd.f32 0.0, %v4398
        %v4400 = vpop.f32.mrb[0].mxu0
        %4401 = vmatprep.mubr.bf16.mxu0 %v3758
        %4402 = vmatmul.mubr.bf16.gmra.mrb[0].mxu0 %v3587
        %v4403 = vpop.f32.mrb[0].mxu0
        %v4404 = vadd.f32 0.0, %v4403
        %v4405 = vpop.f32.mrb[0].mxu0
        %v4406 = vpop.f32.mrb[0].mxu0
        %v4407 = vadd.f32 0.0, %v4406
        %v4408 = vpop.f32.mrb[0].mxu0
        %4409 = vmatprep.mubr.bf16.mxu0 %v4255
        %4410 = vmatmul.mubr.bf16.gmra.mrb[0].mxu0 %v3589
        %v4411 = vpop.f32.mrb[0].mxu0
        %v4412 = vadd.f32 0.0, %v4411
        %v4413 = vpop.f32.mrb[0].mxu0
        %v4414 = vpop.f32.mrb[0].mxu0
        %v4415 = vadd.f32 0.0, %v4414
        %v4416 = vpop.f32.mrb[0].mxu0
        %4417 = vdwg.mxu0
        %v4418 = vadd.f32 %v4031, %v4292
        %v4419 = vadd.f32 %v4034, %v4295
        %v4420 = vadd.f32 %v4039, %v4300
        %v4421 = vadd.f32 %v4042, %v4303
        %v4422 = vadd.f32 %v4047, %v4308
        %v4423 = vadd.f32 %v4050, %v4311
        %v4424 = vadd.f32 %v4055, %v4316
        %v4425 = vadd.f32 %v4058, %v4319
        %v4426 = vadd.f32 %v4063, %v4324
        %v4427 = vadd.f32 %v4066, %v4327
        %v4428 = vadd.f32 %v4071, %v4332
        %v4429 = vadd.f32 %v4074, %v4335
        %v4430 = vadd.f32 %v4079, %v4340
        %v4431 = vadd.f32 %v4082, %v4343
        %v4432 = vadd.f32 %v4087, %v4348
        %v4433 = vadd.f32 %v4090, %v4351
        %v4434 = vadd.f32 %v4095, %v4356
        %v4435 = vadd.f32 %v4098, %v4359
        %v4436 = vadd.f32 %v4103, %v4364
        %v4437 = vadd.f32 %v4106, %v4367
        %v4438 = vadd.f32 %v4111, %v4372
        %v4439 = vadd.f32 %v4114, %v4375
        %v4440 = vadd.f32 %v4119, %v4380
        %v4441 = vadd.f32 %v4122, %v4383
        %v4442 = vadd.f32 %v4127, %v4388
        %v4443 = vadd.f32 %v4130, %v4391
        %v4444 = vadd.f32 %v4135, %v4396
        %v4445 = vadd.f32 %v4138, %v4399
        %v4446 = vadd.f32 %v4143, %v4404
        %v4447 = vadd.f32 %v4146, %v4407
        %v4448 = vadd.f32 %v4151, %v4412
        %v4449 = vadd.f32 %v4154, %v4415
        %v4450 = vld [vmem:[#allocation15] sm:$0x1]
        %v4452 = vlaneseq
        %v4453 = vshrl.u32 %v4452, 7
        %v4454 = vsub.s32 0, %v4453
        %v4455 = vrot.slane %v4450, %v4454
        %v4457 = vadd.f32 %v4418, %v4455
        %v4458 = vadd.f32 %v4419, %v4455
        %v4459 = vadd.f32 %v4420, %v4455
        %v4460 = vadd.f32 %v4421, %v4455
        %v4461 = vadd.f32 %v4422, %v4455
        %v4462 = vadd.f32 %v4423, %v4455
        %v4463 = vadd.f32 %v4424, %v4455
        %v4464 = vadd.f32 %v4425, %v4455
        %v4465 = vadd.f32 %v4426, %v4455
        %v4466 = vadd.f32 %v4427, %v4455
        %v4467 = vadd.f32 %v4428, %v4455
        %v4468 = vadd.f32 %v4429, %v4455
        %v4469 = vadd.f32 %v4430, %v4455
        %v4470 = vadd.f32 %v4431, %v4455
        %v4471 = vadd.f32 %v4432, %v4455
        %v4472 = vadd.f32 %v4433, %v4455
        %v4473 = vadd.f32 %v4434, %v4455
        %v4474 = vadd.f32 %v4435, %v4455
        %v4475 = vadd.f32 %v4436, %v4455
        %v4476 = vadd.f32 %v4437, %v4455
        %v4477 = vadd.f32 %v4438, %v4455
        %v4478 = vadd.f32 %v4439, %v4455
        %v4479 = vadd.f32 %v4440, %v4455
        %v4480 = vadd.f32 %v4441, %v4455
        %v4481 = vadd.f32 %v4442, %v4455
        %v4482 = vadd.f32 %v4443, %v4455
        %v4483 = vadd.f32 %v4444, %v4455
        %v4484 = vadd.f32 %v4445, %v4455
        %v4485 = vadd.f32 %v4446, %v4455
        %v4486 = vadd.f32 %v4447, %v4455
        %v4487 = vadd.f32 %v4448, %v4455
        %v4488 = vadd.f32 %v4449, %v4455
        %v4489 = vmax.f32 %v4457, 0.0
        %v4490 = vmax.f32 %v4458, 0.0
        %v4491 = vmax.f32 %v4459, 0.0
        %v4492 = vmax.f32 %v4460, 0.0
        %v4493 = vmax.f32 %v4461, 0.0
        %v4494 = vmax.f32 %v4462, 0.0
        %v4495 = vmax.f32 %v4463, 0.0
        %v4496 = vmax.f32 %v4464, 0.0
        %v4497 = vmax.f32 %v4465, 0.0
        %v4498 = vmax.f32 %v4466, 0.0
        %v4499 = vmax.f32 %v4467, 0.0
        %v4500 = vmax.f32 %v4468, 0.0
        %v4501 = vmax.f32 %v4469, 0.0
        %v4502 = vmax.f32 %v4470, 0.0
        %v4503 = vmax.f32 %v4471, 0.0
        %v4504 = vmax.f32 %v4472, 0.0
        %v4505 = vmax.f32 %v4473, 0.0
        %v4506 = vmax.f32 %v4474, 0.0
        %v4507 = vmax.f32 %v4475, 0.0
        %v4508 = vmax.f32 %v4476, 0.0
        %v4509 = vmax.f32 %v4477, 0.0
        %v4510 = vmax.f32 %v4478, 0.0
        %v4511 = vmax.f32 %v4479, 0.0
        %v4512 = vmax.f32 %v4480, 0.0
        %v4513 = vmax.f32 %v4481, 0.0
        %v4514 = vmax.f32 %v4482, 0.0
        %v4515 = vmax.f32 %v4483, 0.0
        %v4516 = vmax.f32 %v4484, 0.0
        %v4517 = vmax.f32 %v4485, 0.0
        %v4518 = vmax.f32 %v4486, 0.0
        %v4519 = vmax.f32 %v4487, 0.0
        %v4520 = vmax.f32 %v4488, 0.0
        %4521 = vst.msk [vmem:[%s1948 + $0x1] sm:$0xff] %vm541, %v4489
        %4522 = vst.msk [vmem:[%s1948 + $0x9] sm:$0xff] %vm541, %v4490
        %4523 = vst.msk [vmem:[%s1948 + $0x19] sm:$0xff] %vm541, %v4491
        %4524 = vst.msk [vmem:[%s1948 + $0x21] sm:$0xff] %vm541, %v4492
        %4525 = vst.msk [vmem:[%s1948 + $0x31] sm:$0xff] %vm541, %v4493
        %4526 = vst.msk [vmem:[%s1948 + $0x39] sm:$0xff] %vm541, %v4494
        %4527 = vst.msk [vmem:[%s1948 + $0x49] sm:$0xff] %vm541, %v4495
        %4528 = vst.msk [vmem:[%s1948 + $0x51] sm:$0xff] %vm541, %v4496
        %4529 = vst.msk [vmem:[%s1948 + $0x61] sm:$0xff] %vm541, %v4497
        %4530 = vst.msk [vmem:[%s1948 + $0x69] sm:$0xff] %vm541, %v4498
        %4531 = vst.msk [vmem:[%s1948 + $0x79] sm:$0xff] %vm541, %v4499
        %4532 = vst.msk [vmem:[%s1948 + $0x81] sm:$0xff] %vm541, %v4500
        %4533 = vst.msk [vmem:[%s1948 + $0x91] sm:$0xff] %vm541, %v4501
        %4534 = vst.msk [vmem:[%s1948 + $0x99] sm:$0xff] %vm541, %v4502
        %4535 = vst.msk [vmem:[%s1948 + $0xa9] sm:$0xff] %vm541, %v4503
        %4536 = vst.msk [vmem:[%s1948 + $0xb1] sm:$0xff] %vm541, %v4504
        %4537 = vst.msk [vmem:[%s1948 + $0xc1] sm:$0xff] %vm541, %v4505
        %4538 = vst.msk [vmem:[%s1948 + $0xc9] sm:$0xff] %vm541, %v4506
        %4539 = vst.msk [vmem:[%s1948 + $0xd9] sm:$0xff] %vm541, %v4507
        %4540 = vst.msk [vmem:[%s1948 + $0xe1] sm:$0xff] %vm541, %v4508
        %4541 = vst.msk [vmem:[%s1948 + $0xf1] sm:$0xff] %vm541, %v4509
        %4542 = vst.msk [vmem:[%s1948 + $0xf9] sm:$0xff] %vm541, %v4510
        %4543 = vst.msk [vmem:[%s1948 + $0x109] sm:$0xff] %vm541, %v4511
        %4544 = vst.msk [vmem:[%s1948 + $0x111] sm:$0xff] %vm541, %v4512
        %4545 = vst.msk [vmem:[%s1948 + $0x121] sm:$0xff] %vm541, %v4513
        %4546 = vst.msk [vmem:[%s1948 + $0x129] sm:$0xff] %vm541, %v4514
        %4547 = vst.msk [vmem:[%s1948 + $0x139] sm:$0xff] %vm541, %v4515
        %4548 = vst.msk [vmem:[%s1948 + $0x141] sm:$0xff] %vm541, %v4516
        %4549 = vst.msk [vmem:[%s1948 + $0x151] sm:$0xff] %vm541, %v4517
        %4550 = vst.msk [vmem:[%s1948 + $0x159] sm:$0xff] %vm541, %v4518
        %4551 = vst.msk [vmem:[%s1948 + $0x169] sm:$0xff] %vm541, %v4519
        %4552 = vst.msk [vmem:[%s1948 + $0x171] sm:$0xff] %vm541, %v4520
        %v4553 = vld [vmem:[#allocation3] sm:$0xff]
        %v4554 = vld [vmem:[#allocation3 + $0x8] sm:$0xff]
        %v4555 = vld [vmem:[#allocation3 + $0x18] sm:$0xff]
        %v4556 = vld [vmem:[#allocation3 + $0x20] sm:$0xff]
        %v4557 = vld [vmem:[#allocation3 + $0x30] sm:$0xff]
        %v4558 = vld [vmem:[#allocation3 + $0x38] sm:$0xff]
        %v4559 = vld [vmem:[#allocation3 + $0x48] sm:$0xff]
        %v4560 = vld [vmem:[#allocation3 + $0x50] sm:$0xff]
        %v4561 = vld [vmem:[#allocation3 + $0x60] sm:$0xff]
        %v4562 = vld [vmem:[#allocation3 + $0x68] sm:$0xff]
        %v4563 = vld [vmem:[#allocation3 + $0x78] sm:$0xff]
        %v4564 = vld [vmem:[#allocation3 + $0x80] sm:$0xff]
        %v4565 = vld [vmem:[#allocation3 + $0x90] sm:$0xff]
        %v4566 = vld [vmem:[#allocation3 + $0x98] sm:$0xff]
        %v4567 = vld [vmem:[#allocation3 + $0xa8] sm:$0xff]
        %v4568 = vld [vmem:[#allocation3 + $0xb0] sm:$0xff]
        %v4569 = vld [vmem:[#allocation3 + $0xc0] sm:$0xff]
        %v4570 = vld [vmem:[#allocation3 + $0xc8] sm:$0xff]
        %v4571 = vld [vmem:[#allocation3 + $0xd8] sm:$0xff]
        %v4572 = vld [vmem:[#allocation3 + $0xe0] sm:$0xff]
        %v4573 = vld [vmem:[#allocation3 + $0xf0] sm:$0xff]
        %v4574 = vld [vmem:[#allocation3 + $0xf8] sm:$0xff]
        %v4575 = vld [vmem:[#allocation3 + $0x108] sm:$0xff]
        %v4576 = vld [vmem:[#allocation3 + $0x110] sm:$0xff]
        %v4577 = vld [vmem:[#allocation3 + $0x120] sm:$0xff]
        %v4578 = vld [vmem:[#allocation3 + $0x128] sm:$0xff]
        %v4579 = vld [vmem:[#allocation3 + $0x138] sm:$0xff]
        %v4580 = vld [vmem:[#allocation3 + $0x140] sm:$0xff]
        %v4581 = vld [vmem:[#allocation3 + $0x150] sm:$0xff]
        %v4582 = vld [vmem:[#allocation3 + $0x158] sm:$0xff]
        %v4583 = vld [vmem:[#allocation3 + $0x168] sm:$0xff]
        %v4584 = vld [vmem:[#allocation3 + $0x170] sm:$0xff]
        %v4585 = vld [vmem:[#allocation3 + $0x180] sm:$0xff]
        %v4586 = vld [vmem:[#allocation3 + $0x188] sm:$0xff]
        %v4587 = vld [vmem:[#allocation3 + $0x198] sm:$0xff]
        %v4588 = vld [vmem:[#allocation3 + $0x1a0] sm:$0xff]
        %v4589 = vld [vmem:[#allocation3 + $0x1] sm:$0xff]
        %v4590 = vld [vmem:[#allocation3 + $0x9] sm:$0xff]
        %v4591 = vld [vmem:[#allocation3 + $0x19] sm:$0xff]
        %v4592 = vld [vmem:[#allocation3 + $0x21] sm:$0xff]
        %v4593 = vld [vmem:[#allocation3 + $0x31] sm:$0xff]
        %v4594 = vld [vmem:[#allocation3 + $0x39] sm:$0xff]
        %v4595 = vld [vmem:[#allocation3 + $0x49] sm:$0xff]
        %v4596 = vld [vmem:[#allocation3 + $0x51] sm:$0xff]
        %v4597 = vld [vmem:[#allocation3 + $0x61] sm:$0xff]
        %v4598 = vld [vmem:[#allocation3 + $0x69] sm:$0xff]
        %v4599 = vld [vmem:[#allocation3 + $0x79] sm:$0xff]
        %v4600 = vld [vmem:[#allocation3 + $0x81] sm:$0xff]
        %v4601 = vld [vmem:[#allocation3 + $0x91] sm:$0xff]
        %v4602 = vld [vmem:[#allocation3 + $0x99] sm:$0xff]
        %v4603 = vld [vmem:[#allocation3 + $0xa9] sm:$0xff]
        %v4604 = vld [vmem:[#allocation3 + $0xb1] sm:$0xff]
        %v4605 = vld [vmem:[#allocation3 + $0xc1] sm:$0xff]
        %v4606 = vld [vmem:[#allocation3 + $0xc9] sm:$0xff]
        %v4607 = vld [vmem:[#allocation3 + $0xd9] sm:$0xff]
        %v4608 = vld [vmem:[#allocation3 + $0xe1] sm:$0xff]
        %v4609 = vld [vmem:[#allocation3 + $0xf1] sm:$0xff]
        %v4610 = vld [vmem:[#allocation3 + $0xf9] sm:$0xff]
        %v4611 = vld [vmem:[#allocation3 + $0x109] sm:$0xff]
        %v4612 = vld [vmem:[#allocation3 + $0x111] sm:$0xff]
        %v4613 = vld [vmem:[#allocation3 + $0x121] sm:$0xff]
        %v4614 = vld [vmem:[#allocation3 + $0x129] sm:$0xff]
        %v4615 = vld [vmem:[#allocation3 + $0x139] sm:$0xff]
        %v4616 = vld [vmem:[#allocation3 + $0x141] sm:$0xff]
        %v4617 = vld [vmem:[#allocation3 + $0x151] sm:$0xff]
        %v4618 = vld [vmem:[#allocation3 + $0x159] sm:$0xff]
        %v4619 = vld [vmem:[#allocation3 + $0x169] sm:$0xff]
        %v4620 = vld [vmem:[#allocation3 + $0x171] sm:$0xff]
        %v4621 = vld [vmem:[#allocation3 + $0x181] sm:$0xff]
        %v4622 = vld [vmem:[#allocation3 + $0x189] sm:$0xff]
        %v4623 = vld [vmem:[#allocation3 + $0x199] sm:$0xff]
        %v4624 = vld [vmem:[#allocation3 + $0x1a1] sm:$0xff]
        %v4625 = vld [vmem:[#allocation3 + $0x2] sm:$0xff]
        %v4626 = vld [vmem:[#allocation3 + $0xa] sm:$0xff]
        %v4627 = vld [vmem:[#allocation3 + $0x1a] sm:$0xff]
        %v4628 = vld [vmem:[#allocation3 + $0x22] sm:$0xff]
        %v4629 = vld [vmem:[#allocation3 + $0x32] sm:$0xff]
        %v4630 = vld [vmem:[#allocation3 + $0x3a] sm:$0xff]
        %v4631 = vld [vmem:[#allocation3 + $0x4a] sm:$0xff]
        %v4632 = vld [vmem:[#allocation3 + $0x52] sm:$0xff]
        %v4633 = vld [vmem:[#allocation3 + $0x62] sm:$0xff]
        %v4634 = vld [vmem:[#allocation3 + $0x6a] sm:$0xff]
        %v4635 = vld [vmem:[#allocation3 + $0x7a] sm:$0xff]
        %v4636 = vld [vmem:[#allocation3 + $0x82] sm:$0xff]
        %v4637 = vld [vmem:[#allocation3 + $0x92] sm:$0xff]
        %v4638 = vld [vmem:[#allocation3 + $0x9a] sm:$0xff]
        %v4639 = vld [vmem:[#allocation3 + $0xaa] sm:$0xff]
        %v4640 = vld [vmem:[#allocation3 + $0xb2] sm:$0xff]
        %v4641 = vld [vmem:[#allocation3 + $0xc2] sm:$0xff]
        %v4642 = vld [vmem:[#allocation3 + $0xca] sm:$0xff]
        %v4643 = vld [vmem:[#allocation3 + $0xda] sm:$0xff]
        %v4644 = vld [vmem:[#allocation3 + $0xe2] sm:$0xff]
        %v4645 = vld [vmem:[#allocation3 + $0xf2] sm:$0xff]
        %v4646 = vld [vmem:[#allocation3 + $0xfa] sm:$0xff]
        %v4647 = vld [vmem:[#allocation3 + $0x10a] sm:$0xff]
        %v4648 = vld [vmem:[#allocation3 + $0x112] sm:$0xff]
        %v4649 = vld [vmem:[#allocation3 + $0x122] sm:$0xff]
        %v4650 = vld [vmem:[#allocation3 + $0x12a] sm:$0xff]
        %v4651 = vld [vmem:[#allocation3 + $0x13a] sm:$0xff]
        %v4652 = vld [vmem:[#allocation3 + $0x142] sm:$0xff]
        %v4653 = vld [vmem:[#allocation3 + $0x152] sm:$0xff]
        %v4654 = vld [vmem:[#allocation3 + $0x15a] sm:$0xff]
        %v4655 = vld [vmem:[#allocation3 + $0x16a] sm:$0xff]
        %v4656 = vld [vmem:[#allocation3 + $0x172] sm:$0xff]
        %v4657 = vld [vmem:[#allocation3 + $0x182] sm:$0xff]
        %v4658 = vld [vmem:[#allocation3 + $0x18a] sm:$0xff]
        %v4659 = vld [vmem:[#allocation3 + $0x19a] sm:$0xff]
        %v4660 = vld [vmem:[#allocation3 + $0x1a2] sm:$0xff]
        %4697 = vrot.lane.b32.xlu0 %v4589, 64
        %v4698 = vpop.permute.xlu0 %4697
        %4699 = vrot.lane.b32.xlu0 %v4590, 64
        %v4700 = vpop.permute.xlu0 %4699
        %4701 = vrot.lane.b32.xlu0 %v4591, 64
        %v4702 = vpop.permute.xlu0 %4701
        %4703 = vrot.lane.b32.xlu0 %v4592, 64
        %v4704 = vpop.permute.xlu0 %4703
        %4705 = vrot.lane.b32.xlu0 %v4593, 64
        %v4706 = vpop.permute.xlu0 %4705
        %4707 = vrot.lane.b32.xlu0 %v4594, 64
        %v4708 = vpop.permute.xlu0 %4707
        %4709 = vrot.lane.b32.xlu0 %v4595, 64
        %v4710 = vpop.permute.xlu0 %4709
        %4711 = vrot.lane.b32.xlu0 %v4596, 64
        %v4712 = vpop.permute.xlu0 %4711
        %4713 = vrot.lane.b32.xlu0 %v4597, 64
        %v4714 = vpop.permute.xlu0 %4713
        %4715 = vrot.lane.b32.xlu0 %v4598, 64
        %v4716 = vpop.permute.xlu0 %4715
        %4717 = vrot.lane.b32.xlu0 %v4599, 64
        %v4718 = vpop.permute.xlu0 %4717
        %4719 = vrot.lane.b32.xlu0 %v4600, 64
        %v4720 = vpop.permute.xlu0 %4719
        %4721 = vrot.lane.b32.xlu0 %v4601, 64
        %v4722 = vpop.permute.xlu0 %4721
        %4723 = vrot.lane.b32.xlu0 %v4602, 64
        %v4724 = vpop.permute.xlu0 %4723
        %4725 = vrot.lane.b32.xlu0 %v4603, 64
        %v4726 = vpop.permute.xlu0 %4725
        %4727 = vrot.lane.b32.xlu0 %v4604, 64
        %v4728 = vpop.permute.xlu0 %4727
        %4729 = vrot.lane.b32.xlu0 %v4605, 64
        %v4730 = vpop.permute.xlu0 %4729
        %4731 = vrot.lane.b32.xlu0 %v4606, 64
        %v4732 = vpop.permute.xlu0 %4731
        %4733 = vrot.lane.b32.xlu0 %v4607, 64
        %v4734 = vpop.permute.xlu0 %4733
        %4735 = vrot.lane.b32.xlu0 %v4608, 64
        %v4736 = vpop.permute.xlu0 %4735
        %4737 = vrot.lane.b32.xlu0 %v4609, 64
        %v4738 = vpop.permute.xlu0 %4737
        %4739 = vrot.lane.b32.xlu0 %v4610, 64
        %v4740 = vpop.permute.xlu0 %4739
        %4741 = vrot.lane.b32.xlu0 %v4611, 64
        %v4742 = vpop.permute.xlu0 %4741
        %4743 = vrot.lane.b32.xlu0 %v4612, 64
        %v4744 = vpop.permute.xlu0 %4743
        %4745 = vrot.lane.b32.xlu0 %v4613, 64
        %v4746 = vpop.permute.xlu0 %4745
        %4747 = vrot.lane.b32.xlu0 %v4614, 64
        %v4748 = vpop.permute.xlu0 %4747
        %4749 = vrot.lane.b32.xlu0 %v4615, 64
        %v4750 = vpop.permute.xlu0 %4749
        %4751 = vrot.lane.b32.xlu0 %v4616, 64
        %v4752 = vpop.permute.xlu0 %4751
        %4753 = vrot.lane.b32.xlu0 %v4617, 64
        %v4754 = vpop.permute.xlu0 %4753
        %4755 = vrot.lane.b32.xlu0 %v4618, 64
        %v4756 = vpop.permute.xlu0 %4755
        %4757 = vrot.lane.b32.xlu0 %v4619, 64
        %v4758 = vpop.permute.xlu0 %4757
        %4759 = vrot.lane.b32.xlu0 %v4620, 64
        %v4760 = vpop.permute.xlu0 %4759
        %4761 = vrot.lane.b32.xlu0 %v4621, 64
        %v4762 = vpop.permute.xlu0 %4761
        %4763 = vrot.lane.b32.xlu0 %v4622, 64
        %v4764 = vpop.permute.xlu0 %4763
        %4765 = vrot.lane.b32.xlu0 %v4623, 64
        %v4766 = vpop.permute.xlu0 %4765
        %4767 = vrot.lane.b32.xlu0 %v4624, 64
        %v4768 = vpop.permute.xlu0 %4767
        %v4805 = vsel %vm541, %v4553, %v4698
        %v4806 = vsel %vm541, %v4554, %v4700
        %v4807 = vsel %vm541, %v4555, %v4702
        %v4808 = vsel %vm541, %v4556, %v4704
        %v4809 = vsel %vm541, %v4557, %v4706
        %v4810 = vsel %vm541, %v4558, %v4708
        %v4811 = vsel %vm541, %v4559, %v4710
        %v4812 = vsel %vm541, %v4560, %v4712
        %v4813 = vsel %vm541, %v4561, %v4714
        %v4814 = vsel %vm541, %v4562, %v4716
        %v4815 = vsel %vm541, %v4563, %v4718
        %v4816 = vsel %vm541, %v4564, %v4720
        %v4817 = vsel %vm541, %v4565, %v4722
        %v4818 = vsel %vm541, %v4566, %v4724
        %v4819 = vsel %vm541, %v4567, %v4726
        %v4820 = vsel %vm541, %v4568, %v4728
        %v4821 = vsel %vm541, %v4569, %v4730
        %v4822 = vsel %vm541, %v4570, %v4732
        %v4823 = vsel %vm541, %v4571, %v4734
        %v4824 = vsel %vm541, %v4572, %v4736
        %v4825 = vsel %vm541, %v4573, %v4738
        %v4826 = vsel %vm541, %v4574, %v4740
        %v4827 = vsel %vm541, %v4575, %v4742
        %v4828 = vsel %vm541, %v4576, %v4744
        %v4829 = vsel %vm541, %v4577, %v4746
        %v4830 = vsel %vm541, %v4578, %v4748
        %v4831 = vsel %vm541, %v4579, %v4750
        %v4832 = vsel %vm541, %v4580, %v4752
        %v4833 = vsel %vm541, %v4581, %v4754
        %v4834 = vsel %vm541, %v4582, %v4756
        %v4835 = vsel %vm541, %v4583, %v4758
        %v4836 = vsel %vm541, %v4584, %v4760
        %v4837 = vsel %vm541, %v4585, %v4762
        %v4838 = vsel %vm541, %v4586, %v4764
        %v4839 = vsel %vm541, %v4587, %v4766
        %v4840 = vsel %vm541, %v4588, %v4768
        %v4841 = vpack.c.bf16 %v4806, %v4805
        %v4842 = vpack.c.bf16 %v4626, %v4625
        %v4843 = vpack.c.bf16 %v4808, %v4807
        %v4844 = vpack.c.bf16 %v4628, %v4627
        %v4845 = vpack.c.bf16 %v4810, %v4809
        %v4846 = vpack.c.bf16 %v4630, %v4629
        %v4847 = vpack.c.bf16 %v4812, %v4811
        %v4848 = vpack.c.bf16 %v4632, %v4631
        %v4849 = vpack.c.bf16 %v4814, %v4813
        %v4850 = vpack.c.bf16 %v4634, %v4633
        %v4851 = vpack.c.bf16 %v4816, %v4815
        %v4852 = vpack.c.bf16 %v4636, %v4635
        %v4853 = vpack.c.bf16 %v4818, %v4817
        %v4854 = vpack.c.bf16 %v4638, %v4637
        %v4855 = vpack.c.bf16 %v4820, %v4819
        %v4856 = vpack.c.bf16 %v4640, %v4639
        %v4857 = vpack.c.bf16 %v4822, %v4821
        %v4858 = vpack.c.bf16 %v4642, %v4641
        %v4859 = vpack.c.bf16 %v4824, %v4823
        %v4860 = vpack.c.bf16 %v4644, %v4643
        %v4861 = vpack.c.bf16 %v4826, %v4825
        %v4862 = vpack.c.bf16 %v4646, %v4645
        %v4863 = vpack.c.bf16 %v4828, %v4827
        %v4864 = vpack.c.bf16 %v4648, %v4647
        %v4865 = vpack.c.bf16 %v4830, %v4829
        %v4866 = vpack.c.bf16 %v4650, %v4649
        %v4867 = vpack.c.bf16 %v4832, %v4831
        %v4868 = vpack.c.bf16 %v4652, %v4651
        %v4869 = vpack.c.bf16 %v4834, %v4833
        %v4870 = vpack.c.bf16 %v4654, %v4653
        %v4871 = vpack.c.bf16 %v4836, %v4835
        %v4872 = vpack.c.bf16 %v4656, %v4655
        %v4873 = vpack.c.bf16 %v4838, %v4837
        %v4874 = vpack.c.bf16 %v4658, %v4657
        %v4875 = vpack.c.bf16 %v4840, %v4839
        %v4876 = vpack.c.bf16 %v4660, %v4659
        %v4877 = vld [vmem:[#allocation16] sm:$0xf]
        %v4878 = vld [vmem:[#allocation16 + $0x4] sm:$0xf]
        %v4879 = vld [vmem:[#allocation16 + $0x8] sm:$0xf]
        %v4880 = vld [vmem:[#allocation16 + $0xc] sm:$0xf]
        %v4881 = vld [vmem:[#allocation16 + $0x10] sm:$0xf]
        %v4882 = vld [vmem:[#allocation16 + $0x14] sm:$0xf]
        %v4883 = vld [vmem:[#allocation16 + $0x18] sm:$0xf]
        %v4884 = vld [vmem:[#allocation16 + $0x1c] sm:$0xf]
        %v4885 = vld [vmem:[#allocation16 + $0x20] sm:$0xf]
        %v4886 = vld [vmem:[#allocation16 + $0x24] sm:$0xf]
        %v4887 = vld [vmem:[#allocation16 + $0x28] sm:$0xf]
        %v4888 = vld [vmem:[#allocation16 + $0x2c] sm:$0xf]
        %v4889 = vld [vmem:[#allocation16 + $0x30] sm:$0xf]
        %v4890 = vld [vmem:[#allocation16 + $0x34] sm:$0xf]
        %v4891 = vld [vmem:[#allocation16 + $0x38] sm:$0xf]
        %v4892 = vld [vmem:[#allocation16 + $0x3c] sm:$0xf]
        %v4893 = vld [vmem:[#allocation16 + $0x40] sm:$0xf]
        %v4894 = vld [vmem:[#allocation16 + $0x44] sm:$0xf]
        %v4895 = vld [vmem:[#allocation16 + $0x48] sm:$0xf]
        %v4896 = vld [vmem:[#allocation16 + $0x4c] sm:$0xf]
        %v4897 = vld [vmem:[#allocation16 + $0x50] sm:$0xf]
        %v4898 = vld [vmem:[#allocation16 + $0x54] sm:$0xf]
        %v4899 = vld [vmem:[#allocation16 + $0x58] sm:$0xf]
        %v4900 = vld [vmem:[#allocation16 + $0x5c] sm:$0xf]
        %s4901 = scalar_lea.vmem [#allocation16], 96
        %v4902 = vld [vmem:[%s4901] sm:$0xf]
        %v4903 = vld [vmem:[%s4901 + $0x4] sm:$0xf]
        %v4904 = vld [vmem:[%s4901 + $0x8] sm:$0xf]
        %v4905 = vld [vmem:[%s4901 + $0xc] sm:$0xf]
        %v4906 = vld [vmem:[%s4901 + $0x10] sm:$0xf]
        %v4907 = vld [vmem:[%s4901 + $0x14] sm:$0xf]
        %v4908 = vld [vmem:[%s4901 + $0x18] sm:$0xf]
        %v4909 = vld [vmem:[%s4901 + $0x1c] sm:$0xf]
        %v4910 = vld [vmem:[%s4901 + $0x20] sm:$0xf]
        %v4911 = vld [vmem:[%s4901 + $0x24] sm:$0xf]
        %v4912 = vld [vmem:[%s4901 + $0x28] sm:$0xf]
        %v4913 = vld [vmem:[%s4901 + $0x2c] sm:$0xf]
        %v4914 = vld [vmem:[%s4901 + $0x30] sm:$0xf]
        %v4915 = vld [vmem:[%s4901 + $0x34] sm:$0xf]
        %v4916 = vld [vmem:[%s4901 + $0x38] sm:$0xf]
        %v4917 = vld [vmem:[%s4901 + $0x3c] sm:$0xf]
        %v4918 = vld [vmem:[%s4901 + $0x40] sm:$0xf]
        %v4919 = vld [vmem:[%s4901 + $0x44] sm:$0xf]
        %v4920 = vld [vmem:[%s4901 + $0x48] sm:$0xf]
        %v4921 = vld [vmem:[%s4901 + $0x4c] sm:$0xf]
        %v4922 = vld [vmem:[%s4901 + $0x50] sm:$0xf]
        %v4923 = vld [vmem:[%s4901 + $0x54] sm:$0xf]
        %v4924 = vld [vmem:[%s4901 + $0x58] sm:$0xf]
        %v4925 = vld [vmem:[%s4901 + $0x5c] sm:$0xf]
        %v4950 = vunpack.c.l.b16 %v4902
        %v4951 = vunpack.c.l.b16 %v4903
        %v4952 = vunpack.c.l.b16 %v4904
        %v4953 = vunpack.c.l.b16 %v4905
        %v4954 = vunpack.c.l.b16 %v4906
        %v4955 = vunpack.c.l.b16 %v4907
        %v4956 = vunpack.c.l.b16 %v4908
        %v4957 = vunpack.c.l.b16 %v4909
        %v4958 = vunpack.c.l.b16 %v4910
        %v4959 = vunpack.c.l.b16 %v4911
        %v4960 = vunpack.c.l.b16 %v4912
        %v4961 = vunpack.c.l.b16 %v4913
        %v4962 = vunpack.c.l.b16 %v4914
        %v4963 = vunpack.c.l.b16 %v4915
        %v4964 = vunpack.c.l.b16 %v4916
        %v4965 = vunpack.c.l.b16 %v4917
        %v4966 = vunpack.c.l.b16 %v4918
        %v4967 = vunpack.c.l.b16 %v4919
        %v4968 = vunpack.c.l.b16 %v4920
        %v4969 = vunpack.c.l.b16 %v4921
        %v4970 = vunpack.c.l.b16 %v4922
        %v4971 = vunpack.c.l.b16 %v4923
        %v4972 = vunpack.c.l.b16 %v4924
        %v4973 = vunpack.c.l.b16 %v4925
        %v4974 = vpack.c.b16 %v4951, %v4950
        %v4975 = vpack.c.b16 %v4953, %v4952
        %v4976 = vpack.c.b16 %v4955, %v4954
        %v4977 = vpack.c.b16 %v4957, %v4956
        %v4978 = vpack.c.b16 %v4959, %v4958
        %v4979 = vpack.c.b16 %v4961, %v4960
        %v4980 = vpack.c.b16 %v4963, %v4962
        %v4981 = vpack.c.b16 %v4965, %v4964
        %v4982 = vpack.c.b16 %v4967, %v4966
        %v4983 = vpack.c.b16 %v4969, %v4968
        %v4984 = vpack.c.b16 %v4971, %v4970
        %v4985 = vpack.c.b16 %v4973, %v4972
        %v4999 = vsel %vm541, %v4844, 0
        %v5002 = vsel %vm541, %v4846, 0
        %v5005 = vsel %vm541, %v4848, 0
        %v5008 = vsel %vm541, %v4850, 0
        %v5011 = vsel %vm541, %v4852, 0
        %v5014 = vsel %vm541, %v4854, 0
        %v5017 = vsel %vm541, %v4856, 0
        %v5020 = vsel %vm541, %v4858, 0
        %v5023 = vsel %vm541, %v4860, 0
        %v5026 = vsel %vm541, %v4862, 0
        %v5029 = vsel %vm541, %v4864, 0
        %v5032 = vsel %vm541, %v4866, 0
        %v5035 = vsel %vm541, %v4868, 0
        %v5038 = vsel %vm541, %v4870, 0
        %v5041 = vsel %vm541, %v4872, 0
        %v5044 = vsel %vm541, %v4874, 0
        %5046 = vmatprep.subr.bf16.mxu0 0
        %5047 = vmatpush1.bf16.msra.mxu0 %v4974
        %5048 = vmatprep.subr.bf16.mxu0 0
        %5049 = vmatpush1.bf16.msra.mxu0 %v4975
        %5050 = vmatprep.subr.bf16.mxu0 0
        %5051 = vmatpush1.bf16.msra.mxu0 %v4976
        %5052 = vmatprep.subr.bf16.mxu0 0
        %5053 = vmatpush1.bf16.msra.mxu0 %v4977
        %5054 = vmatprep.subr.bf16.mxu0 0
        %5055 = vmatpush1.bf16.msra.mxu0 %v4978
        %5056 = vmatprep.subr.bf16.mxu0 0
        %5057 = vmatpush1.bf16.msra.mxu0 %v4979
        %5058 = vmatprep.subr.bf16.mxu0 0
        %5059 = vmatpush1.bf16.msra.mxu0 %v4980
        %5060 = vmatprep.subr.bf16.mxu0 0
        %5061 = vmatpush1.bf16.msra.mxu0 %v4981
        %5062 = vmatprep.subr.bf16.mxu0 0
        %5063 = vmatpush1.bf16.msra.mxu0 %v4982
        %5064 = vmatprep.subr.bf16.mxu0 0
        %5065 = vmatpush1.bf16.msra.mxu0 %v4983
        %5066 = vmatprep.subr.bf16.mxu0 0
        %5067 = vmatpush1.bf16.msra.mxu0 %v4984
        %5068 = vmatprep.subr.bf16.mxu0 0
        %5069 = vmatpush1.bf16.msra.mxu0 %v4985
        %5070 = vmatprep.subr.bf16.mxu0 0
        %5071 = vmatpush1.bf16.msra.mxu0 0
        %5072 = vmatprep.subr.bf16.mxu0 0
        %5073 = vmatpush1.bf16.msra.mxu0 0
        %5074 = vmatprep.subr.bf16.mxu0 0
        %5075 = vmatpush1.bf16.msra.mxu0 0
        %5076 = vmatprep.subr.bf16.mxu0 0
        %5077 = vmatpush1.bf16.msra.mxu0 0
        %5078 = vmatprep.mubr.bf16.mxu0 %v4999
        %5079 = vmatmul.mubr.bf16.gmra.mrb[0].mxu0 %v4843
        %v5080 = vpop.f32.mrb[0].mxu0
        %v5081 = vadd.f32 0.0, %v5080
        %v5082 = vpop.f32.mrb[0].mxu0
        %v5083 = vpop.f32.mrb[0].mxu0
        %v5084 = vadd.f32 0.0, %v5083
        %v5085 = vpop.f32.mrb[0].mxu0
        %5086 = vmatprep.mubr.bf16.mxu0 %v5002
        %5087 = vmatmul.mubr.bf16.gmra.mrb[0].mxu0 %v4845
        %v5088 = vpop.f32.mrb[0].mxu0
        %v5089 = vadd.f32 0.0, %v5088
        %v5090 = vpop.f32.mrb[0].mxu0
        %v5091 = vpop.f32.mrb[0].mxu0
        %v5092 = vadd.f32 0.0, %v5091
        %v5093 = vpop.f32.mrb[0].mxu0
        %5094 = vmatprep.mubr.bf16.mxu0 %v5005
        %5095 = vmatmul.mubr.bf16.gmra.mrb[0].mxu0 %v4847
        %v5096 = vpop.f32.mrb[0].mxu0
        %v5097 = vadd.f32 0.0, %v5096
        %v5098 = vpop.f32.mrb[0].mxu0
        %v5099 = vpop.f32.mrb[0].mxu0
        %v5100 = vadd.f32 0.0, %v5099
        %v5101 = vpop.f32.mrb[0].mxu0
        %5102 = vmatprep.mubr.bf16.mxu0 %v5008
        %5103 = vmatmul.mubr.bf16.gmra.mrb[0].mxu0 %v4849
        %v5104 = vpop.f32.mrb[0].mxu0
        %v5105 = vadd.f32 0.0, %v5104
        %v5106 = vpop.f32.mrb[0].mxu0
        %v5107 = vpop.f32.mrb[0].mxu0
        %v5108 = vadd.f32 0.0, %v5107
        %v5109 = vpop.f32.mrb[0].mxu0
        %5110 = vmatprep.mubr.bf16.mxu0 %v5011
        %5111 = vmatmul.mubr.bf16.gmra.mrb[0].mxu0 %v4851
        %v5112 = vpop.f32.mrb[0].mxu0
        %v5113 = vadd.f32 0.0, %v5112
        %v5114 = vpop.f32.mrb[0].mxu0
        %v5115 = vpop.f32.mrb[0].mxu0
        %v5116 = vadd.f32 0.0, %v5115
        %v5117 = vpop.f32.mrb[0].mxu0
        %5118 = vmatprep.mubr.bf16.mxu0 %v5014
        %5119 = vmatmul.mubr.bf16.gmra.mrb[0].mxu0 %v4853
        %v5120 = vpop.f32.mrb[0].mxu0
        %v5121 = vadd.f32 0.0, %v5120
        %v5122 = vpop.f32.mrb[0].mxu0
        %v5123 = vpop.f32.mrb[0].mxu0
        %v5124 = vadd.f32 0.0, %v5123
        %v5125 = vpop.f32.mrb[0].mxu0
        %5126 = vmatprep.mubr.bf16.mxu0 %v5017
        %5127 = vmatmul.mubr.bf16.gmra.mrb[0].mxu0 %v4855
        %v5128 = vpop.f32.mrb[0].mxu0
        %v5129 = vadd.f32 0.0, %v5128
        %v5130 = vpop.f32.mrb[0].mxu0
        %v5131 = vpop.f32.mrb[0].mxu0
        %v5132 = vadd.f32 0.0, %v5131
        %v5133 = vpop.f32.mrb[0].mxu0
        %5134 = vmatprep.mubr.bf16.mxu0 %v5020
        %5135 = vmatmul.mubr.bf16.gmra.mrb[0].mxu0 %v4857
        %v5136 = vpop.f32.mrb[0].mxu0
        %v5137 = vadd.f32 0.0, %v5136
        %v5138 = vpop.f32.mrb[0].mxu0
        %v5139 = vpop.f32.mrb[0].mxu0
        %v5140 = vadd.f32 0.0, %v5139
        %v5141 = vpop.f32.mrb[0].mxu0
        %5142 = vmatprep.mubr.bf16.mxu0 %v5023
        %5143 = vmatmul.mubr.bf16.gmra.mrb[0].mxu0 %v4859
        %v5144 = vpop.f32.mrb[0].mxu0
        %v5145 = vadd.f32 0.0, %v5144
        %v5146 = vpop.f32.mrb[0].mxu0
        %v5147 = vpop.f32.mrb[0].mxu0
        %v5148 = vadd.f32 0.0, %v5147
        %v5149 = vpop.f32.mrb[0].mxu0
        %5150 = vmatprep.mubr.bf16.mxu0 %v5026
        %5151 = vmatmul.mubr.bf16.gmra.mrb[0].mxu0 %v4861
        %v5152 = vpop.f32.mrb[0].mxu0
        %v5153 = vadd.f32 0.0, %v5152
        %v5154 = vpop.f32.mrb[0].mxu0
        %v5155 = vpop.f32.mrb[0].mxu0
        %v5156 = vadd.f32 0.0, %v5155
        %v5157 = vpop.f32.mrb[0].mxu0
        %5158 = vmatprep.mubr.bf16.mxu0 %v5029
        %5159 = vmatmul.mubr.bf16.gmra.mrb[0].mxu0 %v4863
        %v5160 = vpop.f32.mrb[0].mxu0
        %v5161 = vadd.f32 0.0, %v5160
        %v5162 = vpop.f32.mrb[0].mxu0
        %v5163 = vpop.f32.mrb[0].mxu0
        %v5164 = vadd.f32 0.0, %v5163
        %v5165 = vpop.f32.mrb[0].mxu0
        %5166 = vmatprep.mubr.bf16.mxu0 %v5032
        %5167 = vmatmul.mubr.bf16.gmra.mrb[0].mxu0 %v4865
        %v5168 = vpop.f32.mrb[0].mxu0
        %v5169 = vadd.f32 0.0, %v5168
        %v5170 = vpop.f32.mrb[0].mxu0
        %v5171 = vpop.f32.mrb[0].mxu0
        %v5172 = vadd.f32 0.0, %v5171
        %v5173 = vpop.f32.mrb[0].mxu0
        %5174 = vmatprep.mubr.bf16.mxu0 %v5035
        %5175 = vmatmul.mubr.bf16.gmra.mrb[0].mxu0 %v4867
        %v5176 = vpop.f32.mrb[0].mxu0
        %v5177 = vadd.f32 0.0, %v5176
        %v5178 = vpop.f32.mrb[0].mxu0
        %v5179 = vpop.f32.mrb[0].mxu0
        %v5180 = vadd.f32 0.0, %v5179
        %v5181 = vpop.f32.mrb[0].mxu0
        %5182 = vmatprep.mubr.bf16.mxu0 %v5038
        %5183 = vmatmul.mubr.bf16.gmra.mrb[0].mxu0 %v4869
        %v5184 = vpop.f32.mrb[0].mxu0
        %v5185 = vadd.f32 0.0, %v5184
        %v5186 = vpop.f32.mrb[0].mxu0
        %v5187 = vpop.f32.mrb[0].mxu0
        %v5188 = vadd.f32 0.0, %v5187
        %v5189 = vpop.f32.mrb[0].mxu0
        %5190 = vmatprep.mubr.bf16.mxu0 %v5041
        %5191 = vmatmul.mubr.bf16.gmra.mrb[0].mxu0 %v4871
        %v5192 = vpop.f32.mrb[0].mxu0
        %v5193 = vadd.f32 0.0, %v5192
        %v5194 = vpop.f32.mrb[0].mxu0
        %v5195 = vpop.f32.mrb[0].mxu0
        %v5196 = vadd.f32 0.0, %v5195
        %v5197 = vpop.f32.mrb[0].mxu0
        %5198 = vmatprep.mubr.bf16.mxu0 %v5044
        %5199 = vmatmul.mubr.bf16.gmra.mrb[0].mxu0 %v4873
        %v5200 = vpop.f32.mrb[0].mxu0
        %v5201 = vadd.f32 0.0, %v5200
        %v5202 = vpop.f32.mrb[0].mxu0
        %v5203 = vpop.f32.mrb[0].mxu0
        %v5204 = vadd.f32 0.0, %v5203
        %v5205 = vpop.f32.mrb[0].mxu0
        %5206 = vdwg.mxu0
        %v5231 = vunpack.c.l.b16 %v4877
        %v5232 = vunpack.c.l.b16 %v4878
        %v5233 = vunpack.c.l.b16 %v4879
        %v5234 = vunpack.c.l.b16 %v4880
        %v5235 = vunpack.c.l.b16 %v4881
        %v5236 = vunpack.c.l.b16 %v4882
        %v5237 = vunpack.c.l.b16 %v4883
        %v5238 = vunpack.c.l.b16 %v4884
        %v5239 = vunpack.c.l.b16 %v4885
        %v5240 = vunpack.c.l.b16 %v4886
        %v5241 = vunpack.c.l.b16 %v4887
        %v5242 = vunpack.c.l.b16 %v4888
        %v5243 = vunpack.c.l.b16 %v4889
        %v5244 = vunpack.c.l.b16 %v4890
        %v5245 = vunpack.c.l.b16 %v4891
        %v5246 = vunpack.c.l.b16 %v4892
        %v5247 = vunpack.c.l.b16 %v4893
        %v5248 = vunpack.c.l.b16 %v4894
        %v5249 = vunpack.c.l.b16 %v4895
        %v5250 = vunpack.c.l.b16 %v4896
        %v5251 = vunpack.c.l.b16 %v4897
        %v5252 = vunpack.c.l.b16 %v4898
        %v5253 = vunpack.c.l.b16 %v4899
        %v5254 = vunpack.c.l.b16 %v4900
        %v5255 = vpack.c.b16 %v5232, %v5231
        %v5256 = vpack.c.b16 %v5234, %v5233
        %v5257 = vpack.c.b16 %v5236, %v5235
        %v5258 = vpack.c.b16 %v5238, %v5237
        %v5259 = vpack.c.b16 %v5240, %v5239
        %v5260 = vpack.c.b16 %v5242, %v5241
        %v5261 = vpack.c.b16 %v5244, %v5243
        %v5262 = vpack.c.b16 %v5246, %v5245
        %v5263 = vpack.c.b16 %v5248, %v5247
        %v5264 = vpack.c.b16 %v5250, %v5249
        %v5265 = vpack.c.b16 %v5252, %v5251
        %v5266 = vpack.c.b16 %v5254, %v5253
        %v5280 = vsel %vm541, %v4842, 0
        %5282 = vmatprep.subr.bf16.mxu0 0
        %5283 = vmatpush1.bf16.msra.mxu0 %v5255
        %5284 = vmatprep.subr.bf16.mxu0 0
        %5285 = vmatpush1.bf16.msra.mxu0 %v5256
        %5286 = vmatprep.subr.bf16.mxu0 0
        %5287 = vmatpush1.bf16.msra.mxu0 %v5257
        %5288 = vmatprep.subr.bf16.mxu0 0
        %5289 = vmatpush1.bf16.msra.mxu0 %v5258
        %5290 = vmatprep.subr.bf16.mxu0 0
        %5291 = vmatpush1.bf16.msra.mxu0 %v5259
        %5292 = vmatprep.subr.bf16.mxu0 0
        %5293 = vmatpush1.bf16.msra.mxu0 %v5260
        %5294 = vmatprep.subr.bf16.mxu0 0
        %5295 = vmatpush1.bf16.msra.mxu0 %v5261
        %5296 = vmatprep.subr.bf16.mxu0 0
        %5297 = vmatpush1.bf16.msra.mxu0 %v5262
        %5298 = vmatprep.subr.bf16.mxu0 0
        %5299 = vmatpush1.bf16.msra.mxu0 %v5263
        %5300 = vmatprep.subr.bf16.mxu0 0
        %5301 = vmatpush1.bf16.msra.mxu0 %v5264
        %5302 = vmatprep.subr.bf16.mxu0 0
        %5303 = vmatpush1.bf16.msra.mxu0 %v5265
        %5304 = vmatprep.subr.bf16.mxu0 0
        %5305 = vmatpush1.bf16.msra.mxu0 %v5266
        %5306 = vmatprep.subr.bf16.mxu0 0
        %5307 = vmatpush1.bf16.msra.mxu0 0
        %5308 = vmatprep.subr.bf16.mxu0 0
        %5309 = vmatpush1.bf16.msra.mxu0 0
        %5310 = vmatprep.subr.bf16.mxu0 0
        %5311 = vmatpush1.bf16.msra.mxu0 0
        %5312 = vmatprep.subr.bf16.mxu0 0
        %5313 = vmatpush1.bf16.msra.mxu0 0
        %5314 = vmatprep.mubr.bf16.mxu0 %v5280
        %5315 = vmatmul.mubr.bf16.gmra.mrb[0].mxu0 %v4841
        %v5316 = vpop.f32.mrb[0].mxu0
        %v5317 = vadd.f32 %v5081, %v5316
        %v5318 = vpop.f32.mrb[0].mxu0
        %v5319 = vpop.f32.mrb[0].mxu0
        %v5320 = vadd.f32 %v5084, %v5319
        %v5321 = vpop.f32.mrb[0].mxu0
        %5322 = vmatprep.mubr.bf16.mxu0 %v4999
        %5323 = vmatmul.mubr.bf16.gmra.mrb[0].mxu0 %v4843
        %v5324 = vpop.f32.mrb[0].mxu0
        %v5325 = vadd.f32 %v5089, %v5324
        %v5326 = vpop.f32.mrb[0].mxu0
        %v5327 = vpop.f32.mrb[0].mxu0
        %v5328 = vadd.f32 %v5092, %v5327
        %v5329 = vpop.f32.mrb[0].mxu0
        %5330 = vmatprep.mubr.bf16.mxu0 %v5002
        %5331 = vmatmul.mubr.bf16.gmra.mrb[0].mxu0 %v4845
        %v5332 = vpop.f32.mrb[0].mxu0
        %v5333 = vadd.f32 %v5097, %v5332
        %v5334 = vpop.f32.mrb[0].mxu0
        %v5335 = vpop.f32.mrb[0].mxu0
        %v5336 = vadd.f32 %v5100, %v5335
        %v5337 = vpop.f32.mrb[0].mxu0
        %5338 = vmatprep.mubr.bf16.mxu0 %v5005
        %5339 = vmatmul.mubr.bf16.gmra.mrb[0].mxu0 %v4847
        %v5340 = vpop.f32.mrb[0].mxu0
        %v5341 = vadd.f32 %v5105, %v5340
        %v5342 = vpop.f32.mrb[0].mxu0
        %v5343 = vpop.f32.mrb[0].mxu0
        %v5344 = vadd.f32 %v5108, %v5343
        %v5345 = vpop.f32.mrb[0].mxu0
        %5346 = vmatprep.mubr.bf16.mxu0 %v5008
        %5347 = vmatmul.mubr.bf16.gmra.mrb[0].mxu0 %v4849
        %v5348 = vpop.f32.mrb[0].mxu0
        %v5349 = vadd.f32 %v5113, %v5348
        %v5350 = vpop.f32.mrb[0].mxu0
        %v5351 = vpop.f32.mrb[0].mxu0
        %v5352 = vadd.f32 %v5116, %v5351
        %v5353 = vpop.f32.mrb[0].mxu0
        %5354 = vmatprep.mubr.bf16.mxu0 %v5011
        %5355 = vmatmul.mubr.bf16.gmra.mrb[0].mxu0 %v4851
        %v5356 = vpop.f32.mrb[0].mxu0
        %v5357 = vadd.f32 %v5121, %v5356
        %v5358 = vpop.f32.mrb[0].mxu0
        %v5359 = vpop.f32.mrb[0].mxu0
        %v5360 = vadd.f32 %v5124, %v5359
        %v5361 = vpop.f32.mrb[0].mxu0
        %5362 = vmatprep.mubr.bf16.mxu0 %v5014
        %5363 = vmatmul.mubr.bf16.gmra.mrb[0].mxu0 %v4853
        %v5364 = vpop.f32.mrb[0].mxu0
        %v5365 = vadd.f32 %v5129, %v5364
        %v5366 = vpop.f32.mrb[0].mxu0
        %v5367 = vpop.f32.mrb[0].mxu0
        %v5368 = vadd.f32 %v5132, %v5367
        %v5369 = vpop.f32.mrb[0].mxu0
        %5370 = vmatprep.mubr.bf16.mxu0 %v5017
        %5371 = vmatmul.mubr.bf16.gmra.mrb[0].mxu0 %v4855
        %v5372 = vpop.f32.mrb[0].mxu0
        %v5373 = vadd.f32 %v5137, %v5372
        %v5374 = vpop.f32.mrb[0].mxu0
        %v5375 = vpop.f32.mrb[0].mxu0
        %v5376 = vadd.f32 %v5140, %v5375
        %v5377 = vpop.f32.mrb[0].mxu0
        %5378 = vmatprep.mubr.bf16.mxu0 %v5020
        %5379 = vmatmul.mubr.bf16.gmra.mrb[0].mxu0 %v4857
        %v5380 = vpop.f32.mrb[0].mxu0
        %v5381 = vadd.f32 %v5145, %v5380
        %v5382 = vpop.f32.mrb[0].mxu0
        %v5383 = vpop.f32.mrb[0].mxu0
        %v5384 = vadd.f32 %v5148, %v5383
        %v5385 = vpop.f32.mrb[0].mxu0
        %5386 = vmatprep.mubr.bf16.mxu0 %v5023
        %5387 = vmatmul.mubr.bf16.gmra.mrb[0].mxu0 %v4859
        %v5388 = vpop.f32.mrb[0].mxu0
        %v5389 = vadd.f32 %v5153, %v5388
        %v5390 = vpop.f32.mrb[0].mxu0
        %v5391 = vpop.f32.mrb[0].mxu0
        %v5392 = vadd.f32 %v5156, %v5391
        %v5393 = vpop.f32.mrb[0].mxu0
        %5394 = vmatprep.mubr.bf16.mxu0 %v5026
        %5395 = vmatmul.mubr.bf16.gmra.mrb[0].mxu0 %v4861
        %v5396 = vpop.f32.mrb[0].mxu0
        %v5397 = vadd.f32 %v5161, %v5396
        %v5398 = vpop.f32.mrb[0].mxu0
        %v5399 = vpop.f32.mrb[0].mxu0
        %v5400 = vadd.f32 %v5164, %v5399
        %v5401 = vpop.f32.mrb[0].mxu0
        %5402 = vmatprep.mubr.bf16.mxu0 %v5029
        %5403 = vmatmul.mubr.bf16.gmra.mrb[0].mxu0 %v4863
        %v5404 = vpop.f32.mrb[0].mxu0
        %v5405 = vadd.f32 %v5169, %v5404
        %v5406 = vpop.f32.mrb[0].mxu0
        %v5407 = vpop.f32.mrb[0].mxu0
        %v5408 = vadd.f32 %v5172, %v5407
        %v5409 = vpop.f32.mrb[0].mxu0
        %5410 = vmatprep.mubr.bf16.mxu0 %v5032
        %5411 = vmatmul.mubr.bf16.gmra.mrb[0].mxu0 %v4865
        %v5412 = vpop.f32.mrb[0].mxu0
        %v5413 = vadd.f32 %v5177, %v5412
        %v5414 = vpop.f32.mrb[0].mxu0
        %v5415 = vpop.f32.mrb[0].mxu0
        %v5416 = vadd.f32 %v5180, %v5415
        %v5417 = vpop.f32.mrb[0].mxu0
        %5418 = vmatprep.mubr.bf16.mxu0 %v5035
        %5419 = vmatmul.mubr.bf16.gmra.mrb[0].mxu0 %v4867
        %v5420 = vpop.f32.mrb[0].mxu0
        %v5421 = vadd.f32 %v5185, %v5420
        %v5422 = vpop.f32.mrb[0].mxu0
        %v5423 = vpop.f32.mrb[0].mxu0
        %v5424 = vadd.f32 %v5188, %v5423
        %v5425 = vpop.f32.mrb[0].mxu0
        %5426 = vmatprep.mubr.bf16.mxu0 %v5038
        %5427 = vmatmul.mubr.bf16.gmra.mrb[0].mxu0 %v4869
        %v5428 = vpop.f32.mrb[0].mxu0
        %v5429 = vadd.f32 %v5193, %v5428
        %v5430 = vpop.f32.mrb[0].mxu0
        %v5431 = vpop.f32.mrb[0].mxu0
        %v5432 = vadd.f32 %v5196, %v5431
        %v5433 = vpop.f32.mrb[0].mxu0
        %5434 = vmatprep.mubr.bf16.mxu0 %v5041
        %5435 = vmatmul.mubr.bf16.gmra.mrb[0].mxu0 %v4871
        %v5436 = vpop.f32.mrb[0].mxu0
        %v5437 = vadd.f32 %v5201, %v5436
        %v5438 = vpop.f32.mrb[0].mxu0
        %v5439 = vpop.f32.mrb[0].mxu0
        %v5440 = vadd.f32 %v5204, %v5439
        %v5441 = vpop.f32.mrb[0].mxu0
        %5442 = vdwg.mxu0
        %s5443 = scalar_lea.vmem [#allocation16], 192
        %v5444 = vld [vmem:[%s5443] sm:$0xf]
        %v5445 = vld [vmem:[%s5443 + $0x4] sm:$0xf]
        %v5446 = vld [vmem:[%s5443 + $0x8] sm:$0xf]
        %v5447 = vld [vmem:[%s5443 + $0xc] sm:$0xf]
        %v5448 = vld [vmem:[%s5443 + $0x10] sm:$0xf]
        %v5449 = vld [vmem:[%s5443 + $0x14] sm:$0xf]
        %v5450 = vld [vmem:[%s5443 + $0x18] sm:$0xf]
        %v5451 = vld [vmem:[%s5443 + $0x1c] sm:$0xf]
        %v5452 = vld [vmem:[%s5443 + $0x20] sm:$0xf]
        %v5453 = vld [vmem:[%s5443 + $0x24] sm:$0xf]
        %v5454 = vld [vmem:[%s5443 + $0x28] sm:$0xf]
        %v5455 = vld [vmem:[%s5443 + $0x2c] sm:$0xf]
        %v5456 = vld [vmem:[%s5443 + $0x30] sm:$0xf]
        %v5457 = vld [vmem:[%s5443 + $0x34] sm:$0xf]
        %v5458 = vld [vmem:[%s5443 + $0x38] sm:$0xf]
        %v5459 = vld [vmem:[%s5443 + $0x3c] sm:$0xf]
        %v5460 = vld [vmem:[%s5443 + $0x40] sm:$0xf]
        %v5461 = vld [vmem:[%s5443 + $0x44] sm:$0xf]
        %v5462 = vld [vmem:[%s5443 + $0x48] sm:$0xf]
        %v5463 = vld [vmem:[%s5443 + $0x4c] sm:$0xf]
        %v5464 = vld [vmem:[%s5443 + $0x50] sm:$0xf]
        %v5465 = vld [vmem:[%s5443 + $0x54] sm:$0xf]
        %v5466 = vld [vmem:[%s5443 + $0x58] sm:$0xf]
        %v5467 = vld [vmem:[%s5443 + $0x5c] sm:$0xf]
        %v5492 = vunpack.c.l.b16 %v5444
        %v5493 = vunpack.c.l.b16 %v5445
        %v5494 = vunpack.c.l.b16 %v5446
        %v5495 = vunpack.c.l.b16 %v5447
        %v5496 = vunpack.c.l.b16 %v5448
        %v5497 = vunpack.c.l.b16 %v5449
        %v5498 = vunpack.c.l.b16 %v5450
        %v5499 = vunpack.c.l.b16 %v5451
        %v5500 = vunpack.c.l.b16 %v5452
        %v5501 = vunpack.c.l.b16 %v5453
        %v5502 = vunpack.c.l.b16 %v5454
        %v5503 = vunpack.c.l.b16 %v5455
        %v5504 = vunpack.c.l.b16 %v5456
        %v5505 = vunpack.c.l.b16 %v5457
        %v5506 = vunpack.c.l.b16 %v5458
        %v5507 = vunpack.c.l.b16 %v5459
        %v5508 = vunpack.c.l.b16 %v5460
        %v5509 = vunpack.c.l.b16 %v5461
        %v5510 = vunpack.c.l.b16 %v5462
        %v5511 = vunpack.c.l.b16 %v5463
        %v5512 = vunpack.c.l.b16 %v5464
        %v5513 = vunpack.c.l.b16 %v5465
        %v5514 = vunpack.c.l.b16 %v5466
        %v5515 = vunpack.c.l.b16 %v5467
        %v5516 = vpack.c.b16 %v5493, %v5492
        %v5517 = vpack.c.b16 %v5495, %v5494
        %v5518 = vpack.c.b16 %v5497, %v5496
        %v5519 = vpack.c.b16 %v5499, %v5498
        %v5520 = vpack.c.b16 %v5501, %v5500
        %v5521 = vpack.c.b16 %v5503, %v5502
        %v5522 = vpack.c.b16 %v5505, %v5504
        %v5523 = vpack.c.b16 %v5507, %v5506
        %v5524 = vpack.c.b16 %v5509, %v5508
        %v5525 = vpack.c.b16 %v5511, %v5510
        %v5526 = vpack.c.b16 %v5513, %v5512
        %v5527 = vpack.c.b16 %v5515, %v5514
        %v5541 = vsel %vm541, %v4876, 0
        %5543 = vmatprep.subr.bf16.mxu0 0
        %5544 = vmatpush1.bf16.msra.mxu0 %v5516
        %5545 = vmatprep.subr.bf16.mxu0 0
        %5546 = vmatpush1.bf16.msra.mxu0 %v5517
        %5547 = vmatprep.subr.bf16.mxu0 0
        %5548 = vmatpush1.bf16.msra.mxu0 %v5518
        %5549 = vmatprep.subr.bf16.mxu0 0
        %5550 = vmatpush1.bf16.msra.mxu0 %v5519
        %5551 = vmatprep.subr.bf16.mxu0 0
        %5552 = vmatpush1.bf16.msra.mxu0 %v5520
        %5553 = vmatprep.subr.bf16.mxu0 0
        %5554 = vmatpush1.bf16.msra.mxu0 %v5521
        %5555 = vmatprep.subr.bf16.mxu0 0
        %5556 = vmatpush1.bf16.msra.mxu0 %v5522
        %5557 = vmatprep.subr.bf16.mxu0 0
        %5558 = vmatpush1.bf16.msra.mxu0 %v5523
        %5559 = vmatprep.subr.bf16.mxu0 0
        %5560 = vmatpush1.bf16.msra.mxu0 %v5524
        %5561 = vmatprep.subr.bf16.mxu0 0
        %5562 = vmatpush1.bf16.msra.mxu0 %v5525
        %5563 = vmatprep.subr.bf16.mxu0 0
        %5564 = vmatpush1.bf16.msra.mxu0 %v5526
        %5565 = vmatprep.subr.bf16.mxu0 0
        %5566 = vmatpush1.bf16.msra.mxu0 %v5527
        %5567 = vmatprep.subr.bf16.mxu0 0
        %5568 = vmatpush1.bf16.msra.mxu0 0
        %5569 = vmatprep.subr.bf16.mxu0 0
        %5570 = vmatpush1.bf16.msra.mxu0 0
        %5571 = vmatprep.subr.bf16.mxu0 0
        %5572 = vmatpush1.bf16.msra.mxu0 0
        %5573 = vmatprep.subr.bf16.mxu0 0
        %5574 = vmatpush1.bf16.msra.mxu0 0
        %5575 = vmatprep.mubr.bf16.mxu0 %v5002
        %5576 = vmatmul.mubr.bf16.gmra.mrb[0].mxu0 %v4845
        %v5577 = vpop.f32.mrb[0].mxu0
        %v5578 = vadd.f32 0.0, %v5577
        %v5579 = vpop.f32.mrb[0].mxu0
        %v5580 = vpop.f32.mrb[0].mxu0
        %v5581 = vadd.f32 0.0, %v5580
        %v5582 = vpop.f32.mrb[0].mxu0
        %5583 = vmatprep.mubr.bf16.mxu0 %v5005
        %5584 = vmatmul.mubr.bf16.gmra.mrb[0].mxu0 %v4847
        %v5585 = vpop.f32.mrb[0].mxu0
        %v5586 = vadd.f32 0.0, %v5585
        %v5587 = vpop.f32.mrb[0].mxu0
        %v5588 = vpop.f32.mrb[0].mxu0
        %v5589 = vadd.f32 0.0, %v5588
        %v5590 = vpop.f32.mrb[0].mxu0
        %5591 = vmatprep.mubr.bf16.mxu0 %v5008
        %5592 = vmatmul.mubr.bf16.gmra.mrb[0].mxu0 %v4849
        %v5593 = vpop.f32.mrb[0].mxu0
        %v5594 = vadd.f32 0.0, %v5593
        %v5595 = vpop.f32.mrb[0].mxu0
        %v5596 = vpop.f32.mrb[0].mxu0
        %v5597 = vadd.f32 0.0, %v5596
        %v5598 = vpop.f32.mrb[0].mxu0
        %5599 = vmatprep.mubr.bf16.mxu0 %v5011
        %5600 = vmatmul.mubr.bf16.gmra.mrb[0].mxu0 %v4851
        %v5601 = vpop.f32.mrb[0].mxu0
        %v5602 = vadd.f32 0.0, %v5601
        %v5603 = vpop.f32.mrb[0].mxu0
        %v5604 = vpop.f32.mrb[0].mxu0
        %v5605 = vadd.f32 0.0, %v5604
        %v5606 = vpop.f32.mrb[0].mxu0
        %5607 = vmatprep.mubr.bf16.mxu0 %v5014
        %5608 = vmatmul.mubr.bf16.gmra.mrb[0].mxu0 %v4853
        %v5609 = vpop.f32.mrb[0].mxu0
        %v5610 = vadd.f32 0.0, %v5609
        %v5611 = vpop.f32.mrb[0].mxu0
        %v5612 = vpop.f32.mrb[0].mxu0
        %v5613 = vadd.f32 0.0, %v5612
        %v5614 = vpop.f32.mrb[0].mxu0
        %5615 = vmatprep.mubr.bf16.mxu0 %v5017
        %5616 = vmatmul.mubr.bf16.gmra.mrb[0].mxu0 %v4855
        %v5617 = vpop.f32.mrb[0].mxu0
        %v5618 = vadd.f32 0.0, %v5617
        %v5619 = vpop.f32.mrb[0].mxu0
        %v5620 = vpop.f32.mrb[0].mxu0
        %v5621 = vadd.f32 0.0, %v5620
        %v5622 = vpop.f32.mrb[0].mxu0
        %5623 = vmatprep.mubr.bf16.mxu0 %v5020
        %5624 = vmatmul.mubr.bf16.gmra.mrb[0].mxu0 %v4857
        %v5625 = vpop.f32.mrb[0].mxu0
        %v5626 = vadd.f32 0.0, %v5625
        %v5627 = vpop.f32.mrb[0].mxu0
        %v5628 = vpop.f32.mrb[0].mxu0
        %v5629 = vadd.f32 0.0, %v5628
        %v5630 = vpop.f32.mrb[0].mxu0
        %5631 = vmatprep.mubr.bf16.mxu0 %v5023
        %5632 = vmatmul.mubr.bf16.gmra.mrb[0].mxu0 %v4859
        %v5633 = vpop.f32.mrb[0].mxu0
        %v5634 = vadd.f32 0.0, %v5633
        %v5635 = vpop.f32.mrb[0].mxu0
        %v5636 = vpop.f32.mrb[0].mxu0
        %v5637 = vadd.f32 0.0, %v5636
        %v5638 = vpop.f32.mrb[0].mxu0
        %5639 = vmatprep.mubr.bf16.mxu0 %v5026
        %5640 = vmatmul.mubr.bf16.gmra.mrb[0].mxu0 %v4861
        %v5641 = vpop.f32.mrb[0].mxu0
        %v5642 = vadd.f32 0.0, %v5641
        %v5643 = vpop.f32.mrb[0].mxu0
        %v5644 = vpop.f32.mrb[0].mxu0
        %v5645 = vadd.f32 0.0, %v5644
        %v5646 = vpop.f32.mrb[0].mxu0
        %5647 = vmatprep.mubr.bf16.mxu0 %v5029
        %5648 = vmatmul.mubr.bf16.gmra.mrb[0].mxu0 %v4863
        %v5649 = vpop.f32.mrb[0].mxu0
        %v5650 = vadd.f32 0.0, %v5649
        %v5651 = vpop.f32.mrb[0].mxu0
        %v5652 = vpop.f32.mrb[0].mxu0
        %v5653 = vadd.f32 0.0, %v5652
        %v5654 = vpop.f32.mrb[0].mxu0
        %5655 = vmatprep.mubr.bf16.mxu0 %v5032
        %5656 = vmatmul.mubr.bf16.gmra.mrb[0].mxu0 %v4865
        %v5657 = vpop.f32.mrb[0].mxu0
        %v5658 = vadd.f32 0.0, %v5657
        %v5659 = vpop.f32.mrb[0].mxu0
        %v5660 = vpop.f32.mrb[0].mxu0
        %v5661 = vadd.f32 0.0, %v5660
        %v5662 = vpop.f32.mrb[0].mxu0
        %5663 = vmatprep.mubr.bf16.mxu0 %v5035
        %5664 = vmatmul.mubr.bf16.gmra.mrb[0].mxu0 %v4867
        %v5665 = vpop.f32.mrb[0].mxu0
        %v5666 = vadd.f32 0.0, %v5665
        %v5667 = vpop.f32.mrb[0].mxu0
        %v5668 = vpop.f32.mrb[0].mxu0
        %v5669 = vadd.f32 0.0, %v5668
        %v5670 = vpop.f32.mrb[0].mxu0
        %5671 = vmatprep.mubr.bf16.mxu0 %v5038
        %5672 = vmatmul.mubr.bf16.gmra.mrb[0].mxu0 %v4869
        %v5673 = vpop.f32.mrb[0].mxu0
        %v5674 = vadd.f32 0.0, %v5673
        %v5675 = vpop.f32.mrb[0].mxu0
        %v5676 = vpop.f32.mrb[0].mxu0
        %v5677 = vadd.f32 0.0, %v5676
        %v5678 = vpop.f32.mrb[0].mxu0
        %5679 = vmatprep.mubr.bf16.mxu0 %v5041
        %5680 = vmatmul.mubr.bf16.gmra.mrb[0].mxu0 %v4871
        %v5681 = vpop.f32.mrb[0].mxu0
        %v5682 = vadd.f32 0.0, %v5681
        %v5683 = vpop.f32.mrb[0].mxu0
        %v5684 = vpop.f32.mrb[0].mxu0
        %v5685 = vadd.f32 0.0, %v5684
        %v5686 = vpop.f32.mrb[0].mxu0
        %5687 = vmatprep.mubr.bf16.mxu0 %v5044
        %5688 = vmatmul.mubr.bf16.gmra.mrb[0].mxu0 %v4873
        %v5689 = vpop.f32.mrb[0].mxu0
        %v5690 = vadd.f32 0.0, %v5689
        %v5691 = vpop.f32.mrb[0].mxu0
        %v5692 = vpop.f32.mrb[0].mxu0
        %v5693 = vadd.f32 0.0, %v5692
        %v5694 = vpop.f32.mrb[0].mxu0
        %5695 = vmatprep.mubr.bf16.mxu0 %v5541
        %5696 = vmatmul.mubr.bf16.gmra.mrb[0].mxu0 %v4875
        %v5697 = vpop.f32.mrb[0].mxu0
        %v5698 = vadd.f32 0.0, %v5697
        %v5699 = vpop.f32.mrb[0].mxu0
        %v5700 = vpop.f32.mrb[0].mxu0
        %v5701 = vadd.f32 0.0, %v5700
        %v5702 = vpop.f32.mrb[0].mxu0
        %5703 = vdwg.mxu0
        %v5704 = vadd.f32 %v5317, %v5578
        %v5705 = vadd.f32 %v5320, %v5581
        %v5706 = vadd.f32 %v5325, %v5586
        %v5707 = vadd.f32 %v5328, %v5589
        %v5708 = vadd.f32 %v5333, %v5594
        %v5709 = vadd.f32 %v5336, %v5597
        %v5710 = vadd.f32 %v5341, %v5602
        %v5711 = vadd.f32 %v5344, %v5605
        %v5712 = vadd.f32 %v5349, %v5610
        %v5713 = vadd.f32 %v5352, %v5613
        %v5714 = vadd.f32 %v5357, %v5618
        %v5715 = vadd.f32 %v5360, %v5621
        %v5716 = vadd.f32 %v5365, %v5626
        %v5717 = vadd.f32 %v5368, %v5629
        %v5718 = vadd.f32 %v5373, %v5634
        %v5719 = vadd.f32 %v5376, %v5637
        %v5720 = vadd.f32 %v5381, %v5642
        %v5721 = vadd.f32 %v5384, %v5645
        %v5722 = vadd.f32 %v5389, %v5650
        %v5723 = vadd.f32 %v5392, %v5653
        %v5724 = vadd.f32 %v5397, %v5658
        %v5725 = vadd.f32 %v5400, %v5661
        %v5726 = vadd.f32 %v5405, %v5666
        %v5727 = vadd.f32 %v5408, %v5669
        %v5728 = vadd.f32 %v5413, %v5674
        %v5729 = vadd.f32 %v5416, %v5677
        %v5730 = vadd.f32 %v5421, %v5682
        %v5731 = vadd.f32 %v5424, %v5685
        %v5732 = vadd.f32 %v5429, %v5690
        %v5733 = vadd.f32 %v5432, %v5693
        %v5734 = vadd.f32 %v5437, %v5698
        %v5735 = vadd.f32 %v5440, %v5701
        %v5736 = vld [vmem:[#allocation18] sm:$0x1]
        %v5738 = vlaneseq
        %v5739 = vshrl.u32 %v5738, 7
        %v5740 = vsub.s32 0, %v5739
        %v5741 = vrot.slane %v5736, %v5740
        %v5743 = vadd.f32 %v5704, %v5741
        %v5744 = vadd.f32 %v5705, %v5741
        %v5745 = vadd.f32 %v5706, %v5741
        %v5746 = vadd.f32 %v5707, %v5741
        %v5747 = vadd.f32 %v5708, %v5741
        %v5748 = vadd.f32 %v5709, %v5741
        %v5749 = vadd.f32 %v5710, %v5741
        %v5750 = vadd.f32 %v5711, %v5741
        %v5751 = vadd.f32 %v5712, %v5741
        %v5752 = vadd.f32 %v5713, %v5741
        %v5753 = vadd.f32 %v5714, %v5741
        %v5754 = vadd.f32 %v5715, %v5741
        %v5755 = vadd.f32 %v5716, %v5741
        %v5756 = vadd.f32 %v5717, %v5741
        %v5757 = vadd.f32 %v5718, %v5741
        %v5758 = vadd.f32 %v5719, %v5741
        %v5759 = vadd.f32 %v5720, %v5741
        %v5760 = vadd.f32 %v5721, %v5741
        %v5761 = vadd.f32 %v5722, %v5741
        %v5762 = vadd.f32 %v5723, %v5741
        %v5763 = vadd.f32 %v5724, %v5741
        %v5764 = vadd.f32 %v5725, %v5741
        %v5765 = vadd.f32 %v5726, %v5741
        %v5766 = vadd.f32 %v5727, %v5741
        %v5767 = vadd.f32 %v5728, %v5741
        %v5768 = vadd.f32 %v5729, %v5741
        %v5769 = vadd.f32 %v5730, %v5741
        %v5770 = vadd.f32 %v5731, %v5741
        %v5771 = vadd.f32 %v5732, %v5741
        %v5772 = vadd.f32 %v5733, %v5741
        %v5773 = vadd.f32 %v5734, %v5741
        %v5774 = vadd.f32 %v5735, %v5741
        %v5775 = vmax.f32 %v5743, 0.0
        %v5776 = vmax.f32 %v5744, 0.0
        %v5777 = vmax.f32 %v5745, 0.0
        %v5778 = vmax.f32 %v5746, 0.0
        %v5779 = vmax.f32 %v5747, 0.0
        %v5780 = vmax.f32 %v5748, 0.0
        %v5781 = vmax.f32 %v5749, 0.0
        %v5782 = vmax.f32 %v5750, 0.0
        %v5783 = vmax.f32 %v5751, 0.0
        %v5784 = vmax.f32 %v5752, 0.0
        %v5785 = vmax.f32 %v5753, 0.0
        %v5786 = vmax.f32 %v5754, 0.0
        %v5787 = vmax.f32 %v5755, 0.0
        %v5788 = vmax.f32 %v5756, 0.0
        %v5789 = vmax.f32 %v5757, 0.0
        %v5790 = vmax.f32 %v5758, 0.0
        %v5791 = vmax.f32 %v5759, 0.0
        %v5792 = vmax.f32 %v5760, 0.0
        %v5793 = vmax.f32 %v5761, 0.0
        %v5794 = vmax.f32 %v5762, 0.0
        %v5795 = vmax.f32 %v5763, 0.0
        %v5796 = vmax.f32 %v5764, 0.0
        %v5797 = vmax.f32 %v5765, 0.0
        %v5798 = vmax.f32 %v5766, 0.0
        %v5799 = vmax.f32 %v5767, 0.0
        %v5800 = vmax.f32 %v5768, 0.0
        %v5801 = vmax.f32 %v5769, 0.0
        %v5802 = vmax.f32 %v5770, 0.0
        %v5803 = vmax.f32 %v5771, 0.0
        %v5804 = vmax.f32 %v5772, 0.0
        %v5805 = vmax.f32 %v5773, 0.0
        %v5806 = vmax.f32 %v5774, 0.0
        %5807 = vst.msk [vmem:[%s661 + $0x1] sm:$0xff] %vm541, %v5775
        %5808 = vst.msk [vmem:[%s661 + $0x9] sm:$0xff] %vm541, %v5776
        %5809 = vst.msk [vmem:[%s661 + $0x19] sm:$0xff] %vm541, %v5777
        %5810 = vst.msk [vmem:[%s661 + $0x21] sm:$0xff] %vm541, %v5778
        %5811 = vst.msk [vmem:[%s661 + $0x31] sm:$0xff] %vm541, %v5779
        %5812 = vst.msk [vmem:[%s661 + $0x39] sm:$0xff] %vm541, %v5780
        %5813 = vst.msk [vmem:[%s661 + $0x49] sm:$0xff] %vm541, %v5781
        %5814 = vst.msk [vmem:[%s661 + $0x51] sm:$0xff] %vm541, %v5782
        %5815 = vst.msk [vmem:[%s661 + $0x61] sm:$0xff] %vm541, %v5783
        %5816 = vst.msk [vmem:[%s661 + $0x69] sm:$0xff] %vm541, %v5784
        %5817 = vst.msk [vmem:[%s661 + $0x79] sm:$0xff] %vm541, %v5785
        %5818 = vst.msk [vmem:[%s661 + $0x81] sm:$0xff] %vm541, %v5786
        %5819 = vst.msk [vmem:[%s661 + $0x91] sm:$0xff] %vm541, %v5787
        %5820 = vst.msk [vmem:[%s661 + $0x99] sm:$0xff] %vm541, %v5788
        %5821 = vst.msk [vmem:[%s661 + $0xa9] sm:$0xff] %vm541, %v5789
        %5822 = vst.msk [vmem:[%s661 + $0xb1] sm:$0xff] %vm541, %v5790
        %5823 = vst.msk [vmem:[%s661 + $0xc1] sm:$0xff] %vm541, %v5791
        %5824 = vst.msk [vmem:[%s661 + $0xc9] sm:$0xff] %vm541, %v5792
        %5825 = vst.msk [vmem:[%s661 + $0xd9] sm:$0xff] %vm541, %v5793
        %5826 = vst.msk [vmem:[%s661 + $0xe1] sm:$0xff] %vm541, %v5794
        %5827 = vst.msk [vmem:[%s661 + $0xf1] sm:$0xff] %vm541, %v5795
        %5828 = vst.msk [vmem:[%s661 + $0xf9] sm:$0xff] %vm541, %v5796
        %5829 = vst.msk [vmem:[%s661 + $0x109] sm:$0xff] %vm541, %v5797
        %5830 = vst.msk [vmem:[%s661 + $0x111] sm:$0xff] %vm541, %v5798
        %5831 = vst.msk [vmem:[%s661 + $0x121] sm:$0xff] %vm541, %v5799
        %5832 = vst.msk [vmem:[%s661 + $0x129] sm:$0xff] %vm541, %v5800
        %5833 = vst.msk [vmem:[%s661 + $0x139] sm:$0xff] %vm541, %v5801
        %5834 = vst.msk [vmem:[%s661 + $0x141] sm:$0xff] %vm541, %v5802
        %5835 = vst.msk [vmem:[%s661 + $0x151] sm:$0xff] %vm541, %v5803
        %5836 = vst.msk [vmem:[%s661 + $0x159] sm:$0xff] %vm541, %v5804
        %5837 = vst.msk [vmem:[%s661 + $0x169] sm:$0xff] %vm541, %v5805
        %5838 = vst.msk [vmem:[%s661 + $0x171] sm:$0xff] %vm541, %v5806
        %v5839 = vld [vmem:[#allocation2] sm:$0xff]
        %v5840 = vld [vmem:[#allocation2 + $0x8] sm:$0xff]
        %v5841 = vld [vmem:[#allocation2 + $0x18] sm:$0xff]
        %v5842 = vld [vmem:[#allocation2 + $0x20] sm:$0xff]
        %v5843 = vld [vmem:[#allocation2 + $0x30] sm:$0xff]
        %v5844 = vld [vmem:[#allocation2 + $0x38] sm:$0xff]
        %v5845 = vld [vmem:[#allocation2 + $0x48] sm:$0xff]
        %v5846 = vld [vmem:[#allocation2 + $0x50] sm:$0xff]
        %v5847 = vld [vmem:[#allocation2 + $0x60] sm:$0xff]
        %v5848 = vld [vmem:[#allocation2 + $0x68] sm:$0xff]
        %v5849 = vld [vmem:[#allocation2 + $0x78] sm:$0xff]
        %v5850 = vld [vmem:[#allocation2 + $0x80] sm:$0xff]
        %v5851 = vld [vmem:[#allocation2 + $0x90] sm:$0xff]
        %v5852 = vld [vmem:[#allocation2 + $0x98] sm:$0xff]
        %v5853 = vld [vmem:[#allocation2 + $0xa8] sm:$0xff]
        %v5854 = vld [vmem:[#allocation2 + $0xb0] sm:$0xff]
        %v5855 = vld [vmem:[#allocation2 + $0xc0] sm:$0xff]
        %v5856 = vld [vmem:[#allocation2 + $0xc8] sm:$0xff]
        %v5857 = vld [vmem:[#allocation2 + $0xd8] sm:$0xff]
        %v5858 = vld [vmem:[#allocation2 + $0xe0] sm:$0xff]
        %v5859 = vld [vmem:[#allocation2 + $0xf0] sm:$0xff]
        %v5860 = vld [vmem:[#allocation2 + $0xf8] sm:$0xff]
        %v5861 = vld [vmem:[#allocation2 + $0x108] sm:$0xff]
        %v5862 = vld [vmem:[#allocation2 + $0x110] sm:$0xff]
        %v5863 = vld [vmem:[#allocation2 + $0x120] sm:$0xff]
        %v5864 = vld [vmem:[#allocation2 + $0x128] sm:$0xff]
        %v5865 = vld [vmem:[#allocation2 + $0x138] sm:$0xff]
        %v5866 = vld [vmem:[#allocation2 + $0x140] sm:$0xff]
        %v5867 = vld [vmem:[#allocation2 + $0x150] sm:$0xff]
        %v5868 = vld [vmem:[#allocation2 + $0x158] sm:$0xff]
        %v5869 = vld [vmem:[#allocation2 + $0x168] sm:$0xff]
        %v5870 = vld [vmem:[#allocation2 + $0x170] sm:$0xff]
        %v5871 = vld [vmem:[#allocation2 + $0x180] sm:$0xff]
        %v5872 = vld [vmem:[#allocation2 + $0x188] sm:$0xff]
        %v5873 = vld [vmem:[#allocation2 + $0x198] sm:$0xff]
        %v5874 = vld [vmem:[#allocation2 + $0x1a0] sm:$0xff]
        %v5875 = vld [vmem:[#allocation2 + $0x1] sm:$0xff]
        %v5876 = vld [vmem:[#allocation2 + $0x9] sm:$0xff]
        %v5877 = vld [vmem:[#allocation2 + $0x19] sm:$0xff]
        %v5878 = vld [vmem:[#allocation2 + $0x21] sm:$0xff]
        %v5879 = vld [vmem:[#allocation2 + $0x31] sm:$0xff]
        %v5880 = vld [vmem:[#allocation2 + $0x39] sm:$0xff]
        %v5881 = vld [vmem:[#allocation2 + $0x49] sm:$0xff]
        %v5882 = vld [vmem:[#allocation2 + $0x51] sm:$0xff]
        %v5883 = vld [vmem:[#allocation2 + $0x61] sm:$0xff]
        %v5884 = vld [vmem:[#allocation2 + $0x69] sm:$0xff]
        %v5885 = vld [vmem:[#allocation2 + $0x79] sm:$0xff]
        %v5886 = vld [vmem:[#allocation2 + $0x81] sm:$0xff]
        %v5887 = vld [vmem:[#allocation2 + $0x91] sm:$0xff]
        %v5888 = vld [vmem:[#allocation2 + $0x99] sm:$0xff]
        %v5889 = vld [vmem:[#allocation2 + $0xa9] sm:$0xff]
        %v5890 = vld [vmem:[#allocation2 + $0xb1] sm:$0xff]
        %v5891 = vld [vmem:[#allocation2 + $0xc1] sm:$0xff]
        %v5892 = vld [vmem:[#allocation2 + $0xc9] sm:$0xff]
        %v5893 = vld [vmem:[#allocation2 + $0xd9] sm:$0xff]
        %v5894 = vld [vmem:[#allocation2 + $0xe1] sm:$0xff]
        %v5895 = vld [vmem:[#allocation2 + $0xf1] sm:$0xff]
        %v5896 = vld [vmem:[#allocation2 + $0xf9] sm:$0xff]
        %v5897 = vld [vmem:[#allocation2 + $0x109] sm:$0xff]
        %v5898 = vld [vmem:[#allocation2 + $0x111] sm:$0xff]
        %v5899 = vld [vmem:[#allocation2 + $0x121] sm:$0xff]
        %v5900 = vld [vmem:[#allocation2 + $0x129] sm:$0xff]
        %v5901 = vld [vmem:[#allocation2 + $0x139] sm:$0xff]
        %v5902 = vld [vmem:[#allocation2 + $0x141] sm:$0xff]
        %v5903 = vld [vmem:[#allocation2 + $0x151] sm:$0xff]
        %v5904 = vld [vmem:[#allocation2 + $0x159] sm:$0xff]
        %v5905 = vld [vmem:[#allocation2 + $0x169] sm:$0xff]
        %v5906 = vld [vmem:[#allocation2 + $0x171] sm:$0xff]
        %v5907 = vld [vmem:[#allocation2 + $0x181] sm:$0xff]
        %v5908 = vld [vmem:[#allocation2 + $0x189] sm:$0xff]
        %v5909 = vld [vmem:[#allocation2 + $0x199] sm:$0xff]
        %v5910 = vld [vmem:[#allocation2 + $0x1a1] sm:$0xff]
        %v5911 = vld [vmem:[#allocation2 + $0x2] sm:$0xff]
        %v5912 = vld [vmem:[#allocation2 + $0xa] sm:$0xff]
        %v5913 = vld [vmem:[#allocation2 + $0x1a] sm:$0xff]
        %v5914 = vld [vmem:[#allocation2 + $0x22] sm:$0xff]
        %v5915 = vld [vmem:[#allocation2 + $0x32] sm:$0xff]
        %v5916 = vld [vmem:[#allocation2 + $0x3a] sm:$0xff]
        %v5917 = vld [vmem:[#allocation2 + $0x4a] sm:$0xff]
        %v5918 = vld [vmem:[#allocation2 + $0x52] sm:$0xff]
        %v5919 = vld [vmem:[#allocation2 + $0x62] sm:$0xff]
        %v5920 = vld [vmem:[#allocation2 + $0x6a] sm:$0xff]
        %v5921 = vld [vmem:[#allocation2 + $0x7a] sm:$0xff]
        %v5922 = vld [vmem:[#allocation2 + $0x82] sm:$0xff]
        %v5923 = vld [vmem:[#allocation2 + $0x92] sm:$0xff]
        %v5924 = vld [vmem:[#allocation2 + $0x9a] sm:$0xff]
        %v5925 = vld [vmem:[#allocation2 + $0xaa] sm:$0xff]
        %v5926 = vld [vmem:[#allocation2 + $0xb2] sm:$0xff]
        %v5927 = vld [vmem:[#allocation2 + $0xc2] sm:$0xff]
        %v5928 = vld [vmem:[#allocation2 + $0xca] sm:$0xff]
        %v5929 = vld [vmem:[#allocation2 + $0xda] sm:$0xff]
        %v5930 = vld [vmem:[#allocation2 + $0xe2] sm:$0xff]
        %v5931 = vld [vmem:[#allocation2 + $0xf2] sm:$0xff]
        %v5932 = vld [vmem:[#allocation2 + $0xfa] sm:$0xff]
        %v5933 = vld [vmem:[#allocation2 + $0x10a] sm:$0xff]
        %v5934 = vld [vmem:[#allocation2 + $0x112] sm:$0xff]
        %v5935 = vld [vmem:[#allocation2 + $0x122] sm:$0xff]
        %v5936 = vld [vmem:[#allocation2 + $0x12a] sm:$0xff]
        %v5937 = vld [vmem:[#allocation2 + $0x13a] sm:$0xff]
        %v5938 = vld [vmem:[#allocation2 + $0x142] sm:$0xff]
        %v5939 = vld [vmem:[#allocation2 + $0x152] sm:$0xff]
        %v5940 = vld [vmem:[#allocation2 + $0x15a] sm:$0xff]
        %v5941 = vld [vmem:[#allocation2 + $0x16a] sm:$0xff]
        %v5942 = vld [vmem:[#allocation2 + $0x172] sm:$0xff]
        %v5943 = vld [vmem:[#allocation2 + $0x182] sm:$0xff]
        %v5944 = vld [vmem:[#allocation2 + $0x18a] sm:$0xff]
        %v5945 = vld [vmem:[#allocation2 + $0x19a] sm:$0xff]
        %v5946 = vld [vmem:[#allocation2 + $0x1a2] sm:$0xff]
        %5983 = vrot.lane.b32.xlu0 %v5875, 64
        %v5984 = vpop.permute.xlu0 %5983
        %5985 = vrot.lane.b32.xlu0 %v5876, 64
        %v5986 = vpop.permute.xlu0 %5985
        %5987 = vrot.lane.b32.xlu0 %v5877, 64
        %v5988 = vpop.permute.xlu0 %5987
        %5989 = vrot.lane.b32.xlu0 %v5878, 64
        %v5990 = vpop.permute.xlu0 %5989
        %5991 = vrot.lane.b32.xlu0 %v5879, 64
        %v5992 = vpop.permute.xlu0 %5991
        %5993 = vrot.lane.b32.xlu0 %v5880, 64
        %v5994 = vpop.permute.xlu0 %5993
        %5995 = vrot.lane.b32.xlu0 %v5881, 64
        %v5996 = vpop.permute.xlu0 %5995
        %5997 = vrot.lane.b32.xlu0 %v5882, 64
        %v5998 = vpop.permute.xlu0 %5997
        %5999 = vrot.lane.b32.xlu0 %v5883, 64
        %v6000 = vpop.permute.xlu0 %5999
        %6001 = vrot.lane.b32.xlu0 %v5884, 64
        %v6002 = vpop.permute.xlu0 %6001
        %6003 = vrot.lane.b32.xlu0 %v5885, 64
        %v6004 = vpop.permute.xlu0 %6003
        %6005 = vrot.lane.b32.xlu0 %v5886, 64
        %v6006 = vpop.permute.xlu0 %6005
        %6007 = vrot.lane.b32.xlu0 %v5887, 64
        %v6008 = vpop.permute.xlu0 %6007
        %6009 = vrot.lane.b32.xlu0 %v5888, 64
        %v6010 = vpop.permute.xlu0 %6009
        %6011 = vrot.lane.b32.xlu0 %v5889, 64
        %v6012 = vpop.permute.xlu0 %6011
        %6013 = vrot.lane.b32.xlu0 %v5890, 64
        %v6014 = vpop.permute.xlu0 %6013
        %6015 = vrot.lane.b32.xlu0 %v5891, 64
        %v6016 = vpop.permute.xlu0 %6015
        %6017 = vrot.lane.b32.xlu0 %v5892, 64
        %v6018 = vpop.permute.xlu0 %6017
        %6019 = vrot.lane.b32.xlu0 %v5893, 64
        %v6020 = vpop.permute.xlu0 %6019
        %6021 = vrot.lane.b32.xlu0 %v5894, 64
        %v6022 = vpop.permute.xlu0 %6021
        %6023 = vrot.lane.b32.xlu0 %v5895, 64
        %v6024 = vpop.permute.xlu0 %6023
        %6025 = vrot.lane.b32.xlu0 %v5896, 64
        %v6026 = vpop.permute.xlu0 %6025
        %6027 = vrot.lane.b32.xlu0 %v5897, 64
        %v6028 = vpop.permute.xlu0 %6027
        %6029 = vrot.lane.b32.xlu0 %v5898, 64
        %v6030 = vpop.permute.xlu0 %6029
        %6031 = vrot.lane.b32.xlu0 %v5899, 64
        %v6032 = vpop.permute.xlu0 %6031
        %6033 = vrot.lane.b32.xlu0 %v5900, 64
        %v6034 = vpop.permute.xlu0 %6033
        %6035 = vrot.lane.b32.xlu0 %v5901, 64
        %v6036 = vpop.permute.xlu0 %6035
        %6037 = vrot.lane.b32.xlu0 %v5902, 64
        %v6038 = vpop.permute.xlu0 %6037
        %6039 = vrot.lane.b32.xlu0 %v5903, 64
        %v6040 = vpop.permute.xlu0 %6039
        %6041 = vrot.lane.b32.xlu0 %v5904, 64
        %v6042 = vpop.permute.xlu0 %6041
        %6043 = vrot.lane.b32.xlu0 %v5905, 64
        %v6044 = vpop.permute.xlu0 %6043
        %6045 = vrot.lane.b32.xlu0 %v5906, 64
        %v6046 = vpop.permute.xlu0 %6045
        %6047 = vrot.lane.b32.xlu0 %v5907, 64
        %v6048 = vpop.permute.xlu0 %6047
        %6049 = vrot.lane.b32.xlu0 %v5908, 64
        %v6050 = vpop.permute.xlu0 %6049
        %6051 = vrot.lane.b32.xlu0 %v5909, 64
        %v6052 = vpop.permute.xlu0 %6051
        %6053 = vrot.lane.b32.xlu0 %v5910, 64
        %v6054 = vpop.permute.xlu0 %6053
        %v6091 = vsel %vm541, %v5839, %v5984
        %v6092 = vsel %vm541, %v5840, %v5986
        %v6093 = vsel %vm541, %v5841, %v5988
        %v6094 = vsel %vm541, %v5842, %v5990
        %v6095 = vsel %vm541, %v5843, %v5992
        %v6096 = vsel %vm541, %v5844, %v5994
        %v6097 = vsel %vm541, %v5845, %v5996
        %v6098 = vsel %vm541, %v5846, %v5998
        %v6099 = vsel %vm541, %v5847, %v6000
        %v6100 = vsel %vm541, %v5848, %v6002
        %v6101 = vsel %vm541, %v5849, %v6004
        %v6102 = vsel %vm541, %v5850, %v6006
        %v6103 = vsel %vm541, %v5851, %v6008
        %v6104 = vsel %vm541, %v5852, %v6010
        %v6105 = vsel %vm541, %v5853, %v6012
        %v6106 = vsel %vm541, %v5854, %v6014
        %v6107 = vsel %vm541, %v5855, %v6016
        %v6108 = vsel %vm541, %v5856, %v6018
        %v6109 = vsel %vm541, %v5857, %v6020
        %v6110 = vsel %vm541, %v5858, %v6022
        %v6111 = vsel %vm541, %v5859, %v6024
        %v6112 = vsel %vm541, %v5860, %v6026
        %v6113 = vsel %vm541, %v5861, %v6028
        %v6114 = vsel %vm541, %v5862, %v6030
        %v6115 = vsel %vm541, %v5863, %v6032
        %v6116 = vsel %vm541, %v5864, %v6034
        %v6117 = vsel %vm541, %v5865, %v6036
        %v6118 = vsel %vm541, %v5866, %v6038
        %v6119 = vsel %vm541, %v5867, %v6040
        %v6120 = vsel %vm541, %v5868, %v6042
        %v6121 = vsel %vm541, %v5869, %v6044
        %v6122 = vsel %vm541, %v5870, %v6046
        %v6123 = vsel %vm541, %v5871, %v6048
        %v6124 = vsel %vm541, %v5872, %v6050
        %v6125 = vsel %vm541, %v5873, %v6052
        %v6126 = vsel %vm541, %v5874, %v6054
        %v6127 = vpack.c.bf16 %v6092, %v6091
        %v6128 = vpack.c.bf16 %v5912, %v5911
        %v6129 = vpack.c.bf16 %v6094, %v6093
        %v6130 = vpack.c.bf16 %v5914, %v5913
        %v6131 = vpack.c.bf16 %v6096, %v6095
        %v6132 = vpack.c.bf16 %v5916, %v5915
        %v6133 = vpack.c.bf16 %v6098, %v6097
        %v6134 = vpack.c.bf16 %v5918, %v5917
        %v6135 = vpack.c.bf16 %v6100, %v6099
        %v6136 = vpack.c.bf16 %v5920, %v5919
        %v6137 = vpack.c.bf16 %v6102, %v6101
        %v6138 = vpack.c.bf16 %v5922, %v5921
        %v6139 = vpack.c.bf16 %v6104, %v6103
        %v6140 = vpack.c.bf16 %v5924, %v5923
        %v6141 = vpack.c.bf16 %v6106, %v6105
        %v6142 = vpack.c.bf16 %v5926, %v5925
        %v6143 = vpack.c.bf16 %v6108, %v6107
        %v6144 = vpack.c.bf16 %v5928, %v5927
        %v6145 = vpack.c.bf16 %v6110, %v6109
        %v6146 = vpack.c.bf16 %v5930, %v5929
        %v6147 = vpack.c.bf16 %v6112, %v6111
        %v6148 = vpack.c.bf16 %v5932, %v5931
        %v6149 = vpack.c.bf16 %v6114, %v6113
        %v6150 = vpack.c.bf16 %v5934, %v5933
        %v6151 = vpack.c.bf16 %v6116, %v6115
        %v6152 = vpack.c.bf16 %v5936, %v5935
        %v6153 = vpack.c.bf16 %v6118, %v6117
        %v6154 = vpack.c.bf16 %v5938, %v5937
        %v6155 = vpack.c.bf16 %v6120, %v6119
        %v6156 = vpack.c.bf16 %v5940, %v5939
        %v6157 = vpack.c.bf16 %v6122, %v6121
        %v6158 = vpack.c.bf16 %v5942, %v5941
        %v6159 = vpack.c.bf16 %v6124, %v6123
        %v6160 = vpack.c.bf16 %v5944, %v5943
        %v6161 = vpack.c.bf16 %v6126, %v6125
        %v6162 = vpack.c.bf16 %v5946, %v5945
        %v6163 = vld [vmem:[#allocation19] sm:$0xf]
        %v6164 = vld [vmem:[#allocation19 + $0x4] sm:$0xf]
        %v6165 = vld [vmem:[#allocation19 + $0x8] sm:$0xf]
        %v6166 = vld [vmem:[#allocation19 + $0xc] sm:$0xf]
        %v6167 = vld [vmem:[#allocation19 + $0x10] sm:$0xf]
        %v6168 = vld [vmem:[#allocation19 + $0x14] sm:$0xf]
        %v6169 = vld [vmem:[#allocation19 + $0x18] sm:$0xf]
        %v6170 = vld [vmem:[#allocation19 + $0x1c] sm:$0xf]
        %v6171 = vld [vmem:[#allocation19 + $0x20] sm:$0xf]
        %v6172 = vld [vmem:[#allocation19 + $0x24] sm:$0xf]
        %v6173 = vld [vmem:[#allocation19 + $0x28] sm:$0xf]
        %v6174 = vld [vmem:[#allocation19 + $0x2c] sm:$0xf]
        %v6175 = vld [vmem:[#allocation19 + $0x30] sm:$0xf]
        %v6176 = vld [vmem:[#allocation19 + $0x34] sm:$0xf]
        %v6177 = vld [vmem:[#allocation19 + $0x38] sm:$0xf]
        %v6178 = vld [vmem:[#allocation19 + $0x3c] sm:$0xf]
        %v6179 = vld [vmem:[#allocation19 + $0x40] sm:$0xf]
        %v6180 = vld [vmem:[#allocation19 + $0x44] sm:$0xf]
        %v6181 = vld [vmem:[#allocation19 + $0x48] sm:$0xf]
        %v6182 = vld [vmem:[#allocation19 + $0x4c] sm:$0xf]
        %v6183 = vld [vmem:[#allocation19 + $0x50] sm:$0xf]
        %v6184 = vld [vmem:[#allocation19 + $0x54] sm:$0xf]
        %v6185 = vld [vmem:[#allocation19 + $0x58] sm:$0xf]
        %v6186 = vld [vmem:[#allocation19 + $0x5c] sm:$0xf]
        %s6187 = scalar_lea.vmem [#allocation19], 96
        %v6188 = vld [vmem:[%s6187] sm:$0xf]
        %v6189 = vld [vmem:[%s6187 + $0x4] sm:$0xf]
        %v6190 = vld [vmem:[%s6187 + $0x8] sm:$0xf]
        %v6191 = vld [vmem:[%s6187 + $0xc] sm:$0xf]
        %v6192 = vld [vmem:[%s6187 + $0x10] sm:$0xf]
        %v6193 = vld [vmem:[%s6187 + $0x14] sm:$0xf]
        %v6194 = vld [vmem:[%s6187 + $0x18] sm:$0xf]
        %v6195 = vld [vmem:[%s6187 + $0x1c] sm:$0xf]
        %v6196 = vld [vmem:[%s6187 + $0x20] sm:$0xf]
        %v6197 = vld [vmem:[%s6187 + $0x24] sm:$0xf]
        %v6198 = vld [vmem:[%s6187 + $0x28] sm:$0xf]
        %v6199 = vld [vmem:[%s6187 + $0x2c] sm:$0xf]
        %v6200 = vld [vmem:[%s6187 + $0x30] sm:$0xf]
        %v6201 = vld [vmem:[%s6187 + $0x34] sm:$0xf]
        %v6202 = vld [vmem:[%s6187 + $0x38] sm:$0xf]
        %v6203 = vld [vmem:[%s6187 + $0x3c] sm:$0xf]
        %v6204 = vld [vmem:[%s6187 + $0x40] sm:$0xf]
        %v6205 = vld [vmem:[%s6187 + $0x44] sm:$0xf]
        %v6206 = vld [vmem:[%s6187 + $0x48] sm:$0xf]
        %v6207 = vld [vmem:[%s6187 + $0x4c] sm:$0xf]
        %v6208 = vld [vmem:[%s6187 + $0x50] sm:$0xf]
        %v6209 = vld [vmem:[%s6187 + $0x54] sm:$0xf]
        %v6210 = vld [vmem:[%s6187 + $0x58] sm:$0xf]
        %v6211 = vld [vmem:[%s6187 + $0x5c] sm:$0xf]
        %v6236 = vunpack.c.l.b16 %v6188
        %v6237 = vunpack.c.l.b16 %v6189
        %v6238 = vunpack.c.l.b16 %v6190
        %v6239 = vunpack.c.l.b16 %v6191
        %v6240 = vunpack.c.l.b16 %v6192
        %v6241 = vunpack.c.l.b16 %v6193
        %v6242 = vunpack.c.l.b16 %v6194
        %v6243 = vunpack.c.l.b16 %v6195
        %v6244 = vunpack.c.l.b16 %v6196
        %v6245 = vunpack.c.l.b16 %v6197
        %v6246 = vunpack.c.l.b16 %v6198
        %v6247 = vunpack.c.l.b16 %v6199
        %v6248 = vunpack.c.l.b16 %v6200
        %v6249 = vunpack.c.l.b16 %v6201
        %v6250 = vunpack.c.l.b16 %v6202
        %v6251 = vunpack.c.l.b16 %v6203
        %v6252 = vunpack.c.l.b16 %v6204
        %v6253 = vunpack.c.l.b16 %v6205
        %v6254 = vunpack.c.l.b16 %v6206
        %v6255 = vunpack.c.l.b16 %v6207
        %v6256 = vunpack.c.l.b16 %v6208
        %v6257 = vunpack.c.l.b16 %v6209
        %v6258 = vunpack.c.l.b16 %v6210
        %v6259 = vunpack.c.l.b16 %v6211
        %v6260 = vpack.c.b16 %v6237, %v6236
        %v6261 = vpack.c.b16 %v6239, %v6238
        %v6262 = vpack.c.b16 %v6241, %v6240
        %v6263 = vpack.c.b16 %v6243, %v6242
        %v6264 = vpack.c.b16 %v6245, %v6244
        %v6265 = vpack.c.b16 %v6247, %v6246
        %v6266 = vpack.c.b16 %v6249, %v6248
        %v6267 = vpack.c.b16 %v6251, %v6250
        %v6268 = vpack.c.b16 %v6253, %v6252
        %v6269 = vpack.c.b16 %v6255, %v6254
        %v6270 = vpack.c.b16 %v6257, %v6256
        %v6271 = vpack.c.b16 %v6259, %v6258
        %v6285 = vsel %vm541, %v6130, 0
        %v6288 = vsel %vm541, %v6132, 0
        %v6291 = vsel %vm541, %v6134, 0
        %v6294 = vsel %vm541, %v6136, 0
        %v6297 = vsel %vm541, %v6138, 0
        %v6300 = vsel %vm541, %v6140, 0
        %v6303 = vsel %vm541, %v6142, 0
        %v6306 = vsel %vm541, %v6144, 0
        %v6309 = vsel %vm541, %v6146, 0
        %v6312 = vsel %vm541, %v6148, 0
        %v6315 = vsel %vm541, %v6150, 0
        %v6318 = vsel %vm541, %v6152, 0
        %v6321 = vsel %vm541, %v6154, 0
        %v6324 = vsel %vm541, %v6156, 0
        %v6327 = vsel %vm541, %v6158, 0
        %v6330 = vsel %vm541, %v6160, 0
        %6332 = vmatprep.subr.bf16.mxu0 0
        %6333 = vmatpush1.bf16.msra.mxu0 %v6260
        %6334 = vmatprep.subr.bf16.mxu0 0
        %6335 = vmatpush1.bf16.msra.mxu0 %v6261
        %6336 = vmatprep.subr.bf16.mxu0 0
        %6337 = vmatpush1.bf16.msra.mxu0 %v6262
        %6338 = vmatprep.subr.bf16.mxu0 0
        %6339 = vmatpush1.bf16.msra.mxu0 %v6263
        %6340 = vmatprep.subr.bf16.mxu0 0
        %6341 = vmatpush1.bf16.msra.mxu0 %v6264
        %6342 = vmatprep.subr.bf16.mxu0 0
        %6343 = vmatpush1.bf16.msra.mxu0 %v6265
        %6344 = vmatprep.subr.bf16.mxu0 0
        %6345 = vmatpush1.bf16.msra.mxu0 %v6266
        %6346 = vmatprep.subr.bf16.mxu0 0
        %6347 = vmatpush1.bf16.msra.mxu0 %v6267
        %6348 = vmatprep.subr.bf16.mxu0 0
        %6349 = vmatpush1.bf16.msra.mxu0 %v6268
        %6350 = vmatprep.subr.bf16.mxu0 0
        %6351 = vmatpush1.bf16.msra.mxu0 %v6269
        %6352 = vmatprep.subr.bf16.mxu0 0
        %6353 = vmatpush1.bf16.msra.mxu0 %v6270
        %6354 = vmatprep.subr.bf16.mxu0 0
        %6355 = vmatpush1.bf16.msra.mxu0 %v6271
        %6356 = vmatprep.subr.bf16.mxu0 0
        %6357 = vmatpush1.bf16.msra.mxu0 0
        %6358 = vmatprep.subr.bf16.mxu0 0
        %6359 = vmatpush1.bf16.msra.mxu0 0
        %6360 = vmatprep.subr.bf16.mxu0 0
        %6361 = vmatpush1.bf16.msra.mxu0 0
        %6362 = vmatprep.subr.bf16.mxu0 0
        %6363 = vmatpush1.bf16.msra.mxu0 0
        %6364 = vmatprep.mubr.bf16.mxu0 %v6285
        %6365 = vmatmul.mubr.bf16.gmra.mrb[0].mxu0 %v6129
        %v6366 = vpop.f32.mrb[0].mxu0
        %v6367 = vadd.f32 0.0, %v6366
        %v6368 = vpop.f32.mrb[0].mxu0
        %v6369 = vpop.f32.mrb[0].mxu0
        %v6370 = vadd.f32 0.0, %v6369
        %v6371 = vpop.f32.mrb[0].mxu0
        %6372 = vmatprep.mubr.bf16.mxu0 %v6288
        %6373 = vmatmul.mubr.bf16.gmra.mrb[0].mxu0 %v6131
        %v6374 = vpop.f32.mrb[0].mxu0
        %v6375 = vadd.f32 0.0, %v6374
        %v6376 = vpop.f32.mrb[0].mxu0
        %v6377 = vpop.f32.mrb[0].mxu0
        %v6378 = vadd.f32 0.0, %v6377
        %v6379 = vpop.f32.mrb[0].mxu0
        %6380 = vmatprep.mubr.bf16.mxu0 %v6291
        %6381 = vmatmul.mubr.bf16.gmra.mrb[0].mxu0 %v6133
        %v6382 = vpop.f32.mrb[0].mxu0
        %v6383 = vadd.f32 0.0, %v6382
        %v6384 = vpop.f32.mrb[0].mxu0
        %v6385 = vpop.f32.mrb[0].mxu0
        %v6386 = vadd.f32 0.0, %v6385
        %v6387 = vpop.f32.mrb[0].mxu0
        %6388 = vmatprep.mubr.bf16.mxu0 %v6294
        %6389 = vmatmul.mubr.bf16.gmra.mrb[0].mxu0 %v6135
        %v6390 = vpop.f32.mrb[0].mxu0
        %v6391 = vadd.f32 0.0, %v6390
        %v6392 = vpop.f32.mrb[0].mxu0
        %v6393 = vpop.f32.mrb[0].mxu0
        %v6394 = vadd.f32 0.0, %v6393
        %v6395 = vpop.f32.mrb[0].mxu0
        %6396 = vmatprep.mubr.bf16.mxu0 %v6297
        %6397 = vmatmul.mubr.bf16.gmra.mrb[0].mxu0 %v6137
        %v6398 = vpop.f32.mrb[0].mxu0
        %v6399 = vadd.f32 0.0, %v6398
        %v6400 = vpop.f32.mrb[0].mxu0
        %v6401 = vpop.f32.mrb[0].mxu0
        %v6402 = vadd.f32 0.0, %v6401
        %v6403 = vpop.f32.mrb[0].mxu0
        %6404 = vmatprep.mubr.bf16.mxu0 %v6300
        %6405 = vmatmul.mubr.bf16.gmra.mrb[0].mxu0 %v6139
        %v6406 = vpop.f32.mrb[0].mxu0
        %v6407 = vadd.f32 0.0, %v6406
        %v6408 = vpop.f32.mrb[0].mxu0
        %v6409 = vpop.f32.mrb[0].mxu0
        %v6410 = vadd.f32 0.0, %v6409
        %v6411 = vpop.f32.mrb[0].mxu0
        %6412 = vmatprep.mubr.bf16.mxu0 %v6303
        %6413 = vmatmul.mubr.bf16.gmra.mrb[0].mxu0 %v6141
        %v6414 = vpop.f32.mrb[0].mxu0
        %v6415 = vadd.f32 0.0, %v6414
        %v6416 = vpop.f32.mrb[0].mxu0
        %v6417 = vpop.f32.mrb[0].mxu0
        %v6418 = vadd.f32 0.0, %v6417
        %v6419 = vpop.f32.mrb[0].mxu0
        %6420 = vmatprep.mubr.bf16.mxu0 %v6306
        %6421 = vmatmul.mubr.bf16.gmra.mrb[0].mxu0 %v6143
        %v6422 = vpop.f32.mrb[0].mxu0
        %v6423 = vadd.f32 0.0, %v6422
        %v6424 = vpop.f32.mrb[0].mxu0
        %v6425 = vpop.f32.mrb[0].mxu0
        %v6426 = vadd.f32 0.0, %v6425
        %v6427 = vpop.f32.mrb[0].mxu0
        %6428 = vmatprep.mubr.bf16.mxu0 %v6309
        %6429 = vmatmul.mubr.bf16.gmra.mrb[0].mxu0 %v6145
        %v6430 = vpop.f32.mrb[0].mxu0
        %v6431 = vadd.f32 0.0, %v6430
        %v6432 = vpop.f32.mrb[0].mxu0
        %v6433 = vpop.f32.mrb[0].mxu0
        %v6434 = vadd.f32 0.0, %v6433
        %v6435 = vpop.f32.mrb[0].mxu0
        %6436 = vmatprep.mubr.bf16.mxu0 %v6312
        %6437 = vmatmul.mubr.bf16.gmra.mrb[0].mxu0 %v6147
        %v6438 = vpop.f32.mrb[0].mxu0
        %v6439 = vadd.f32 0.0, %v6438
        %v6440 = vpop.f32.mrb[0].mxu0
        %v6441 = vpop.f32.mrb[0].mxu0
        %v6442 = vadd.f32 0.0, %v6441
        %v6443 = vpop.f32.mrb[0].mxu0
        %6444 = vmatprep.mubr.bf16.mxu0 %v6315
        %6445 = vmatmul.mubr.bf16.gmra.mrb[0].mxu0 %v6149
        %v6446 = vpop.f32.mrb[0].mxu0
        %v6447 = vadd.f32 0.0, %v6446
        %v6448 = vpop.f32.mrb[0].mxu0
        %v6449 = vpop.f32.mrb[0].mxu0
        %v6450 = vadd.f32 0.0, %v6449
        %v6451 = vpop.f32.mrb[0].mxu0
        %6452 = vmatprep.mubr.bf16.mxu0 %v6318
        %6453 = vmatmul.mubr.bf16.gmra.mrb[0].mxu0 %v6151
        %v6454 = vpop.f32.mrb[0].mxu0
        %v6455 = vadd.f32 0.0, %v6454
        %v6456 = vpop.f32.mrb[0].mxu0
        %v6457 = vpop.f32.mrb[0].mxu0
        %v6458 = vadd.f32 0.0, %v6457
        %v6459 = vpop.f32.mrb[0].mxu0
        %6460 = vmatprep.mubr.bf16.mxu0 %v6321
        %6461 = vmatmul.mubr.bf16.gmra.mrb[0].mxu0 %v6153
        %v6462 = vpop.f32.mrb[0].mxu0
        %v6463 = vadd.f32 0.0, %v6462
        %v6464 = vpop.f32.mrb[0].mxu0
        %v6465 = vpop.f32.mrb[0].mxu0
        %v6466 = vadd.f32 0.0, %v6465
        %v6467 = vpop.f32.mrb[0].mxu0
        %6468 = vmatprep.mubr.bf16.mxu0 %v6324
        %6469 = vmatmul.mubr.bf16.gmra.mrb[0].mxu0 %v6155
        %v6470 = vpop.f32.mrb[0].mxu0
        %v6471 = vadd.f32 0.0, %v6470
        %v6472 = vpop.f32.mrb[0].mxu0
        %v6473 = vpop.f32.mrb[0].mxu0
        %v6474 = vadd.f32 0.0, %v6473
        %v6475 = vpop.f32.mrb[0].mxu0
        %6476 = vmatprep.mubr.bf16.mxu0 %v6327
        %6477 = vmatmul.mubr.bf16.gmra.mrb[0].mxu0 %v6157
        %v6478 = vpop.f32.mrb[0].mxu0
        %v6479 = vadd.f32 0.0, %v6478
        %v6480 = vpop.f32.mrb[0].mxu0
        %v6481 = vpop.f32.mrb[0].mxu0
        %v6482 = vadd.f32 0.0, %v6481
        %v6483 = vpop.f32.mrb[0].mxu0
        %6484 = vmatprep.mubr.bf16.mxu0 %v6330
        %6485 = vmatmul.mubr.bf16.gmra.mrb[0].mxu0 %v6159
        %v6486 = vpop.f32.mrb[0].mxu0
        %v6487 = vadd.f32 0.0, %v6486
        %v6488 = vpop.f32.mrb[0].mxu0
        %v6489 = vpop.f32.mrb[0].mxu0
        %v6490 = vadd.f32 0.0, %v6489
        %v6491 = vpop.f32.mrb[0].mxu0
        %6492 = vdwg.mxu0
        %v6517 = vunpack.c.l.b16 %v6163
        %v6518 = vunpack.c.l.b16 %v6164
        %v6519 = vunpack.c.l.b16 %v6165
        %v6520 = vunpack.c.l.b16 %v6166
        %v6521 = vunpack.c.l.b16 %v6167
        %v6522 = vunpack.c.l.b16 %v6168
        %v6523 = vunpack.c.l.b16 %v6169
        %v6524 = vunpack.c.l.b16 %v6170
        %v6525 = vunpack.c.l.b16 %v6171
        %v6526 = vunpack.c.l.b16 %v6172
        %v6527 = vunpack.c.l.b16 %v6173
        %v6528 = vunpack.c.l.b16 %v6174
        %v6529 = vunpack.c.l.b16 %v6175
        %v6530 = vunpack.c.l.b16 %v6176
        %v6531 = vunpack.c.l.b16 %v6177
        %v6532 = vunpack.c.l.b16 %v6178
        %v6533 = vunpack.c.l.b16 %v6179
        %v6534 = vunpack.c.l.b16 %v6180
        %v6535 = vunpack.c.l.b16 %v6181
        %v6536 = vunpack.c.l.b16 %v6182
        %v6537 = vunpack.c.l.b16 %v6183
        %v6538 = vunpack.c.l.b16 %v6184
        %v6539 = vunpack.c.l.b16 %v6185
        %v6540 = vunpack.c.l.b16 %v6186
        %v6541 = vpack.c.b16 %v6518, %v6517
        %v6542 = vpack.c.b16 %v6520, %v6519
        %v6543 = vpack.c.b16 %v6522, %v6521
        %v6544 = vpack.c.b16 %v6524, %v6523
        %v6545 = vpack.c.b16 %v6526, %v6525
        %v6546 = vpack.c.b16 %v6528, %v6527
        %v6547 = vpack.c.b16 %v6530, %v6529
        %v6548 = vpack.c.b16 %v6532, %v6531
        %v6549 = vpack.c.b16 %v6534, %v6533
        %v6550 = vpack.c.b16 %v6536, %v6535
        %v6551 = vpack.c.b16 %v6538, %v6537
        %v6552 = vpack.c.b16 %v6540, %v6539
        %v6566 = vsel %vm541, %v6128, 0
        %6568 = vmatprep.subr.bf16.mxu0 0
        %6569 = vmatpush1.bf16.msra.mxu0 %v6541
        %6570 = vmatprep.subr.bf16.mxu0 0
        %6571 = vmatpush1.bf16.msra.mxu0 %v6542
        %6572 = vmatprep.subr.bf16.mxu0 0
        %6573 = vmatpush1.bf16.msra.mxu0 %v6543
        %6574 = vmatprep.subr.bf16.mxu0 0
        %6575 = vmatpush1.bf16.msra.mxu0 %v6544
        %6576 = vmatprep.subr.bf16.mxu0 0
        %6577 = vmatpush1.bf16.msra.mxu0 %v6545
        %6578 = vmatprep.subr.bf16.mxu0 0
        %6579 = vmatpush1.bf16.msra.mxu0 %v6546
        %6580 = vmatprep.subr.bf16.mxu0 0
        %6581 = vmatpush1.bf16.msra.mxu0 %v6547
        %6582 = vmatprep.subr.bf16.mxu0 0
        %6583 = vmatpush1.bf16.msra.mxu0 %v6548
        %6584 = vmatprep.subr.bf16.mxu0 0
        %6585 = vmatpush1.bf16.msra.mxu0 %v6549
        %6586 = vmatprep.subr.bf16.mxu0 0
        %6587 = vmatpush1.bf16.msra.mxu0 %v6550
        %6588 = vmatprep.subr.bf16.mxu0 0
        %6589 = vmatpush1.bf16.msra.mxu0 %v6551
        %6590 = vmatprep.subr.bf16.mxu0 0
        %6591 = vmatpush1.bf16.msra.mxu0 %v6552
        %6592 = vmatprep.subr.bf16.mxu0 0
        %6593 = vmatpush1.bf16.msra.mxu0 0
        %6594 = vmatprep.subr.bf16.mxu0 0
        %6595 = vmatpush1.bf16.msra.mxu0 0
        %6596 = vmatprep.subr.bf16.mxu0 0
        %6597 = vmatpush1.bf16.msra.mxu0 0
        %6598 = vmatprep.subr.bf16.mxu0 0
        %6599 = vmatpush1.bf16.msra.mxu0 0
        %6600 = vmatprep.mubr.bf16.mxu0 %v6566
        %6601 = vmatmul.mubr.bf16.gmra.mrb[0].mxu0 %v6127
        %v6602 = vpop.f32.mrb[0].mxu0
        %v6603 = vadd.f32 %v6367, %v6602
        %v6604 = vpop.f32.mrb[0].mxu0
        %v6605 = vpop.f32.mrb[0].mxu0
        %v6606 = vadd.f32 %v6370, %v6605
        %v6607 = vpop.f32.mrb[0].mxu0
        %6608 = vmatprep.mubr.bf16.mxu0 %v6285
        %6609 = vmatmul.mubr.bf16.gmra.mrb[0].mxu0 %v6129
        %v6610 = vpop.f32.mrb[0].mxu0
        %v6611 = vadd.f32 %v6375, %v6610
        %v6612 = vpop.f32.mrb[0].mxu0
        %v6613 = vpop.f32.mrb[0].mxu0
        %v6614 = vadd.f32 %v6378, %v6613
        %v6615 = vpop.f32.mrb[0].mxu0
        %6616 = vmatprep.mubr.bf16.mxu0 %v6288
        %6617 = vmatmul.mubr.bf16.gmra.mrb[0].mxu0 %v6131
        %v6618 = vpop.f32.mrb[0].mxu0
        %v6619 = vadd.f32 %v6383, %v6618
        %v6620 = vpop.f32.mrb[0].mxu0
        %v6621 = vpop.f32.mrb[0].mxu0
        %v6622 = vadd.f32 %v6386, %v6621
        %v6623 = vpop.f32.mrb[0].mxu0
        %6624 = vmatprep.mubr.bf16.mxu0 %v6291
        %6625 = vmatmul.mubr.bf16.gmra.mrb[0].mxu0 %v6133
        %v6626 = vpop.f32.mrb[0].mxu0
        %v6627 = vadd.f32 %v6391, %v6626
        %v6628 = vpop.f32.mrb[0].mxu0
        %v6629 = vpop.f32.mrb[0].mxu0
        %v6630 = vadd.f32 %v6394, %v6629
        %v6631 = vpop.f32.mrb[0].mxu0
        %6632 = vmatprep.mubr.bf16.mxu0 %v6294
        %6633 = vmatmul.mubr.bf16.gmra.mrb[0].mxu0 %v6135
        %v6634 = vpop.f32.mrb[0].mxu0
        %v6635 = vadd.f32 %v6399, %v6634
        %v6636 = vpop.f32.mrb[0].mxu0
        %v6637 = vpop.f32.mrb[0].mxu0
        %v6638 = vadd.f32 %v6402, %v6637
        %v6639 = vpop.f32.mrb[0].mxu0
        %6640 = vmatprep.mubr.bf16.mxu0 %v6297
        %6641 = vmatmul.mubr.bf16.gmra.mrb[0].mxu0 %v6137
        %v6642 = vpop.f32.mrb[0].mxu0
        %v6643 = vadd.f32 %v6407, %v6642
        %v6644 = vpop.f32.mrb[0].mxu0
        %v6645 = vpop.f32.mrb[0].mxu0
        %v6646 = vadd.f32 %v6410, %v6645
        %v6647 = vpop.f32.mrb[0].mxu0
        %6648 = vmatprep.mubr.bf16.mxu0 %v6300
        %6649 = vmatmul.mubr.bf16.gmra.mrb[0].mxu0 %v6139
        %v6650 = vpop.f32.mrb[0].mxu0
        %v6651 = vadd.f32 %v6415, %v6650
        %v6652 = vpop.f32.mrb[0].mxu0
        %v6653 = vpop.f32.mrb[0].mxu0
        %v6654 = vadd.f32 %v6418, %v6653
        %v6655 = vpop.f32.mrb[0].mxu0
        %6656 = vmatprep.mubr.bf16.mxu0 %v6303
        %6657 = vmatmul.mubr.bf16.gmra.mrb[0].mxu0 %v6141
        %v6658 = vpop.f32.mrb[0].mxu0
        %v6659 = vadd.f32 %v6423, %v6658
        %v6660 = vpop.f32.mrb[0].mxu0
        %v6661 = vpop.f32.mrb[0].mxu0
        %v6662 = vadd.f32 %v6426, %v6661
        %v6663 = vpop.f32.mrb[0].mxu0
        %6664 = vmatprep.mubr.bf16.mxu0 %v6306
        %6665 = vmatmul.mubr.bf16.gmra.mrb[0].mxu0 %v6143
        %v6666 = vpop.f32.mrb[0].mxu0
        %v6667 = vadd.f32 %v6431, %v6666
        %v6668 = vpop.f32.mrb[0].mxu0
        %v6669 = vpop.f32.mrb[0].mxu0
        %v6670 = vadd.f32 %v6434, %v6669
        %v6671 = vpop.f32.mrb[0].mxu0
        %6672 = vmatprep.mubr.bf16.mxu0 %v6309
        %6673 = vmatmul.mubr.bf16.gmra.mrb[0].mxu0 %v6145
        %v6674 = vpop.f32.mrb[0].mxu0
        %v6675 = vadd.f32 %v6439, %v6674
        %v6676 = vpop.f32.mrb[0].mxu0
        %v6677 = vpop.f32.mrb[0].mxu0
        %v6678 = vadd.f32 %v6442, %v6677
        %v6679 = vpop.f32.mrb[0].mxu0
        %6680 = vmatprep.mubr.bf16.mxu0 %v6312
        %6681 = vmatmul.mubr.bf16.gmra.mrb[0].mxu0 %v6147
        %v6682 = vpop.f32.mrb[0].mxu0
        %v6683 = vadd.f32 %v6447, %v6682
        %v6684 = vpop.f32.mrb[0].mxu0
        %v6685 = vpop.f32.mrb[0].mxu0
        %v6686 = vadd.f32 %v6450, %v6685
        %v6687 = vpop.f32.mrb[0].mxu0
        %6688 = vmatprep.mubr.bf16.mxu0 %v6315
        %6689 = vmatmul.mubr.bf16.gmra.mrb[0].mxu0 %v6149
        %v6690 = vpop.f32.mrb[0].mxu0
        %v6691 = vadd.f32 %v6455, %v6690
        %v6692 = vpop.f32.mrb[0].mxu0
        %v6693 = vpop.f32.mrb[0].mxu0
        %v6694 = vadd.f32 %v6458, %v6693
        %v6695 = vpop.f32.mrb[0].mxu0
        %6696 = vmatprep.mubr.bf16.mxu0 %v6318
        %6697 = vmatmul.mubr.bf16.gmra.mrb[0].mxu0 %v6151
        %v6698 = vpop.f32.mrb[0].mxu0
        %v6699 = vadd.f32 %v6463, %v6698
        %v6700 = vpop.f32.mrb[0].mxu0
        %v6701 = vpop.f32.mrb[0].mxu0
        %v6702 = vadd.f32 %v6466, %v6701
        %v6703 = vpop.f32.mrb[0].mxu0
        %6704 = vmatprep.mubr.bf16.mxu0 %v6321
        %6705 = vmatmul.mubr.bf16.gmra.mrb[0].mxu0 %v6153
        %v6706 = vpop.f32.mrb[0].mxu0
        %v6707 = vadd.f32 %v6471, %v6706
        %v6708 = vpop.f32.mrb[0].mxu0
        %v6709 = vpop.f32.mrb[0].mxu0
        %v6710 = vadd.f32 %v6474, %v6709
        %v6711 = vpop.f32.mrb[0].mxu0
        %6712 = vmatprep.mubr.bf16.mxu0 %v6324
        %6713 = vmatmul.mubr.bf16.gmra.mrb[0].mxu0 %v6155
        %v6714 = vpop.f32.mrb[0].mxu0
        %v6715 = vadd.f32 %v6479, %v6714
        %v6716 = vpop.f32.mrb[0].mxu0
        %v6717 = vpop.f32.mrb[0].mxu0
        %v6718 = vadd.f32 %v6482, %v6717
        %v6719 = vpop.f32.mrb[0].mxu0
        %6720 = vmatprep.mubr.bf16.mxu0 %v6327
        %6721 = vmatmul.mubr.bf16.gmra.mrb[0].mxu0 %v6157
        %v6722 = vpop.f32.mrb[0].mxu0
        %v6723 = vadd.f32 %v6487, %v6722
        %v6724 = vpop.f32.mrb[0].mxu0
        %v6725 = vpop.f32.mrb[0].mxu0
        %v6726 = vadd.f32 %v6490, %v6725
        %v6727 = vpop.f32.mrb[0].mxu0
        %6728 = vdwg.mxu0
        %s6729 = scalar_lea.vmem [#allocation19], 192
        %v6730 = vld [vmem:[%s6729] sm:$0xf]
        %v6731 = vld [vmem:[%s6729 + $0x4] sm:$0xf]
        %v6732 = vld [vmem:[%s6729 + $0x8] sm:$0xf]
        %v6733 = vld [vmem:[%s6729 + $0xc] sm:$0xf]
        %v6734 = vld [vmem:[%s6729 + $0x10] sm:$0xf]
        %v6735 = vld [vmem:[%s6729 + $0x14] sm:$0xf]
        %v6736 = vld [vmem:[%s6729 + $0x18] sm:$0xf]
        %v6737 = vld [vmem:[%s6729 + $0x1c] sm:$0xf]
        %v6738 = vld [vmem:[%s6729 + $0x20] sm:$0xf]
        %v6739 = vld [vmem:[%s6729 + $0x24] sm:$0xf]
        %v6740 = vld [vmem:[%s6729 + $0x28] sm:$0xf]
        %v6741 = vld [vmem:[%s6729 + $0x2c] sm:$0xf]
        %v6742 = vld [vmem:[%s6729 + $0x30] sm:$0xf]
        %v6743 = vld [vmem:[%s6729 + $0x34] sm:$0xf]
        %v6744 = vld [vmem:[%s6729 + $0x38] sm:$0xf]
        %v6745 = vld [vmem:[%s6729 + $0x3c] sm:$0xf]
        %v6746 = vld [vmem:[%s6729 + $0x40] sm:$0xf]
        %v6747 = vld [vmem:[%s6729 + $0x44] sm:$0xf]
        %v6748 = vld [vmem:[%s6729 + $0x48] sm:$0xf]
        %v6749 = vld [vmem:[%s6729 + $0x4c] sm:$0xf]
        %v6750 = vld [vmem:[%s6729 + $0x50] sm:$0xf]
        %v6751 = vld [vmem:[%s6729 + $0x54] sm:$0xf]
        %v6752 = vld [vmem:[%s6729 + $0x58] sm:$0xf]
        %v6753 = vld [vmem:[%s6729 + $0x5c] sm:$0xf]
        %v6778 = vunpack.c.l.b16 %v6730
        %v6779 = vunpack.c.l.b16 %v6731
        %v6780 = vunpack.c.l.b16 %v6732
        %v6781 = vunpack.c.l.b16 %v6733
        %v6782 = vunpack.c.l.b16 %v6734
        %v6783 = vunpack.c.l.b16 %v6735
        %v6784 = vunpack.c.l.b16 %v6736
        %v6785 = vunpack.c.l.b16 %v6737
        %v6786 = vunpack.c.l.b16 %v6738
        %v6787 = vunpack.c.l.b16 %v6739
        %v6788 = vunpack.c.l.b16 %v6740
        %v6789 = vunpack.c.l.b16 %v6741
        %v6790 = vunpack.c.l.b16 %v6742
        %v6791 = vunpack.c.l.b16 %v6743
        %v6792 = vunpack.c.l.b16 %v6744
        %v6793 = vunpack.c.l.b16 %v6745
        %v6794 = vunpack.c.l.b16 %v6746
        %v6795 = vunpack.c.l.b16 %v6747
        %v6796 = vunpack.c.l.b16 %v6748
        %v6797 = vunpack.c.l.b16 %v6749
        %v6798 = vunpack.c.l.b16 %v6750
        %v6799 = vunpack.c.l.b16 %v6751
        %v6800 = vunpack.c.l.b16 %v6752
        %v6801 = vunpack.c.l.b16 %v6753
        %v6802 = vpack.c.b16 %v6779, %v6778
        %v6803 = vpack.c.b16 %v6781, %v6780
        %v6804 = vpack.c.b16 %v6783, %v6782
        %v6805 = vpack.c.b16 %v6785, %v6784
        %v6806 = vpack.c.b16 %v6787, %v6786
        %v6807 = vpack.c.b16 %v6789, %v6788
        %v6808 = vpack.c.b16 %v6791, %v6790
        %v6809 = vpack.c.b16 %v6793, %v6792
        %v6810 = vpack.c.b16 %v6795, %v6794
        %v6811 = vpack.c.b16 %v6797, %v6796
        %v6812 = vpack.c.b16 %v6799, %v6798
        %v6813 = vpack.c.b16 %v6801, %v6800
        %v6827 = vsel %vm541, %v6162, 0
        %6829 = vmatprep.subr.bf16.mxu0 0
        %6830 = vmatpush1.bf16.msra.mxu0 %v6802
        %6831 = vmatprep.subr.bf16.mxu0 0
        %6832 = vmatpush1.bf16.msra.mxu0 %v6803
        %6833 = vmatprep.subr.bf16.mxu0 0
        %6834 = vmatpush1.bf16.msra.mxu0 %v6804
        %6835 = vmatprep.subr.bf16.mxu0 0
        %6836 = vmatpush1.bf16.msra.mxu0 %v6805
        %6837 = vmatprep.subr.bf16.mxu0 0
        %6838 = vmatpush1.bf16.msra.mxu0 %v6806
        %6839 = vmatprep.subr.bf16.mxu0 0
        %6840 = vmatpush1.bf16.msra.mxu0 %v6807
        %6841 = vmatprep.subr.bf16.mxu0 0
        %6842 = vmatpush1.bf16.msra.mxu0 %v6808
        %6843 = vmatprep.subr.bf16.mxu0 0
        %6844 = vmatpush1.bf16.msra.mxu0 %v6809
        %6845 = vmatprep.subr.bf16.mxu0 0
        %6846 = vmatpush1.bf16.msra.mxu0 %v6810
        %6847 = vmatprep.subr.bf16.mxu0 0
        %6848 = vmatpush1.bf16.msra.mxu0 %v6811
        %6849 = vmatprep.subr.bf16.mxu0 0
        %6850 = vmatpush1.bf16.msra.mxu0 %v6812
        %6851 = vmatprep.subr.bf16.mxu0 0
        %6852 = vmatpush1.bf16.msra.mxu0 %v6813
        %6853 = vmatprep.subr.bf16.mxu0 0
        %6854 = vmatpush1.bf16.msra.mxu0 0
        %6855 = vmatprep.subr.bf16.mxu0 0
        %6856 = vmatpush1.bf16.msra.mxu0 0
        %6857 = vmatprep.subr.bf16.mxu0 0
        %6858 = vmatpush1.bf16.msra.mxu0 0
        %6859 = vmatprep.subr.bf16.mxu0 0
        %6860 = vmatpush1.bf16.msra.mxu0 0
        %6861 = vmatprep.mubr.bf16.mxu0 %v6288
        %6862 = vmatmul.mubr.bf16.gmra.mrb[0].mxu0 %v6131
        %v6863 = vpop.f32.mrb[0].mxu0
        %v6864 = vadd.f32 0.0, %v6863
        %v6865 = vpop.f32.mrb[0].mxu0
        %v6866 = vpop.f32.mrb[0].mxu0
        %v6867 = vadd.f32 0.0, %v6866
        %v6868 = vpop.f32.mrb[0].mxu0
        %6869 = vmatprep.mubr.bf16.mxu0 %v6291
        %6870 = vmatmul.mubr.bf16.gmra.mrb[0].mxu0 %v6133
        %v6871 = vpop.f32.mrb[0].mxu0
        %v6872 = vadd.f32 0.0, %v6871
        %v6873 = vpop.f32.mrb[0].mxu0
        %v6874 = vpop.f32.mrb[0].mxu0
        %v6875 = vadd.f32 0.0, %v6874
        %v6876 = vpop.f32.mrb[0].mxu0
        %6877 = vmatprep.mubr.bf16.mxu0 %v6294
        %6878 = vmatmul.mubr.bf16.gmra.mrb[0].mxu0 %v6135
        %v6879 = vpop.f32.mrb[0].mxu0
        %v6880 = vadd.f32 0.0, %v6879
        %v6881 = vpop.f32.mrb[0].mxu0
        %v6882 = vpop.f32.mrb[0].mxu0
        %v6883 = vadd.f32 0.0, %v6882
        %v6884 = vpop.f32.mrb[0].mxu0
        %6885 = vmatprep.mubr.bf16.mxu0 %v6297
        %6886 = vmatmul.mubr.bf16.gmra.mrb[0].mxu0 %v6137
        %v6887 = vpop.f32.mrb[0].mxu0
        %v6888 = vadd.f32 0.0, %v6887
        %v6889 = vpop.f32.mrb[0].mxu0
        %v6890 = vpop.f32.mrb[0].mxu0
        %v6891 = vadd.f32 0.0, %v6890
        %v6892 = vpop.f32.mrb[0].mxu0
        %6893 = vmatprep.mubr.bf16.mxu0 %v6300
        %6894 = vmatmul.mubr.bf16.gmra.mrb[0].mxu0 %v6139
        %v6895 = vpop.f32.mrb[0].mxu0
        %v6896 = vadd.f32 0.0, %v6895
        %v6897 = vpop.f32.mrb[0].mxu0
        %v6898 = vpop.f32.mrb[0].mxu0
        %v6899 = vadd.f32 0.0, %v6898
        %v6900 = vpop.f32.mrb[0].mxu0
        %6901 = vmatprep.mubr.bf16.mxu0 %v6303
        %6902 = vmatmul.mubr.bf16.gmra.mrb[0].mxu0 %v6141
        %v6903 = vpop.f32.mrb[0].mxu0
        %v6904 = vadd.f32 0.0, %v6903
        %v6905 = vpop.f32.mrb[0].mxu0
        %v6906 = vpop.f32.mrb[0].mxu0
        %v6907 = vadd.f32 0.0, %v6906
        %v6908 = vpop.f32.mrb[0].mxu0
        %6909 = vmatprep.mubr.bf16.mxu0 %v6306
        %6910 = vmatmul.mubr.bf16.gmra.mrb[0].mxu0 %v6143
        %v6911 = vpop.f32.mrb[0].mxu0
        %v6912 = vadd.f32 0.0, %v6911
        %v6913 = vpop.f32.mrb[0].mxu0
        %v6914 = vpop.f32.mrb[0].mxu0
        %v6915 = vadd.f32 0.0, %v6914
        %v6916 = vpop.f32.mrb[0].mxu0
        %6917 = vmatprep.mubr.bf16.mxu0 %v6309
        %6918 = vmatmul.mubr.bf16.gmra.mrb[0].mxu0 %v6145
        %v6919 = vpop.f32.mrb[0].mxu0
        %v6920 = vadd.f32 0.0, %v6919
        %v6921 = vpop.f32.mrb[0].mxu0
        %v6922 = vpop.f32.mrb[0].mxu0
        %v6923 = vadd.f32 0.0, %v6922
        %v6924 = vpop.f32.mrb[0].mxu0
        %6925 = vmatprep.mubr.bf16.mxu0 %v6312
        %6926 = vmatmul.mubr.bf16.gmra.mrb[0].mxu0 %v6147
        %v6927 = vpop.f32.mrb[0].mxu0
        %v6928 = vadd.f32 0.0, %v6927
        %v6929 = vpop.f32.mrb[0].mxu0
        %v6930 = vpop.f32.mrb[0].mxu0
        %v6931 = vadd.f32 0.0, %v6930
        %v6932 = vpop.f32.mrb[0].mxu0
        %6933 = vmatprep.mubr.bf16.mxu0 %v6315
        %6934 = vmatmul.mubr.bf16.gmra.mrb[0].mxu0 %v6149
        %v6935 = vpop.f32.mrb[0].mxu0
        %v6936 = vadd.f32 0.0, %v6935
        %v6937 = vpop.f32.mrb[0].mxu0
        %v6938 = vpop.f32.mrb[0].mxu0
        %v6939 = vadd.f32 0.0, %v6938
        %v6940 = vpop.f32.mrb[0].mxu0
        %6941 = vmatprep.mubr.bf16.mxu0 %v6318
        %6942 = vmatmul.mubr.bf16.gmra.mrb[0].mxu0 %v6151
        %v6943 = vpop.f32.mrb[0].mxu0
        %v6944 = vadd.f32 0.0, %v6943
        %v6945 = vpop.f32.mrb[0].mxu0
        %v6946 = vpop.f32.mrb[0].mxu0
        %v6947 = vadd.f32 0.0, %v6946
        %v6948 = vpop.f32.mrb[0].mxu0
        %6949 = vmatprep.mubr.bf16.mxu0 %v6321
        %6950 = vmatmul.mubr.bf16.gmra.mrb[0].mxu0 %v6153
        %v6951 = vpop.f32.mrb[0].mxu0
        %v6952 = vadd.f32 0.0, %v6951
        %v6953 = vpop.f32.mrb[0].mxu0
        %v6954 = vpop.f32.mrb[0].mxu0
        %v6955 = vadd.f32 0.0, %v6954
        %v6956 = vpop.f32.mrb[0].mxu0
        %6957 = vmatprep.mubr.bf16.mxu0 %v6324
        %6958 = vmatmul.mubr.bf16.gmra.mrb[0].mxu0 %v6155
        %v6959 = vpop.f32.mrb[0].mxu0
        %v6960 = vadd.f32 0.0, %v6959
        %v6961 = vpop.f32.mrb[0].mxu0
        %v6962 = vpop.f32.mrb[0].mxu0
        %v6963 = vadd.f32 0.0, %v6962
        %v6964 = vpop.f32.mrb[0].mxu0
        %6965 = vmatprep.mubr.bf16.mxu0 %v6327
        %6966 = vmatmul.mubr.bf16.gmra.mrb[0].mxu0 %v6157
        %v6967 = vpop.f32.mrb[0].mxu0
        %v6968 = vadd.f32 0.0, %v6967
        %v6969 = vpop.f32.mrb[0].mxu0
        %v6970 = vpop.f32.mrb[0].mxu0
        %v6971 = vadd.f32 0.0, %v6970
        %v6972 = vpop.f32.mrb[0].mxu0
        %6973 = vmatprep.mubr.bf16.mxu0 %v6330
        %6974 = vmatmul.mubr.bf16.gmra.mrb[0].mxu0 %v6159
        %v6975 = vpop.f32.mrb[0].mxu0
        %v6976 = vadd.f32 0.0, %v6975
        %v6977 = vpop.f32.mrb[0].mxu0
        %v6978 = vpop.f32.mrb[0].mxu0
        %v6979 = vadd.f32 0.0, %v6978
        %v6980 = vpop.f32.mrb[0].mxu0
        %6981 = vmatprep.mubr.bf16.mxu0 %v6827
        %6982 = vmatmul.mubr.bf16.gmra.mrb[0].mxu0 %v6161
        %v6983 = vpop.f32.mrb[0].mxu0
        %v6984 = vadd.f32 0.0, %v6983
        %v6985 = vpop.f32.mrb[0].mxu0
        %v6986 = vpop.f32.mrb[0].mxu0
        %v6987 = vadd.f32 0.0, %v6986
        %v6988 = vpop.f32.mrb[0].mxu0
        %6989 = vdwg.mxu0
        %v6990 = vadd.f32 %v6603, %v6864
        %v6991 = vadd.f32 %v6606, %v6867
        %v6992 = vadd.f32 %v6611, %v6872
        %v6993 = vadd.f32 %v6614, %v6875
        %v6994 = vadd.f32 %v6619, %v6880
        %v6995 = vadd.f32 %v6622, %v6883
        %v6996 = vadd.f32 %v6627, %v6888
        %v6997 = vadd.f32 %v6630, %v6891
        %v6998 = vadd.f32 %v6635, %v6896
        %v6999 = vadd.f32 %v6638, %v6899
        %v7000 = vadd.f32 %v6643, %v6904
        %v7001 = vadd.f32 %v6646, %v6907
        %v7002 = vadd.f32 %v6651, %v6912
        %v7003 = vadd.f32 %v6654, %v6915
        %v7004 = vadd.f32 %v6659, %v6920
        %v7005 = vadd.f32 %v6662, %v6923
        %v7006 = vadd.f32 %v6667, %v6928
        %v7007 = vadd.f32 %v6670, %v6931
        %v7008 = vadd.f32 %v6675, %v6936
        %v7009 = vadd.f32 %v6678, %v6939
        %v7010 = vadd.f32 %v6683, %v6944
        %v7011 = vadd.f32 %v6686, %v6947
        %v7012 = vadd.f32 %v6691, %v6952
        %v7013 = vadd.f32 %v6694, %v6955
        %v7014 = vadd.f32 %v6699, %v6960
        %v7015 = vadd.f32 %v6702, %v6963
        %v7016 = vadd.f32 %v6707, %v6968
        %v7017 = vadd.f32 %v6710, %v6971
        %v7018 = vadd.f32 %v6715, %v6976
        %v7019 = vadd.f32 %v6718, %v6979
        %v7020 = vadd.f32 %v6723, %v6984
        %v7021 = vadd.f32 %v6726, %v6987
        %v7022 = vld [vmem:[#allocation21] sm:$0x1]
        %v7024 = vlaneseq
        %v7025 = vshrl.u32 %v7024, 7
        %v7026 = vsub.s32 0, %v7025
        %v7027 = vrot.slane %v7022, %v7026
        %v7029 = vadd.f32 %v6990, %v7027
        %v7030 = vadd.f32 %v6991, %v7027
        %v7031 = vadd.f32 %v6992, %v7027
        %v7032 = vadd.f32 %v6993, %v7027
        %v7033 = vadd.f32 %v6994, %v7027
        %v7034 = vadd.f32 %v6995, %v7027
        %v7035 = vadd.f32 %v6996, %v7027
        %v7036 = vadd.f32 %v6997, %v7027
        %v7037 = vadd.f32 %v6998, %v7027
        %v7038 = vadd.f32 %v6999, %v7027
        %v7039 = vadd.f32 %v7000, %v7027
        %v7040 = vadd.f32 %v7001, %v7027
        %v7041 = vadd.f32 %v7002, %v7027
        %v7042 = vadd.f32 %v7003, %v7027
        %v7043 = vadd.f32 %v7004, %v7027
        %v7044 = vadd.f32 %v7005, %v7027
        %v7045 = vadd.f32 %v7006, %v7027
        %v7046 = vadd.f32 %v7007, %v7027
        %v7047 = vadd.f32 %v7008, %v7027
        %v7048 = vadd.f32 %v7009, %v7027
        %v7049 = vadd.f32 %v7010, %v7027
        %v7050 = vadd.f32 %v7011, %v7027
        %v7051 = vadd.f32 %v7012, %v7027
        %v7052 = vadd.f32 %v7013, %v7027
        %v7053 = vadd.f32 %v7014, %v7027
        %v7054 = vadd.f32 %v7015, %v7027
        %v7055 = vadd.f32 %v7016, %v7027
        %v7056 = vadd.f32 %v7017, %v7027
        %v7057 = vadd.f32 %v7018, %v7027
        %v7058 = vadd.f32 %v7019, %v7027
        %v7059 = vadd.f32 %v7020, %v7027
        %v7060 = vadd.f32 %v7021, %v7027
        %v7061 = vadd.f32 %v629, %v7029
        %v7062 = vadd.f32 %v630, %v7030
        %v7063 = vadd.f32 %v631, %v7031
        %v7064 = vadd.f32 %v632, %v7032
        %v7065 = vadd.f32 %v633, %v7033
        %v7066 = vadd.f32 %v634, %v7034
        %v7067 = vadd.f32 %v635, %v7035
        %v7068 = vadd.f32 %v636, %v7036
        %v7069 = vadd.f32 %v637, %v7037
        %v7070 = vadd.f32 %v638, %v7038
        %v7071 = vadd.f32 %v639, %v7039
        %v7072 = vadd.f32 %v640, %v7040
        %v7073 = vadd.f32 %v641, %v7041
        %v7074 = vadd.f32 %v642, %v7042
        %v7075 = vadd.f32 %v643, %v7043
        %v7076 = vadd.f32 %v644, %v7044
        %v7077 = vadd.f32 %v645, %v7045
        %v7078 = vadd.f32 %v646, %v7046
        %v7079 = vadd.f32 %v647, %v7047
        %v7080 = vadd.f32 %v648, %v7048
        %v7081 = vadd.f32 %v649, %v7049
        %v7082 = vadd.f32 %v650, %v7050
        %v7083 = vadd.f32 %v651, %v7051
        %v7084 = vadd.f32 %v652, %v7052
        %v7085 = vadd.f32 %v653, %v7053
        %v7086 = vadd.f32 %v654, %v7054
        %v7087 = vadd.f32 %v655, %v7055
        %v7088 = vadd.f32 %v656, %v7056
        %v7089 = vadd.f32 %v657, %v7057
        %v7090 = vadd.f32 %v658, %v7058
        %v7091 = vadd.f32 %v659, %v7059
        %v7092 = vadd.f32 %v660, %v7060
        %vm7093 = vcmask 252928
        %7094 = vst.msk [vmem:[%s539] sm:$0xff] %vm7093, %v7061
        %7095 = vst.msk [vmem:[%s539 + $0x8] sm:$0xff] %vm7093, %v7062
        %7096 = vst.msk [vmem:[%s539 + $0x10] sm:$0xff] %vm7093, %v7063
        %7097 = vst.msk [vmem:[%s539 + $0x18] sm:$0xff] %vm7093, %v7064
        %7098 = vst.msk [vmem:[%s539 + $0x20] sm:$0xff] %vm7093, %v7065
        %7099 = vst.msk [vmem:[%s539 + $0x28] sm:$0xff] %vm7093, %v7066
        %7100 = vst.msk [vmem:[%s539 + $0x30] sm:$0xff] %vm7093, %v7067
        %7101 = vst.msk [vmem:[%s539 + $0x38] sm:$0xff] %vm7093, %v7068
        %7102 = vst.msk [vmem:[%s539 + $0x40] sm:$0xff] %vm7093, %v7069
        %7103 = vst.msk [vmem:[%s539 + $0x48] sm:$0xff] %vm7093, %v7070
        %7104 = vst.msk [vmem:[%s539 + $0x50] sm:$0xff] %vm7093, %v7071
        %7105 = vst.msk [vmem:[%s539 + $0x58] sm:$0xff] %vm7093, %v7072
        %7106 = vst.msk [vmem:[%s539 + $0x60] sm:$0xff] %vm7093, %v7073
        %7107 = vst.msk [vmem:[%s539 + $0x68] sm:$0xff] %vm7093, %v7074
        %7108 = vst.msk [vmem:[%s539 + $0x70] sm:$0xff] %vm7093, %v7075
        %7109 = vst.msk [vmem:[%s539 + $0x78] sm:$0xff] %vm7093, %v7076
        %7110 = vst.msk [vmem:[%s539 + $0x80] sm:$0xff] %vm7093, %v7077
        %7111 = vst.msk [vmem:[%s539 + $0x88] sm:$0xff] %vm7093, %v7078
        %7112 = vst.msk [vmem:[%s539 + $0x90] sm:$0xff] %vm7093, %v7079
        %7113 = vst.msk [vmem:[%s539 + $0x98] sm:$0xff] %vm7093, %v7080
        %7114 = vst.msk [vmem:[%s539 + $0xa0] sm:$0xff] %vm7093, %v7081
        %7115 = vst.msk [vmem:[%s539 + $0xa8] sm:$0xff] %vm7093, %v7082
        %7116 = vst.msk [vmem:[%s539 + $0xb0] sm:$0xff] %vm7093, %v7083
        %7117 = vst.msk [vmem:[%s539 + $0xb8] sm:$0xff] %vm7093, %v7084
        %7118 = vst.msk [vmem:[%s539 + $0xc0] sm:$0xff] %vm7093, %v7085
        %7119 = vst.msk [vmem:[%s539 + $0xc8] sm:$0xff] %vm7093, %v7086
        %7120 = vst.msk [vmem:[%s539 + $0xd0] sm:$0xff] %vm7093, %v7087
        %7121 = vst.msk [vmem:[%s539 + $0xd8] sm:$0xff] %vm7093, %v7088
        %7122 = vst.msk [vmem:[%s539 + $0xe0] sm:$0xff] %vm7093, %v7089
        %7123 = vst.msk [vmem:[%s539 + $0xe8] sm:$0xff] %vm7093, %v7090
        %7124 = vst.msk [vmem:[%s539 + $0xf0] sm:$0xff] %vm7093, %v7091
        %7125 = vst.msk [vmem:[%s539 + $0xf8] sm:$0xff] %vm7093, %v7092
        %s7126 = sand.u32 %s277, 1
        %s7127 = scalar_lea.sflag [#allocation6], %s7126
        %s7128 = sand.u32 %s277, 1
        %s7129 = smul.addr %s7128, 256
        %s7130 = scalar_lea.vmem [#allocation22], %s7129
        // Predicated region
        $region109: #{resblock_pallas.1} parent=63 // pred_check
          %p7131 = pneg %p287
        $region110: #{resblock_pallas.1} parent=63 // pred_check_branch
          %7133 = sbr.rel (%p7131) target = $region112
        $region111: #{resblock_pallas.1} parent=63 // pred_region
          %s7135 = ssub.s32 4096, 4096
          %7136 = vsyncadd %s7127, %s7135
          %s7137 = smul.addr %s33, 32
          %s7138 = smul.addr %s7137, 128
          %s7139 = scalar_lea.hbm %s11, %s7138
          %s7140 = sshll.u32 %s7130, 4
          %s7141 = int_to_ptr.vmem [resolvable:$true] %s7140
          %7146 = dma.vmem_to_hbm [thread:$0]  %s7141, 4096, %s7139, %s7127, 128, 128, 8
        $region112: #{resblock_pallas.1} parent=63 // pred_fallthru
          _
      $region64: #{resblock_pallas.1} parent=5 // pred_fallthru
        _
      %p7147 = scmp.le.s32.totalorder 2, %s28
      // Predicated region
      $region113: #{resblock_pallas.1} parent=5 // pred_check
        %p7148 = pneg %p7147
      $region114: #{resblock_pallas.1} parent=5 // pred_check_branch
        %7150 = sbr.rel (%p7148) target = $region116
      $region115: #{resblock_pallas.1} parent=5 // pred_region
        %s7151 = ssub.s32 %s28, 2
        // Predicated region
        $region117: #{resblock_pallas.1} parent=115 // pred_check
          %p7152 = pneg %p293
        $region118: #{resblock_pallas.1} parent=115 // pred_check_branch
          %7154 = sbr.rel (%p7152) target = $region120
        $region119: #{resblock_pallas.1} parent=115 // pred_region
          %s7155 = sand.u32 %s278, 1
          %s7156 = scalar_lea.sflag [#allocation6], %s7155
          %s7157 = sand.u32 %s278, 1
          %s7158 = smul.addr %s7157, 256
          %s7159 = scalar_lea.vmem [#allocation22], %s7158
          %7160 = dma.done %s7156, 4096
        $region120: #{resblock_pallas.1} parent=115 // pred_fallthru
          _
      $region116: #{resblock_pallas.1} parent=5 // pred_fallthru
        _
    $region6: #{resblock_pallas.1} parent=1 // loop_footer
      %s32 = sadd.s32 1, %s28
    $region7: #{resblock_pallas.1} parent=1 // loop_footer_branch
      %27 = sbr.rel target = $region3
    $region8: #{resblock_pallas.1} parent=1 // loop_exit
      _
    %7161 = vsyncpa [#allocation5], 1
    %s7162 = scalar_lea.sflag [#allocation5], 1
    %7163 = vsyncpa %s7162, 1
    %7164 = vsyncpa [#allocation8], 1
    %7165 = vsyncpa [#allocation11], 1
    %7166 = vsyncpa [#allocation14], 1
    %7167 = vsyncpa [#allocation17], 1
    %7168 = vsyncpa [#allocation20], 1
    %7169 = vsyncpa [#allocation6], 1
    %s7170 = scalar_lea.sflag [#allocation6], 1
    %7171 = vsyncpa %s7170, 1

</llo_original>
